<compile_context>
chip_gen: v7x
topology: tpu7x:2x2x1
jax: 0.10.0
libtpu: 0.0.40
codegen_flags: <defaults>
</compile_context>

<pallas_src>
import functools

import jax
import jax.numpy as jnp
from jax.experimental import pallas as pl
from jax.experimental.pallas import tpu as pltpu


def _lstm_cell(gates, m_t, h, c, H):
    """Apply LSTM gates. gates: (B, 4H) f32 (i,f,g,o order), m_t: (B,1)."""
    i = jax.nn.sigmoid(gates[:, 0 * H:1 * H])
    f = jax.nn.sigmoid(gates[:, 1 * H:2 * H])
    g = jnp.tanh(gates[:, 2 * H:3 * H])
    o = jax.nn.sigmoid(gates[:, 3 * H:4 * H])
    c_new = f * c + i * g
    h_new = o * jnp.tanh(c_new)
    keep = m_t > 0.0                      # padded steps keep previous state
    c_new = jnp.where(keep, c_new, c)
    h_new = jnp.where(keep, h_new, h)
    return h_new, c_new


def make_bilstm_kernel(n_parts, T, B, H):
    """Bidirectional masked LSTM kernel over `n_parts` un-concatenated inputs.

    Inputs (in order):
      x_k     : (T*B, D_k) bf16, k = 0..n_parts-1
      mask    : (T, B, 1)  f32
      wi_k    : (D_k, 8H)  bf16   [W_ih_fwd | W_ih_bwd] row-split of W_ih
      w_hh_f  : (H, 4H)    bf16
      w_hh_b  : (H, 4H)    bf16
      b       : (1, 8H)    f32    [b_fwd | b_bwd]  (b_ih + b_hh pre-summed)
    Output:
      out     : (T, B, 2H) bf16   fwd into [:, :, :H], bwd into [:, :, H:]
    Scratch:
      gin     : (T*B, 8H)  f32    precomputed input projection
      hf, cf, hb, cb : (B, H) f32
    """

    def kernel(*args):
        x_refs = args[0:n_parts]
        mask_ref = args[n_parts]
        wi_refs = args[n_parts + 1: 2 * n_parts + 1]
        whf_ref = args[2 * n_parts + 1]
        whb_ref = args[2 * n_parts + 2]
        b_ref = args[2 * n_parts + 3]
        out_ref = args[2 * n_parts + 4]
        gin_ref, hf, cf, hb, cb = args[2 * n_parts + 5:]

        # ---- hoisted input projection: one big MXU matmul for all t, both dirs
        acc = jnp.dot(x_refs[0][...], wi_refs[0][...],
                      preferred_element_type=jnp.float32)
        for k in range(1, n_parts):
            acc = acc + jnp.dot(x_refs[k][...], wi_refs[k][...],
                                preferred_element_type=jnp.float32)
        gin_ref[...] = acc + b_ref[...]          # bias folded in once

        hf[...] = jnp.zeros_like(hf)
        cf[...] = jnp.zeros_like(cf)
        hb[...] = jnp.zeros_like(hb)
        cb[...] = jnp.zeros_like(cb)

        @pl.loop(0, T)
        def _(t):
            tb = T - 1 - t
            # ---------------- forward direction ----------------
            m_t = mask_ref[t]                                   # (B, 1)
            row = pl.multiple_of(t * B, 8)
            gates_f = gin_ref[pl.ds(row, B), 0:4 * H] + jnp.dot(
                hf[...].astype(jnp.bfloat16), whf_ref[...],
                preferred_element_type=jnp.float32)
            hf_new, cf_new = _lstm_cell(gates_f, m_t, hf[...], cf[...], H)
            hf[...] = hf_new
            cf[...] = cf_new
            out_ref[t, :, 0:H] = jnp.where(m_t > 0.0, hf_new,
                                           0.0).astype(out_ref.dtype)
            # ---------------- backward direction ----------------
            m_b = mask_ref[tb]
            rowb = pl.multiple_of(tb * B, 8)
            gates_b = gin_ref[pl.ds(rowb, B), 4 * H:8 * H] + jnp.dot(
                hb[...].astype(jnp.bfloat16), whb_ref[...],
                preferred_element_type=jnp.float32)
            hb_new, cb_new = _lstm_cell(gates_b, m_b, hb[...], cb[...], H)
            hb[...] = hb_new
            cb[...] = cb_new
            out_ref[tb, :, H:2 * H] = jnp.where(m_b > 0.0, hb_new,
                                                0.0).astype(out_ref.dtype)

    return kernel


def bilstm(x_parts, mask_tm, p):
    """x_parts: list of (T, BP, D_k) bf16; mask_tm: (T, BP, 1) f32.

    Returns (T, BP, 2H) bf16 with fwd/bwd hidden states already concatenated.
    """
    T, BP, _ = x_parts[0].shape
    H = p["w_hh_f"].shape[0]
    n_parts = len(x_parts)
    x_flat = [x.reshape(T * BP, x.shape[-1]) for x in x_parts]
    vmem = pl.BlockSpec(memory_space=pltpu.MemorySpace.VMEM)
    kernel = make_bilstm_kernel(n_parts, T, BP, H)
    return pl.pallas_call(
        kernel,
        out_shape=jax.ShapeDtypeStruct((T, BP, 2 * H), jnp.bfloat16),
        in_specs=[vmem] * (2 * n_parts + 4),
        out_specs=vmem,
        scratch_shapes=[pltpu.VMEM((T * BP, 8 * H), jnp.float32)]
                       + [pltpu.VMEM((BP, H), jnp.float32)] * 4,
        compiler_params=pltpu.CompilerParams(
            vmem_limit_bytes=64 * 1024 * 1024),
    )(*x_flat, mask_tm, *p["wi_parts"], p["w_hh_f"], p["w_hh_b"], p["b"])


def pool_classify_kernel(q_ref, m_ref, w_ref, b_ref, out_ref, *, B):
    """replace_masked(-1e7) + max over time + [a,b,|a-b|,a*b] + single Linear."""
    neg = jnp.float32(-1.0e7)
    q = q_ref[...].astype(jnp.float32)                    # (T, BP, F)
    m = m_ref[...]                                        # (T, BP, 1)
    s = jnp.where(m > 0.0, q, neg)                        # replace_masked
    smax = jnp.max(s, axis=0)                             # (BP, F)
    max1 = smax[0:B]                                      # sentence 1
    max2 = smax[B:2 * B]                                  # sentence 2
    feats = jnp.concatenate(
        [max1, max2, jnp.abs(max1 - max2), max1 * max2], axis=-1)  # (B, 4F)
    out_ref[...] = (jnp.dot(feats, w_ref[...],
                            preferred_element_type=jnp.float32)
                    + b_ref[...])


def pool_classify(q, mask_tm, w_mlp, b_mlp, B):
    n_classes = w_mlp.shape[1]
    vmem = pl.BlockSpec(memory_space=pltpu.MemorySpace.VMEM)
    return pl.pallas_call(
        functools.partial(pool_classify_kernel, B=B),
        out_shape=jax.ShapeDtypeStruct((B, n_classes), jnp.float32),
        in_specs=[vmem] * 4,
        out_specs=vmem,
        compiler_params=pltpu.CompilerParams(
            vmem_limit_bytes=64 * 1024 * 1024),
    )(q, mask_tm, w_mlp, b_mlp)


def sse_forward(params, sentences1, sentences2, padding_idx):
    """sentences: int32 [B, T] token ids. Returns logits [B, n_classes]."""
    B, T = sentences1.shape
    m1 = (sentences1 != padding_idx).astype(jnp.float32)         # [B, T]
    m2 = (sentences2 != padding_idx).astype(jnp.float32)
    e1 = params["emb"][sentences1]                                # gather (glue)
    e2 = params["emb"][sentences2]

    # Fuse the two sentences along batch so each layer's weights are loaded
    # once, and pad the fused batch to a multiple of 8 sublanes.
    e = jnp.concatenate([e1, e2], axis=0)                         # (2B, T, E)
    m = jnp.concatenate([m1, m2], axis=0)                         # (2B, T)
    BP = ((2 * B + 7) // 8) * 8
    pad = BP - 2 * B
    if pad:
        e = jnp.pad(e, ((0, pad), (0, 0), (0, 0)))
        m = jnp.pad(m, ((0, pad), (0, 0)))

    # time-major, bf16 activations for the MXU
    e_tm = jnp.transpose(e, (1, 0, 2)).astype(jnp.bfloat16)       # (T, BP, E)
    m_tm = jnp.transpose(m)[:, :, None]                           # (T, BP, 1)

    # Shortcut stack; the concatenated inputs are never materialized —
    # each layer consumes the un-concatenated parts directly.
    o1 = bilstm([e_tm], m_tm, params["lstm1"])                    # (T, BP, 2H1)
    o2 = bilstm([e_tm, o1], m_tm, params["lstm2"])                # (T, BP, 2H2)
    q = bilstm([e_tm, o1, o2], m_tm, params["lstm3"])             # (T, BP, 2H3)

    # nn.Dropout in the MLP is identity at inference.
    return pool_classify(q, m_tm, params["w_mlp"], params["b_mlp"], B)


def _init_params(key, n_vocab, emb_dim, hidden, n_classes):
    keys = jax.random.split(key, 8)
    params = {"emb": jax.random.normal(keys[0], (n_vocab, emb_dim),
                                       jnp.float32) * 0.1}
    in_sizes = [emb_dim,
                emb_dim + 2 * hidden[0],
                emb_dim + 2 * hidden[0] + 2 * hidden[1]]
    part_splits = [
        [emb_dim],
        [emb_dim, 2 * hidden[0]],
        [emb_dim, 2 * hidden[0], 2 * hidden[1]],
    ]
    for li, (d, h) in enumerate(zip(in_sizes, hidden)):
        kk = jax.random.split(keys[1 + li], 6)
        w_ih_f = jax.random.normal(kk[0], (d, 4 * h), jnp.float32) * 0.1
        w_hh_f = jax.random.normal(kk[1], (h, 4 * h), jnp.float32) * 0.1
        b_f = jax.random.normal(kk[2], (1, 4 * h), jnp.float32) * 0.1  # b_ih+b_hh summed
        w_ih_b = jax.random.normal(kk[3], (d, 4 * h), jnp.float32) * 0.1
        w_hh_b = jax.random.normal(kk[4], (h, 4 * h), jnp.float32) * 0.1
        b_b = jax.random.normal(kk[5], (1, 4 * h), jnp.float32) * 0.1
        w_ih = jnp.concatenate([w_ih_f, w_ih_b], axis=1)           # (d, 8h)
        parts, off = [], 0
        for dk in part_splits[li]:
            parts.append(w_ih[off:off + dk].astype(jnp.bfloat16))
            off += dk
        params[f"lstm{li + 1}"] = dict(
            wi_parts=tuple(parts),
            w_hh_f=w_hh_f.astype(jnp.bfloat16),
            w_hh_b=w_hh_b.astype(jnp.bfloat16),
            b=jnp.concatenate([b_f, b_b], axis=1),                 # (1, 8h) f32
        )
    feat = 2 * hidden[2]
    params["w_mlp"] = jax.random.normal(keys[5], (4 * feat, n_classes),
                                        jnp.float32) * 0.05
    params["b_mlp"] = jax.random.normal(keys[6], (1, n_classes),
                                        jnp.float32) * 0.05
    return params


if __name__ == "__main__":
    B, T = 2, 8
    n_vocab, emb_dim = 50, 128
    hidden = [128, 128, 128]       # lane-aligned small stand-ins for [256, 512, 1024]
    n_classes = 3
    padding_idx = 0

    key = jax.random.PRNGKey(0)
    k_par, k_s1, k_s2 = jax.random.split(key, 3)
    params = _init_params(k_par, n_vocab, emb_dim, hidden, n_classes)

    # token ids in [1, n_vocab); pad the tails to exercise the length masking
    s1 = jax.random.randint(k_s1, (B, T), 1, n_vocab)
    s2 = jax.random.randint(k_s2, (B, T), 1, n_vocab)
    lens1 = jnp.array([T, 5])
    lens2 = jnp.array([6, T])
    pos = jnp.arange(T)[None, :]
    s1 = jnp.where(pos < lens1[:, None], s1, padding_idx).astype(jnp.int32)
    s2 = jnp.where(pos < lens2[:, None], s2, padding_idx).astype(jnp.int32)

    fwd = jax.jit(functools.partial(sse_forward, padding_idx=padding_idx))
    logits = fwd(params, s1, s2)
    jax.block_until_ready(logits)
    assert logits.shape == (B, n_classes)
    assert bool(jnp.all(jnp.isfinite(logits)))
    print("KERNEL_OK")
</pallas_src>

<mosaic_0001>
module attributes {stable_mosaic.version = 11 : i64} {
  func.func @kernel(%arg0: memref<64x128xbf16, #tpu.memory_space<vmem>>, %arg1: memref<8x8x1xf32, #tpu.memory_space<vmem>>, %arg2: memref<128x1024xbf16, #tpu.memory_space<vmem>>, %arg3: memref<128x512xbf16, #tpu.memory_space<vmem>>, %arg4: memref<128x512xbf16, #tpu.memory_space<vmem>>, %arg5: memref<1x1024xf32, #tpu.memory_space<vmem>>, %arg6: memref<8x8x256xbf16, #tpu.memory_space<vmem>>, %arg7: memref<64x1024xf32, #tpu.memory_space<vmem>>, %arg8: memref<8x128xf32, #tpu.memory_space<vmem>>, %arg9: memref<8x128xf32, #tpu.memory_space<vmem>>, %arg10: memref<8x128xf32, #tpu.memory_space<vmem>>, %arg11: memref<8x128xf32, #tpu.memory_space<vmem>>) attributes {dimension_semantics = [], scalar_prefetch = 0 : i64, scratch_operands = 5 : i64, tpu.core_type = #tpu.core_type<tc>} {
    %c0 = arith.constant 0 : index
    %c0_0 = arith.constant 0 : index
    %0 = vector.load %arg0[%c0, %c0_0] : memref<64x128xbf16, #tpu.memory_space<vmem>>, vector<64x128xbf16>
    %c0_1 = arith.constant 0 : index
    %c0_2 = arith.constant 0 : index
    %1 = vector.load %arg2[%c0_1, %c0_2] : memref<128x1024xbf16, #tpu.memory_space<vmem>>, vector<128x1024xbf16>
    %cst = arith.constant dense<0.000000e+00> : vector<64x1024xf32>
    %2 = tpu.matmul %0, %1, %cst {dimension_numbers = #tpu.dot_dimension_numbers<[1], [0], [0], [1], [0, 0, 1, 1], [], []>} : vector<64x128xbf16>, vector<128x1024xbf16>, vector<64x1024xf32> -> vector<64x1024xf32>
    %c0_3 = arith.constant 0 : index
    %c0_4 = arith.constant 0 : index
    %3 = vector.load %arg5[%c0_3, %c0_4] : memref<1x1024xf32, #tpu.memory_space<vmem>>, vector<1x1024xf32>
    %4 = vector.broadcast %3 : vector<1x1024xf32> to vector<64x1024xf32>
    %5 = arith.addf %2, %4 : vector<64x1024xf32>
    %c0_5 = arith.constant 0 : index
    %c0_6 = arith.constant 0 : index
    %6 = vector.load %arg7[%c0_5, %c0_6] : memref<64x1024xf32, #tpu.memory_space<vmem>>, vector<64x1024xf32>
    tpu.vector_store %arg7[%c0_5, %c0_6], %5 {strides = array<i32>} : memref<64x1024xf32, #tpu.memory_space<vmem>>, vector<64x1024xf32>,
    %cst_7 = arith.constant 0.000000e+00 : f32
    %7 = vector.broadcast %cst_7 : f32 to vector<8x128xf32>
    %c0_8 = arith.constant 0 : index
    %c0_9 = arith.constant 0 : index
    %8 = vector.load %arg8[%c0_8, %c0_9] : memref<8x128xf32, #tpu.memory_space<vmem>>, vector<8x128xf32>
    tpu.vector_store %arg8[%c0_8, %c0_9], %7 {strides = array<i32>} : memref<8x128xf32, #tpu.memory_space<vmem>>, vector<8x128xf32>,
    %cst_10 = arith.constant 0.000000e+00 : f32
    %9 = vector.broadcast %cst_10 : f32 to vector<8x128xf32>
    %c0_11 = arith.constant 0 : index
    %c0_12 = arith.constant 0 : index
    %10 = vector.load %arg9[%c0_11, %c0_12] : memref<8x128xf32, #tpu.memory_space<vmem>>, vector<8x128xf32>
    tpu.vector_store %arg9[%c0_11, %c0_12], %9 {strides = array<i32>} : memref<8x128xf32, #tpu.memory_space<vmem>>, vector<8x128xf32>,
    %cst_13 = arith.constant 0.000000e+00 : f32
    %11 = vector.broadcast %cst_13 : f32 to vector<8x128xf32>
    %c0_14 = arith.constant 0 : index
    %c0_15 = arith.constant 0 : index
    %12 = vector.load %arg10[%c0_14, %c0_15] : memref<8x128xf32, #tpu.memory_space<vmem>>, vector<8x128xf32>
    tpu.vector_store %arg10[%c0_14, %c0_15], %11 {strides = array<i32>} : memref<8x128xf32, #tpu.memory_space<vmem>>, vector<8x128xf32>,
    %cst_16 = arith.constant 0.000000e+00 : f32
    %13 = vector.broadcast %cst_16 : f32 to vector<8x128xf32>
    %c0_17 = arith.constant 0 : index
    %c0_18 = arith.constant 0 : index
    %14 = vector.load %arg11[%c0_17, %c0_18] : memref<8x128xf32, #tpu.memory_space<vmem>>, vector<8x128xf32>
    tpu.vector_store %arg11[%c0_17, %c0_18], %13 {strides = array<i32>} : memref<8x128xf32, #tpu.memory_space<vmem>>, vector<8x128xf32>,
    %c0_i32 = arith.constant 0 : i32
    %c8_i32 = arith.constant 8 : i32
    %15 = arith.addi %c0_i32, %c8_i32 : i32
    %c1_i32 = arith.constant 1 : i32
    scf.for %arg12 = %c0_i32 to %15 step %c1_i32  : i32 {
      %c1_i32_20 = arith.constant 1 : i32
      %16 = arith.muli %arg12, %c1_i32_20 : i32
      %c0_i32_21 = arith.constant 0 : i32
      %17 = arith.addi %c0_i32_21, %16 : i32
      %c7_i32 = arith.constant 7 : i32
      %18 = arith.subi %c7_i32, %17 : i32
      %19 = arith.index_cast %17 : i32 to index
      %c0_22 = arith.constant 0 : index
      %c0_23 = arith.constant 0 : index
      %20 = vector.load %arg1[%19, %c0_22, %c0_23] : memref<8x8x1xf32, #tpu.memory_space<vmem>>, vector<1x8x1xf32>
      %21 = vector.shape_cast %20 : vector<1x8x1xf32> to vector<8x1xf32>
      %c8_i32_24 = arith.constant 8 : i32
      %22 = arith.muli %17, %c8_i32_24 : i32
      %23 = tpu.assume_multiple %22, 8 : i32
      %24 = arith.index_cast %23 : i32 to index
      %c0_25 = arith.constant 0 : index
      %25 = vector.load %arg7[%24, %c0_25] : memref<64x1024xf32, #tpu.memory_space<vmem>>, vector<8x512xf32>
      %c0_26 = arith.constant 0 : index
      %c0_27 = arith.constant 0 : index
      %26 = vector.load %arg8[%c0_26, %c0_27] : memref<8x128xf32, #tpu.memory_space<vmem>>, vector<8x128xf32>
      %27 = arith.truncf %26 : vector<8x128xf32> to vector<8x128xbf16>
      %c0_28 = arith.constant 0 : index
      %c0_29 = arith.constant 0 : index
      %28 = vector.load %arg3[%c0_28, %c0_29] : memref<128x512xbf16, #tpu.memory_space<vmem>>, vector<128x512xbf16>
      %cst_30 = arith.constant dense<0.000000e+00> : vector<8x512xf32>
      %29 = tpu.matmul %27, %28, %cst_30 {dimension_numbers = #tpu.dot_dimension_numbers<[1], [0], [0], [1], [0, 0, 1, 1], [], []>} : vector<8x128xbf16>, vector<128x512xbf16>, vector<8x512xf32> -> vector<8x512xf32>
      %30 = arith.addf %25, %29 : vector<8x512xf32>
      %c0_31 = arith.constant 0 : index
      %c0_32 = arith.constant 0 : index
      %31 = vector.load %arg8[%c0_31, %c0_32] : memref<8x128xf32, #tpu.memory_space<vmem>>, vector<8x128xf32>
      %c0_33 = arith.constant 0 : index
      %c0_34 = arith.constant 0 : index
      %32 = vector.load %arg9[%c0_33, %c0_34] : memref<8x128xf32, #tpu.memory_space<vmem>>, vector<8x128xf32>
      %33 = vector.extract_strided_slice %30 {offsets = [0, 0], sizes = [8, 128], strides = [1, 1]} : vector<8x512xf32> to vector<8x128xf32>
      %34 = arith.negf %33 : vector<8x128xf32>
      %35 = math.exp %34 : vector<8x128xf32>
      %cst_35 = arith.constant 1.000000e+00 : f32
      %36 = vector.broadcast %cst_35 : f32 to vector<8x128xf32>
      %37 = arith.addf %36, %35 : vector<8x128xf32>
      %38 = arith.divf %36, %37 : vector<8x128xf32>
      %39 = vector.extract_strided_slice %30 {offsets = [0, 128], sizes = [8, 128], strides = [1, 1]} : vector<8x512xf32> to vector<8x128xf32>
      %40 = arith.negf %39 : vector<8x128xf32>
      %41 = math.exp %40 : vector<8x128xf32>
      %cst_36 = arith.constant 1.000000e+00 : f32
      %42 = vector.broadcast %cst_36 : f32 to vector<8x128xf32>
      %43 = arith.addf %42, %41 : vector<8x128xf32>
      %44 = arith.divf %42, %43 : vector<8x128xf32>
      %45 = vector.extract_strided_slice %30 {offsets = [0, 256], sizes = [8, 128], strides = [1, 1]} : vector<8x512xf32> to vector<8x128xf32>
      %46 = math.tanh %45 : vector<8x128xf32>
      %47 = vector.extract_strided_slice %30 {offsets = [0, 384], sizes = [8, 128], strides = [1, 1]} : vector<8x512xf32> to vector<8x128xf32>
      %48 = arith.negf %47 : vector<8x128xf32>
      %49 = math.exp %48 : vector<8x128xf32>
      %cst_37 = arith.constant 1.000000e+00 : f32
      %50 = vector.broadcast %cst_37 : f32 to vector<8x128xf32>
      %51 = arith.addf %50, %49 : vector<8x128xf32>
      %52 = arith.divf %50, %51 : vector<8x128xf32>
      %53 = arith.mulf %44, %32 : vector<8x128xf32>
      %54 = arith.mulf %38, %46 : vector<8x128xf32>
      %55 = arith.addf %53, %54 : vector<8x128xf32>
      %56 = math.tanh %55 : vector<8x128xf32>
      %57 = arith.mulf %52, %56 : vector<8x128xf32>
      %cst_38 = arith.constant 0.000000e+00 : f32
      %58 = vector.broadcast %cst_38 : f32 to vector<8x1xf32>
      %59 = arith.cmpf ogt, %21, %58 : vector<8x1xf32>
      %60 = vector.shape_cast %59 : vector<8x1xi1> to vector<8x1xi1>
      %61 = vector.broadcast %60 : vector<8x1xi1> to vector<8x128xi1>
      %62 = arith.select %61, %55, %32 : vector<8x128xi1>, vector<8x128xf32>
      %63 = vector.shape_cast %59 : vector<8x1xi1> to vector<8x1xi1>
      %64 = vector.broadcast %63 : vector<8x1xi1> to vector<8x128xi1>
      %65 = arith.select %64, %57, %31 : vector<8x128xi1>, vector<8x128xf32>
      %c0_39 = arith.constant 0 : index
      %c0_40 = arith.constant 0 : index
      %66 = vector.load %arg8[%c0_39, %c0_40] : memref<8x128xf32, #tpu.memory_space<vmem>>, vector<8x128xf32>
      tpu.vector_store %arg8[%c0_39, %c0_40], %65 {strides = array<i32>} : memref<8x128xf32, #tpu.memory_space<vmem>>, vector<8x128xf32>,
      %c0_41 = arith.constant 0 : index
      %c0_42 = arith.constant 0 : index
      %67 = vector.load %arg9[%c0_41, %c0_42] : memref<8x128xf32, #tpu.memory_space<vmem>>, vector<8x128xf32>
      tpu.vector_store %arg9[%c0_41, %c0_42], %62 {strides = array<i32>} : memref<8x128xf32, #tpu.memory_space<vmem>>, vector<8x128xf32>,
      %cst_43 = arith.constant 0.000000e+00 : f32
      %68 = vector.broadcast %cst_43 : f32 to vector<8x1xf32>
      %69 = arith.cmpf ogt, %21, %68 : vector<8x1xf32>
      %cst_44 = arith.constant 0.000000e+00 : f32
      %70 = vector.shape_cast %69 : vector<8x1xi1> to vector<8x1xi1>
      %71 = vector.broadcast %70 : vector<8x1xi1> to vector<8x128xi1>
      %72 = vector.broadcast %cst_44 : f32 to vector<8x128xf32>
      %73 = arith.select %71, %65, %72 : vector<8x128xi1>, vector<8x128xf32>
      %74 = arith.truncf %73 : vector<8x128xf32> to vector<8x128xbf16>
      %75 = arith.index_cast %17 : i32 to index
      %c0_45 = arith.constant 0 : index
      %c0_46 = arith.constant 0 : index
      %76 = vector.load %arg6[%75, %c0_45, %c0_46] : memref<8x8x256xbf16, #tpu.memory_space<vmem>>, vector<1x8x128xbf16>
      %77 = vector.shape_cast %76 : vector<1x8x128xbf16> to vector<8x128xbf16>
      %78 = vector.shape_cast %74 : vector<8x128xbf16> to vector<1x8x128xbf16>
      tpu.vector_store %arg6[%75, %c0_45, %c0_46], %78 {strides = array<i32>} : memref<8x8x256xbf16, #tpu.memory_space<vmem>>, vector<1x8x128xbf16>,
      %79 = arith.index_cast %18 : i32 to index
      %c0_47 = arith.constant 0 : index
      %c0_48 = arith.constant 0 : index
      %80 = vector.load %arg1[%79, %c0_47, %c0_48] : memref<8x8x1xf32, #tpu.memory_space<vmem>>, vector<1x8x1xf32>
      %81 = vector.shape_cast %80 : vector<1x8x1xf32> to vector<8x1xf32>
      %c8_i32_49 = arith.constant 8 : i32
      %82 = arith.muli %18, %c8_i32_49 : i32
      %83 = tpu.assume_multiple %82, 8 : i32
      %84 = arith.index_cast %83 : i32 to index
      %c512 = arith.constant 512 : index
      %85 = vector.load %arg7[%84, %c512] : memref<64x1024xf32, #tpu.memory_space<vmem>>, vector<8x512xf32>
      %c0_50 = arith.constant 0 : index
      %c0_51 = arith.constant 0 : index
      %86 = vector.load %arg10[%c0_50, %c0_51] : memref<8x128xf32, #tpu.memory_space<vmem>>, vector<8x128xf32>
      %87 = arith.truncf %86 : vector<8x128xf32> to vector<8x128xbf16>
      %c0_52 = arith.constant 0 : index
      %c0_53 = arith.constant 0 : index
      %88 = vector.load %arg4[%c0_52, %c0_53] : memref<128x512xbf16, #tpu.memory_space<vmem>>, vector<128x512xbf16>
      %cst_54 = arith.constant dense<0.000000e+00> : vector<8x512xf32>
      %89 = tpu.matmul %87, %88, %cst_54 {dimension_numbers = #tpu.dot_dimension_numbers<[1], [0], [0], [1], [0, 0, 1, 1], [], []>} : vector<8x128xbf16>, vector<128x512xbf16>, vector<8x512xf32> -> vector<8x512xf32>
      %90 = arith.addf %85, %89 : vector<8x512xf32>
      %c0_55 = arith.constant 0 : index
      %c0_56 = arith.constant 0 : index
      %91 = vector.load %arg10[%c0_55, %c0_56] : memref<8x128xf32, #tpu.memory_space<vmem>>, vector<8x128xf32>
      %c0_57 = arith.constant 0 : index
      %c0_58 = arith.constant 0 : index
      %92 = vector.load %arg11[%c0_57, %c0_58] : memref<8x128xf32, #tpu.memory_space<vmem>>, vector<8x128xf32>
      %93 = vector.extract_strided_slice %90 {offsets = [0, 0], sizes = [8, 128], strides = [1, 1]} : vector<8x512xf32> to vector<8x128xf32>
      %94 = arith.negf %93 : vector<8x128xf32>
      %95 = math.exp %94 : vector<8x128xf32>
      %cst_59 = arith.constant 1.000000e+00 : f32
      %96 = vector.broadcast %cst_59 : f32 to vector<8x128xf32>
      %97 = arith.addf %96, %95 : vector<8x128xf32>
      %98 = arith.divf %96, %97 : vector<8x128xf32>
      %99 = vector.extract_strided_slice %90 {offsets = [0, 128], sizes = [8, 128], strides = [1, 1]} : vector<8x512xf32> to vector<8x128xf32>
      %100 = arith.negf %99 : vector<8x128xf32>
      %101 = math.exp %100 : vector<8x128xf32>
      %cst_60 = arith.constant 1.000000e+00 : f32
      %102 = vector.broadcast %cst_60 : f32 to vector<8x128xf32>
      %103 = arith.addf %102, %101 : vector<8x128xf32>
      %104 = arith.divf %102, %103 : vector<8x128xf32>
      %105 = vector.extract_strided_slice %90 {offsets = [0, 256], sizes = [8, 128], strides = [1, 1]} : vector<8x512xf32> to vector<8x128xf32>
      %106 = math.tanh %105 : vector<8x128xf32>
      %107 = vector.extract_strided_slice %90 {offsets = [0, 384], sizes = [8, 128], strides = [1, 1]} : vector<8x512xf32> to vector<8x128xf32>
      %108 = arith.negf %107 : vector<8x128xf32>
      %109 = math.exp %108 : vector<8x128xf32>
      %cst_61 = arith.constant 1.000000e+00 : f32
      %110 = vector.broadcast %cst_61 : f32 to vector<8x128xf32>
      %111 = arith.addf %110, %109 : vector<8x128xf32>
      %112 = arith.divf %110, %111 : vector<8x128xf32>
      %113 = arith.mulf %104, %92 : vector<8x128xf32>
      %114 = arith.mulf %98, %106 : vector<8x128xf32>
      %115 = arith.addf %113, %114 : vector<8x128xf32>
      %116 = math.tanh %115 : vector<8x128xf32>
      %117 = arith.mulf %112, %116 : vector<8x128xf32>
      %cst_62 = arith.constant 0.000000e+00 : f32
      %118 = vector.broadcast %cst_62 : f32 to vector<8x1xf32>
      %119 = arith.cmpf ogt, %81, %118 : vector<8x1xf32>
      %120 = vector.shape_cast %119 : vector<8x1xi1> to vector<8x1xi1>
      %121 = vector.broadcast %120 : vector<8x1xi1> to vector<8x128xi1>
      %122 = arith.select %121, %115, %92 : vector<8x128xi1>, vector<8x128xf32>
      %123 = vector.shape_cast %119 : vector<8x1xi1> to vector<8x1xi1>
      %124 = vector.broadcast %123 : vector<8x1xi1> to vector<8x128xi1>
      %125 = arith.select %124, %117, %91 : vector<8x128xi1>, vector<8x128xf32>
      %c0_63 = arith.constant 0 : index
      %c0_64 = arith.constant 0 : index
      %126 = vector.load %arg10[%c0_63, %c0_64] : memref<8x128xf32, #tpu.memory_space<vmem>>, vector<8x128xf32>
      tpu.vector_store %arg10[%c0_63, %c0_64], %125 {strides = array<i32>} : memref<8x128xf32, #tpu.memory_space<vmem>>, vector<8x128xf32>,
      %c0_65 = arith.constant 0 : index
      %c0_66 = arith.constant 0 : index
      %127 = vector.load %arg11[%c0_65, %c0_66] : memref<8x128xf32, #tpu.memory_space<vmem>>, vector<8x128xf32>
      tpu.vector_store %arg11[%c0_65, %c0_66], %122 {strides = array<i32>} : memref<8x128xf32, #tpu.memory_space<vmem>>, vector<8x128xf32>,
      %cst_67 = arith.constant 0.000000e+00 : f32
      %128 = vector.broadcast %cst_67 : f32 to vector<8x1xf32>
      %129 = arith.cmpf ogt, %81, %128 : vector<8x1xf32>
      %cst_68 = arith.constant 0.000000e+00 : f32
      %130 = vector.shape_cast %129 : vector<8x1xi1> to vector<8x1xi1>
      %131 = vector.broadcast %130 : vector<8x1xi1> to vector<8x128xi1>
      %132 = vector.broadcast %cst_68 : f32 to vector<8x128xf32>
      %133 = arith.select %131, %125, %132 : vector<8x128xi1>, vector<8x128xf32>
      %134 = arith.truncf %133 : vector<8x128xf32> to vector<8x128xbf16>
      %135 = arith.index_cast %18 : i32 to index
      %c0_69 = arith.constant 0 : index
      %c128 = arith.constant 128 : index
      %136 = vector.load %arg6[%135, %c0_69, %c128] : memref<8x8x256xbf16, #tpu.memory_space<vmem>>, vector<1x8x128xbf16>
      %137 = vector.shape_cast %136 : vector<1x8x128xbf16> to vector<8x128xbf16>
      %138 = vector.shape_cast %134 : vector<8x128xbf16> to vector<1x8x128xbf16>
      tpu.vector_store %arg6[%135, %c0_69, %c128], %138 {strides = array<i32>} : memref<8x8x256xbf16, #tpu.memory_space<vmem>>, vector<1x8x128xbf16>,
    }
    %c8_i32_19 = arith.constant 8 : i32
    return
  }
}

module attributes {stable_mosaic.version = 11 : i64} {
  func.func @kernel(%arg0: memref<64x128xbf16, #tpu.memory_space<vmem>>, %arg1: memref<64x256xbf16, #tpu.memory_space<vmem>>, %arg2: memref<64x256xbf16, #tpu.memory_space<vmem>>, %arg3: memref<8x8x1xf32, #tpu.memory_space<vmem>>, %arg4: memref<128x1024xbf16, #tpu.memory_space<vmem>>, %arg5: memref<256x1024xbf16, #tpu.memory_space<vmem>>, %arg6: memref<256x1024xbf16, #tpu.memory_space<vmem>>, %arg7: memref<128x512xbf16, #tpu.memory_space<vmem>>, %arg8: memref<128x512xbf16, #tpu.memory_space<vmem>>, %arg9: memref<1x1024xf32, #tpu.memory_space<vmem>>, %arg10: memref<8x8x256xbf16, #tpu.memory_space<vmem>>, %arg11: memref<64x1024xf32, #tpu.memory_space<vmem>>, %arg12: memref<8x128xf32, #tpu.memory_space<vmem>>, %arg13: memref<8x128xf32, #tpu.memory_space<vmem>>, %arg14: memref<8x128xf32, #tpu.memory_space<vmem>>, %arg15: memref<8x128xf32, #tpu.memory_space<vmem>>) attributes {dimension_semantics = [], scalar_prefetch = 0 : i64, scratch_operands = 5 : i64, tpu.core_type = #tpu.core_type<tc>} {
    %c0 = arith.constant 0 : index
    %c0_0 = arith.constant 0 : index
    %0 = vector.load %arg0[%c0, %c0_0] : memref<64x128xbf16, #tpu.memory_space<vmem>>, vector<64x128xbf16>
    %c0_1 = arith.constant 0 : index
    %c0_2 = arith.constant 0 : index
    %1 = vector.load %arg4[%c0_1, %c0_2] : memref<128x1024xbf16, #tpu.memory_space<vmem>>, vector<128x1024xbf16>
    %cst = arith.constant dense<0.000000e+00> : vector<64x1024xf32>
    %2 = tpu.matmul %0, %1, %cst {dimension_numbers = #tpu.dot_dimension_numbers<[1], [0], [0], [1], [0, 0, 1, 1], [], []>} : vector<64x128xbf16>, vector<128x1024xbf16>, vector<64x1024xf32> -> vector<64x1024xf32>
    %c0_3 = arith.constant 0 : index
    %c0_4 = arith.constant 0 : index
    %3 = vector.load %arg1[%c0_3, %c0_4] : memref<64x256xbf16, #tpu.memory_space<vmem>>, vector<64x256xbf16>
    %c0_5 = arith.constant 0 : index
    %c0_6 = arith.constant 0 : index
    %4 = vector.load %arg5[%c0_5, %c0_6] : memref<256x1024xbf16, #tpu.memory_space<vmem>>, vector<256x1024xbf16>
    %cst_7 = arith.constant dense<0.000000e+00> : vector<64x1024xf32>
    %5 = tpu.matmul %3, %4, %cst_7 {dimension_numbers = #tpu.dot_dimension_numbers<[1], [0], [0], [1], [0, 0, 1, 1], [], []>} : vector<64x256xbf16>, vector<256x1024xbf16>, vector<64x1024xf32> -> vector<64x1024xf32>
    %6 = arith.addf %2, %5 : vector<64x1024xf32>
    %c0_8 = arith.constant 0 : index
    %c0_9 = arith.constant 0 : index
    %7 = vector.load %arg2[%c0_8, %c0_9] : memref<64x256xbf16, #tpu.memory_space<vmem>>, vector<64x256xbf16>
    %c0_10 = arith.constant 0 : index
    %c0_11 = arith.constant 0 : index
    %8 = vector.load %arg6[%c0_10, %c0_11] : memref<256x1024xbf16, #tpu.memory_space<vmem>>, vector<256x1024xbf16>
    %cst_12 = arith.constant dense<0.000000e+00> : vector<64x1024xf32>
    %9 = tpu.matmul %7, %8, %cst_12 {dimension_numbers = #tpu.dot_dimension_numbers<[1], [0], [0], [1], [0, 0, 1, 1], [], []>} : vector<64x256xbf16>, vector<256x1024xbf16>, vector<64x1024xf32> -> vector<64x1024xf32>
    %10 = arith.addf %6, %9 : vector<64x1024xf32>
    %c0_13 = arith.constant 0 : index
    %c0_14 = arith.constant 0 : index
    %11 = vector.load %arg9[%c0_13, %c0_14] : memref<1x1024xf32, #tpu.memory_space<vmem>>, vector<1x1024xf32>
    %12 = vector.broadcast %11 : vector<1x1024xf32> to vector<64x1024xf32>
    %13 = arith.addf %10, %12 : vector<64x1024xf32>
    %c0_15 = arith.constant 0 : index
    %c0_16 = arith.constant 0 : index
    %14 = vector.load %arg11[%c0_15, %c0_16] : memref<64x1024xf32, #tpu.memory_space<vmem>>, vector<64x1024xf32>
    tpu.vector_store %arg11[%c0_15, %c0_16], %13 {strides = array<i32>} : memref<64x1024xf32, #tpu.memory_space<vmem>>, vector<64x1024xf32>,
    %cst_17 = arith.constant 0.000000e+00 : f32
    %15 = vector.broadcast %cst_17 : f32 to vector<8x128xf32>
    %c0_18 = arith.constant 0 : index
    %c0_19 = arith.constant 0 : index
    %16 = vector.load %arg12[%c0_18, %c0_19] : memref<8x128xf32, #tpu.memory_space<vmem>>, vector<8x128xf32>
    tpu.vector_store %arg12[%c0_18, %c0_19], %15 {strides = array<i32>} : memref<8x128xf32, #tpu.memory_space<vmem>>, vector<8x128xf32>,
    %cst_20 = arith.constant 0.000000e+00 : f32
    %17 = vector.broadcast %cst_20 : f32 to vector<8x128xf32>
    %c0_21 = arith.constant 0 : index
    %c0_22 = arith.constant 0 : index
    %18 = vector.load %arg13[%c0_21, %c0_22] : memref<8x128xf32, #tpu.memory_space<vmem>>, vector<8x128xf32>
    tpu.vector_store %arg13[%c0_21, %c0_22], %17 {strides = array<i32>} : memref<8x128xf32, #tpu.memory_space<vmem>>, vector<8x128xf32>,
    %cst_23 = arith.constant 0.000000e+00 : f32
    %19 = vector.broadcast %cst_23 : f32 to vector<8x128xf32>
    %c0_24 = arith.constant 0 : index
    %c0_25 = arith.constant 0 : index
    %20 = vector.load %arg14[%c0_24, %c0_25] : memref<8x128xf32, #tpu.memory_space<vmem>>, vector<8x128xf32>
    tpu.vector_store %arg14[%c0_24, %c0_25], %19 {strides = array<i32>} : memref<8x128xf32, #tpu.memory_space<vmem>>, vector<8x128xf32>,
    %cst_26 = arith.constant 0.000000e+00 : f32
    %21 = vector.broadcast %cst_26 : f32 to vector<8x128xf32>
    %c0_27 = arith.constant 0 : index
    %c0_28 = arith.constant 0 : index
    %22 = vector.load %arg15[%c0_27, %c0_28] : memref<8x128xf32, #tpu.memory_space<vmem>>, vector<8x128xf32>
    tpu.vector_store %arg15[%c0_27, %c0_28], %21 {strides = array<i32>} : memref<8x128xf32, #tpu.memory_space<vmem>>, vector<8x128xf32>,
    %c0_i32 = arith.constant 0 : i32
    %c8_i32 = arith.constant 8 : i32
    %23 = arith.addi %c0_i32, %c8_i32 : i32
    %c1_i32 = arith.constant 1 : i32
    scf.for %arg16 = %c0_i32 to %23 step %c1_i32  : i32 {
      %c1_i32_30 = arith.constant 1 : i32
      %24 = arith.muli %arg16, %c1_i32_30 : i32
      %c0_i32_31 = arith.constant 0 : i32
      %25 = arith.addi %c0_i32_31, %24 : i32
      %c7_i32 = arith.constant 7 : i32
      %26 = arith.subi %c7_i32, %25 : i32
      %27 = arith.index_cast %25 : i32 to index
      %c0_32 = arith.constant 0 : index
      %c0_33 = arith.constant 0 : index
      %28 = vector.load %arg3[%27, %c0_32, %c0_33] : memref<8x8x1xf32, #tpu.memory_space<vmem>>, vector<1x8x1xf32>
      %29 = vector.shape_cast %28 : vector<1x8x1xf32> to vector<8x1xf32>
      %c8_i32_34 = arith.constant 8 : i32
      %30 = arith.muli %25, %c8_i32_34 : i32
      %31 = tpu.assume_multiple %30, 8 : i32
      %32 = arith.index_cast %31 : i32 to index
      %c0_35 = arith.constant 0 : index
      %33 = vector.load %arg11[%32, %c0_35] : memref<64x1024xf32, #tpu.memory_space<vmem>>, vector<8x512xf32>
      %c0_36 = arith.constant 0 : index
      %c0_37 = arith.constant 0 : index
      %34 = vector.load %arg12[%c0_36, %c0_37] : memref<8x128xf32, #tpu.memory_space<vmem>>, vector<8x128xf32>
      %35 = arith.truncf %34 : vector<8x128xf32> to vector<8x128xbf16>
      %c0_38 = arith.constant 0 : index
      %c0_39 = arith.constant 0 : index
      %36 = vector.load %arg7[%c0_38, %c0_39] : memref<128x512xbf16, #tpu.memory_space<vmem>>, vector<128x512xbf16>
      %cst_40 = arith.constant dense<0.000000e+00> : vector<8x512xf32>
      %37 = tpu.matmul %35, %36, %cst_40 {dimension_numbers = #tpu.dot_dimension_numbers<[1], [0], [0], [1], [0, 0, 1, 1], [], []>} : vector<8x128xbf16>, vector<128x512xbf16>, vector<8x512xf32> -> vector<8x512xf32>
      %38 = arith.addf %33, %37 : vector<8x512xf32>
      %c0_41 = arith.constant 0 : index
      %c0_42 = arith.constant 0 : index
      %39 = vector.load %arg12[%c0_41, %c0_42] : memref<8x128xf32, #tpu.memory_space<vmem>>, vector<8x128xf32>
      %c0_43 = arith.constant 0 : index
      %c0_44 = arith.constant 0 : index
      %40 = vector.load %arg13[%c0_43, %c0_44] : memref<8x128xf32, #tpu.memory_space<vmem>>, vector<8x128xf32>
      %41 = vector.extract_strided_slice %38 {offsets = [0, 0], sizes = [8, 128], strides = [1, 1]} : vector<8x512xf32> to vector<8x128xf32>
      %42 = arith.negf %41 : vector<8x128xf32>
      %43 = math.exp %42 : vector<8x128xf32>
      %cst_45 = arith.constant 1.000000e+00 : f32
      %44 = vector.broadcast %cst_45 : f32 to vector<8x128xf32>
      %45 = arith.addf %44, %43 : vector<8x128xf32>
      %46 = arith.divf %44, %45 : vector<8x128xf32>
      %47 = vector.extract_strided_slice %38 {offsets = [0, 128], sizes = [8, 128], strides = [1, 1]} : vector<8x512xf32> to vector<8x128xf32>
      %48 = arith.negf %47 : vector<8x128xf32>
      %49 = math.exp %48 : vector<8x128xf32>
      %cst_46 = arith.constant 1.000000e+00 : f32
      %50 = vector.broadcast %cst_46 : f32 to vector<8x128xf32>
      %51 = arith.addf %50, %49 : vector<8x128xf32>
      %52 = arith.divf %50, %51 : vector<8x128xf32>
      %53 = vector.extract_strided_slice %38 {offsets = [0, 256], sizes = [8, 128], strides = [1, 1]} : vector<8x512xf32> to vector<8x128xf32>
      %54 = math.tanh %53 : vector<8x128xf32>
      %55 = vector.extract_strided_slice %38 {offsets = [0, 384], sizes = [8, 128], strides = [1, 1]} : vector<8x512xf32> to vector<8x128xf32>
      %56 = arith.negf %55 : vector<8x128xf32>
      %57 = math.exp %56 : vector<8x128xf32>
      %cst_47 = arith.constant 1.000000e+00 : f32
      %58 = vector.broadcast %cst_47 : f32 to vector<8x128xf32>
      %59 = arith.addf %58, %57 : vector<8x128xf32>
      %60 = arith.divf %58, %59 : vector<8x128xf32>
      %61 = arith.mulf %52, %40 : vector<8x128xf32>
      %62 = arith.mulf %46, %54 : vector<8x128xf32>
      %63 = arith.addf %61, %62 : vector<8x128xf32>
      %64 = math.tanh %63 : vector<8x128xf32>
      %65 = arith.mulf %60, %64 : vector<8x128xf32>
      %cst_48 = arith.constant 0.000000e+00 : f32
      %66 = vector.broadcast %cst_48 : f32 to vector<8x1xf32>
      %67 = arith.cmpf ogt, %29, %66 : vector<8x1xf32>
      %68 = vector.shape_cast %67 : vector<8x1xi1> to vector<8x1xi1>
      %69 = vector.broadcast %68 : vector<8x1xi1> to vector<8x128xi1>
      %70 = arith.select %69, %63, %40 : vector<8x128xi1>, vector<8x128xf32>
      %71 = vector.shape_cast %67 : vector<8x1xi1> to vector<8x1xi1>
      %72 = vector.broadcast %71 : vector<8x1xi1> to vector<8x128xi1>
      %73 = arith.select %72, %65, %39 : vector<8x128xi1>, vector<8x128xf32>
      %c0_49 = arith.constant 0 : index
      %c0_50 = arith.constant 0 : index
      %74 = vector.load %arg12[%c0_49, %c0_50] : memref<8x128xf32, #tpu.memory_space<vmem>>, vector<8x128xf32>
      tpu.vector_store %arg12[%c0_49, %c0_50], %73 {strides = array<i32>} : memref<8x128xf32, #tpu.memory_space<vmem>>, vector<8x128xf32>,
      %c0_51 = arith.constant 0 : index
      %c0_52 = arith.constant 0 : index
      %75 = vector.load %arg13[%c0_51, %c0_52] : memref<8x128xf32, #tpu.memory_space<vmem>>, vector<8x128xf32>
      tpu.vector_store %arg13[%c0_51, %c0_52], %70 {strides = array<i32>} : memref<8x128xf32, #tpu.memory_space<vmem>>, vector<8x128xf32>,
      %cst_53 = arith.constant 0.000000e+00 : f32
      %76 = vector.broadcast %cst_53 : f32 to vector<8x1xf32>
      %77 = arith.cmpf ogt, %29, %76 : vector<8x1xf32>
      %cst_54 = arith.constant 0.000000e+00 : f32
      %78 = vector.shape_cast %77 : vector<8x1xi1> to vector<8x1xi1>
      %79 = vector.broadcast %78 : vector<8x1xi1> to vector<8x128xi1>
      %80 = vector.broadcast %cst_54 : f32 to vector<8x128xf32>
      %81 = arith.select %79, %73, %80 : vector<8x128xi1>, vector<8x128xf32>
      %82 = arith.truncf %81 : vector<8x128xf32> to vector<8x128xbf16>
      %83 = arith.index_cast %25 : i32 to index
      %c0_55 = arith.constant 0 : index
      %c0_56 = arith.constant 0 : index
      %84 = vector.load %arg10[%83, %c0_55, %c0_56] : memref<8x8x256xbf16, #tpu.memory_space<vmem>>, vector<1x8x128xbf16>
      %85 = vector.shape_cast %84 : vector<1x8x128xbf16> to vector<8x128xbf16>
      %86 = vector.shape_cast %82 : vector<8x128xbf16> to vector<1x8x128xbf16>
      tpu.vector_store %arg10[%83, %c0_55, %c0_56], %86 {strides = array<i32>} : memref<8x8x256xbf16, #tpu.memory_space<vmem>>, vector<1x8x128xbf16>,
      %87 = arith.index_cast %26 : i32 to index
      %c0_57 = arith.constant 0 : index
      %c0_58 = arith.constant 0 : index
      %88 = vector.load %arg3[%87, %c0_57, %c0_58] : memref<8x8x1xf32, #tpu.memory_space<vmem>>, vector<1x8x1xf32>
      %89 = vector.shape_cast %88 : vector<1x8x1xf32> to vector<8x1xf32>
      %c8_i32_59 = arith.constant 8 : i32
      %90 = arith.muli %26, %c8_i32_59 : i32
      %91 = tpu.assume_multiple %90, 8 : i32
      %92 = arith.index_cast %91 : i32 to index
      %c512 = arith.constant 512 : index
      %93 = vector.load %arg11[%92, %c512] : memref<64x1024xf32, #tpu.memory_space<vmem>>, vector<8x512xf32>
      %c0_60 = arith.constant 0 : index
      %c0_61 = arith.constant 0 : index
      %94 = vector.load %arg14[%c0_60, %c0_61] : memref<8x128xf32, #tpu.memory_space<vmem>>, vector<8x128xf32>
      %95 = arith.truncf %94 : vector<8x128xf32> to vector<8x128xbf16>
      %c0_62 = arith.constant 0 : index
      %c0_63 = arith.constant 0 : index
      %96 = vector.load %arg8[%c0_62, %c0_63] : memref<128x512xbf16, #tpu.memory_space<vmem>>, vector<128x512xbf16>
      %cst_64 = arith.constant dense<0.000000e+00> : vector<8x512xf32>
      %97 = tpu.matmul %95, %96, %cst_64 {dimension_numbers = #tpu.dot_dimension_numbers<[1], [0], [0], [1], [0, 0, 1, 1], [], []>} : vector<8x128xbf16>, vector<128x512xbf16>, vector<8x512xf32> -> vector<8x512xf32>
      %98 = arith.addf %93, %97 : vector<8x512xf32>
      %c0_65 = arith.constant 0 : index
      %c0_66 = arith.constant 0 : index
      %99 = vector.load %arg14[%c0_65, %c0_66] : memref<8x128xf32, #tpu.memory_space<vmem>>, vector<8x128xf32>
      %c0_67 = arith.constant 0 : index
      %c0_68 = arith.constant 0 : index
      %100 = vector.load %arg15[%c0_67, %c0_68] : memref<8x128xf32, #tpu.memory_space<vmem>>, vector<8x128xf32>
      %101 = vector.extract_strided_slice %98 {offsets = [0, 0], sizes = [8, 128], strides = [1, 1]} : vector<8x512xf32> to vector<8x128xf32>
      %102 = arith.negf %101 : vector<8x128xf32>
      %103 = math.exp %102 : vector<8x128xf32>
      %cst_69 = arith.constant 1.000000e+00 : f32
      %104 = vector.broadcast %cst_69 : f32 to vector<8x128xf32>
      %105 = arith.addf %104, %103 : vector<8x128xf32>
      %106 = arith.divf %104, %105 : vector<8x128xf32>
      %107 = vector.extract_strided_slice %98 {offsets = [0, 128], sizes = [8, 128], strides = [1, 1]} : vector<8x512xf32> to vector<8x128xf32>
      %108 = arith.negf %107 : vector<8x128xf32>
      %109 = math.exp %108 : vector<8x128xf32>
      %cst_70 = arith.constant 1.000000e+00 : f32
      %110 = vector.broadcast %cst_70 : f32 to vector<8x128xf32>
      %111 = arith.addf %110, %109 : vector<8x128xf32>
      %112 = arith.divf %110, %111 : vector<8x128xf32>
      %113 = vector.extract_strided_slice %98 {offsets = [0, 256], sizes = [8, 128], strides = [1, 1]} : vector<8x512xf32> to vector<8x128xf32>
      %114 = math.tanh %113 : vector<8x128xf32>
      %115 = vector.extract_strided_slice %98 {offsets = [0, 384], sizes = [8, 128], strides = [1, 1]} : vector<8x512xf32> to vector<8x128xf32>
      %116 = arith.negf %115 : vector<8x128xf32>
      %117 = math.exp %116 : vector<8x128xf32>
      %cst_71 = arith.constant 1.000000e+00 : f32
      %118 = vector.broadcast %cst_71 : f32 to vector<8x128xf32>
      %119 = arith.addf %118, %117 : vector<8x128xf32>
      %120 = arith.divf %118, %119 : vector<8x128xf32>
      %121 = arith.mulf %112, %100 : vector<8x128xf32>
      %122 = arith.mulf %106, %114 : vector<8x128xf32>
      %123 = arith.addf %121, %122 : vector<8x128xf32>
      %124 = math.tanh %123 : vector<8x128xf32>
      %125 = arith.mulf %120, %124 : vector<8x128xf32>
      %cst_72 = arith.constant 0.000000e+00 : f32
      %126 = vector.broadcast %cst_72 : f32 to vector<8x1xf32>
      %127 = arith.cmpf ogt, %89, %126 : vector<8x1xf32>
      %128 = vector.shape_cast %127 : vector<8x1xi1> to vector<8x1xi1>
      %129 = vector.broadcast %128 : vector<8x1xi1> to vector<8x128xi1>
      %130 = arith.select %129, %123, %100 : vector<8x128xi1>, vector<8x128xf32>
      %131 = vector.shape_cast %127 : vector<8x1xi1> to vector<8x1xi1>
      %132 = vector.broadcast %131 : vector<8x1xi1> to vector<8x128xi1>
      %133 = arith.select %132, %125, %99 : vector<8x128xi1>, vector<8x128xf32>
      %c0_73 = arith.constant 0 : index
      %c0_74 = arith.constant 0 : index
      %134 = vector.load %arg14[%c0_73, %c0_74] : memref<8x128xf32, #tpu.memory_space<vmem>>, vector<8x128xf32>
      tpu.vector_store %arg14[%c0_73, %c0_74], %133 {strides = array<i32>} : memref<8x128xf32, #tpu.memory_space<vmem>>, vector<8x128xf32>,
      %c0_75 = arith.constant 0 : index
      %c0_76 = arith.constant 0 : index
      %135 = vector.load %arg15[%c0_75, %c0_76] : memref<8x128xf32, #tpu.memory_space<vmem>>, vector<8x128xf32>
      tpu.vector_store %arg15[%c0_75, %c0_76], %130 {strides = array<i32>} : memref<8x128xf32, #tpu.memory_space<vmem>>, vector<8x128xf32>,
      %cst_77 = arith.constant 0.000000e+00 : f32
      %136 = vector.broadcast %cst_77 : f32 to vector<8x1xf32>
      %137 = arith.cmpf ogt, %89, %136 : vector<8x1xf32>
      %cst_78 = arith.constant 0.000000e+00 : f32
      %138 = vector.shape_cast %137 : vector<8x1xi1> to vector<8x1xi1>
      %139 = vector.broadcast %138 : vector<8x1xi1> to vector<8x128xi1>
      %140 = vector.broadcast %cst_78 : f32 to vector<8x128xf32>
      %141 = arith.select %139, %133, %140 : vector<8x128xi1>, vector<8x128xf32>
      %142 = arith.truncf %141 : vector<8x128xf32> to vector<8x128xbf16>
      %143 = arith.index_cast %26 : i32 to index
      %c0_79 = arith.constant 0 : index
      %c128 = arith.constant 128 : index
      %144 = vector.load %arg10[%143, %c0_79, %c128] : memref<8x8x256xbf16, #tpu.memory_space<vmem>>, vector<1x8x128xbf16>
      %145 = vector.shape_cast %144 : vector<1x8x128xbf16> to vector<8x128xbf16>
      %146 = vector.shape_cast %142 : vector<8x128xbf16> to vector<1x8x128xbf16>
      tpu.vector_store %arg10[%143, %c0_79, %c128], %146 {strides = array<i32>} : memref<8x8x256xbf16, #tpu.memory_space<vmem>>, vector<1x8x128xbf16>,
    }
    %c8_i32_29 = arith.constant 8 : i32
    return
  }
}

module attributes {stable_mosaic.version = 11 : i64} {
  func.func @kernel(%arg0: memref<64x128xbf16, #tpu.memory_space<vmem>>, %arg1: memref<64x256xbf16, #tpu.memory_space<vmem>>, %arg2: memref<8x8x1xf32, #tpu.memory_space<vmem>>, %arg3: memref<128x1024xbf16, #tpu.memory_space<vmem>>, %arg4: memref<256x1024xbf16, #tpu.memory_space<vmem>>, %arg5: memref<128x512xbf16, #tpu.memory_space<vmem>>, %arg6: memref<128x512xbf16, #tpu.memory_space<vmem>>, %arg7: memref<1x1024xf32, #tpu.memory_space<vmem>>, %arg8: memref<8x8x256xbf16, #tpu.memory_space<vmem>>, %arg9: memref<64x1024xf32, #tpu.memory_space<vmem>>, %arg10: memref<8x128xf32, #tpu.memory_space<vmem>>, %arg11: memref<8x128xf32, #tpu.memory_space<vmem>>, %arg12: memref<8x128xf32, #tpu.memory_space<vmem>>, %arg13: memref<8x128xf32, #tpu.memory_space<vmem>>) attributes {dimension_semantics = [], scalar_prefetch = 0 : i64, scratch_operands = 5 : i64, tpu.core_type = #tpu.core_type<tc>} {
    %c0 = arith.constant 0 : index
    %c0_0 = arith.constant 0 : index
    %0 = vector.load %arg0[%c0, %c0_0] : memref<64x128xbf16, #tpu.memory_space<vmem>>, vector<64x128xbf16>
    %c0_1 = arith.constant 0 : index
    %c0_2 = arith.constant 0 : index
    %1 = vector.load %arg3[%c0_1, %c0_2] : memref<128x1024xbf16, #tpu.memory_space<vmem>>, vector<128x1024xbf16>
    %cst = arith.constant dense<0.000000e+00> : vector<64x1024xf32>
    %2 = tpu.matmul %0, %1, %cst {dimension_numbers = #tpu.dot_dimension_numbers<[1], [0], [0], [1], [0, 0, 1, 1], [], []>} : vector<64x128xbf16>, vector<128x1024xbf16>, vector<64x1024xf32> -> vector<64x1024xf32>
    %c0_3 = arith.constant 0 : index
    %c0_4 = arith.constant 0 : index
    %3 = vector.load %arg1[%c0_3, %c0_4] : memref<64x256xbf16, #tpu.memory_space<vmem>>, vector<64x256xbf16>
    %c0_5 = arith.constant 0 : index
    %c0_6 = arith.constant 0 : index
    %4 = vector.load %arg4[%c0_5, %c0_6] : memref<256x1024xbf16, #tpu.memory_space<vmem>>, vector<256x1024xbf16>
    %cst_7 = arith.constant dense<0.000000e+00> : vector<64x1024xf32>
    %5 = tpu.matmul %3, %4, %cst_7 {dimension_numbers = #tpu.dot_dimension_numbers<[1], [0], [0], [1], [0, 0, 1, 1], [], []>} : vector<64x256xbf16>, vector<256x1024xbf16>, vector<64x1024xf32> -> vector<64x1024xf32>
    %6 = arith.addf %2, %5 : vector<64x1024xf32>
    %c0_8 = arith.constant 0 : index
    %c0_9 = arith.constant 0 : index
    %7 = vector.load %arg7[%c0_8, %c0_9] : memref<1x1024xf32, #tpu.memory_space<vmem>>, vector<1x1024xf32>
    %8 = vector.broadcast %7 : vector<1x1024xf32> to vector<64x1024xf32>
    %9 = arith.addf %6, %8 : vector<64x1024xf32>
    %c0_10 = arith.constant 0 : index
    %c0_11 = arith.constant 0 : index
    %10 = vector.load %arg9[%c0_10, %c0_11] : memref<64x1024xf32, #tpu.memory_space<vmem>>, vector<64x1024xf32>
    tpu.vector_store %arg9[%c0_10, %c0_11], %9 {strides = array<i32>} : memref<64x1024xf32, #tpu.memory_space<vmem>>, vector<64x1024xf32>,
    %cst_12 = arith.constant 0.000000e+00 : f32
    %11 = vector.broadcast %cst_12 : f32 to vector<8x128xf32>
    %c0_13 = arith.constant 0 : index
    %c0_14 = arith.constant 0 : index
    %12 = vector.load %arg10[%c0_13, %c0_14] : memref<8x128xf32, #tpu.memory_space<vmem>>, vector<8x128xf32>
    tpu.vector_store %arg10[%c0_13, %c0_14], %11 {strides = array<i32>} : memref<8x128xf32, #tpu.memory_space<vmem>>, vector<8x128xf32>,
    %cst_15 = arith.constant 0.000000e+00 : f32
    %13 = vector.broadcast %cst_15 : f32 to vector<8x128xf32>
    %c0_16 = arith.constant 0 : index
    %c0_17 = arith.constant 0 : index
    %14 = vector.load %arg11[%c0_16, %c0_17] : memref<8x128xf32, #tpu.memory_space<vmem>>, vector<8x128xf32>
    tpu.vector_store %arg11[%c0_16, %c0_17], %13 {strides = array<i32>} : memref<8x128xf32, #tpu.memory_space<vmem>>, vector<8x128xf32>,
    %cst_18 = arith.constant 0.000000e+00 : f32
    %15 = vector.broadcast %cst_18 : f32 to vector<8x128xf32>
    %c0_19 = arith.constant 0 : index
    %c0_20 = arith.constant 0 : index
    %16 = vector.load %arg12[%c0_19, %c0_20] : memref<8x128xf32, #tpu.memory_space<vmem>>, vector<8x128xf32>
    tpu.vector_store %arg12[%c0_19, %c0_20], %15 {strides = array<i32>} : memref<8x128xf32, #tpu.memory_space<vmem>>, vector<8x128xf32>,
    %cst_21 = arith.constant 0.000000e+00 : f32
    %17 = vector.broadcast %cst_21 : f32 to vector<8x128xf32>
    %c0_22 = arith.constant 0 : index
    %c0_23 = arith.constant 0 : index
    %18 = vector.load %arg13[%c0_22, %c0_23] : memref<8x128xf32, #tpu.memory_space<vmem>>, vector<8x128xf32>
    tpu.vector_store %arg13[%c0_22, %c0_23], %17 {strides = array<i32>} : memref<8x128xf32, #tpu.memory_space<vmem>>, vector<8x128xf32>,
    %c0_i32 = arith.constant 0 : i32
    %c8_i32 = arith.constant 8 : i32
    %19 = arith.addi %c0_i32, %c8_i32 : i32
    %c1_i32 = arith.constant 1 : i32
    scf.for %arg14 = %c0_i32 to %19 step %c1_i32  : i32 {
      %c1_i32_25 = arith.constant 1 : i32
      %20 = arith.muli %arg14, %c1_i32_25 : i32
      %c0_i32_26 = arith.constant 0 : i32
      %21 = arith.addi %c0_i32_26, %20 : i32
      %c7_i32 = arith.constant 7 : i32
      %22 = arith.subi %c7_i32, %21 : i32
      %23 = arith.index_cast %21 : i32 to index
      %c0_27 = arith.constant 0 : index
      %c0_28 = arith.constant 0 : index
      %24 = vector.load %arg2[%23, %c0_27, %c0_28] : memref<8x8x1xf32, #tpu.memory_space<vmem>>, vector<1x8x1xf32>
      %25 = vector.shape_cast %24 : vector<1x8x1xf32> to vector<8x1xf32>
      %c8_i32_29 = arith.constant 8 : i32
      %26 = arith.muli %21, %c8_i32_29 : i32
      %27 = tpu.assume_multiple %26, 8 : i32
      %28 = arith.index_cast %27 : i32 to index
      %c0_30 = arith.constant 0 : index
      %29 = vector.load %arg9[%28, %c0_30] : memref<64x1024xf32, #tpu.memory_space<vmem>>, vector<8x512xf32>
      %c0_31 = arith.constant 0 : index
      %c0_32 = arith.constant 0 : index
      %30 = vector.load %arg10[%c0_31, %c0_32] : memref<8x128xf32, #tpu.memory_space<vmem>>, vector<8x128xf32>
      %31 = arith.truncf %30 : vector<8x128xf32> to vector<8x128xbf16>
      %c0_33 = arith.constant 0 : index
      %c0_34 = arith.constant 0 : index
      %32 = vector.load %arg5[%c0_33, %c0_34] : memref<128x512xbf16, #tpu.memory_space<vmem>>, vector<128x512xbf16>
      %cst_35 = arith.constant dense<0.000000e+00> : vector<8x512xf32>
      %33 = tpu.matmul %31, %32, %cst_35 {dimension_numbers = #tpu.dot_dimension_numbers<[1], [0], [0], [1], [0, 0, 1, 1], [], []>} : vector<8x128xbf16>, vector<128x512xbf16>, vector<8x512xf32> -> vector<8x512xf32>
      %34 = arith.addf %29, %33 : vector<8x512xf32>
      %c0_36 = arith.constant 0 : index
      %c0_37 = arith.constant 0 : index
      %35 = vector.load %arg10[%c0_36, %c0_37] : memref<8x128xf32, #tpu.memory_space<vmem>>, vector<8x128xf32>
      %c0_38 = arith.constant 0 : index
      %c0_39 = arith.constant 0 : index
      %36 = vector.load %arg11[%c0_38, %c0_39] : memref<8x128xf32, #tpu.memory_space<vmem>>, vector<8x128xf32>
      %37 = vector.extract_strided_slice %34 {offsets = [0, 0], sizes = [8, 128], strides = [1, 1]} : vector<8x512xf32> to vector<8x128xf32>
      %38 = arith.negf %37 : vector<8x128xf32>
      %39 = math.exp %38 : vector<8x128xf32>
      %cst_40 = arith.constant 1.000000e+00 : f32
      %40 = vector.broadcast %cst_40 : f32 to vector<8x128xf32>
      %41 = arith.addf %40, %39 : vector<8x128xf32>
      %42 = arith.divf %40, %41 : vector<8x128xf32>
      %43 = vector.extract_strided_slice %34 {offsets = [0, 128], sizes = [8, 128], strides = [1, 1]} : vector<8x512xf32> to vector<8x128xf32>
      %44 = arith.negf %43 : vector<8x128xf32>
      %45 = math.exp %44 : vector<8x128xf32>
      %cst_41 = arith.constant 1.000000e+00 : f32
      %46 = vector.broadcast %cst_41 : f32 to vector<8x128xf32>
      %47 = arith.addf %46, %45 : vector<8x128xf32>
      %48 = arith.divf %46, %47 : vector<8x128xf32>
      %49 = vector.extract_strided_slice %34 {offsets = [0, 256], sizes = [8, 128], strides = [1, 1]} : vector<8x512xf32> to vector<8x128xf32>
      %50 = math.tanh %49 : vector<8x128xf32>
      %51 = vector.extract_strided_slice %34 {offsets = [0, 384], sizes = [8, 128], strides = [1, 1]} : vector<8x512xf32> to vector<8x128xf32>
      %52 = arith.negf %51 : vector<8x128xf32>
      %53 = math.exp %52 : vector<8x128xf32>
      %cst_42 = arith.constant 1.000000e+00 : f32
      %54 = vector.broadcast %cst_42 : f32 to vector<8x128xf32>
      %55 = arith.addf %54, %53 : vector<8x128xf32>
      %56 = arith.divf %54, %55 : vector<8x128xf32>
      %57 = arith.mulf %48, %36 : vector<8x128xf32>
      %58 = arith.mulf %42, %50 : vector<8x128xf32>
      %59 = arith.addf %57, %58 : vector<8x128xf32>
      %60 = math.tanh %59 : vector<8x128xf32>
      %61 = arith.mulf %56, %60 : vector<8x128xf32>
      %cst_43 = arith.constant 0.000000e+00 : f32
      %62 = vector.broadcast %cst_43 : f32 to vector<8x1xf32>
      %63 = arith.cmpf ogt, %25, %62 : vector<8x1xf32>
      %64 = vector.shape_cast %63 : vector<8x1xi1> to vector<8x1xi1>
      %65 = vector.broadcast %64 : vector<8x1xi1> to vector<8x128xi1>
      %66 = arith.select %65, %59, %36 : vector<8x128xi1>, vector<8x128xf32>
      %67 = vector.shape_cast %63 : vector<8x1xi1> to vector<8x1xi1>
      %68 = vector.broadcast %67 : vector<8x1xi1> to vector<8x128xi1>
      %69 = arith.select %68, %61, %35 : vector<8x128xi1>, vector<8x128xf32>
      %c0_44 = arith.constant 0 : index
      %c0_45 = arith.constant 0 : index
      %70 = vector.load %arg10[%c0_44, %c0_45] : memref<8x128xf32, #tpu.memory_space<vmem>>, vector<8x128xf32>
      tpu.vector_store %arg10[%c0_44, %c0_45], %69 {strides = array<i32>} : memref<8x128xf32, #tpu.memory_space<vmem>>, vector<8x128xf32>,
      %c0_46 = arith.constant 0 : index
      %c0_47 = arith.constant 0 : index
      %71 = vector.load %arg11[%c0_46, %c0_47] : memref<8x128xf32, #tpu.memory_space<vmem>>, vector<8x128xf32>
      tpu.vector_store %arg11[%c0_46, %c0_47], %66 {strides = array<i32>} : memref<8x128xf32, #tpu.memory_space<vmem>>, vector<8x128xf32>,
      %cst_48 = arith.constant 0.000000e+00 : f32
      %72 = vector.broadcast %cst_48 : f32 to vector<8x1xf32>
      %73 = arith.cmpf ogt, %25, %72 : vector<8x1xf32>
      %cst_49 = arith.constant 0.000000e+00 : f32
      %74 = vector.shape_cast %73 : vector<8x1xi1> to vector<8x1xi1>
      %75 = vector.broadcast %74 : vector<8x1xi1> to vector<8x128xi1>
      %76 = vector.broadcast %cst_49 : f32 to vector<8x128xf32>
      %77 = arith.select %75, %69, %76 : vector<8x128xi1>, vector<8x128xf32>
      %78 = arith.truncf %77 : vector<8x128xf32> to vector<8x128xbf16>
      %79 = arith.index_cast %21 : i32 to index
      %c0_50 = arith.constant 0 : index
      %c0_51 = arith.constant 0 : index
      %80 = vector.load %arg8[%79, %c0_50, %c0_51] : memref<8x8x256xbf16, #tpu.memory_space<vmem>>, vector<1x8x128xbf16>
      %81 = vector.shape_cast %80 : vector<1x8x128xbf16> to vector<8x128xbf16>
      %82 = vector.shape_cast %78 : vector<8x128xbf16> to vector<1x8x128xbf16>
      tpu.vector_store %arg8[%79, %c0_50, %c0_51], %82 {strides = array<i32>} : memref<8x8x256xbf16, #tpu.memory_space<vmem>>, vector<1x8x128xbf16>,
      %83 = arith.index_cast %22 : i32 to index
      %c0_52 = arith.constant 0 : index
      %c0_53 = arith.constant 0 : index
      %84 = vector.load %arg2[%83, %c0_52, %c0_53] : memref<8x8x1xf32, #tpu.memory_space<vmem>>, vector<1x8x1xf32>
      %85 = vector.shape_cast %84 : vector<1x8x1xf32> to vector<8x1xf32>
      %c8_i32_54 = arith.constant 8 : i32
      %86 = arith.muli %22, %c8_i32_54 : i32
      %87 = tpu.assume_multiple %86, 8 : i32
      %88 = arith.index_cast %87 : i32 to index
      %c512 = arith.constant 512 : index
      %89 = vector.load %arg9[%88, %c512] : memref<64x1024xf32, #tpu.memory_space<vmem>>, vector<8x512xf32>
      %c0_55 = arith.constant 0 : index
      %c0_56 = arith.constant 0 : index
      %90 = vector.load %arg12[%c0_55, %c0_56] : memref<8x128xf32, #tpu.memory_space<vmem>>, vector<8x128xf32>
      %91 = arith.truncf %90 : vector<8x128xf32> to vector<8x128xbf16>
      %c0_57 = arith.constant 0 : index
      %c0_58 = arith.constant 0 : index
      %92 = vector.load %arg6[%c0_57, %c0_58] : memref<128x512xbf16, #tpu.memory_space<vmem>>, vector<128x512xbf16>
      %cst_59 = arith.constant dense<0.000000e+00> : vector<8x512xf32>
      %93 = tpu.matmul %91, %92, %cst_59 {dimension_numbers = #tpu.dot_dimension_numbers<[1], [0], [0], [1], [0, 0, 1, 1], [], []>} : vector<8x128xbf16>, vector<128x512xbf16>, vector<8x512xf32> -> vector<8x512xf32>
      %94 = arith.addf %89, %93 : vector<8x512xf32>
      %c0_60 = arith.constant 0 : index
      %c0_61 = arith.constant 0 : index
      %95 = vector.load %arg12[%c0_60, %c0_61] : memref<8x128xf32, #tpu.memory_space<vmem>>, vector<8x128xf32>
      %c0_62 = arith.constant 0 : index
      %c0_63 = arith.constant 0 : index
      %96 = vector.load %arg13[%c0_62, %c0_63] : memref<8x128xf32, #tpu.memory_space<vmem>>, vector<8x128xf32>
      %97 = vector.extract_strided_slice %94 {offsets = [0, 0], sizes = [8, 128], strides = [1, 1]} : vector<8x512xf32> to vector<8x128xf32>
      %98 = arith.negf %97 : vector<8x128xf32>
      %99 = math.exp %98 : vector<8x128xf32>
      %cst_64 = arith.constant 1.000000e+00 : f32
      %100 = vector.broadcast %cst_64 : f32 to vector<8x128xf32>
      %101 = arith.addf %100, %99 : vector<8x128xf32>
      %102 = arith.divf %100, %101 : vector<8x128xf32>
      %103 = vector.extract_strided_slice %94 {offsets = [0, 128], sizes = [8, 128], strides = [1, 1]} : vector<8x512xf32> to vector<8x128xf32>
      %104 = arith.negf %103 : vector<8x128xf32>
      %105 = math.exp %104 : vector<8x128xf32>
      %cst_65 = arith.constant 1.000000e+00 : f32
      %106 = vector.broadcast %cst_65 : f32 to vector<8x128xf32>
      %107 = arith.addf %106, %105 : vector<8x128xf32>
      %108 = arith.divf %106, %107 : vector<8x128xf32>
      %109 = vector.extract_strided_slice %94 {offsets = [0, 256], sizes = [8, 128], strides = [1, 1]} : vector<8x512xf32> to vector<8x128xf32>
      %110 = math.tanh %109 : vector<8x128xf32>
      %111 = vector.extract_strided_slice %94 {offsets = [0, 384], sizes = [8, 128], strides = [1, 1]} : vector<8x512xf32> to vector<8x128xf32>
      %112 = arith.negf %111 : vector<8x128xf32>
      %113 = math.exp %112 : vector<8x128xf32>
      %cst_66 = arith.constant 1.000000e+00 : f32
      %114 = vector.broadcast %cst_66 : f32 to vector<8x128xf32>
      %115 = arith.addf %114, %113 : vector<8x128xf32>
      %116 = arith.divf %114, %115 : vector<8x128xf32>
      %117 = arith.mulf %108, %96 : vector<8x128xf32>
      %118 = arith.mulf %102, %110 : vector<8x128xf32>
      %119 = arith.addf %117, %118 : vector<8x128xf32>
      %120 = math.tanh %119 : vector<8x128xf32>
      %121 = arith.mulf %116, %120 : vector<8x128xf32>
      %cst_67 = arith.constant 0.000000e+00 : f32
      %122 = vector.broadcast %cst_67 : f32 to vector<8x1xf32>
      %123 = arith.cmpf ogt, %85, %122 : vector<8x1xf32>
      %124 = vector.shape_cast %123 : vector<8x1xi1> to vector<8x1xi1>
      %125 = vector.broadcast %124 : vector<8x1xi1> to vector<8x128xi1>
      %126 = arith.select %125, %119, %96 : vector<8x128xi1>, vector<8x128xf32>
      %127 = vector.shape_cast %123 : vector<8x1xi1> to vector<8x1xi1>
      %128 = vector.broadcast %127 : vector<8x1xi1> to vector<8x128xi1>
      %129 = arith.select %128, %121, %95 : vector<8x128xi1>, vector<8x128xf32>
      %c0_68 = arith.constant 0 : index
      %c0_69 = arith.constant 0 : index
      %130 = vector.load %arg12[%c0_68, %c0_69] : memref<8x128xf32, #tpu.memory_space<vmem>>, vector<8x128xf32>
      tpu.vector_store %arg12[%c0_68, %c0_69], %129 {strides = array<i32>} : memref<8x128xf32, #tpu.memory_space<vmem>>, vector<8x128xf32>,
      %c0_70 = arith.constant 0 : index
      %c0_71 = arith.constant 0 : index
      %131 = vector.load %arg13[%c0_70, %c0_71] : memref<8x128xf32, #tpu.memory_space<vmem>>, vector<8x128xf32>
      tpu.vector_store %arg13[%c0_70, %c0_71], %126 {strides = array<i32>} : memref<8x128xf32, #tpu.memory_space<vmem>>, vector<8x128xf32>,
      %cst_72 = arith.constant 0.000000e+00 : f32
      %132 = vector.broadcast %cst_72 : f32 to vector<8x1xf32>
      %133 = arith.cmpf ogt, %85, %132 : vector<8x1xf32>
      %cst_73 = arith.constant 0.000000e+00 : f32
      %134 = vector.shape_cast %133 : vector<8x1xi1> to vector<8x1xi1>
      %135 = vector.broadcast %134 : vector<8x1xi1> to vector<8x128xi1>
      %136 = vector.broadcast %cst_73 : f32 to vector<8x128xf32>
      %137 = arith.select %135, %129, %136 : vector<8x128xi1>, vector<8x128xf32>
      %138 = arith.truncf %137 : vector<8x128xf32> to vector<8x128xbf16>
      %139 = arith.index_cast %22 : i32 to index
      %c0_74 = arith.constant 0 : index
      %c128 = arith.constant 128 : index
      %140 = vector.load %arg8[%139, %c0_74, %c128] : memref<8x8x256xbf16, #tpu.memory_space<vmem>>, vector<1x8x128xbf16>
      %141 = vector.shape_cast %140 : vector<1x8x128xbf16> to vector<8x128xbf16>
      %142 = vector.shape_cast %138 : vector<8x128xbf16> to vector<1x8x128xbf16>
      tpu.vector_store %arg8[%139, %c0_74, %c128], %142 {strides = array<i32>} : memref<8x8x256xbf16, #tpu.memory_space<vmem>>, vector<1x8x128xbf16>,
    }
    %c8_i32_24 = arith.constant 8 : i32
    return
  }
}

module attributes {stable_mosaic.version = 11 : i64} {
  func.func @pool_classify_kernel(%arg0: memref<8x8x256xbf16, #tpu.memory_space<vmem>>, %arg1: memref<8x8x1xf32, #tpu.memory_space<vmem>>, %arg2: memref<1024x3xf32, #tpu.memory_space<vmem>>, %arg3: memref<1x3xf32, #tpu.memory_space<vmem>>, %arg4: memref<2x3xf32, #tpu.memory_space<vmem>>) attributes {dimension_semantics = [], scalar_prefetch = 0 : i64, scratch_operands = 0 : i64, tpu.core_type = #tpu.core_type<tc>} {
    %c0 = arith.constant 0 : index
    %c0_0 = arith.constant 0 : index
    %c0_1 = arith.constant 0 : index
    %0 = vector.load %arg0[%c0, %c0_0, %c0_1] : memref<8x8x256xbf16, #tpu.memory_space<vmem>>, vector<8x8x256xbf16>
    %1 = arith.extf %0 : vector<8x8x256xbf16> to vector<8x8x256xf32>
    %c0_2 = arith.constant 0 : index
    %c0_3 = arith.constant 0 : index
    %c0_4 = arith.constant 0 : index
    %2 = vector.load %arg1[%c0_2, %c0_3, %c0_4] : memref<8x8x1xf32, #tpu.memory_space<vmem>>, vector<8x8x1xf32>
    %cst = arith.constant 0.000000e+00 : f32
    %3 = vector.broadcast %cst : f32 to vector<8x8x1xf32>
    %4 = arith.cmpf ogt, %2, %3 : vector<8x8x1xf32>
    %cst_5 = arith.constant -1.000000e+07 : f32
    %5 = vector.shape_cast %4 : vector<8x8x1xi1> to vector<8x8x1xi1>
    %6 = vector.broadcast %5 : vector<8x8x1xi1> to vector<8x8x256xi1>
    %7 = vector.broadcast %cst_5 : f32 to vector<8x8x256xf32>
    %8 = arith.select %6, %1, %7 : vector<8x8x256xi1>, vector<8x8x256xf32>
    %cst_6 = arith.constant dense<0xFF800000> : vector<8x256xf32>
    %9 = vector.multi_reduction <maximumf>, %8, %cst_6 [0] : vector<8x8x256xf32> to vector<8x256xf32>
    %10 = vector.extract_strided_slice %9 {offsets = [0, 0], sizes = [2, 256], strides = [1, 1]} : vector<8x256xf32> to vector<2x256xf32>
    %11 = vector.extract_strided_slice %9 {offsets = [2, 0], sizes = [2, 256], strides = [1, 1]} : vector<8x256xf32> to vector<2x256xf32>
    %12 = arith.subf %10, %11 : vector<2x256xf32>
    %13 = math.absf %12 : vector<2x256xf32>
    %14 = arith.mulf %10, %11 : vector<2x256xf32>
    %15 = tpu.concatenate %10, %11, %13, %14 in 1 : vector<2x256xf32>, vector<2x256xf32>, vector<2x256xf32>, vector<2x256xf32> -> vector<2x1024xf32>
    %c0_7 = arith.constant 0 : index
    %c0_8 = arith.constant 0 : index
    %16 = vector.load %arg2[%c0_7, %c0_8] : memref<1024x3xf32, #tpu.memory_space<vmem>>, vector<1024x3xf32>
    %cst_9 = arith.constant dense<0.000000e+00> : vector<2x3xf32>
    %17 = tpu.matmul %15, %16, %cst_9 {dimension_numbers = #tpu.dot_dimension_numbers<[1], [0], [0], [1], [0, 0, 1, 1], [], []>} : vector<2x1024xf32>, vector<1024x3xf32>, vector<2x3xf32> -> vector<2x3xf32>
    %c0_10 = arith.constant 0 : index
    %c0_11 = arith.constant 0 : index
    %18 = vector.load %arg3[%c0_10, %c0_11] : memref<1x3xf32, #tpu.memory_space<vmem>>, vector<1x3xf32>
    %19 = vector.broadcast %18 : vector<1x3xf32> to vector<2x3xf32>
    %20 = arith.addf %17, %19 : vector<2x3xf32>
    %c0_12 = arith.constant 0 : index
    %c0_13 = arith.constant 0 : index
    %21 = vector.load %arg4[%c0_12, %c0_13] : memref<2x3xf32, #tpu.memory_space<vmem>>, vector<2x3xf32>
    tpu.vector_store %arg4[%c0_12, %c0_13], %20 {strides = array<i32>} : memref<2x3xf32, #tpu.memory_space<vmem>>, vector<2x3xf32>,
    return
  }
}

</mosaic_0001>

<llo_original>
// kernel: sse_forward.7
$region0: #{sse_forward.7}
  #allocation0 [shape = 'u32[]', space=smem, size = 0x4, offset = 0x4, fixed_abs, tag = 'smem constant byte address 0x4 - core index']
  #allocation1 [shape = 'u32[144,128]{1,0:T(1,128)}', space=vmem, size = 0x12000, scoped, tag = 'internal scratch']
  %s0 = inlined_call_operand.hbm [shape: bf16[8,8,256], index: 0, kind: input, shape index: {}]
  %s1 = inlined_call_operand.hbm [shape: f32[8,8,1], index: 1, kind: input, shape index: {}]
  %s2 = inlined_call_operand.hbm [shape: f32[1024,3], index: 2, kind: input, shape index: {}]
  %s3 = inlined_call_operand.hbm [shape: f32[1,3], index: 3, kind: input, shape index: {}]
  %s4 = inlined_call_operand.hbm [shape: f32[2,3], index: 4, kind: output, shape index: {}]
  %s5 = sld [smem:[#allocation0]]
  $region42: #{sse_forward.7} parent=0
    _
  %s7 = ssub.s32 1, %s5
  %s8 = scalar_select 0, %s7, %s5
  $region1: #{sse_forward.7} parent=0
    #allocation2 [shape = 'u8[32768]{0}', space=vmem, size = 0x8000, scoped, tag = 'input window, operand 0, single buffered']
    #allocation3 [shape = 's32[1]{0}', space=sflag, size = 0x4, scoped, tag = 'scoped memory for sse_forward.7']
    #allocation4 [shape = 's32[1]{0}', space=sflag, size = 0x4, scoped, tag = 'scoped memory for sse_forward.7']
    #allocation5 [shape = 'u8[32768]{0}', space=vmem, size = 0x8000, scoped, tag = 'input window, operand 1, single buffered']
    #allocation6 [shape = 's32[1]{0}', space=sflag, size = 0x4, scoped, tag = 'scoped memory for sse_forward.7']
    #allocation7 [shape = 'u8[524288]{0}', space=vmem, size = 0x80000, scoped, tag = 'input window, operand 2, single buffered']
    #allocation8 [shape = 'u8[512]{0}', space=vmem, size = 0x400, scoped, tag = 'input window, operand 3, single buffered']
    #allocation9 [shape = 's32[1]{0}', space=sflag, size = 0x4, scoped, tag = 'scoped memory for sse_forward.7']
    #allocation10 [shape = 'u8[1024]{0}', space=vmem, size = 0x400, scoped, tag = 'output window, operand 0, single buffered']
    %9 = vsyncpa [#allocation3], 0
    %10 = vsyncpa [#allocation6], 0
    %11 = vsyncpa [#allocation9], 0
    %12 = vsyncpa [#allocation4], 0
    // Predicated region
    $region2: #{sse_forward.7} parent=1 // pred_check
      _
    $region3: #{sse_forward.7} parent=1 // pred_check_branch
      %14 = sbr.rel (0) target = $region5
    $region4: #{sse_forward.7} parent=1 // pred_region
      %s16 = ssub.s32 1024, 1024
      %17 = vsyncadd [#allocation3], %s16
      %s18 = sshll.u32 [#allocation2], 4
      %s19 = int_to_ptr.vmem [resolvable:$true] %s18
      %24 = dma.hbm_to_vmem [thread:$0]  %s0, 1024, %s19, [#allocation3], 128, 128, 8
    $region5: #{sse_forward.7} parent=1 // pred_fallthru
      _
    // Predicated region
    $region6: #{sse_forward.7} parent=1 // pred_check
      _
    $region7: #{sse_forward.7} parent=1 // pred_check_branch
      %26 = sbr.rel (0) target = $region9
    $region8: #{sse_forward.7} parent=1 // pred_region
      %s28 = ssub.s32 1024, 1024
      %29 = vsyncadd [#allocation6], %s28
      %s30 = sshll.u32 [#allocation5], 4
      %s31 = int_to_ptr.vmem [resolvable:$true] %s30
      %36 = dma.hbm_to_vmem [thread:$0]  %s1, 1024, %s31, [#allocation6], 128, 128, 8
    $region9: #{sse_forward.7} parent=1 // pred_fallthru
      _
    // Predicated region
    $region10: #{sse_forward.7} parent=1 // pred_check
      _
    $region11: #{sse_forward.7} parent=1 // pred_check_branch
      %38 = sbr.rel (0) target = $region13
    $region12: #{sse_forward.7} parent=1 // pred_region
      %s40 = ssub.s32 16384, 16384
      %41 = vsyncadd [#allocation6], %s40
      %s42 = sshll.u32 [#allocation7], 4
      %s43 = int_to_ptr.vmem [resolvable:$true] %s42
      %48 = dma.hbm_to_vmem [thread:$0]  %s2, 16384, %s43, [#allocation6], 128, 128, 8
    $region13: #{sse_forward.7} parent=1 // pred_fallthru
      _
    // Predicated region
    $region14: #{sse_forward.7} parent=1 // pred_check
      _
    $region15: #{sse_forward.7} parent=1 // pred_check_branch
      %50 = sbr.rel (0) target = $region17
    $region16: #{sse_forward.7} parent=1 // pred_region
      %s52 = ssub.s32 16, 16
      %53 = vsyncadd [#allocation9], %s52
      %s55 = sshll.u32 [#allocation8], 4
      %s56 = int_to_ptr.vmem [resolvable:$true] %s55
      %58 = dma.hbm_to_vmem [thread:$0]  %s3, 16, %s56, [#allocation9]
    $region17: #{sse_forward.7} parent=1 // pred_fallthru
      _
    // Predicated region
    $region18: #{sse_forward.7} parent=1 // pred_check
      _
    $region19: #{sse_forward.7} parent=1 // pred_check_branch
      %60 = sbr.rel (0) target = $region21
    $region20: #{sse_forward.7} parent=1 // pred_region
      %61 = dma.done [#allocation3], 1024
    $region21: #{sse_forward.7} parent=1 // pred_fallthru
      _
    // Predicated region
    $region22: #{sse_forward.7} parent=1 // pred_check
      _
    $region23: #{sse_forward.7} parent=1 // pred_check_branch
      %63 = sbr.rel (0) target = $region25
    $region24: #{sse_forward.7} parent=1 // pred_region
      %64 = dma.done [#allocation6], 1024
    $region25: #{sse_forward.7} parent=1 // pred_fallthru
      _
    // Predicated region
    $region26: #{sse_forward.7} parent=1 // pred_check
      _
    $region27: #{sse_forward.7} parent=1 // pred_check_branch
      %66 = sbr.rel (0) target = $region29
    $region28: #{sse_forward.7} parent=1 // pred_region
      %67 = dma.done [#allocation6], 16384
    $region29: #{sse_forward.7} parent=1 // pred_fallthru
      _
    // Predicated region
    $region30: #{sse_forward.7} parent=1 // pred_check
      _
    $region31: #{sse_forward.7} parent=1 // pred_check_branch
      %69 = sbr.rel (0) target = $region33
    $region32: #{sse_forward.7} parent=1 // pred_region
      %70 = dma.done [#allocation9], 16
    $region33: #{sse_forward.7} parent=1 // pred_fallthru
      _
    %v71 = vld [vmem:[#allocation2] sm:$0xff]
    %v72 = vld [vmem:[#allocation2 + $0x8] sm:$0xff]
    %v73 = vld [vmem:[#allocation2 + $0x10] sm:$0xff]
    %v74 = vld [vmem:[#allocation2 + $0x18] sm:$0xff]
    %v75 = vld [vmem:[#allocation2 + $0x20] sm:$0xff]
    %v76 = vld [vmem:[#allocation2 + $0x28] sm:$0xff]
    %v77 = vld [vmem:[#allocation2 + $0x30] sm:$0xff]
    %v78 = vld [vmem:[#allocation2 + $0x38] sm:$0xff]
    %v79 = vunpack.c.l.bf16 %v71
    %v80 = vunpack.c.h.bf16 %v71
    %v81 = vunpack.c.l.bf16 %v72
    %v82 = vunpack.c.h.bf16 %v72
    %v83 = vunpack.c.l.bf16 %v73
    %v84 = vunpack.c.h.bf16 %v73
    %v85 = vunpack.c.l.bf16 %v74
    %v86 = vunpack.c.h.bf16 %v74
    %v87 = vunpack.c.l.bf16 %v75
    %v88 = vunpack.c.h.bf16 %v75
    %v89 = vunpack.c.l.bf16 %v76
    %v90 = vunpack.c.h.bf16 %v76
    %v91 = vunpack.c.l.bf16 %v77
    %v92 = vunpack.c.h.bf16 %v77
    %v93 = vunpack.c.l.bf16 %v78
    %v94 = vunpack.c.h.bf16 %v78
    %v95 = vld [vmem:[#allocation5] sm:$0xff]
    %v96 = vld [vmem:[#allocation5 + $0x8] sm:$0xff]
    %v97 = vld [vmem:[#allocation5 + $0x10] sm:$0xff]
    %v98 = vld [vmem:[#allocation5 + $0x18] sm:$0xff]
    %v99 = vld [vmem:[#allocation5 + $0x20] sm:$0xff]
    %v100 = vld [vmem:[#allocation5 + $0x28] sm:$0xff]
    %v101 = vld [vmem:[#allocation5 + $0x30] sm:$0xff]
    %v102 = vld [vmem:[#allocation5 + $0x38] sm:$0xff]
    %vm103 = vcmp.gt.f32.partialorder %v95, 0.0
    %vm104 = vcmp.gt.f32.partialorder %v96, 0.0
    %vm105 = vcmp.gt.f32.partialorder %v97, 0.0
    %vm106 = vcmp.gt.f32.partialorder %v98, 0.0
    %vm107 = vcmp.gt.f32.partialorder %v99, 0.0
    %vm108 = vcmp.gt.f32.partialorder %v100, 0.0
    %vm109 = vcmp.gt.f32.partialorder %v101, 0.0
    %vm110 = vcmp.gt.f32.partialorder %v102, 0.0
    %v111 = vsel %vm103, 1, 0
    %v112 = vsel %vm104, 1, 0
    %v113 = vsel %vm105, 1, 0
    %v114 = vsel %vm106, 1, 0
    %v115 = vsel %vm107, 1, 0
    %v116 = vsel %vm108, 1, 0
    %v117 = vsel %vm109, 1, 0
    %v118 = vsel %vm110, 1, 0
    %119 = vset.pattern.permute.xlu0 0
    %120 = vperm.xlu0 %119, %v111
    %v121 = vpop.permute.xlu0 %120
    %122 = vset.pattern.permute.xlu0 0
    %123 = vperm.xlu0 %122, %v112
    %v124 = vpop.permute.xlu0 %123
    %125 = vset.pattern.permute.xlu0 0
    %126 = vperm.xlu0 %125, %v113
    %v127 = vpop.permute.xlu0 %126
    %128 = vset.pattern.permute.xlu0 0
    %129 = vperm.xlu0 %128, %v114
    %v130 = vpop.permute.xlu0 %129
    %131 = vset.pattern.permute.xlu0 0
    %132 = vperm.xlu0 %131, %v115
    %v133 = vpop.permute.xlu0 %132
    %134 = vset.pattern.permute.xlu0 0
    %135 = vperm.xlu0 %134, %v116
    %v136 = vpop.permute.xlu0 %135
    %137 = vset.pattern.permute.xlu0 0
    %138 = vperm.xlu0 %137, %v117
    %v139 = vpop.permute.xlu0 %138
    %140 = vset.pattern.permute.xlu0 0
    %141 = vperm.xlu0 %140, %v118
    %v142 = vpop.permute.xlu0 %141
    %vm143 = vcmp.eq.s32.totalorder %v121, 1
    %vm144 = vcmp.eq.s32.totalorder %v124, 1
    %vm145 = vcmp.eq.s32.totalorder %v127, 1
    %vm146 = vcmp.eq.s32.totalorder %v130, 1
    %vm147 = vcmp.eq.s32.totalorder %v133, 1
    %vm148 = vcmp.eq.s32.totalorder %v136, 1
    %vm149 = vcmp.eq.s32.totalorder %v139, 1
    %vm150 = vcmp.eq.s32.totalorder %v142, 1
    %v151 = vsel %vm143, %v79, -10000000.0
    %v152 = vsel %vm143, %v80, -10000000.0
    %v153 = vsel %vm144, %v81, -10000000.0
    %v154 = vsel %vm144, %v82, -10000000.0
    %v155 = vsel %vm145, %v83, -10000000.0
    %v156 = vsel %vm145, %v84, -10000000.0
    %v157 = vsel %vm146, %v85, -10000000.0
    %v158 = vsel %vm146, %v86, -10000000.0
    %v159 = vsel %vm147, %v87, -10000000.0
    %v160 = vsel %vm147, %v88, -10000000.0
    %v161 = vsel %vm148, %v89, -10000000.0
    %v162 = vsel %vm148, %v90, -10000000.0
    %v163 = vsel %vm149, %v91, -10000000.0
    %v164 = vsel %vm149, %v92, -10000000.0
    %v165 = vsel %vm150, %v93, -10000000.0
    %v166 = vsel %vm150, %v94, -10000000.0
    %v167 = vmax.f32 %v151, %v155
    %v168 = vmax.f32 %v153, %v157
    %v169 = vmax.f32 %v167, %v159
    %v170 = vmax.f32 %v168, %v161
    %v171 = vmax.f32 %v169, %v163
    %v172 = vmax.f32 %v170, %v165
    %v173 = vmax.f32 %v171, %v172
    %v174 = vmax.f32 %v152, %v156
    %v175 = vmax.f32 %v154, %v158
    %v176 = vmax.f32 %v174, %v160
    %v177 = vmax.f32 %v175, %v162
    %v178 = vmax.f32 %v176, %v164
    %v179 = vmax.f32 %v177, %v166
    %v180 = vmax.f32 %v178, %v179
    %v183 = vrot.slane %v173, 2
    %v184 = vrot.slane %v180, 2
    %v187 = vsub.f32 %v173, %v183
    %v188 = vsub.f32 %v180, %v184
    %v189 = vand.u32 2147483647, %v187
    %v190 = vand.u32 2147483647, %v188
    %v191 = vmul.f32 %v173, %v183
    %v192 = vmul.f32 %v180, %v184
    %v193 = vld [vmem:[#allocation7] sm:$0xff]
    %v194 = vld [vmem:[#allocation7 + $0x8] sm:$0xff]
    %v195 = vld [vmem:[#allocation7 + $0x10] sm:$0xff]
    %v196 = vld [vmem:[#allocation7 + $0x18] sm:$0xff]
    %v197 = vld [vmem:[#allocation7 + $0x20] sm:$0xff]
    %v198 = vld [vmem:[#allocation7 + $0x28] sm:$0xff]
    %v199 = vld [vmem:[#allocation7 + $0x30] sm:$0xff]
    %v200 = vld [vmem:[#allocation7 + $0x38] sm:$0xff]
    %v201 = vld [vmem:[#allocation7 + $0x40] sm:$0xff]
    %v202 = vld [vmem:[#allocation7 + $0x48] sm:$0xff]
    %v203 = vld [vmem:[#allocation7 + $0x50] sm:$0xff]
    %v204 = vld [vmem:[#allocation7 + $0x58] sm:$0xff]
    %v205 = vld [vmem:[#allocation7 + $0x60] sm:$0xff]
    %v206 = vld [vmem:[#allocation7 + $0x68] sm:$0xff]
    %v207 = vld [vmem:[#allocation7 + $0x70] sm:$0xff]
    %v208 = vld [vmem:[#allocation7 + $0x78] sm:$0xff]
    %v209 = vld [vmem:[#allocation7 + $0x80] sm:$0xff]
    %v210 = vld [vmem:[#allocation7 + $0x88] sm:$0xff]
    %v211 = vld [vmem:[#allocation7 + $0x90] sm:$0xff]
    %v212 = vld [vmem:[#allocation7 + $0x98] sm:$0xff]
    %v213 = vld [vmem:[#allocation7 + $0xa0] sm:$0xff]
    %v214 = vld [vmem:[#allocation7 + $0xa8] sm:$0xff]
    %v215 = vld [vmem:[#allocation7 + $0xb0] sm:$0xff]
    %v216 = vld [vmem:[#allocation7 + $0xb8] sm:$0xff]
    %v217 = vld [vmem:[#allocation7 + $0xc0] sm:$0xff]
    %v218 = vld [vmem:[#allocation7 + $0xc8] sm:$0xff]
    %v219 = vld [vmem:[#allocation7 + $0xd0] sm:$0xff]
    %v220 = vld [vmem:[#allocation7 + $0xd8] sm:$0xff]
    %v221 = vld [vmem:[#allocation7 + $0xe0] sm:$0xff]
    %v222 = vld [vmem:[#allocation7 + $0xe8] sm:$0xff]
    %v223 = vld [vmem:[#allocation7 + $0xf0] sm:$0xff]
    %v224 = vld [vmem:[#allocation7 + $0xf8] sm:$0xff]
    %v225 = vld [vmem:[#allocation7 + $0x100] sm:$0xff]
    %v226 = vld [vmem:[#allocation7 + $0x108] sm:$0xff]
    %v227 = vld [vmem:[#allocation7 + $0x110] sm:$0xff]
    %v228 = vld [vmem:[#allocation7 + $0x118] sm:$0xff]
    %v229 = vld [vmem:[#allocation7 + $0x120] sm:$0xff]
    %v230 = vld [vmem:[#allocation7 + $0x128] sm:$0xff]
    %v231 = vld [vmem:[#allocation7 + $0x130] sm:$0xff]
    %v232 = vld [vmem:[#allocation7 + $0x138] sm:$0xff]
    %v233 = vld [vmem:[#allocation7 + $0x140] sm:$0xff]
    %v234 = vld [vmem:[#allocation7 + $0x148] sm:$0xff]
    %v235 = vld [vmem:[#allocation7 + $0x150] sm:$0xff]
    %v236 = vld [vmem:[#allocation7 + $0x158] sm:$0xff]
    %v237 = vld [vmem:[#allocation7 + $0x160] sm:$0xff]
    %v238 = vld [vmem:[#allocation7 + $0x168] sm:$0xff]
    %v239 = vld [vmem:[#allocation7 + $0x170] sm:$0xff]
    %v240 = vld [vmem:[#allocation7 + $0x178] sm:$0xff]
    %v241 = vld [vmem:[#allocation7 + $0x180] sm:$0xff]
    %v242 = vld [vmem:[#allocation7 + $0x188] sm:$0xff]
    %v243 = vld [vmem:[#allocation7 + $0x190] sm:$0xff]
    %v244 = vld [vmem:[#allocation7 + $0x198] sm:$0xff]
    %v245 = vld [vmem:[#allocation7 + $0x1a0] sm:$0xff]
    %v246 = vld [vmem:[#allocation7 + $0x1a8] sm:$0xff]
    %v247 = vld [vmem:[#allocation7 + $0x1b0] sm:$0xff]
    %v248 = vld [vmem:[#allocation7 + $0x1b8] sm:$0xff]
    %v249 = vld [vmem:[#allocation7 + $0x1c0] sm:$0xff]
    %v250 = vld [vmem:[#allocation7 + $0x1c8] sm:$0xff]
    %v251 = vld [vmem:[#allocation7 + $0x1d0] sm:$0xff]
    %v252 = vld [vmem:[#allocation7 + $0x1d8] sm:$0xff]
    %v253 = vld [vmem:[#allocation7 + $0x1e0] sm:$0xff]
    %v254 = vld [vmem:[#allocation7 + $0x1e8] sm:$0xff]
    %v255 = vld [vmem:[#allocation7 + $0x1f0] sm:$0xff]
    %v256 = vld [vmem:[#allocation7 + $0x1f8] sm:$0xff]
    %v257 = vld [vmem:[#allocation7 + $0x200] sm:$0xff]
    %v258 = vld [vmem:[#allocation7 + $0x208] sm:$0xff]
    %v259 = vld [vmem:[#allocation7 + $0x210] sm:$0xff]
    %v260 = vld [vmem:[#allocation7 + $0x218] sm:$0xff]
    %v261 = vld [vmem:[#allocation7 + $0x220] sm:$0xff]
    %v262 = vld [vmem:[#allocation7 + $0x228] sm:$0xff]
    %v263 = vld [vmem:[#allocation7 + $0x230] sm:$0xff]
    %v264 = vld [vmem:[#allocation7 + $0x238] sm:$0xff]
    %v265 = vld [vmem:[#allocation7 + $0x240] sm:$0xff]
    %v266 = vld [vmem:[#allocation7 + $0x248] sm:$0xff]
    %v267 = vld [vmem:[#allocation7 + $0x250] sm:$0xff]
    %v268 = vld [vmem:[#allocation7 + $0x258] sm:$0xff]
    %v269 = vld [vmem:[#allocation7 + $0x260] sm:$0xff]
    %v270 = vld [vmem:[#allocation7 + $0x268] sm:$0xff]
    %v271 = vld [vmem:[#allocation7 + $0x270] sm:$0xff]
    %v272 = vld [vmem:[#allocation7 + $0x278] sm:$0xff]
    %v273 = vld [vmem:[#allocation7 + $0x280] sm:$0xff]
    %v274 = vld [vmem:[#allocation7 + $0x288] sm:$0xff]
    %v275 = vld [vmem:[#allocation7 + $0x290] sm:$0xff]
    %v276 = vld [vmem:[#allocation7 + $0x298] sm:$0xff]
    %v277 = vld [vmem:[#allocation7 + $0x2a0] sm:$0xff]
    %v278 = vld [vmem:[#allocation7 + $0x2a8] sm:$0xff]
    %v279 = vld [vmem:[#allocation7 + $0x2b0] sm:$0xff]
    %v280 = vld [vmem:[#allocation7 + $0x2b8] sm:$0xff]
    %v281 = vld [vmem:[#allocation7 + $0x2c0] sm:$0xff]
    %v282 = vld [vmem:[#allocation7 + $0x2c8] sm:$0xff]
    %v283 = vld [vmem:[#allocation7 + $0x2d0] sm:$0xff]
    %v284 = vld [vmem:[#allocation7 + $0x2d8] sm:$0xff]
    %v285 = vld [vmem:[#allocation7 + $0x2e0] sm:$0xff]
    %v286 = vld [vmem:[#allocation7 + $0x2e8] sm:$0xff]
    %v287 = vld [vmem:[#allocation7 + $0x2f0] sm:$0xff]
    %v288 = vld [vmem:[#allocation7 + $0x2f8] sm:$0xff]
    %v289 = vld [vmem:[#allocation7 + $0x300] sm:$0xff]
    %v290 = vld [vmem:[#allocation7 + $0x308] sm:$0xff]
    %v291 = vld [vmem:[#allocation7 + $0x310] sm:$0xff]
    %v292 = vld [vmem:[#allocation7 + $0x318] sm:$0xff]
    %v293 = vld [vmem:[#allocation7 + $0x320] sm:$0xff]
    %v294 = vld [vmem:[#allocation7 + $0x328] sm:$0xff]
    %v295 = vld [vmem:[#allocation7 + $0x330] sm:$0xff]
    %v296 = vld [vmem:[#allocation7 + $0x338] sm:$0xff]
    %v297 = vld [vmem:[#allocation7 + $0x340] sm:$0xff]
    %v298 = vld [vmem:[#allocation7 + $0x348] sm:$0xff]
    %v299 = vld [vmem:[#allocation7 + $0x350] sm:$0xff]
    %v300 = vld [vmem:[#allocation7 + $0x358] sm:$0xff]
    %v301 = vld [vmem:[#allocation7 + $0x360] sm:$0xff]
    %v302 = vld [vmem:[#allocation7 + $0x368] sm:$0xff]
    %v303 = vld [vmem:[#allocation7 + $0x370] sm:$0xff]
    %v304 = vld [vmem:[#allocation7 + $0x378] sm:$0xff]
    %v305 = vld [vmem:[#allocation7 + $0x380] sm:$0xff]
    %v306 = vld [vmem:[#allocation7 + $0x388] sm:$0xff]
    %v307 = vld [vmem:[#allocation7 + $0x390] sm:$0xff]
    %v308 = vld [vmem:[#allocation7 + $0x398] sm:$0xff]
    %v309 = vld [vmem:[#allocation7 + $0x3a0] sm:$0xff]
    %v310 = vld [vmem:[#allocation7 + $0x3a8] sm:$0xff]
    %v311 = vld [vmem:[#allocation7 + $0x3b0] sm:$0xff]
    %v312 = vld [vmem:[#allocation7 + $0x3b8] sm:$0xff]
    %v313 = vld [vmem:[#allocation7 + $0x3c0] sm:$0xff]
    %v314 = vld [vmem:[#allocation7 + $0x3c8] sm:$0xff]
    %v315 = vld [vmem:[#allocation7 + $0x3d0] sm:$0xff]
    %v316 = vld [vmem:[#allocation7 + $0x3d8] sm:$0xff]
    %v317 = vld [vmem:[#allocation7 + $0x3e0] sm:$0xff]
    %v318 = vld [vmem:[#allocation7 + $0x3e8] sm:$0xff]
    %v319 = vld [vmem:[#allocation7 + $0x3f0] sm:$0xff]
    %v320 = vld [vmem:[#allocation7 + $0x3f8] sm:$0xff]
    %v321 = vld [vmem:[#allocation8] sm:$0x1]
    %v323 = vlaneseq
    %v324 = vshrl.u32 %v323, 7
    %v325 = vsub.s32 0, %v324
    %v326 = vrot.slane %v321, %v325
    %328 = vmatprep.subr.mxu0 0.0
    %329 = vmatpush1.msra.mxu0 %v193
    %330 = vmatprep.subr.mxu0 0.0
    %331 = vmatpush1.msra.mxu0 %v194
    %332 = vmatprep.subr.mxu0 0.0
    %333 = vmatpush1.msra.mxu0 %v195
    %334 = vmatprep.subr.mxu0 0.0
    %335 = vmatpush1.msra.mxu0 %v196
    %336 = vmatprep.subr.mxu0 0.0
    %337 = vmatpush1.msra.mxu0 %v197
    %338 = vmatprep.subr.mxu0 0.0
    %339 = vmatpush1.msra.mxu0 %v198
    %340 = vmatprep.subr.mxu0 0.0
    %341 = vmatpush1.msra.mxu0 %v199
    %342 = vmatprep.subr.mxu0 0.0
    %343 = vmatpush1.msra.mxu0 %v200
    %344 = vmatprep.subr.mxu0 0.0
    %345 = vmatpush1.msra.mxu0 %v201
    %346 = vmatprep.subr.mxu0 0.0
    %347 = vmatpush1.msra.mxu0 %v202
    %348 = vmatprep.subr.mxu0 0.0
    %349 = vmatpush1.msra.mxu0 %v203
    %350 = vmatprep.subr.mxu0 0.0
    %351 = vmatpush1.msra.mxu0 %v204
    %352 = vmatprep.subr.mxu0 0.0
    %353 = vmatpush1.msra.mxu0 %v205
    %354 = vmatprep.subr.mxu0 0.0
    %355 = vmatpush1.msra.mxu0 %v206
    %356 = vmatprep.subr.mxu0 0.0
    %357 = vmatpush1.msra.mxu0 %v207
    %358 = vmatprep.subr.mxu0 0.0
    %359 = vmatpush1.msra.mxu0 %v208
    %360 = vmatprep.subr.mxu0 0.0
    %361 = vmatpush1.msra.mxu0 %v209
    %362 = vmatprep.subr.mxu0 0.0
    %363 = vmatpush1.msra.mxu0 %v210
    %364 = vmatprep.subr.mxu0 0.0
    %365 = vmatpush1.msra.mxu0 %v211
    %366 = vmatprep.subr.mxu0 0.0
    %367 = vmatpush1.msra.mxu0 %v212
    %368 = vmatprep.subr.mxu0 0.0
    %369 = vmatpush1.msra.mxu0 %v213
    %370 = vmatprep.subr.mxu0 0.0
    %371 = vmatpush1.msra.mxu0 %v214
    %372 = vmatprep.subr.mxu0 0.0
    %373 = vmatpush1.msra.mxu0 %v215
    %374 = vmatprep.subr.mxu0 0.0
    %375 = vmatpush1.msra.mxu0 %v216
    %376 = vmatprep.subr.mxu0 0.0
    %377 = vmatpush1.msra.mxu0 %v217
    %378 = vmatprep.subr.mxu0 0.0
    %379 = vmatpush1.msra.mxu0 %v218
    %380 = vmatprep.subr.mxu0 0.0
    %381 = vmatpush1.msra.mxu0 %v219
    %382 = vmatprep.subr.mxu0 0.0
    %383 = vmatpush1.msra.mxu0 %v220
    %384 = vmatprep.subr.mxu0 0.0
    %385 = vmatpush1.msra.mxu0 %v221
    %386 = vmatprep.subr.mxu0 0.0
    %387 = vmatpush1.msra.mxu0 %v222
    %388 = vmatprep.subr.mxu0 0.0
    %389 = vmatpush1.msra.mxu0 %v223
    %390 = vmatprep.subr.mxu0 0.0
    %391 = vmatpush1.msra.mxu0 %v224
    %392 = vmatprep.mubr.f32.mxu0 %v180
    %393 = vmatmul.mubr.f32.gmra.mrb[0].mxu0 %v173
    %v394 = vpop.f32.mrb[0].mxu0
    %v395 = vadd.f32 %v326, %v394
    %v396 = vpop.f32.mrb[0].mxu0
    %397 = vdwg.mxu0
    %398 = vmatprep.subr.mxu0 0.0
    %399 = vmatpush1.msra.mxu0 %v225
    %400 = vmatprep.subr.mxu0 0.0
    %401 = vmatpush1.msra.mxu0 %v226
    %402 = vmatprep.subr.mxu0 0.0
    %403 = vmatpush1.msra.mxu0 %v227
    %404 = vmatprep.subr.mxu0 0.0
    %405 = vmatpush1.msra.mxu0 %v228
    %406 = vmatprep.subr.mxu0 0.0
    %407 = vmatpush1.msra.mxu0 %v229
    %408 = vmatprep.subr.mxu0 0.0
    %409 = vmatpush1.msra.mxu0 %v230
    %410 = vmatprep.subr.mxu0 0.0
    %411 = vmatpush1.msra.mxu0 %v231
    %412 = vmatprep.subr.mxu0 0.0
    %413 = vmatpush1.msra.mxu0 %v232
    %414 = vmatprep.subr.mxu0 0.0
    %415 = vmatpush1.msra.mxu0 %v233
    %416 = vmatprep.subr.mxu0 0.0
    %417 = vmatpush1.msra.mxu0 %v234
    %418 = vmatprep.subr.mxu0 0.0
    %419 = vmatpush1.msra.mxu0 %v235
    %420 = vmatprep.subr.mxu0 0.0
    %421 = vmatpush1.msra.mxu0 %v236
    %422 = vmatprep.subr.mxu0 0.0
    %423 = vmatpush1.msra.mxu0 %v237
    %424 = vmatprep.subr.mxu0 0.0
    %425 = vmatpush1.msra.mxu0 %v238
    %426 = vmatprep.subr.mxu0 0.0
    %427 = vmatpush1.msra.mxu0 %v239
    %428 = vmatprep.subr.mxu0 0.0
    %429 = vmatpush1.msra.mxu0 %v240
    %430 = vmatprep.subr.mxu0 0.0
    %431 = vmatpush1.msra.mxu0 %v241
    %432 = vmatprep.subr.mxu0 0.0
    %433 = vmatpush1.msra.mxu0 %v242
    %434 = vmatprep.subr.mxu0 0.0
    %435 = vmatpush1.msra.mxu0 %v243
    %436 = vmatprep.subr.mxu0 0.0
    %437 = vmatpush1.msra.mxu0 %v244
    %438 = vmatprep.subr.mxu0 0.0
    %439 = vmatpush1.msra.mxu0 %v245
    %440 = vmatprep.subr.mxu0 0.0
    %441 = vmatpush1.msra.mxu0 %v246
    %442 = vmatprep.subr.mxu0 0.0
    %443 = vmatpush1.msra.mxu0 %v247
    %444 = vmatprep.subr.mxu0 0.0
    %445 = vmatpush1.msra.mxu0 %v248
    %446 = vmatprep.subr.mxu0 0.0
    %447 = vmatpush1.msra.mxu0 %v249
    %448 = vmatprep.subr.mxu0 0.0
    %449 = vmatpush1.msra.mxu0 %v250
    %450 = vmatprep.subr.mxu0 0.0
    %451 = vmatpush1.msra.mxu0 %v251
    %452 = vmatprep.subr.mxu0 0.0
    %453 = vmatpush1.msra.mxu0 %v252
    %454 = vmatprep.subr.mxu0 0.0
    %455 = vmatpush1.msra.mxu0 %v253
    %456 = vmatprep.subr.mxu0 0.0
    %457 = vmatpush1.msra.mxu0 %v254
    %458 = vmatprep.subr.mxu0 0.0
    %459 = vmatpush1.msra.mxu0 %v255
    %460 = vmatprep.subr.mxu0 0.0
    %461 = vmatpush1.msra.mxu0 %v256
    %462 = vmatprep.mubr.f32.mxu0 %v184
    %463 = vmatmul.mubr.f32.gmra.mrb[0].mxu0 %v183
    %v464 = vpop.f32.mrb[0].mxu0
    %v465 = vadd.f32 %v395, %v464
    %v466 = vpop.f32.mrb[0].mxu0
    %467 = vdwg.mxu0
    %468 = vmatprep.subr.mxu0 0.0
    %469 = vmatpush1.msra.mxu0 %v257
    %470 = vmatprep.subr.mxu0 0.0
    %471 = vmatpush1.msra.mxu0 %v258
    %472 = vmatprep.subr.mxu0 0.0
    %473 = vmatpush1.msra.mxu0 %v259
    %474 = vmatprep.subr.mxu0 0.0
    %475 = vmatpush1.msra.mxu0 %v260
    %476 = vmatprep.subr.mxu0 0.0
    %477 = vmatpush1.msra.mxu0 %v261
    %478 = vmatprep.subr.mxu0 0.0
    %479 = vmatpush1.msra.mxu0 %v262
    %480 = vmatprep.subr.mxu0 0.0
    %481 = vmatpush1.msra.mxu0 %v263
    %482 = vmatprep.subr.mxu0 0.0
    %483 = vmatpush1.msra.mxu0 %v264
    %484 = vmatprep.subr.mxu0 0.0
    %485 = vmatpush1.msra.mxu0 %v265
    %486 = vmatprep.subr.mxu0 0.0
    %487 = vmatpush1.msra.mxu0 %v266
    %488 = vmatprep.subr.mxu0 0.0
    %489 = vmatpush1.msra.mxu0 %v267
    %490 = vmatprep.subr.mxu0 0.0
    %491 = vmatpush1.msra.mxu0 %v268
    %492 = vmatprep.subr.mxu0 0.0
    %493 = vmatpush1.msra.mxu0 %v269
    %494 = vmatprep.subr.mxu0 0.0
    %495 = vmatpush1.msra.mxu0 %v270
    %496 = vmatprep.subr.mxu0 0.0
    %497 = vmatpush1.msra.mxu0 %v271
    %498 = vmatprep.subr.mxu0 0.0
    %499 = vmatpush1.msra.mxu0 %v272
    %500 = vmatprep.subr.mxu0 0.0
    %501 = vmatpush1.msra.mxu0 %v273
    %502 = vmatprep.subr.mxu0 0.0
    %503 = vmatpush1.msra.mxu0 %v274
    %504 = vmatprep.subr.mxu0 0.0
    %505 = vmatpush1.msra.mxu0 %v275
    %506 = vmatprep.subr.mxu0 0.0
    %507 = vmatpush1.msra.mxu0 %v276
    %508 = vmatprep.subr.mxu0 0.0
    %509 = vmatpush1.msra.mxu0 %v277
    %510 = vmatprep.subr.mxu0 0.0
    %511 = vmatpush1.msra.mxu0 %v278
    %512 = vmatprep.subr.mxu0 0.0
    %513 = vmatpush1.msra.mxu0 %v279
    %514 = vmatprep.subr.mxu0 0.0
    %515 = vmatpush1.msra.mxu0 %v280
    %516 = vmatprep.subr.mxu0 0.0
    %517 = vmatpush1.msra.mxu0 %v281
    %518 = vmatprep.subr.mxu0 0.0
    %519 = vmatpush1.msra.mxu0 %v282
    %520 = vmatprep.subr.mxu0 0.0
    %521 = vmatpush1.msra.mxu0 %v283
    %522 = vmatprep.subr.mxu0 0.0
    %523 = vmatpush1.msra.mxu0 %v284
    %524 = vmatprep.subr.mxu0 0.0
    %525 = vmatpush1.msra.mxu0 %v285
    %526 = vmatprep.subr.mxu0 0.0
    %527 = vmatpush1.msra.mxu0 %v286
    %528 = vmatprep.subr.mxu0 0.0
    %529 = vmatpush1.msra.mxu0 %v287
    %530 = vmatprep.subr.mxu0 0.0
    %531 = vmatpush1.msra.mxu0 %v288
    %532 = vmatprep.mubr.f32.mxu0 %v190
    %533 = vmatmul.mubr.f32.gmra.mrb[0].mxu0 %v189
    %v534 = vpop.f32.mrb[0].mxu0
    %v535 = vadd.f32 %v465, %v534
    %v536 = vpop.f32.mrb[0].mxu0
    %537 = vdwg.mxu0
    %538 = vmatprep.subr.mxu0 0.0
    %539 = vmatpush1.msra.mxu0 %v289
    %540 = vmatprep.subr.mxu0 0.0
    %541 = vmatpush1.msra.mxu0 %v290
    %542 = vmatprep.subr.mxu0 0.0
    %543 = vmatpush1.msra.mxu0 %v291
    %544 = vmatprep.subr.mxu0 0.0
    %545 = vmatpush1.msra.mxu0 %v292
    %546 = vmatprep.subr.mxu0 0.0
    %547 = vmatpush1.msra.mxu0 %v293
    %548 = vmatprep.subr.mxu0 0.0
    %549 = vmatpush1.msra.mxu0 %v294
    %550 = vmatprep.subr.mxu0 0.0
    %551 = vmatpush1.msra.mxu0 %v295
    %552 = vmatprep.subr.mxu0 0.0
    %553 = vmatpush1.msra.mxu0 %v296
    %554 = vmatprep.subr.mxu0 0.0
    %555 = vmatpush1.msra.mxu0 %v297
    %556 = vmatprep.subr.mxu0 0.0
    %557 = vmatpush1.msra.mxu0 %v298
    %558 = vmatprep.subr.mxu0 0.0
    %559 = vmatpush1.msra.mxu0 %v299
    %560 = vmatprep.subr.mxu0 0.0
    %561 = vmatpush1.msra.mxu0 %v300
    %562 = vmatprep.subr.mxu0 0.0
    %563 = vmatpush1.msra.mxu0 %v301
    %564 = vmatprep.subr.mxu0 0.0
    %565 = vmatpush1.msra.mxu0 %v302
    %566 = vmatprep.subr.mxu0 0.0
    %567 = vmatpush1.msra.mxu0 %v303
    %568 = vmatprep.subr.mxu0 0.0
    %569 = vmatpush1.msra.mxu0 %v304
    %570 = vmatprep.subr.mxu0 0.0
    %571 = vmatpush1.msra.mxu0 %v305
    %572 = vmatprep.subr.mxu0 0.0
    %573 = vmatpush1.msra.mxu0 %v306
    %574 = vmatprep.subr.mxu0 0.0
    %575 = vmatpush1.msra.mxu0 %v307
    %576 = vmatprep.subr.mxu0 0.0
    %577 = vmatpush1.msra.mxu0 %v308
    %578 = vmatprep.subr.mxu0 0.0
    %579 = vmatpush1.msra.mxu0 %v309
    %580 = vmatprep.subr.mxu0 0.0
    %581 = vmatpush1.msra.mxu0 %v310
    %582 = vmatprep.subr.mxu0 0.0
    %583 = vmatpush1.msra.mxu0 %v311
    %584 = vmatprep.subr.mxu0 0.0
    %585 = vmatpush1.msra.mxu0 %v312
    %586 = vmatprep.subr.mxu0 0.0
    %587 = vmatpush1.msra.mxu0 %v313
    %588 = vmatprep.subr.mxu0 0.0
    %589 = vmatpush1.msra.mxu0 %v314
    %590 = vmatprep.subr.mxu0 0.0
    %591 = vmatpush1.msra.mxu0 %v315
    %592 = vmatprep.subr.mxu0 0.0
    %593 = vmatpush1.msra.mxu0 %v316
    %594 = vmatprep.subr.mxu0 0.0
    %595 = vmatpush1.msra.mxu0 %v317
    %596 = vmatprep.subr.mxu0 0.0
    %597 = vmatpush1.msra.mxu0 %v318
    %598 = vmatprep.subr.mxu0 0.0
    %599 = vmatpush1.msra.mxu0 %v319
    %600 = vmatprep.subr.mxu0 0.0
    %601 = vmatpush1.msra.mxu0 %v320
    %602 = vmatprep.mubr.f32.mxu0 %v192
    %603 = vmatmul.mubr.f32.gmra.mrb[0].mxu0 %v191
    %v604 = vpop.f32.mrb[0].mxu0
    %v605 = vadd.f32 %v535, %v604
    %v606 = vpop.f32.mrb[0].mxu0
    %607 = vdwg.mxu0
    %vm608 = vcmask 17408
    %609 = vst.msk [vmem:[#allocation10] sm:$0x3] %vm608, %v605
    // Predicated region
    $region34: #{sse_forward.7} parent=1 // pred_check
      _
    $region35: #{sse_forward.7} parent=1 // pred_check_branch
      %611 = sbr.rel (0) target = $region37
    $region36: #{sse_forward.7} parent=1 // pred_region
      %s613 = ssub.s32 32, 32
      %614 = vsyncadd [#allocation4], %s613
      %s616 = sshll.u32 [#allocation10], 4
      %s617 = int_to_ptr.vmem [resolvable:$true] %s616
      %619 = dma.vmem_to_hbm [thread:$0]  %s617, 32, %s4, [#allocation4]
    $region37: #{sse_forward.7} parent=1 // pred_fallthru
      _
    // Predicated region
    $region38: #{sse_forward.7} parent=1 // pred_check
      _
    $region39: #{sse_forward.7} parent=1 // pred_check_branch
      %621 = sbr.rel (0) target = $region41
    $region40: #{sse_forward.7} parent=1 // pred_region
      %622 = dma.done [#allocation4], 32
    $region41: #{sse_forward.7} parent=1 // pred_fallthru
      _
    %623 = vsyncpa [#allocation3], 1
    %624 = vsyncpa [#allocation6], 1
    %625 = vsyncpa [#allocation9], 1
    %626 = vsyncpa [#allocation4], 1

// kernel: sse_forward.4
$region0: #{sse_forward.4}
  #allocation0 [shape = 'u32[]', space=smem, size = 0x4, offset = 0x4, fixed_abs, tag = 'smem constant byte address 0x4 - core index']
  #allocation1 [shape = 'u32[144,128]{1,0:T(1,128)}', space=vmem, size = 0x12000, scoped, tag = 'internal scratch']
  #allocation2 [shape = 'f32[64,1024]{1,0:T(8,128)}', space=vmem, size = 0x40000, scoped, tag = 'scratch operand']
  #allocation3 [shape = 'f32[8,128]{1,0:T(8,128)}', space=vmem, size = 0x1000, scoped, tag = 'scratch operand']
  #allocation4 [shape = 'f32[8,128]{1,0:T(8,128)}', space=vmem, size = 0x1000, scoped, tag = 'scratch operand']
  #allocation5 [shape = 'f32[8,128]{1,0:T(8,128)}', space=vmem, size = 0x1000, scoped, tag = 'scratch operand']
  #allocation6 [shape = 'f32[8,128]{1,0:T(8,128)}', space=vmem, size = 0x1000, scoped, tag = 'scratch operand']
  %s0 = inlined_call_operand.hbm [shape: bf16[64,128], index: 0, kind: input, shape index: {}]
  %s1 = inlined_call_operand.hbm [shape: f32[8,8,1], index: 1, kind: input, shape index: {}]
  %s2 = inlined_call_operand.hbm [shape: bf16[128,1024], index: 2, kind: input, shape index: {}]
  %s3 = inlined_call_operand.hbm [shape: bf16[128,512], index: 3, kind: input, shape index: {}]
  %s4 = inlined_call_operand.hbm [shape: bf16[128,512], index: 4, kind: input, shape index: {}]
  %s5 = inlined_call_operand.hbm [shape: f32[1,1024], index: 5, kind: input, shape index: {}]
  %s6 = inlined_call_operand.hbm [shape: bf16[8,8,256], index: 6, kind: output, shape index: {}]
  %s7 = sld [smem:[#allocation0]]
  $region65: #{sse_forward.4} parent=0
    _
  %s9 = ssub.s32 1, %s7
  %s10 = scalar_select 0, %s9, %s7
  $region1: #{sse_forward.4} parent=0
    #allocation7 [shape = 'u8[16384]{0}', space=vmem, size = 0x4000, scoped, tag = 'input window, operand 0, single buffered']
    #allocation8 [shape = 's32[1]{0}', space=sflag, size = 0x4, scoped, tag = 'scoped memory for sse_forward.4']
    #allocation9 [shape = 's32[1]{0}', space=sflag, size = 0x4, scoped, tag = 'scoped memory for sse_forward.4']
    #allocation10 [shape = 'u8[32768]{0}', space=vmem, size = 0x8000, scoped, tag = 'input window, operand 1, single buffered']
    #allocation11 [shape = 's32[1]{0}', space=sflag, size = 0x4, scoped, tag = 'scoped memory for sse_forward.4']
    #allocation12 [shape = 'u8[262144]{0}', space=vmem, size = 0x40000, scoped, tag = 'input window, operand 2, single buffered']
    #allocation13 [shape = 'u8[131072]{0}', space=vmem, size = 0x20000, scoped, tag = 'input window, operand 3, single buffered']
    #allocation14 [shape = 's32[1]{0}', space=sflag, size = 0x4, scoped, tag = 'scoped memory for sse_forward.4']
    #allocation15 [shape = 'u8[131072]{0}', space=vmem, size = 0x20000, scoped, tag = 'input window, operand 4, single buffered']
    #allocation16 [shape = 'u8[4096]{0}', space=vmem, size = 0x1000, scoped, tag = 'input window, operand 5, single buffered']
    #allocation17 [shape = 's32[1]{0}', space=sflag, size = 0x4, scoped, tag = 'scoped memory for sse_forward.4']
    #allocation18 [shape = 'u8[32768]{0}', space=vmem, size = 0x8000, scoped, tag = 'output window, operand 0, single buffered']
    %11 = vsyncpa [#allocation8], 0
    %12 = vsyncpa [#allocation11], 0
    %13 = vsyncpa [#allocation14], 0
    %14 = vsyncpa [#allocation17], 0
    %15 = vsyncpa [#allocation9], 0
    // Predicated region
    $region2: #{sse_forward.4} parent=1 // pred_check
      _
    $region3: #{sse_forward.4} parent=1 // pred_check_branch
      %17 = sbr.rel (0) target = $region5
    $region4: #{sse_forward.4} parent=1 // pred_region
      %s19 = ssub.s32 512, 512
      %20 = vsyncadd [#allocation8], %s19
      %s21 = sshll.u32 [#allocation7], 4
      %s22 = int_to_ptr.vmem [resolvable:$true] %s21
      %27 = dma.hbm_to_vmem [thread:$0]  %s0, 512, %s22, [#allocation8], 64, 64, 4
    $region5: #{sse_forward.4} parent=1 // pred_fallthru
      _
    // Predicated region
    $region6: #{sse_forward.4} parent=1 // pred_check
      _
    $region7: #{sse_forward.4} parent=1 // pred_check_branch
      %29 = sbr.rel (0) target = $region9
    $region8: #{sse_forward.4} parent=1 // pred_region
      %s31 = ssub.s32 1024, 1024
      %32 = vsyncadd [#allocation11], %s31
      %s33 = sshll.u32 [#allocation10], 4
      %s34 = int_to_ptr.vmem [resolvable:$true] %s33
      %39 = dma.hbm_to_vmem [thread:$0]  %s1, 1024, %s34, [#allocation11], 128, 128, 8
    $region9: #{sse_forward.4} parent=1 // pred_fallthru
      _
    // Predicated region
    $region10: #{sse_forward.4} parent=1 // pred_check
      _
    $region11: #{sse_forward.4} parent=1 // pred_check_branch
      %41 = sbr.rel (0) target = $region13
    $region12: #{sse_forward.4} parent=1 // pred_region
      %s43 = ssub.s32 8192, 8192
      %44 = vsyncadd [#allocation11], %s43
      %s45 = sshll.u32 [#allocation12], 4
      %s46 = int_to_ptr.vmem [resolvable:$true] %s45
      %51 = dma.hbm_to_vmem [thread:$0]  %s2, 8192, %s46, [#allocation11], 512, 512, 32
    $region13: #{sse_forward.4} parent=1 // pred_fallthru
      _
    // Predicated region
    $region14: #{sse_forward.4} parent=1 // pred_check
      _
    $region15: #{sse_forward.4} parent=1 // pred_check_branch
      %53 = sbr.rel (0) target = $region17
    $region16: #{sse_forward.4} parent=1 // pred_region
      %s55 = ssub.s32 4096, 4096
      %56 = vsyncadd [#allocation14], %s55
      %s57 = sshll.u32 [#allocation13], 4
      %s58 = int_to_ptr.vmem [resolvable:$true] %s57
      %63 = dma.hbm_to_vmem [thread:$0]  %s3, 4096, %s58, [#allocation14], 256, 256, 16
    $region17: #{sse_forward.4} parent=1 // pred_fallthru
      _
    // Predicated region
    $region18: #{sse_forward.4} parent=1 // pred_check
      _
    $region19: #{sse_forward.4} parent=1 // pred_check_branch
      %65 = sbr.rel (0) target = $region21
    $region20: #{sse_forward.4} parent=1 // pred_region
      %s67 = ssub.s32 4096, 4096
      %68 = vsyncadd [#allocation14], %s67
      %s69 = sshll.u32 [#allocation15], 4
      %s70 = int_to_ptr.vmem [resolvable:$true] %s69
      %75 = dma.hbm_to_vmem [thread:$0]  %s4, 4096, %s70, [#allocation14], 256, 256, 16
    $region21: #{sse_forward.4} parent=1 // pred_fallthru
      _
    // Predicated region
    $region22: #{sse_forward.4} parent=1 // pred_check
      _
    $region23: #{sse_forward.4} parent=1 // pred_check_branch
      %77 = sbr.rel (0) target = $region25
    $region24: #{sse_forward.4} parent=1 // pred_region
      %s79 = ssub.s32 128, 128
      %80 = vsyncadd [#allocation17], %s79
      %s82 = sshll.u32 [#allocation16], 4
      %s83 = int_to_ptr.vmem [resolvable:$true] %s82
      %85 = dma.hbm_to_vmem [thread:$0]  %s5, 128, %s83, [#allocation17]
    $region25: #{sse_forward.4} parent=1 // pred_fallthru
      _
    // Predicated region
    $region26: #{sse_forward.4} parent=1 // pred_check
      _
    $region27: #{sse_forward.4} parent=1 // pred_check_branch
      %87 = sbr.rel (0) target = $region29
    $region28: #{sse_forward.4} parent=1 // pred_region
      %88 = dma.done [#allocation8], 512
    $region29: #{sse_forward.4} parent=1 // pred_fallthru
      _
    // Predicated region
    $region30: #{sse_forward.4} parent=1 // pred_check
      _
    $region31: #{sse_forward.4} parent=1 // pred_check_branch
      %90 = sbr.rel (0) target = $region33
    $region32: #{sse_forward.4} parent=1 // pred_region
      %91 = dma.done [#allocation11], 1024
    $region33: #{sse_forward.4} parent=1 // pred_fallthru
      _
    // Predicated region
    $region34: #{sse_forward.4} parent=1 // pred_check
      _
    $region35: #{sse_forward.4} parent=1 // pred_check_branch
      %93 = sbr.rel (0) target = $region37
    $region36: #{sse_forward.4} parent=1 // pred_region
      %94 = dma.done [#allocation11], 8192
    $region37: #{sse_forward.4} parent=1 // pred_fallthru
      _
    // Predicated region
    $region38: #{sse_forward.4} parent=1 // pred_check
      _
    $region39: #{sse_forward.4} parent=1 // pred_check_branch
      %96 = sbr.rel (0) target = $region41
    $region40: #{sse_forward.4} parent=1 // pred_region
      %97 = dma.done [#allocation14], 4096
    $region41: #{sse_forward.4} parent=1 // pred_fallthru
      _
    // Predicated region
    $region42: #{sse_forward.4} parent=1 // pred_check
      _
    $region43: #{sse_forward.4} parent=1 // pred_check_branch
      %99 = sbr.rel (0) target = $region45
    $region44: #{sse_forward.4} parent=1 // pred_region
      %100 = dma.done [#allocation14], 4096
    $region45: #{sse_forward.4} parent=1 // pred_fallthru
      _
    // Predicated region
    $region46: #{sse_forward.4} parent=1 // pred_check
      _
    $region47: #{sse_forward.4} parent=1 // pred_check_branch
      %102 = sbr.rel (0) target = $region49
    $region48: #{sse_forward.4} parent=1 // pred_region
      %103 = dma.done [#allocation17], 128
    $region49: #{sse_forward.4} parent=1 // pred_fallthru
      _
    %v105 = vld [vmem:[#allocation7] sm:$0xf]
    %v106 = vld [vmem:[#allocation7 + $0x4] sm:$0xf]
    %v107 = vld [vmem:[#allocation7 + $0x8] sm:$0xf]
    %v108 = vld [vmem:[#allocation7 + $0xc] sm:$0xf]
    %v109 = vld [vmem:[#allocation7 + $0x10] sm:$0xf]
    %v110 = vld [vmem:[#allocation7 + $0x14] sm:$0xf]
    %v111 = vld [vmem:[#allocation7 + $0x18] sm:$0xf]
    %v112 = vld [vmem:[#allocation7 + $0x1c] sm:$0xf]
    %v113 = vld [vmem:[#allocation12] sm:$0xff]
    %v114 = vld [vmem:[#allocation12 + $0x8] sm:$0xff]
    %v115 = vld [vmem:[#allocation12 + $0x10] sm:$0xff]
    %v116 = vld [vmem:[#allocation12 + $0x18] sm:$0xff]
    %v117 = vld [vmem:[#allocation12 + $0x20] sm:$0xff]
    %v118 = vld [vmem:[#allocation12 + $0x28] sm:$0xff]
    %v119 = vld [vmem:[#allocation12 + $0x30] sm:$0xff]
    %v120 = vld [vmem:[#allocation12 + $0x38] sm:$0xff]
    %v121 = vld [vmem:[#allocation12 + $0x40] sm:$0xff]
    %v122 = vld [vmem:[#allocation12 + $0x48] sm:$0xff]
    %v123 = vld [vmem:[#allocation12 + $0x50] sm:$0xff]
    %v124 = vld [vmem:[#allocation12 + $0x58] sm:$0xff]
    %v125 = vld [vmem:[#allocation12 + $0x60] sm:$0xff]
    %v126 = vld [vmem:[#allocation12 + $0x68] sm:$0xff]
    %v127 = vld [vmem:[#allocation12 + $0x70] sm:$0xff]
    %v128 = vld [vmem:[#allocation12 + $0x78] sm:$0xff]
    %v129 = vld [vmem:[#allocation12 + $0x80] sm:$0xff]
    %v130 = vld [vmem:[#allocation12 + $0x88] sm:$0xff]
    %v131 = vld [vmem:[#allocation12 + $0x90] sm:$0xff]
    %v132 = vld [vmem:[#allocation12 + $0x98] sm:$0xff]
    %v133 = vld [vmem:[#allocation12 + $0xa0] sm:$0xff]
    %v134 = vld [vmem:[#allocation12 + $0xa8] sm:$0xff]
    %v135 = vld [vmem:[#allocation12 + $0xb0] sm:$0xff]
    %v136 = vld [vmem:[#allocation12 + $0xb8] sm:$0xff]
    %v137 = vld [vmem:[#allocation12 + $0xc0] sm:$0xff]
    %v138 = vld [vmem:[#allocation12 + $0xc8] sm:$0xff]
    %v139 = vld [vmem:[#allocation12 + $0xd0] sm:$0xff]
    %v140 = vld [vmem:[#allocation12 + $0xd8] sm:$0xff]
    %v141 = vld [vmem:[#allocation12 + $0xe0] sm:$0xff]
    %v142 = vld [vmem:[#allocation12 + $0xe8] sm:$0xff]
    %v143 = vld [vmem:[#allocation12 + $0xf0] sm:$0xff]
    %v144 = vld [vmem:[#allocation12 + $0xf8] sm:$0xff]
    %v145 = vld [vmem:[#allocation12 + $0x100] sm:$0xff]
    %v146 = vld [vmem:[#allocation12 + $0x108] sm:$0xff]
    %v147 = vld [vmem:[#allocation12 + $0x110] sm:$0xff]
    %v148 = vld [vmem:[#allocation12 + $0x118] sm:$0xff]
    %v149 = vld [vmem:[#allocation12 + $0x120] sm:$0xff]
    %v150 = vld [vmem:[#allocation12 + $0x128] sm:$0xff]
    %v151 = vld [vmem:[#allocation12 + $0x130] sm:$0xff]
    %v152 = vld [vmem:[#allocation12 + $0x138] sm:$0xff]
    %v153 = vld [vmem:[#allocation12 + $0x140] sm:$0xff]
    %v154 = vld [vmem:[#allocation12 + $0x148] sm:$0xff]
    %v155 = vld [vmem:[#allocation12 + $0x150] sm:$0xff]
    %v156 = vld [vmem:[#allocation12 + $0x158] sm:$0xff]
    %v157 = vld [vmem:[#allocation12 + $0x160] sm:$0xff]
    %v158 = vld [vmem:[#allocation12 + $0x168] sm:$0xff]
    %v159 = vld [vmem:[#allocation12 + $0x170] sm:$0xff]
    %v160 = vld [vmem:[#allocation12 + $0x178] sm:$0xff]
    %v161 = vld [vmem:[#allocation12 + $0x180] sm:$0xff]
    %v162 = vld [vmem:[#allocation12 + $0x188] sm:$0xff]
    %v163 = vld [vmem:[#allocation12 + $0x190] sm:$0xff]
    %v164 = vld [vmem:[#allocation12 + $0x198] sm:$0xff]
    %v165 = vld [vmem:[#allocation12 + $0x1a0] sm:$0xff]
    %v166 = vld [vmem:[#allocation12 + $0x1a8] sm:$0xff]
    %v167 = vld [vmem:[#allocation12 + $0x1b0] sm:$0xff]
    %v168 = vld [vmem:[#allocation12 + $0x1b8] sm:$0xff]
    %v169 = vld [vmem:[#allocation12 + $0x1c0] sm:$0xff]
    %v170 = vld [vmem:[#allocation12 + $0x1c8] sm:$0xff]
    %v171 = vld [vmem:[#allocation12 + $0x1d0] sm:$0xff]
    %v172 = vld [vmem:[#allocation12 + $0x1d8] sm:$0xff]
    %v173 = vld [vmem:[#allocation12 + $0x1e0] sm:$0xff]
    %v174 = vld [vmem:[#allocation12 + $0x1e8] sm:$0xff]
    %v175 = vld [vmem:[#allocation12 + $0x1f0] sm:$0xff]
    %v176 = vld [vmem:[#allocation12 + $0x1f8] sm:$0xff]
    %v177 = vld [vmem:[#allocation16] sm:$0xff]
    %v179 = vlaneseq
    %v180 = vshrl.u32 %v179, 7
    %v181 = vsub.s32 0, %v180
    %v182 = vrot.slane %v177, %v181
    %v183 = vlaneseq
    %v184 = vshrl.u32 %v183, 7
    %v185 = vsub.s32 1, %v184
    %v186 = vrot.slane %v177, %v185
    %v187 = vlaneseq
    %v188 = vshrl.u32 %v187, 7
    %v189 = vsub.s32 2, %v188
    %v190 = vrot.slane %v177, %v189
    %v191 = vlaneseq
    %v192 = vshrl.u32 %v191, 7
    %v193 = vsub.s32 3, %v192
    %v194 = vrot.slane %v177, %v193
    %v195 = vlaneseq
    %v196 = vshrl.u32 %v195, 7
    %v197 = vsub.s32 4, %v196
    %v198 = vrot.slane %v177, %v197
    %v199 = vlaneseq
    %v200 = vshrl.u32 %v199, 7
    %v201 = vsub.s32 5, %v200
    %v202 = vrot.slane %v177, %v201
    %v203 = vlaneseq
    %v204 = vshrl.u32 %v203, 7
    %v205 = vsub.s32 6, %v204
    %v206 = vrot.slane %v177, %v205
    %v207 = vlaneseq
    %v208 = vshrl.u32 %v207, 7
    %v209 = vsub.s32 7, %v208
    %v210 = vrot.slane %v177, %v209
    %v227 = vunpack.c.l.b16 %v105
    %v228 = vunpack.c.l.b16 %v106
    %v229 = vunpack.c.l.b16 %v107
    %v230 = vunpack.c.l.b16 %v108
    %v231 = vunpack.c.l.b16 %v109
    %v232 = vunpack.c.l.b16 %v110
    %v233 = vunpack.c.l.b16 %v111
    %v234 = vunpack.c.l.b16 %v112
    %v235 = vpack.c.b16 %v228, %v227
    %v236 = vpack.c.b16 %v230, %v229
    %v237 = vpack.c.b16 %v232, %v231
    %v238 = vpack.c.b16 %v234, %v233
    %v307 = vunpack.c.l.b16 %v113
    %v308 = vunpack.c.h.b16 %v113
    %v309 = vunpack.c.l.b16 %v114
    %v310 = vunpack.c.h.b16 %v114
    %v311 = vunpack.c.l.b16 %v115
    %v312 = vunpack.c.h.b16 %v115
    %v313 = vunpack.c.l.b16 %v116
    %v314 = vunpack.c.h.b16 %v116
    %v315 = vunpack.c.l.b16 %v117
    %v316 = vunpack.c.h.b16 %v117
    %v317 = vunpack.c.l.b16 %v118
    %v318 = vunpack.c.h.b16 %v118
    %v319 = vunpack.c.l.b16 %v119
    %v320 = vunpack.c.h.b16 %v119
    %v321 = vunpack.c.l.b16 %v120
    %v322 = vunpack.c.h.b16 %v120
    %v323 = vunpack.c.l.b16 %v121
    %v324 = vunpack.c.h.b16 %v121
    %v325 = vunpack.c.l.b16 %v122
    %v326 = vunpack.c.h.b16 %v122
    %v327 = vunpack.c.l.b16 %v123
    %v328 = vunpack.c.h.b16 %v123
    %v329 = vunpack.c.l.b16 %v124
    %v330 = vunpack.c.h.b16 %v124
    %v331 = vunpack.c.l.b16 %v125
    %v332 = vunpack.c.h.b16 %v125
    %v333 = vunpack.c.l.b16 %v126
    %v334 = vunpack.c.h.b16 %v126
    %v335 = vunpack.c.l.b16 %v127
    %v336 = vunpack.c.h.b16 %v127
    %v337 = vunpack.c.l.b16 %v128
    %v338 = vunpack.c.h.b16 %v128
    %v339 = vunpack.c.l.b16 %v129
    %v340 = vunpack.c.h.b16 %v129
    %v341 = vunpack.c.l.b16 %v130
    %v342 = vunpack.c.h.b16 %v130
    %v343 = vunpack.c.l.b16 %v131
    %v344 = vunpack.c.h.b16 %v131
    %v345 = vunpack.c.l.b16 %v132
    %v346 = vunpack.c.h.b16 %v132
    %v347 = vunpack.c.l.b16 %v133
    %v348 = vunpack.c.h.b16 %v133
    %v349 = vunpack.c.l.b16 %v134
    %v350 = vunpack.c.h.b16 %v134
    %v351 = vunpack.c.l.b16 %v135
    %v352 = vunpack.c.h.b16 %v135
    %v353 = vunpack.c.l.b16 %v136
    %v354 = vunpack.c.h.b16 %v136
    %v355 = vunpack.c.l.b16 %v137
    %v356 = vunpack.c.h.b16 %v137
    %v357 = vunpack.c.l.b16 %v138
    %v358 = vunpack.c.h.b16 %v138
    %v359 = vunpack.c.l.b16 %v139
    %v360 = vunpack.c.h.b16 %v139
    %v361 = vunpack.c.l.b16 %v140
    %v362 = vunpack.c.h.b16 %v140
    %v363 = vunpack.c.l.b16 %v141
    %v364 = vunpack.c.h.b16 %v141
    %v365 = vunpack.c.l.b16 %v142
    %v366 = vunpack.c.h.b16 %v142
    %v367 = vunpack.c.l.b16 %v143
    %v368 = vunpack.c.h.b16 %v143
    %v369 = vunpack.c.l.b16 %v144
    %v370 = vunpack.c.h.b16 %v144
    %v371 = vunpack.c.l.b16 %v145
    %v372 = vunpack.c.h.b16 %v145
    %v373 = vunpack.c.l.b16 %v146
    %v374 = vunpack.c.h.b16 %v146
    %v375 = vunpack.c.l.b16 %v147
    %v376 = vunpack.c.h.b16 %v147
    %v377 = vunpack.c.l.b16 %v148
    %v378 = vunpack.c.h.b16 %v148
    %v379 = vunpack.c.l.b16 %v149
    %v380 = vunpack.c.h.b16 %v149
    %v381 = vunpack.c.l.b16 %v150
    %v382 = vunpack.c.h.b16 %v150
    %v383 = vunpack.c.l.b16 %v151
    %v384 = vunpack.c.h.b16 %v151
    %v385 = vunpack.c.l.b16 %v152
    %v386 = vunpack.c.h.b16 %v152
    %v387 = vunpack.c.l.b16 %v153
    %v388 = vunpack.c.h.b16 %v153
    %v389 = vunpack.c.l.b16 %v154
    %v390 = vunpack.c.h.b16 %v154
    %v391 = vunpack.c.l.b16 %v155
    %v392 = vunpack.c.h.b16 %v155
    %v393 = vunpack.c.l.b16 %v156
    %v394 = vunpack.c.h.b16 %v156
    %v395 = vunpack.c.l.b16 %v157
    %v396 = vunpack.c.h.b16 %v157
    %v397 = vunpack.c.l.b16 %v158
    %v398 = vunpack.c.h.b16 %v158
    %v399 = vunpack.c.l.b16 %v159
    %v400 = vunpack.c.h.b16 %v159
    %v401 = vunpack.c.l.b16 %v160
    %v402 = vunpack.c.h.b16 %v160
    %v403 = vunpack.c.l.b16 %v161
    %v404 = vunpack.c.h.b16 %v161
    %v405 = vunpack.c.l.b16 %v162
    %v406 = vunpack.c.h.b16 %v162
    %v407 = vunpack.c.l.b16 %v163
    %v408 = vunpack.c.h.b16 %v163
    %v409 = vunpack.c.l.b16 %v164
    %v410 = vunpack.c.h.b16 %v164
    %v411 = vunpack.c.l.b16 %v165
    %v412 = vunpack.c.h.b16 %v165
    %v413 = vunpack.c.l.b16 %v166
    %v414 = vunpack.c.h.b16 %v166
    %v415 = vunpack.c.l.b16 %v167
    %v416 = vunpack.c.h.b16 %v167
    %v417 = vunpack.c.l.b16 %v168
    %v418 = vunpack.c.h.b16 %v168
    %v419 = vunpack.c.l.b16 %v169
    %v420 = vunpack.c.h.b16 %v169
    %v421 = vunpack.c.l.b16 %v170
    %v422 = vunpack.c.h.b16 %v170
    %v423 = vunpack.c.l.b16 %v171
    %v424 = vunpack.c.h.b16 %v171
    %v425 = vunpack.c.l.b16 %v172
    %v426 = vunpack.c.h.b16 %v172
    %v427 = vunpack.c.l.b16 %v173
    %v428 = vunpack.c.h.b16 %v173
    %v429 = vunpack.c.l.b16 %v174
    %v430 = vunpack.c.h.b16 %v174
    %v431 = vunpack.c.l.b16 %v175
    %v432 = vunpack.c.h.b16 %v175
    %v433 = vunpack.c.l.b16 %v176
    %v434 = vunpack.c.h.b16 %v176
    %v435 = vpack.c.b16 %v315, %v307
    %v436 = vpack.c.b16 %v316, %v308
    %v437 = vpack.c.b16 %v317, %v309
    %v438 = vpack.c.b16 %v318, %v310
    %v439 = vpack.c.b16 %v319, %v311
    %v440 = vpack.c.b16 %v320, %v312
    %v441 = vpack.c.b16 %v321, %v313
    %v442 = vpack.c.b16 %v322, %v314
    %v443 = vpack.c.b16 %v331, %v323
    %v444 = vpack.c.b16 %v332, %v324
    %v445 = vpack.c.b16 %v333, %v325
    %v446 = vpack.c.b16 %v334, %v326
    %v447 = vpack.c.b16 %v335, %v327
    %v448 = vpack.c.b16 %v336, %v328
    %v449 = vpack.c.b16 %v337, %v329
    %v450 = vpack.c.b16 %v338, %v330
    %v451 = vpack.c.b16 %v347, %v339
    %v452 = vpack.c.b16 %v348, %v340
    %v453 = vpack.c.b16 %v349, %v341
    %v454 = vpack.c.b16 %v350, %v342
    %v455 = vpack.c.b16 %v351, %v343
    %v456 = vpack.c.b16 %v352, %v344
    %v457 = vpack.c.b16 %v353, %v345
    %v458 = vpack.c.b16 %v354, %v346
    %v459 = vpack.c.b16 %v363, %v355
    %v460 = vpack.c.b16 %v364, %v356
    %v461 = vpack.c.b16 %v365, %v357
    %v462 = vpack.c.b16 %v366, %v358
    %v463 = vpack.c.b16 %v367, %v359
    %v464 = vpack.c.b16 %v368, %v360
    %v465 = vpack.c.b16 %v369, %v361
    %v466 = vpack.c.b16 %v370, %v362
    %v467 = vpack.c.b16 %v379, %v371
    %v468 = vpack.c.b16 %v380, %v372
    %v469 = vpack.c.b16 %v381, %v373
    %v470 = vpack.c.b16 %v382, %v374
    %v471 = vpack.c.b16 %v383, %v375
    %v472 = vpack.c.b16 %v384, %v376
    %v473 = vpack.c.b16 %v385, %v377
    %v474 = vpack.c.b16 %v386, %v378
    %v475 = vpack.c.b16 %v395, %v387
    %v476 = vpack.c.b16 %v396, %v388
    %v477 = vpack.c.b16 %v397, %v389
    %v478 = vpack.c.b16 %v398, %v390
    %v479 = vpack.c.b16 %v399, %v391
    %v480 = vpack.c.b16 %v400, %v392
    %v481 = vpack.c.b16 %v401, %v393
    %v482 = vpack.c.b16 %v402, %v394
    %v483 = vpack.c.b16 %v411, %v403
    %v484 = vpack.c.b16 %v412, %v404
    %v485 = vpack.c.b16 %v413, %v405
    %v486 = vpack.c.b16 %v414, %v406
    %v487 = vpack.c.b16 %v415, %v407
    %v488 = vpack.c.b16 %v416, %v408
    %v489 = vpack.c.b16 %v417, %v409
    %v490 = vpack.c.b16 %v418, %v410
    %v491 = vpack.c.b16 %v427, %v419
    %v492 = vpack.c.b16 %v428, %v420
    %v493 = vpack.c.b16 %v429, %v421
    %v494 = vpack.c.b16 %v430, %v422
    %v495 = vpack.c.b16 %v431, %v423
    %v496 = vpack.c.b16 %v432, %v424
    %v497 = vpack.c.b16 %v433, %v425
    %v498 = vpack.c.b16 %v434, %v426
    %563 = vmatprep.subr.bf16.mxu0 %v436
    %564 = vmatpush1.bf16.msra.mxu0 %v435
    %565 = vmatprep.subr.bf16.mxu0 %v444
    %566 = vmatpush1.bf16.msra.mxu0 %v443
    %567 = vmatprep.subr.bf16.mxu0 %v452
    %568 = vmatpush1.bf16.msra.mxu0 %v451
    %569 = vmatprep.subr.bf16.mxu0 %v460
    %570 = vmatpush1.bf16.msra.mxu0 %v459
    %571 = vmatprep.subr.bf16.mxu0 %v468
    %572 = vmatpush1.bf16.msra.mxu0 %v467
    %573 = vmatprep.subr.bf16.mxu0 %v476
    %574 = vmatpush1.bf16.msra.mxu0 %v475
    %575 = vmatprep.subr.bf16.mxu0 %v484
    %576 = vmatpush1.bf16.msra.mxu0 %v483
    %577 = vmatprep.subr.bf16.mxu0 %v492
    %578 = vmatpush1.bf16.msra.mxu0 %v491
    %579 = vmatprep.subr.bf16.mxu0 0
    %580 = vmatpush1.bf16.msra.mxu0 0
    %581 = vmatprep.subr.bf16.mxu0 0
    %582 = vmatpush1.bf16.msra.mxu0 0
    %583 = vmatprep.subr.bf16.mxu0 0
    %584 = vmatpush1.bf16.msra.mxu0 0
    %585 = vmatprep.subr.bf16.mxu0 0
    %586 = vmatpush1.bf16.msra.mxu0 0
    %587 = vmatprep.subr.bf16.mxu0 0
    %588 = vmatpush1.bf16.msra.mxu0 0
    %589 = vmatprep.subr.bf16.mxu0 0
    %590 = vmatpush1.bf16.msra.mxu0 0
    %591 = vmatprep.subr.bf16.mxu0 0
    %592 = vmatpush1.bf16.msra.mxu0 0
    %593 = vmatprep.subr.bf16.mxu0 0
    %594 = vmatpush1.bf16.msra.mxu0 0
    %595 = vmatprep.mubr.bf16.mxu0 0
    %596 = vmatmul.mubr.bf16.gmra.mrb[0].mxu0 %v235
    %v597 = vpop.f32.mrb[0].mxu0
    %v598 = vadd.f32 %v182, %v597
    %v599 = vpop.f32.mrb[0].mxu0
    %v600 = vadd.f32 %v186, %v599
    %v601 = vpop.f32.mrb[0].mxu0
    %v602 = vadd.f32 %v182, %v601
    %v603 = vpop.f32.mrb[0].mxu0
    %v604 = vadd.f32 %v186, %v603
    %605 = vmatprep.mubr.bf16.mxu0 0
    %606 = vmatmul.mubr.bf16.gmra.mrb[0].mxu0 %v236
    %v607 = vpop.f32.mrb[0].mxu0
    %v608 = vadd.f32 %v182, %v607
    %v609 = vpop.f32.mrb[0].mxu0
    %v610 = vadd.f32 %v186, %v609
    %v611 = vpop.f32.mrb[0].mxu0
    %v612 = vadd.f32 %v182, %v611
    %v613 = vpop.f32.mrb[0].mxu0
    %v614 = vadd.f32 %v186, %v613
    %615 = vmatprep.mubr.bf16.mxu0 0
    %616 = vmatmul.mubr.bf16.gmra.mrb[0].mxu0 %v237
    %v617 = vpop.f32.mrb[0].mxu0
    %v618 = vadd.f32 %v182, %v617
    %v619 = vpop.f32.mrb[0].mxu0
    %v620 = vadd.f32 %v186, %v619
    %v621 = vpop.f32.mrb[0].mxu0
    %v622 = vadd.f32 %v182, %v621
    %v623 = vpop.f32.mrb[0].mxu0
    %v624 = vadd.f32 %v186, %v623
    %625 = vmatprep.mubr.bf16.mxu0 0
    %626 = vmatmul.mubr.bf16.gmra.mrb[0].mxu0 %v238
    %v627 = vpop.f32.mrb[0].mxu0
    %v628 = vadd.f32 %v182, %v627
    %v629 = vpop.f32.mrb[0].mxu0
    %v630 = vadd.f32 %v186, %v629
    %v631 = vpop.f32.mrb[0].mxu0
    %v632 = vadd.f32 %v182, %v631
    %v633 = vpop.f32.mrb[0].mxu0
    %v634 = vadd.f32 %v186, %v633
    %635 = vdwg.mxu0
    %636 = vmatprep.subr.bf16.mxu0 %v438
    %637 = vmatpush1.bf16.msra.mxu0 %v437
    %638 = vmatprep.subr.bf16.mxu0 %v446
    %639 = vmatpush1.bf16.msra.mxu0 %v445
    %640 = vmatprep.subr.bf16.mxu0 %v454
    %641 = vmatpush1.bf16.msra.mxu0 %v453
    %642 = vmatprep.subr.bf16.mxu0 %v462
    %643 = vmatpush1.bf16.msra.mxu0 %v461
    %644 = vmatprep.subr.bf16.mxu0 %v470
    %645 = vmatpush1.bf16.msra.mxu0 %v469
    %646 = vmatprep.subr.bf16.mxu0 %v478
    %647 = vmatpush1.bf16.msra.mxu0 %v477
    %648 = vmatprep.subr.bf16.mxu0 %v486
    %649 = vmatpush1.bf16.msra.mxu0 %v485
    %650 = vmatprep.subr.bf16.mxu0 %v494
    %651 = vmatpush1.bf16.msra.mxu0 %v493
    %652 = vmatprep.subr.bf16.mxu0 0
    %653 = vmatpush1.bf16.msra.mxu0 0
    %654 = vmatprep.subr.bf16.mxu0 0
    %655 = vmatpush1.bf16.msra.mxu0 0
    %656 = vmatprep.subr.bf16.mxu0 0
    %657 = vmatpush1.bf16.msra.mxu0 0
    %658 = vmatprep.subr.bf16.mxu0 0
    %659 = vmatpush1.bf16.msra.mxu0 0
    %660 = vmatprep.subr.bf16.mxu0 0
    %661 = vmatpush1.bf16.msra.mxu0 0
    %662 = vmatprep.subr.bf16.mxu0 0
    %663 = vmatpush1.bf16.msra.mxu0 0
    %664 = vmatprep.subr.bf16.mxu0 0
    %665 = vmatpush1.bf16.msra.mxu0 0
    %666 = vmatprep.subr.bf16.mxu0 0
    %667 = vmatpush1.bf16.msra.mxu0 0
    %668 = vmatprep.mubr.bf16.mxu0 0
    %669 = vmatmul.mubr.bf16.gmra.mrb[0].mxu0 %v235
    %v670 = vpop.f32.mrb[0].mxu0
    %v671 = vadd.f32 %v190, %v670
    %v672 = vpop.f32.mrb[0].mxu0
    %v673 = vadd.f32 %v194, %v672
    %v674 = vpop.f32.mrb[0].mxu0
    %v675 = vadd.f32 %v190, %v674
    %v676 = vpop.f32.mrb[0].mxu0
    %v677 = vadd.f32 %v194, %v676
    %678 = vmatprep.mubr.bf16.mxu0 0
    %679 = vmatmul.mubr.bf16.gmra.mrb[0].mxu0 %v236
    %v680 = vpop.f32.mrb[0].mxu0
    %v681 = vadd.f32 %v190, %v680
    %v682 = vpop.f32.mrb[0].mxu0
    %v683 = vadd.f32 %v194, %v682
    %v684 = vpop.f32.mrb[0].mxu0
    %v685 = vadd.f32 %v190, %v684
    %v686 = vpop.f32.mrb[0].mxu0
    %v687 = vadd.f32 %v194, %v686
    %688 = vmatprep.mubr.bf16.mxu0 0
    %689 = vmatmul.mubr.bf16.gmra.mrb[0].mxu0 %v237
    %v690 = vpop.f32.mrb[0].mxu0
    %v691 = vadd.f32 %v190, %v690
    %v692 = vpop.f32.mrb[0].mxu0
    %v693 = vadd.f32 %v194, %v692
    %v694 = vpop.f32.mrb[0].mxu0
    %v695 = vadd.f32 %v190, %v694
    %v696 = vpop.f32.mrb[0].mxu0
    %v697 = vadd.f32 %v194, %v696
    %698 = vmatprep.mubr.bf16.mxu0 0
    %699 = vmatmul.mubr.bf16.gmra.mrb[0].mxu0 %v238
    %v700 = vpop.f32.mrb[0].mxu0
    %v701 = vadd.f32 %v190, %v700
    %v702 = vpop.f32.mrb[0].mxu0
    %v703 = vadd.f32 %v194, %v702
    %v704 = vpop.f32.mrb[0].mxu0
    %v705 = vadd.f32 %v190, %v704
    %v706 = vpop.f32.mrb[0].mxu0
    %v707 = vadd.f32 %v194, %v706
    %708 = vdwg.mxu0
    %709 = vmatprep.subr.bf16.mxu0 %v440
    %710 = vmatpush1.bf16.msra.mxu0 %v439
    %711 = vmatprep.subr.bf16.mxu0 %v448
    %712 = vmatpush1.bf16.msra.mxu0 %v447
    %713 = vmatprep.subr.bf16.mxu0 %v456
    %714 = vmatpush1.bf16.msra.mxu0 %v455
    %715 = vmatprep.subr.bf16.mxu0 %v464
    %716 = vmatpush1.bf16.msra.mxu0 %v463
    %717 = vmatprep.subr.bf16.mxu0 %v472
    %718 = vmatpush1.bf16.msra.mxu0 %v471
    %719 = vmatprep.subr.bf16.mxu0 %v480
    %720 = vmatpush1.bf16.msra.mxu0 %v479
    %721 = vmatprep.subr.bf16.mxu0 %v488
    %722 = vmatpush1.bf16.msra.mxu0 %v487
    %723 = vmatprep.subr.bf16.mxu0 %v496
    %724 = vmatpush1.bf16.msra.mxu0 %v495
    %725 = vmatprep.subr.bf16.mxu0 0
    %726 = vmatpush1.bf16.msra.mxu0 0
    %727 = vmatprep.subr.bf16.mxu0 0
    %728 = vmatpush1.bf16.msra.mxu0 0
    %729 = vmatprep.subr.bf16.mxu0 0
    %730 = vmatpush1.bf16.msra.mxu0 0
    %731 = vmatprep.subr.bf16.mxu0 0
    %732 = vmatpush1.bf16.msra.mxu0 0
    %733 = vmatprep.subr.bf16.mxu0 0
    %734 = vmatpush1.bf16.msra.mxu0 0
    %735 = vmatprep.subr.bf16.mxu0 0
    %736 = vmatpush1.bf16.msra.mxu0 0
    %737 = vmatprep.subr.bf16.mxu0 0
    %738 = vmatpush1.bf16.msra.mxu0 0
    %739 = vmatprep.subr.bf16.mxu0 0
    %740 = vmatpush1.bf16.msra.mxu0 0
    %741 = vmatprep.mubr.bf16.mxu0 0
    %742 = vmatmul.mubr.bf16.gmra.mrb[0].mxu0 %v235
    %v743 = vpop.f32.mrb[0].mxu0
    %v744 = vadd.f32 %v198, %v743
    %v745 = vpop.f32.mrb[0].mxu0
    %v746 = vadd.f32 %v202, %v745
    %v747 = vpop.f32.mrb[0].mxu0
    %v748 = vadd.f32 %v198, %v747
    %v749 = vpop.f32.mrb[0].mxu0
    %v750 = vadd.f32 %v202, %v749
    %751 = vmatprep.mubr.bf16.mxu0 0
    %752 = vmatmul.mubr.bf16.gmra.mrb[0].mxu0 %v236
    %v753 = vpop.f32.mrb[0].mxu0
    %v754 = vadd.f32 %v198, %v753
    %v755 = vpop.f32.mrb[0].mxu0
    %v756 = vadd.f32 %v202, %v755
    %v757 = vpop.f32.mrb[0].mxu0
    %v758 = vadd.f32 %v198, %v757
    %v759 = vpop.f32.mrb[0].mxu0
    %v760 = vadd.f32 %v202, %v759
    %761 = vmatprep.mubr.bf16.mxu0 0
    %762 = vmatmul.mubr.bf16.gmra.mrb[0].mxu0 %v237
    %v763 = vpop.f32.mrb[0].mxu0
    %v764 = vadd.f32 %v198, %v763
    %v765 = vpop.f32.mrb[0].mxu0
    %v766 = vadd.f32 %v202, %v765
    %v767 = vpop.f32.mrb[0].mxu0
    %v768 = vadd.f32 %v198, %v767
    %v769 = vpop.f32.mrb[0].mxu0
    %v770 = vadd.f32 %v202, %v769
    %771 = vmatprep.mubr.bf16.mxu0 0
    %772 = vmatmul.mubr.bf16.gmra.mrb[0].mxu0 %v238
    %v773 = vpop.f32.mrb[0].mxu0
    %v774 = vadd.f32 %v198, %v773
    %v775 = vpop.f32.mrb[0].mxu0
    %v776 = vadd.f32 %v202, %v775
    %v777 = vpop.f32.mrb[0].mxu0
    %v778 = vadd.f32 %v198, %v777
    %v779 = vpop.f32.mrb[0].mxu0
    %v780 = vadd.f32 %v202, %v779
    %781 = vdwg.mxu0
    %782 = vmatprep.subr.bf16.mxu0 %v442
    %783 = vmatpush1.bf16.msra.mxu0 %v441
    %784 = vmatprep.subr.bf16.mxu0 %v450
    %785 = vmatpush1.bf16.msra.mxu0 %v449
    %786 = vmatprep.subr.bf16.mxu0 %v458
    %787 = vmatpush1.bf16.msra.mxu0 %v457
    %788 = vmatprep.subr.bf16.mxu0 %v466
    %789 = vmatpush1.bf16.msra.mxu0 %v465
    %790 = vmatprep.subr.bf16.mxu0 %v474
    %791 = vmatpush1.bf16.msra.mxu0 %v473
    %792 = vmatprep.subr.bf16.mxu0 %v482
    %793 = vmatpush1.bf16.msra.mxu0 %v481
    %794 = vmatprep.subr.bf16.mxu0 %v490
    %795 = vmatpush1.bf16.msra.mxu0 %v489
    %796 = vmatprep.subr.bf16.mxu0 %v498
    %797 = vmatpush1.bf16.msra.mxu0 %v497
    %798 = vmatprep.subr.bf16.mxu0 0
    %799 = vmatpush1.bf16.msra.mxu0 0
    %800 = vmatprep.subr.bf16.mxu0 0
    %801 = vmatpush1.bf16.msra.mxu0 0
    %802 = vmatprep.subr.bf16.mxu0 0
    %803 = vmatpush1.bf16.msra.mxu0 0
    %804 = vmatprep.subr.bf16.mxu0 0
    %805 = vmatpush1.bf16.msra.mxu0 0
    %806 = vmatprep.subr.bf16.mxu0 0
    %807 = vmatpush1.bf16.msra.mxu0 0
    %808 = vmatprep.subr.bf16.mxu0 0
    %809 = vmatpush1.bf16.msra.mxu0 0
    %810 = vmatprep.subr.bf16.mxu0 0
    %811 = vmatpush1.bf16.msra.mxu0 0
    %812 = vmatprep.subr.bf16.mxu0 0
    %813 = vmatpush1.bf16.msra.mxu0 0
    %814 = vmatprep.mubr.bf16.mxu0 0
    %815 = vmatmul.mubr.bf16.gmra.mrb[0].mxu0 %v235
    %v816 = vpop.f32.mrb[0].mxu0
    %v817 = vadd.f32 %v206, %v816
    %v818 = vpop.f32.mrb[0].mxu0
    %v819 = vadd.f32 %v210, %v818
    %v820 = vpop.f32.mrb[0].mxu0
    %v821 = vadd.f32 %v206, %v820
    %v822 = vpop.f32.mrb[0].mxu0
    %v823 = vadd.f32 %v210, %v822
    %824 = vmatprep.mubr.bf16.mxu0 0
    %825 = vmatmul.mubr.bf16.gmra.mrb[0].mxu0 %v236
    %v826 = vpop.f32.mrb[0].mxu0
    %v827 = vadd.f32 %v206, %v826
    %v828 = vpop.f32.mrb[0].mxu0
    %v829 = vadd.f32 %v210, %v828
    %v830 = vpop.f32.mrb[0].mxu0
    %v831 = vadd.f32 %v206, %v830
    %v832 = vpop.f32.mrb[0].mxu0
    %v833 = vadd.f32 %v210, %v832
    %834 = vmatprep.mubr.bf16.mxu0 0
    %835 = vmatmul.mubr.bf16.gmra.mrb[0].mxu0 %v237
    %v836 = vpop.f32.mrb[0].mxu0
    %v837 = vadd.f32 %v206, %v836
    %v838 = vpop.f32.mrb[0].mxu0
    %v839 = vadd.f32 %v210, %v838
    %v840 = vpop.f32.mrb[0].mxu0
    %v841 = vadd.f32 %v206, %v840
    %v842 = vpop.f32.mrb[0].mxu0
    %v843 = vadd.f32 %v210, %v842
    %844 = vmatprep.mubr.bf16.mxu0 0
    %845 = vmatmul.mubr.bf16.gmra.mrb[0].mxu0 %v238
    %v846 = vpop.f32.mrb[0].mxu0
    %v847 = vadd.f32 %v206, %v846
    %v848 = vpop.f32.mrb[0].mxu0
    %v849 = vadd.f32 %v210, %v848
    %v850 = vpop.f32.mrb[0].mxu0
    %v851 = vadd.f32 %v206, %v850
    %v852 = vpop.f32.mrb[0].mxu0
    %v853 = vadd.f32 %v210, %v852
    %854 = vdwg.mxu0
    %855 = vst [vmem:[#allocation2] sm:$0xff] %v598
    %856 = vst [vmem:[#allocation2 + $0x8] sm:$0xff] %v600
    %857 = vst [vmem:[#allocation2 + $0x10] sm:$0xff] %v671
    %858 = vst [vmem:[#allocation2 + $0x18] sm:$0xff] %v673
    %859 = vst [vmem:[#allocation2 + $0x20] sm:$0xff] %v744
    %860 = vst [vmem:[#allocation2 + $0x28] sm:$0xff] %v746
    %861 = vst [vmem:[#allocation2 + $0x30] sm:$0xff] %v817
    %862 = vst [vmem:[#allocation2 + $0x38] sm:$0xff] %v819
    %863 = vst [vmem:[#allocation2 + $0x40] sm:$0xff] %v602
    %864 = vst [vmem:[#allocation2 + $0x48] sm:$0xff] %v604
    %865 = vst [vmem:[#allocation2 + $0x50] sm:$0xff] %v675
    %866 = vst [vmem:[#allocation2 + $0x58] sm:$0xff] %v677
    %867 = vst [vmem:[#allocation2 + $0x60] sm:$0xff] %v748
    %868 = vst [vmem:[#allocation2 + $0x68] sm:$0xff] %v750
    %869 = vst [vmem:[#allocation2 + $0x70] sm:$0xff] %v821
    %870 = vst [vmem:[#allocation2 + $0x78] sm:$0xff] %v823
    %871 = vst [vmem:[#allocation2 + $0x80] sm:$0xff] %v608
    %872 = vst [vmem:[#allocation2 + $0x88] sm:$0xff] %v610
    %873 = vst [vmem:[#allocation2 + $0x90] sm:$0xff] %v681
    %874 = vst [vmem:[#allocation2 + $0x98] sm:$0xff] %v683
    %875 = vst [vmem:[#allocation2 + $0xa0] sm:$0xff] %v754
    %876 = vst [vmem:[#allocation2 + $0xa8] sm:$0xff] %v756
    %877 = vst [vmem:[#allocation2 + $0xb0] sm:$0xff] %v827
    %878 = vst [vmem:[#allocation2 + $0xb8] sm:$0xff] %v829
    %879 = vst [vmem:[#allocation2 + $0xc0] sm:$0xff] %v612
    %880 = vst [vmem:[#allocation2 + $0xc8] sm:$0xff] %v614
    %881 = vst [vmem:[#allocation2 + $0xd0] sm:$0xff] %v685
    %882 = vst [vmem:[#allocation2 + $0xd8] sm:$0xff] %v687
    %883 = vst [vmem:[#allocation2 + $0xe0] sm:$0xff] %v758
    %884 = vst [vmem:[#allocation2 + $0xe8] sm:$0xff] %v760
    %885 = vst [vmem:[#allocation2 + $0xf0] sm:$0xff] %v831
    %886 = vst [vmem:[#allocation2 + $0xf8] sm:$0xff] %v833
    %887 = vst [vmem:[#allocation2 + $0x100] sm:$0xff] %v618
    %888 = vst [vmem:[#allocation2 + $0x108] sm:$0xff] %v620
    %889 = vst [vmem:[#allocation2 + $0x110] sm:$0xff] %v691
    %890 = vst [vmem:[#allocation2 + $0x118] sm:$0xff] %v693
    %891 = vst [vmem:[#allocation2 + $0x120] sm:$0xff] %v764
    %892 = vst [vmem:[#allocation2 + $0x128] sm:$0xff] %v766
    %893 = vst [vmem:[#allocation2 + $0x130] sm:$0xff] %v837
    %894 = vst [vmem:[#allocation2 + $0x138] sm:$0xff] %v839
    %895 = vst [vmem:[#allocation2 + $0x140] sm:$0xff] %v622
    %896 = vst [vmem:[#allocation2 + $0x148] sm:$0xff] %v624
    %897 = vst [vmem:[#allocation2 + $0x150] sm:$0xff] %v695
    %898 = vst [vmem:[#allocation2 + $0x158] sm:$0xff] %v697
    %899 = vst [vmem:[#allocation2 + $0x160] sm:$0xff] %v768
    %900 = vst [vmem:[#allocation2 + $0x168] sm:$0xff] %v770
    %901 = vst [vmem:[#allocation2 + $0x170] sm:$0xff] %v841
    %902 = vst [vmem:[#allocation2 + $0x178] sm:$0xff] %v843
    %903 = vst [vmem:[#allocation2 + $0x180] sm:$0xff] %v628
    %904 = vst [vmem:[#allocation2 + $0x188] sm:$0xff] %v630
    %905 = vst [vmem:[#allocation2 + $0x190] sm:$0xff] %v701
    %906 = vst [vmem:[#allocation2 + $0x198] sm:$0xff] %v703
    %907 = vst [vmem:[#allocation2 + $0x1a0] sm:$0xff] %v774
    %908 = vst [vmem:[#allocation2 + $0x1a8] sm:$0xff] %v776
    %909 = vst [vmem:[#allocation2 + $0x1b0] sm:$0xff] %v847
    %910 = vst [vmem:[#allocation2 + $0x1b8] sm:$0xff] %v849
    %911 = vst [vmem:[#allocation2 + $0x1c0] sm:$0xff] %v632
    %912 = vst [vmem:[#allocation2 + $0x1c8] sm:$0xff] %v634
    %913 = vst [vmem:[#allocation2 + $0x1d0] sm:$0xff] %v705
    %914 = vst [vmem:[#allocation2 + $0x1d8] sm:$0xff] %v707
    %915 = vst [vmem:[#allocation2 + $0x1e0] sm:$0xff] %v778
    %916 = vst [vmem:[#allocation2 + $0x1e8] sm:$0xff] %v780
    %917 = vst [vmem:[#allocation2 + $0x1f0] sm:$0xff] %v851
    %918 = vst [vmem:[#allocation2 + $0x1f8] sm:$0xff] %v853
    %919 = vst [vmem:[#allocation3] sm:$0xff] 0.0
    %920 = vst [vmem:[#allocation4] sm:$0xff] 0.0
    %921 = vst [vmem:[#allocation5] sm:$0xff] 0.0
    %922 = vst [vmem:[#allocation6] sm:$0xff] 0.0
    loop: start=0, step=1, limit=8
    $region50: #{sse_forward.4} parent=1 // loop_pre_header
      _
    $region51: #{sse_forward.4} parent=1 // loop_header
      %s924 = sphi 0, %s928
      %p925 = scmp.ge.s32.totalorder %s924, 8
    $region52: #{sse_forward.4} parent=1 // loop_header_branch
      %927 = sbr.rel (%p925) target = $region56
    $region53: #{sse_forward.4} parent=1 // loop_body
      %s929 = ssub.s32 7, %s924
      %s930 = smul.u32 %s924, 8
      %s931 = scalar_lea.vmem [#allocation10], %s930
      %v932 = vld [vmem:[%s931] sm:$0xff]
      %s933 = sshra.s32 %s930, 3
      %s934 = sand.u32 %s930, 7
      %s935 = smul.u32 %s933, 8
      %s936 = smul.addr %s935, 8
      %s937 = scalar_lea.vmem [#allocation2], %s936
      %v938 = vld [vmem:[%s937] sm:$0xff]
      %v939 = vld [vmem:[%s937 + $0x8] sm:$0xff]
      %v940 = vld [vmem:[%s937 + $0x10] sm:$0xff]
      %v941 = vld [vmem:[%s937 + $0x18] sm:$0xff]
      %v942 = vld [vmem:[#allocation3] sm:$0xff]
      %v943 = vpack.c.bf16 %v942, %v942
      %v944 = vld [vmem:[#allocation13] sm:$0xff]
      %v945 = vld [vmem:[#allocation13 + $0x8] sm:$0xff]
      %v946 = vld [vmem:[#allocation13 + $0x10] sm:$0xff]
      %v947 = vld [vmem:[#allocation13 + $0x18] sm:$0xff]
      %v948 = vld [vmem:[#allocation13 + $0x20] sm:$0xff]
      %v949 = vld [vmem:[#allocation13 + $0x28] sm:$0xff]
      %v950 = vld [vmem:[#allocation13 + $0x30] sm:$0xff]
      %v951 = vld [vmem:[#allocation13 + $0x38] sm:$0xff]
      %v952 = vld [vmem:[#allocation13 + $0x40] sm:$0xff]
      %v953 = vld [vmem:[#allocation13 + $0x48] sm:$0xff]
      %v954 = vld [vmem:[#allocation13 + $0x50] sm:$0xff]
      %v955 = vld [vmem:[#allocation13 + $0x58] sm:$0xff]
      %v956 = vld [vmem:[#allocation13 + $0x60] sm:$0xff]
      %v957 = vld [vmem:[#allocation13 + $0x68] sm:$0xff]
      %v958 = vld [vmem:[#allocation13 + $0x70] sm:$0xff]
      %v959 = vld [vmem:[#allocation13 + $0x78] sm:$0xff]
      %v960 = vld [vmem:[#allocation13 + $0x80] sm:$0xff]
      %v961 = vld [vmem:[#allocation13 + $0x88] sm:$0xff]
      %v962 = vld [vmem:[#allocation13 + $0x90] sm:$0xff]
      %v963 = vld [vmem:[#allocation13 + $0x98] sm:$0xff]
      %v964 = vld [vmem:[#allocation13 + $0xa0] sm:$0xff]
      %v965 = vld [vmem:[#allocation13 + $0xa8] sm:$0xff]
      %v966 = vld [vmem:[#allocation13 + $0xb0] sm:$0xff]
      %v967 = vld [vmem:[#allocation13 + $0xb8] sm:$0xff]
      %v968 = vld [vmem:[#allocation13 + $0xc0] sm:$0xff]
      %v969 = vld [vmem:[#allocation13 + $0xc8] sm:$0xff]
      %v970 = vld [vmem:[#allocation13 + $0xd0] sm:$0xff]
      %v971 = vld [vmem:[#allocation13 + $0xd8] sm:$0xff]
      %v972 = vld [vmem:[#allocation13 + $0xe0] sm:$0xff]
      %v973 = vld [vmem:[#allocation13 + $0xe8] sm:$0xff]
      %v974 = vld [vmem:[#allocation13 + $0xf0] sm:$0xff]
      %v975 = vld [vmem:[#allocation13 + $0xf8] sm:$0xff]
      %v1008 = vunpack.c.l.b16 %v944
      %v1009 = vunpack.c.h.b16 %v944
      %v1010 = vunpack.c.l.b16 %v945
      %v1011 = vunpack.c.h.b16 %v945
      %v1012 = vunpack.c.l.b16 %v946
      %v1013 = vunpack.c.h.b16 %v946
      %v1014 = vunpack.c.l.b16 %v947
      %v1015 = vunpack.c.h.b16 %v947
      %v1016 = vunpack.c.l.b16 %v948
      %v1017 = vunpack.c.h.b16 %v948
      %v1018 = vunpack.c.l.b16 %v949
      %v1019 = vunpack.c.h.b16 %v949
      %v1020 = vunpack.c.l.b16 %v950
      %v1021 = vunpack.c.h.b16 %v950
      %v1022 = vunpack.c.l.b16 %v951
      %v1023 = vunpack.c.h.b16 %v951
      %v1024 = vunpack.c.l.b16 %v952
      %v1025 = vunpack.c.h.b16 %v952
      %v1026 = vunpack.c.l.b16 %v953
      %v1027 = vunpack.c.h.b16 %v953
      %v1028 = vunpack.c.l.b16 %v954
      %v1029 = vunpack.c.h.b16 %v954
      %v1030 = vunpack.c.l.b16 %v955
      %v1031 = vunpack.c.h.b16 %v955
      %v1032 = vunpack.c.l.b16 %v956
      %v1033 = vunpack.c.h.b16 %v956
      %v1034 = vunpack.c.l.b16 %v957
      %v1035 = vunpack.c.h.b16 %v957
      %v1036 = vunpack.c.l.b16 %v958
      %v1037 = vunpack.c.h.b16 %v958
      %v1038 = vunpack.c.l.b16 %v959
      %v1039 = vunpack.c.h.b16 %v959
      %v1040 = vunpack.c.l.b16 %v960
      %v1041 = vunpack.c.h.b16 %v960
      %v1042 = vunpack.c.l.b16 %v961
      %v1043 = vunpack.c.h.b16 %v961
      %v1044 = vunpack.c.l.b16 %v962
      %v1045 = vunpack.c.h.b16 %v962
      %v1046 = vunpack.c.l.b16 %v963
      %v1047 = vunpack.c.h.b16 %v963
      %v1048 = vunpack.c.l.b16 %v964
      %v1049 = vunpack.c.h.b16 %v964
      %v1050 = vunpack.c.l.b16 %v965
      %v1051 = vunpack.c.h.b16 %v965
      %v1052 = vunpack.c.l.b16 %v966
      %v1053 = vunpack.c.h.b16 %v966
      %v1054 = vunpack.c.l.b16 %v967
      %v1055 = vunpack.c.h.b16 %v967
      %v1056 = vunpack.c.l.b16 %v968
      %v1057 = vunpack.c.h.b16 %v968
      %v1058 = vunpack.c.l.b16 %v969
      %v1059 = vunpack.c.h.b16 %v969
      %v1060 = vunpack.c.l.b16 %v970
      %v1061 = vunpack.c.h.b16 %v970
      %v1062 = vunpack.c.l.b16 %v971
      %v1063 = vunpack.c.h.b16 %v971
      %v1064 = vunpack.c.l.b16 %v972
      %v1065 = vunpack.c.h.b16 %v972
      %v1066 = vunpack.c.l.b16 %v973
      %v1067 = vunpack.c.h.b16 %v973
      %v1068 = vunpack.c.l.b16 %v974
      %v1069 = vunpack.c.h.b16 %v974
      %v1070 = vunpack.c.l.b16 %v975
      %v1071 = vunpack.c.h.b16 %v975
      %v1072 = vpack.c.b16 %v1012, %v1008
      %v1073 = vpack.c.b16 %v1013, %v1009
      %v1074 = vpack.c.b16 %v1014, %v1010
      %v1075 = vpack.c.b16 %v1015, %v1011
      %v1076 = vpack.c.b16 %v1020, %v1016
      %v1077 = vpack.c.b16 %v1021, %v1017
      %v1078 = vpack.c.b16 %v1022, %v1018
      %v1079 = vpack.c.b16 %v1023, %v1019
      %v1080 = vpack.c.b16 %v1028, %v1024
      %v1081 = vpack.c.b16 %v1029, %v1025
      %v1082 = vpack.c.b16 %v1030, %v1026
      %v1083 = vpack.c.b16 %v1031, %v1027
      %v1084 = vpack.c.b16 %v1036, %v1032
      %v1085 = vpack.c.b16 %v1037, %v1033
      %v1086 = vpack.c.b16 %v1038, %v1034
      %v1087 = vpack.c.b16 %v1039, %v1035
      %v1088 = vpack.c.b16 %v1044, %v1040
      %v1089 = vpack.c.b16 %v1045, %v1041
      %v1090 = vpack.c.b16 %v1046, %v1042
      %v1091 = vpack.c.b16 %v1047, %v1043
      %v1092 = vpack.c.b16 %v1052, %v1048
      %v1093 = vpack.c.b16 %v1053, %v1049
      %v1094 = vpack.c.b16 %v1054, %v1050
      %v1095 = vpack.c.b16 %v1055, %v1051
      %v1096 = vpack.c.b16 %v1060, %v1056
      %v1097 = vpack.c.b16 %v1061, %v1057
      %v1098 = vpack.c.b16 %v1062, %v1058
      %v1099 = vpack.c.b16 %v1063, %v1059
      %v1100 = vpack.c.b16 %v1068, %v1064
      %v1101 = vpack.c.b16 %v1069, %v1065
      %v1102 = vpack.c.b16 %v1070, %v1066
      %v1103 = vpack.c.b16 %v1071, %v1067
      %1136 = vmatprep.subr.bf16.mxu0 %v1073
      %1137 = vmatpush1.bf16.msra.mxu0 %v1072
      %1138 = vmatprep.subr.bf16.mxu0 %v1077
      %1139 = vmatpush1.bf16.msra.mxu0 %v1076
      %1140 = vmatprep.subr.bf16.mxu0 %v1081
      %1141 = vmatpush1.bf16.msra.mxu0 %v1080
      %1142 = vmatprep.subr.bf16.mxu0 %v1085
      %1143 = vmatpush1.bf16.msra.mxu0 %v1084
      %1144 = vmatprep.subr.bf16.mxu0 %v1089
      %1145 = vmatpush1.bf16.msra.mxu0 %v1088
      %1146 = vmatprep.subr.bf16.mxu0 %v1093
      %1147 = vmatpush1.bf16.msra.mxu0 %v1092
      %1148 = vmatprep.subr.bf16.mxu0 %v1097
      %1149 = vmatpush1.bf16.msra.mxu0 %v1096
      %1150 = vmatprep.subr.bf16.mxu0 %v1101
      %1151 = vmatpush1.bf16.msra.mxu0 %v1100
      %1152 = vmatprep.subr.bf16.mxu0 0
      %1153 = vmatpush1.bf16.msra.mxu0 0
      %1154 = vmatprep.subr.bf16.mxu0 0
      %1155 = vmatpush1.bf16.msra.mxu0 0
      %1156 = vmatprep.subr.bf16.mxu0 0
      %1157 = vmatpush1.bf16.msra.mxu0 0
      %1158 = vmatprep.subr.bf16.mxu0 0
      %1159 = vmatpush1.bf16.msra.mxu0 0
      %1160 = vmatprep.subr.bf16.mxu0 0
      %1161 = vmatpush1.bf16.msra.mxu0 0
      %1162 = vmatprep.subr.bf16.mxu0 0
      %1163 = vmatpush1.bf16.msra.mxu0 0
      %1164 = vmatprep.subr.bf16.mxu0 0
      %1165 = vmatpush1.bf16.msra.mxu0 0
      %1166 = vmatprep.subr.bf16.mxu0 0
      %1167 = vmatpush1.bf16.msra.mxu0 0
      %1168 = vmatprep.mubr.bf16.mxu0 0
      %1169 = vmatmul.mubr.bf16.gmra.mrb[0].mxu0 %v943
      %v1170 = vpop.f32.mrb[0].mxu0
      %v1171 = vadd.f32 0.0, %v1170
      %v1172 = vpop.f32.mrb[0].mxu0
      %v1173 = vadd.f32 0.0, %v1172
      %v1174 = vpop.f32.mrb[0].mxu0
      %v1175 = vpop.f32.mrb[0].mxu0
      %1176 = vdwg.mxu0
      %1177 = vmatprep.subr.bf16.mxu0 %v1075
      %1178 = vmatpush1.bf16.msra.mxu0 %v1074
      %1179 = vmatprep.subr.bf16.mxu0 %v1079
      %1180 = vmatpush1.bf16.msra.mxu0 %v1078
      %1181 = vmatprep.subr.bf16.mxu0 %v1083
      %1182 = vmatpush1.bf16.msra.mxu0 %v1082
      %1183 = vmatprep.subr.bf16.mxu0 %v1087
      %1184 = vmatpush1.bf16.msra.mxu0 %v1086
      %1185 = vmatprep.subr.bf16.mxu0 %v1091
      %1186 = vmatpush1.bf16.msra.mxu0 %v1090
      %1187 = vmatprep.subr.bf16.mxu0 %v1095
      %1188 = vmatpush1.bf16.msra.mxu0 %v1094
      %1189 = vmatprep.subr.bf16.mxu0 %v1099
      %1190 = vmatpush1.bf16.msra.mxu0 %v1098
      %1191 = vmatprep.subr.bf16.mxu0 %v1103
      %1192 = vmatpush1.bf16.msra.mxu0 %v1102
      %1193 = vmatprep.subr.bf16.mxu0 0
      %1194 = vmatpush1.bf16.msra.mxu0 0
      %1195 = vmatprep.subr.bf16.mxu0 0
      %1196 = vmatpush1.bf16.msra.mxu0 0
      %1197 = vmatprep.subr.bf16.mxu0 0
      %1198 = vmatpush1.bf16.msra.mxu0 0
      %1199 = vmatprep.subr.bf16.mxu0 0
      %1200 = vmatpush1.bf16.msra.mxu0 0
      %1201 = vmatprep.subr.bf16.mxu0 0
      %1202 = vmatpush1.bf16.msra.mxu0 0
      %1203 = vmatprep.subr.bf16.mxu0 0
      %1204 = vmatpush1.bf16.msra.mxu0 0
      %1205 = vmatprep.subr.bf16.mxu0 0
      %1206 = vmatpush1.bf16.msra.mxu0 0
      %1207 = vmatprep.subr.bf16.mxu0 0
      %1208 = vmatpush1.bf16.msra.mxu0 0
      %1209 = vmatprep.mubr.bf16.mxu0 0
      %1210 = vmatmul.mubr.bf16.gmra.mrb[0].mxu0 %v943
      %v1211 = vpop.f32.mrb[0].mxu0
      %v1212 = vadd.f32 0.0, %v1211
      %v1213 = vpop.f32.mrb[0].mxu0
      %v1214 = vadd.f32 0.0, %v1213
      %v1215 = vpop.f32.mrb[0].mxu0
      %v1216 = vpop.f32.mrb[0].mxu0
      %1217 = vdwg.mxu0
      %v1218 = vadd.f32 %v938, %v1171
      %v1219 = vadd.f32 %v939, %v1173
      %v1220 = vadd.f32 %v940, %v1212
      %v1221 = vadd.f32 %v941, %v1214
      %v1222 = vld [vmem:[#allocation4] sm:$0xff]
      %v1223 = vxor.u32 %v1218, 2147483648
      %v1224 = vmul.f32 %v1223, 1.442695
      %v1225 = vpow.pop %v1224
      %v1226 = vadd.f32 %v1225, 1.0
      %v1227 = vrcp.pop %v1226
      %v1228 = vmul.f32 1.0, %v1227
      %v1229 = vxor.u32 %v1219, 2147483648
      %v1230 = vmul.f32 %v1229, 1.442695
      %v1231 = vpow.pop %v1230
      %v1232 = vadd.f32 %v1231, 1.0
      %v1233 = vrcp.pop %v1232
      %v1234 = vmul.f32 1.0, %v1233
      %v1235 = vtanh.pop %v1220
      %v1236 = vxor.u32 %v1221, 2147483648
      %v1237 = vmul.f32 %v1236, 1.442695
      %v1238 = vpow.pop %v1237
      %v1239 = vadd.f32 %v1238, 1.0
      %v1240 = vrcp.pop %v1239
      %v1241 = vmul.f32 1.0, %v1240
      %v1242 = vmul.f32 %v1234, %v1222
      %v1243 = vmul.f32 %v1228, %v1235
      %v1244 = vadd.f32 %v1242, %v1243
      %v1245 = vtanh.pop %v1244
      %v1246 = vmul.f32 %v1241, %v1245
      %vm1247 = vcmp.gt.f32.partialorder %v932, 0.0
      %v1248 = vsel %vm1247, 1, 0
      %1249 = vset.pattern.permute.xlu0 0
      %1250 = vperm.xlu0 %1249, %v1248
      %v1251 = vpop.permute.xlu0 %1250
      %vm1252 = vcmp.eq.s32.totalorder %v1251, 1
      %v1253 = vsel %vm1252, %v1244, %v1222
      %v1254 = vsel %vm1252, %v1246, %v942
      %1255 = vst [vmem:[#allocation3] sm:$0xff] %v1254
      %1256 = vst [vmem:[#allocation4] sm:$0xff] %v1253
      %v1257 = vsel %vm1252, %v1246, 0.0
      %v1258 = vpack.c.bf16 %v1257, %v1257
      %s1259 = smul.u32 %s924, 2
      %s1260 = smul.addr %s1259, 4
      %s1261 = scalar_lea.vmem [#allocation18], %s1260
      %1262 = vst [vmem:[%s1261] sm:$0xf] %v1258
      %s1263 = smul.u32 %s929, 8
      %s1264 = scalar_lea.vmem [#allocation10], %s1263
      %v1265 = vld [vmem:[%s1264] sm:$0xff]
      %s1266 = sshra.s32 %s1263, 3
      %s1267 = sand.u32 %s1263, 7
      %s1268 = smul.u32 %s1266, 8
      %s1269 = smul.addr %s1268, 8
      %s1270 = scalar_lea.vmem [#allocation2], %s1269
      %v1271 = vld [vmem:[%s1270 + $0x20] sm:$0xff]
      %v1272 = vld [vmem:[%s1270 + $0x28] sm:$0xff]
      %v1273 = vld [vmem:[%s1270 + $0x30] sm:$0xff]
      %v1274 = vld [vmem:[%s1270 + $0x38] sm:$0xff]
      %v1275 = vld [vmem:[#allocation5] sm:$0xff]
      %v1276 = vpack.c.bf16 %v1275, %v1275
      %v1277 = vld [vmem:[#allocation15] sm:$0xff]
      %v1278 = vld [vmem:[#allocation15 + $0x8] sm:$0xff]
      %v1279 = vld [vmem:[#allocation15 + $0x10] sm:$0xff]
      %v1280 = vld [vmem:[#allocation15 + $0x18] sm:$0xff]
      %v1281 = vld [vmem:[#allocation15 + $0x20] sm:$0xff]
      %v1282 = vld [vmem:[#allocation15 + $0x28] sm:$0xff]
      %v1283 = vld [vmem:[#allocation15 + $0x30] sm:$0xff]
      %v1284 = vld [vmem:[#allocation15 + $0x38] sm:$0xff]
      %v1285 = vld [vmem:[#allocation15 + $0x40] sm:$0xff]
      %v1286 = vld [vmem:[#allocation15 + $0x48] sm:$0xff]
      %v1287 = vld [vmem:[#allocation15 + $0x50] sm:$0xff]
      %v1288 = vld [vmem:[#allocation15 + $0x58] sm:$0xff]
      %v1289 = vld [vmem:[#allocation15 + $0x60] sm:$0xff]
      %v1290 = vld [vmem:[#allocation15 + $0x68] sm:$0xff]
      %v1291 = vld [vmem:[#allocation15 + $0x70] sm:$0xff]
      %v1292 = vld [vmem:[#allocation15 + $0x78] sm:$0xff]
      %v1293 = vld [vmem:[#allocation15 + $0x80] sm:$0xff]
      %v1294 = vld [vmem:[#allocation15 + $0x88] sm:$0xff]
      %v1295 = vld [vmem:[#allocation15 + $0x90] sm:$0xff]
      %v1296 = vld [vmem:[#allocation15 + $0x98] sm:$0xff]
      %v1297 = vld [vmem:[#allocation15 + $0xa0] sm:$0xff]
      %v1298 = vld [vmem:[#allocation15 + $0xa8] sm:$0xff]
      %v1299 = vld [vmem:[#allocation15 + $0xb0] sm:$0xff]
      %v1300 = vld [vmem:[#allocation15 + $0xb8] sm:$0xff]
      %v1301 = vld [vmem:[#allocation15 + $0xc0] sm:$0xff]
      %v1302 = vld [vmem:[#allocation15 + $0xc8] sm:$0xff]
      %v1303 = vld [vmem:[#allocation15 + $0xd0] sm:$0xff]
      %v1304 = vld [vmem:[#allocation15 + $0xd8] sm:$0xff]
      %v1305 = vld [vmem:[#allocation15 + $0xe0] sm:$0xff]
      %v1306 = vld [vmem:[#allocation15 + $0xe8] sm:$0xff]
      %v1307 = vld [vmem:[#allocation15 + $0xf0] sm:$0xff]
      %v1308 = vld [vmem:[#allocation15 + $0xf8] sm:$0xff]
      %v1341 = vunpack.c.l.b16 %v1277
      %v1342 = vunpack.c.h.b16 %v1277
      %v1343 = vunpack.c.l.b16 %v1278
      %v1344 = vunpack.c.h.b16 %v1278
      %v1345 = vunpack.c.l.b16 %v1279
      %v1346 = vunpack.c.h.b16 %v1279
      %v1347 = vunpack.c.l.b16 %v1280
      %v1348 = vunpack.c.h.b16 %v1280
      %v1349 = vunpack.c.l.b16 %v1281
      %v1350 = vunpack.c.h.b16 %v1281
      %v1351 = vunpack.c.l.b16 %v1282
      %v1352 = vunpack.c.h.b16 %v1282
      %v1353 = vunpack.c.l.b16 %v1283
      %v1354 = vunpack.c.h.b16 %v1283
      %v1355 = vunpack.c.l.b16 %v1284
      %v1356 = vunpack.c.h.b16 %v1284
      %v1357 = vunpack.c.l.b16 %v1285
      %v1358 = vunpack.c.h.b16 %v1285
      %v1359 = vunpack.c.l.b16 %v1286
      %v1360 = vunpack.c.h.b16 %v1286
      %v1361 = vunpack.c.l.b16 %v1287
      %v1362 = vunpack.c.h.b16 %v1287
      %v1363 = vunpack.c.l.b16 %v1288
      %v1364 = vunpack.c.h.b16 %v1288
      %v1365 = vunpack.c.l.b16 %v1289
      %v1366 = vunpack.c.h.b16 %v1289
      %v1367 = vunpack.c.l.b16 %v1290
      %v1368 = vunpack.c.h.b16 %v1290
      %v1369 = vunpack.c.l.b16 %v1291
      %v1370 = vunpack.c.h.b16 %v1291
      %v1371 = vunpack.c.l.b16 %v1292
      %v1372 = vunpack.c.h.b16 %v1292
      %v1373 = vunpack.c.l.b16 %v1293
      %v1374 = vunpack.c.h.b16 %v1293
      %v1375 = vunpack.c.l.b16 %v1294
      %v1376 = vunpack.c.h.b16 %v1294
      %v1377 = vunpack.c.l.b16 %v1295
      %v1378 = vunpack.c.h.b16 %v1295
      %v1379 = vunpack.c.l.b16 %v1296
      %v1380 = vunpack.c.h.b16 %v1296
      %v1381 = vunpack.c.l.b16 %v1297
      %v1382 = vunpack.c.h.b16 %v1297
      %v1383 = vunpack.c.l.b16 %v1298
      %v1384 = vunpack.c.h.b16 %v1298
      %v1385 = vunpack.c.l.b16 %v1299
      %v1386 = vunpack.c.h.b16 %v1299
      %v1387 = vunpack.c.l.b16 %v1300
      %v1388 = vunpack.c.h.b16 %v1300
      %v1389 = vunpack.c.l.b16 %v1301
      %v1390 = vunpack.c.h.b16 %v1301
      %v1391 = vunpack.c.l.b16 %v1302
      %v1392 = vunpack.c.h.b16 %v1302
      %v1393 = vunpack.c.l.b16 %v1303
      %v1394 = vunpack.c.h.b16 %v1303
      %v1395 = vunpack.c.l.b16 %v1304
      %v1396 = vunpack.c.h.b16 %v1304
      %v1397 = vunpack.c.l.b16 %v1305
      %v1398 = vunpack.c.h.b16 %v1305
      %v1399 = vunpack.c.l.b16 %v1306
      %v1400 = vunpack.c.h.b16 %v1306
      %v1401 = vunpack.c.l.b16 %v1307
      %v1402 = vunpack.c.h.b16 %v1307
      %v1403 = vunpack.c.l.b16 %v1308
      %v1404 = vunpack.c.h.b16 %v1308
      %v1405 = vpack.c.b16 %v1345, %v1341
      %v1406 = vpack.c.b16 %v1346, %v1342
      %v1407 = vpack.c.b16 %v1347, %v1343
      %v1408 = vpack.c.b16 %v1348, %v1344
      %v1409 = vpack.c.b16 %v1353, %v1349
      %v1410 = vpack.c.b16 %v1354, %v1350
      %v1411 = vpack.c.b16 %v1355, %v1351
      %v1412 = vpack.c.b16 %v1356, %v1352
      %v1413 = vpack.c.b16 %v1361, %v1357
      %v1414 = vpack.c.b16 %v1362, %v1358
      %v1415 = vpack.c.b16 %v1363, %v1359
      %v1416 = vpack.c.b16 %v1364, %v1360
      %v1417 = vpack.c.b16 %v1369, %v1365
      %v1418 = vpack.c.b16 %v1370, %v1366
      %v1419 = vpack.c.b16 %v1371, %v1367
      %v1420 = vpack.c.b16 %v1372, %v1368
      %v1421 = vpack.c.b16 %v1377, %v1373
      %v1422 = vpack.c.b16 %v1378, %v1374
      %v1423 = vpack.c.b16 %v1379, %v1375
      %v1424 = vpack.c.b16 %v1380, %v1376
      %v1425 = vpack.c.b16 %v1385, %v1381
      %v1426 = vpack.c.b16 %v1386, %v1382
      %v1427 = vpack.c.b16 %v1387, %v1383
      %v1428 = vpack.c.b16 %v1388, %v1384
      %v1429 = vpack.c.b16 %v1393, %v1389
      %v1430 = vpack.c.b16 %v1394, %v1390
      %v1431 = vpack.c.b16 %v1395, %v1391
      %v1432 = vpack.c.b16 %v1396, %v1392
      %v1433 = vpack.c.b16 %v1401, %v1397
      %v1434 = vpack.c.b16 %v1402, %v1398
      %v1435 = vpack.c.b16 %v1403, %v1399
      %v1436 = vpack.c.b16 %v1404, %v1400
      %1469 = vmatprep.subr.bf16.mxu0 %v1406
      %1470 = vmatpush1.bf16.msra.mxu0 %v1405
      %1471 = vmatprep.subr.bf16.mxu0 %v1410
      %1472 = vmatpush1.bf16.msra.mxu0 %v1409
      %1473 = vmatprep.subr.bf16.mxu0 %v1414
      %1474 = vmatpush1.bf16.msra.mxu0 %v1413
      %1475 = vmatprep.subr.bf16.mxu0 %v1418
      %1476 = vmatpush1.bf16.msra.mxu0 %v1417
      %1477 = vmatprep.subr.bf16.mxu0 %v1422
      %1478 = vmatpush1.bf16.msra.mxu0 %v1421
      %1479 = vmatprep.subr.bf16.mxu0 %v1426
      %1480 = vmatpush1.bf16.msra.mxu0 %v1425
      %1481 = vmatprep.subr.bf16.mxu0 %v1430
      %1482 = vmatpush1.bf16.msra.mxu0 %v1429
      %1483 = vmatprep.subr.bf16.mxu0 %v1434
      %1484 = vmatpush1.bf16.msra.mxu0 %v1433
      %1485 = vmatprep.subr.bf16.mxu0 0
      %1486 = vmatpush1.bf16.msra.mxu0 0
      %1487 = vmatprep.subr.bf16.mxu0 0
      %1488 = vmatpush1.bf16.msra.mxu0 0
      %1489 = vmatprep.subr.bf16.mxu0 0
      %1490 = vmatpush1.bf16.msra.mxu0 0
      %1491 = vmatprep.subr.bf16.mxu0 0
      %1492 = vmatpush1.bf16.msra.mxu0 0
      %1493 = vmatprep.subr.bf16.mxu0 0
      %1494 = vmatpush1.bf16.msra.mxu0 0
      %1495 = vmatprep.subr.bf16.mxu0 0
      %1496 = vmatpush1.bf16.msra.mxu0 0
      %1497 = vmatprep.subr.bf16.mxu0 0
      %1498 = vmatpush1.bf16.msra.mxu0 0
      %1499 = vmatprep.subr.bf16.mxu0 0
      %1500 = vmatpush1.bf16.msra.mxu0 0
      %1501 = vmatprep.mubr.bf16.mxu0 0
      %1502 = vmatmul.mubr.bf16.gmra.mrb[0].mxu0 %v1276
      %v1503 = vpop.f32.mrb[0].mxu0
      %v1504 = vadd.f32 0.0, %v1503
      %v1505 = vpop.f32.mrb[0].mxu0
      %v1506 = vadd.f32 0.0, %v1505
      %v1507 = vpop.f32.mrb[0].mxu0
      %v1508 = vpop.f32.mrb[0].mxu0
      %1509 = vdwg.mxu0
      %1510 = vmatprep.subr.bf16.mxu0 %v1408
      %1511 = vmatpush1.bf16.msra.mxu0 %v1407
      %1512 = vmatprep.subr.bf16.mxu0 %v1412
      %1513 = vmatpush1.bf16.msra.mxu0 %v1411
      %1514 = vmatprep.subr.bf16.mxu0 %v1416
      %1515 = vmatpush1.bf16.msra.mxu0 %v1415
      %1516 = vmatprep.subr.bf16.mxu0 %v1420
      %1517 = vmatpush1.bf16.msra.mxu0 %v1419
      %1518 = vmatprep.subr.bf16.mxu0 %v1424
      %1519 = vmatpush1.bf16.msra.mxu0 %v1423
      %1520 = vmatprep.subr.bf16.mxu0 %v1428
      %1521 = vmatpush1.bf16.msra.mxu0 %v1427
      %1522 = vmatprep.subr.bf16.mxu0 %v1432
      %1523 = vmatpush1.bf16.msra.mxu0 %v1431
      %1524 = vmatprep.subr.bf16.mxu0 %v1436
      %1525 = vmatpush1.bf16.msra.mxu0 %v1435
      %1526 = vmatprep.subr.bf16.mxu0 0
      %1527 = vmatpush1.bf16.msra.mxu0 0
      %1528 = vmatprep.subr.bf16.mxu0 0
      %1529 = vmatpush1.bf16.msra.mxu0 0
      %1530 = vmatprep.subr.bf16.mxu0 0
      %1531 = vmatpush1.bf16.msra.mxu0 0
      %1532 = vmatprep.subr.bf16.mxu0 0
      %1533 = vmatpush1.bf16.msra.mxu0 0
      %1534 = vmatprep.subr.bf16.mxu0 0
      %1535 = vmatpush1.bf16.msra.mxu0 0
      %1536 = vmatprep.subr.bf16.mxu0 0
      %1537 = vmatpush1.bf16.msra.mxu0 0
      %1538 = vmatprep.subr.bf16.mxu0 0
      %1539 = vmatpush1.bf16.msra.mxu0 0
      %1540 = vmatprep.subr.bf16.mxu0 0
      %1541 = vmatpush1.bf16.msra.mxu0 0
      %1542 = vmatprep.mubr.bf16.mxu0 0
      %1543 = vmatmul.mubr.bf16.gmra.mrb[0].mxu0 %v1276
      %v1544 = vpop.f32.mrb[0].mxu0
      %v1545 = vadd.f32 0.0, %v1544
      %v1546 = vpop.f32.mrb[0].mxu0
      %v1547 = vadd.f32 0.0, %v1546
      %v1548 = vpop.f32.mrb[0].mxu0
      %v1549 = vpop.f32.mrb[0].mxu0
      %1550 = vdwg.mxu0
      %v1551 = vadd.f32 %v1271, %v1504
      %v1552 = vadd.f32 %v1272, %v1506
      %v1553 = vadd.f32 %v1273, %v1545
      %v1554 = vadd.f32 %v1274, %v1547
      %v1555 = vld [vmem:[#allocation6] sm:$0xff]
      %v1556 = vxor.u32 %v1551, 2147483648
      %v1557 = vmul.f32 %v1556, 1.442695
      %v1558 = vpow.pop %v1557
      %v1559 = vadd.f32 %v1558, 1.0
      %v1560 = vrcp.pop %v1559
      %v1561 = vmul.f32 1.0, %v1560
      %v1562 = vxor.u32 %v1552, 2147483648
      %v1563 = vmul.f32 %v1562, 1.442695
      %v1564 = vpow.pop %v1563
      %v1565 = vadd.f32 %v1564, 1.0
      %v1566 = vrcp.pop %v1565
      %v1567 = vmul.f32 1.0, %v1566
      %v1568 = vtanh.pop %v1553
      %v1569 = vxor.u32 %v1554, 2147483648
      %v1570 = vmul.f32 %v1569, 1.442695
      %v1571 = vpow.pop %v1570
      %v1572 = vadd.f32 %v1571, 1.0
      %v1573 = vrcp.pop %v1572
      %v1574 = vmul.f32 1.0, %v1573
      %v1575 = vmul.f32 %v1567, %v1555
      %v1576 = vmul.f32 %v1561, %v1568
      %v1577 = vadd.f32 %v1575, %v1576
      %v1578 = vtanh.pop %v1577
      %v1579 = vmul.f32 %v1574, %v1578
      %vm1580 = vcmp.gt.f32.partialorder %v1265, 0.0
      %v1581 = vsel %vm1580, 1, 0
      %1582 = vset.pattern.permute.xlu0 0
      %1583 = vperm.xlu0 %1582, %v1581
      %v1584 = vpop.permute.xlu0 %1583
      %vm1585 = vcmp.eq.s32.totalorder %v1584, 1
      %v1586 = vsel %vm1585, %v1577, %v1555
      %v1587 = vsel %vm1585, %v1579, %v1275
      %1588 = vst [vmem:[#allocation5] sm:$0xff] %v1587
      %1589 = vst [vmem:[#allocation6] sm:$0xff] %v1586
      %v1590 = vsel %vm1585, %v1579, 0.0
      %v1591 = vpack.c.bf16 %v1590, %v1590
      %s1592 = smul.u32 %s929, 2
      %s1593 = smul.addr %s1592, 4
      %s1594 = scalar_lea.vmem [#allocation18], %s1593
      %1595 = vst [vmem:[%s1594 + $0x4] sm:$0xf] %v1591
    $region54: #{sse_forward.4} parent=1 // loop_footer
      %s928 = sadd.s32 1, %s924
    $region55: #{sse_forward.4} parent=1 // loop_footer_branch
      %923 = sbr.rel target = $region51
    $region56: #{sse_forward.4} parent=1 // loop_exit
      _
    // Predicated region
    $region57: #{sse_forward.4} parent=1 // pred_check
      _
    $region58: #{sse_forward.4} parent=1 // pred_check_branch
      %1597 = sbr.rel (0) target = $region60
    $region59: #{sse_forward.4} parent=1 // pred_region
      %s1599 = ssub.s32 1024, 1024
      %1600 = vsyncadd [#allocation9], %s1599
      %s1601 = sshll.u32 [#allocation18], 4
      %s1602 = int_to_ptr.vmem [resolvable:$true] %s1601
      %1607 = dma.vmem_to_hbm [thread:$0]  %s1602, 1024, %s6, [#allocation9], 128, 128, 8
    $region60: #{sse_forward.4} parent=1 // pred_fallthru
      _
    // Predicated region
    $region61: #{sse_forward.4} parent=1 // pred_check
      _
    $region62: #{sse_forward.4} parent=1 // pred_check_branch
      %1609 = sbr.rel (0) target = $region64
    $region63: #{sse_forward.4} parent=1 // pred_region
      %1610 = dma.done [#allocation9], 1024
    $region64: #{sse_forward.4} parent=1 // pred_fallthru
      _
    %1611 = vsyncpa [#allocation8], 1
    %1612 = vsyncpa [#allocation11], 1
    %1613 = vsyncpa [#allocation14], 1
    %1614 = vsyncpa [#allocation17], 1
    %1615 = vsyncpa [#allocation9], 1

// kernel: sse_forward.5
$region0: #{sse_forward.5}
  #allocation0 [shape = 'u32[]', space=smem, size = 0x4, offset = 0x4, fixed_abs, tag = 'smem constant byte address 0x4 - core index']
  #allocation1 [shape = 'u32[144,128]{1,0:T(1,128)}', space=vmem, size = 0x12000, scoped, tag = 'internal scratch']
  #allocation2 [shape = 'f32[64,1024]{1,0:T(8,128)}', space=vmem, size = 0x40000, scoped, tag = 'scratch operand']
  #allocation3 [shape = 'f32[8,128]{1,0:T(8,128)}', space=vmem, size = 0x1000, scoped, tag = 'scratch operand']
  #allocation4 [shape = 'f32[8,128]{1,0:T(8,128)}', space=vmem, size = 0x1000, scoped, tag = 'scratch operand']
  #allocation5 [shape = 'f32[8,128]{1,0:T(8,128)}', space=vmem, size = 0x1000, scoped, tag = 'scratch operand']
  #allocation6 [shape = 'f32[8,128]{1,0:T(8,128)}', space=vmem, size = 0x1000, scoped, tag = 'scratch operand']
  %s0 = inlined_call_operand.hbm [shape: bf16[64,128], index: 0, kind: input, shape index: {}]
  %s1 = inlined_call_operand.hbm [shape: bf16[64,256], index: 1, kind: input, shape index: {}]
  %s2 = inlined_call_operand.hbm [shape: f32[8,8,1], index: 2, kind: input, shape index: {}]
  %s3 = inlined_call_operand.hbm [shape: bf16[128,1024], index: 3, kind: input, shape index: {}]
  %s4 = inlined_call_operand.hbm [shape: bf16[256,1024], index: 4, kind: input, shape index: {}]
  %s5 = inlined_call_operand.hbm [shape: bf16[128,512], index: 5, kind: input, shape index: {}]
  %s6 = inlined_call_operand.hbm [shape: bf16[128,512], index: 6, kind: input, shape index: {}]
  %s7 = inlined_call_operand.hbm [shape: f32[1,1024], index: 7, kind: input, shape index: {}]
  %s8 = inlined_call_operand.hbm [shape: bf16[8,8,256], index: 8, kind: output, shape index: {}]
  %s9 = sld [smem:[#allocation0]]
  $region81: #{sse_forward.5} parent=0
    _
  %s11 = ssub.s32 1, %s9
  %s12 = scalar_select 0, %s11, %s9
  $region1: #{sse_forward.5} parent=0
    #allocation7 [shape = 'u8[16384]{0}', space=vmem, size = 0x4000, scoped, tag = 'input window, operand 0, single buffered']
    #allocation8 [shape = 's32[1]{0}', space=sflag, size = 0x4, scoped, tag = 'scoped memory for sse_forward.5']
    #allocation9 [shape = 's32[1]{0}', space=sflag, size = 0x4, scoped, tag = 'scoped memory for sse_forward.5']
    #allocation10 [shape = 'u8[32768]{0}', space=vmem, size = 0x8000, scoped, tag = 'input window, operand 1, single buffered']
    #allocation11 [shape = 's32[1]{0}', space=sflag, size = 0x4, scoped, tag = 'scoped memory for sse_forward.5']
    #allocation12 [shape = 'u8[32768]{0}', space=vmem, size = 0x8000, scoped, tag = 'input window, operand 2, single buffered']
    #allocation13 [shape = 'u8[262144]{0}', space=vmem, size = 0x40000, scoped, tag = 'input window, operand 3, single buffered']
    #allocation14 [shape = 's32[1]{0}', space=sflag, size = 0x4, scoped, tag = 'scoped memory for sse_forward.5']
    #allocation15 [shape = 'u8[524288]{0}', space=vmem, size = 0x80000, scoped, tag = 'input window, operand 4, single buffered']
    #allocation16 [shape = 'u8[131072]{0}', space=vmem, size = 0x20000, scoped, tag = 'input window, operand 5, single buffered']
    #allocation17 [shape = 's32[1]{0}', space=sflag, size = 0x4, scoped, tag = 'scoped memory for sse_forward.5']
    #allocation18 [shape = 'u8[131072]{0}', space=vmem, size = 0x20000, scoped, tag = 'input window, operand 6, single buffered']
    #allocation19 [shape = 'u8[4096]{0}', space=vmem, size = 0x1000, scoped, tag = 'input window, operand 7, single buffered']
    #allocation20 [shape = 's32[1]{0}', space=sflag, size = 0x4, scoped, tag = 'scoped memory for sse_forward.5']
    #allocation21 [shape = 'u8[32768]{0}', space=vmem, size = 0x8000, scoped, tag = 'output window, operand 0, single buffered']
    %13 = vsyncpa [#allocation8], 0
    %14 = vsyncpa [#allocation11], 0
    %15 = vsyncpa [#allocation14], 0
    %16 = vsyncpa [#allocation17], 0
    %17 = vsyncpa [#allocation20], 0
    %18 = vsyncpa [#allocation9], 0
    // Predicated region
    $region2: #{sse_forward.5} parent=1 // pred_check
      _
    $region3: #{sse_forward.5} parent=1 // pred_check_branch
      %20 = sbr.rel (0) target = $region5
    $region4: #{sse_forward.5} parent=1 // pred_region
      %s22 = ssub.s32 512, 512
      %23 = vsyncadd [#allocation8], %s22
      %s24 = sshll.u32 [#allocation7], 4
      %s25 = int_to_ptr.vmem [resolvable:$true] %s24
      %30 = dma.hbm_to_vmem [thread:$0]  %s0, 512, %s25, [#allocation8], 64, 64, 4
    $region5: #{sse_forward.5} parent=1 // pred_fallthru
      _
    // Predicated region
    $region6: #{sse_forward.5} parent=1 // pred_check
      _
    $region7: #{sse_forward.5} parent=1 // pred_check_branch
      %32 = sbr.rel (0) target = $region9
    $region8: #{sse_forward.5} parent=1 // pred_region
      %s34 = ssub.s32 1024, 1024
      %35 = vsyncadd [#allocation11], %s34
      %s36 = sshll.u32 [#allocation10], 4
      %s37 = int_to_ptr.vmem [resolvable:$true] %s36
      %42 = dma.hbm_to_vmem [thread:$0]  %s1, 1024, %s37, [#allocation11], 128, 128, 8
    $region9: #{sse_forward.5} parent=1 // pred_fallthru
      _
    // Predicated region
    $region10: #{sse_forward.5} parent=1 // pred_check
      _
    $region11: #{sse_forward.5} parent=1 // pred_check_branch
      %44 = sbr.rel (0) target = $region13
    $region12: #{sse_forward.5} parent=1 // pred_region
      %s46 = ssub.s32 1024, 1024
      %47 = vsyncadd [#allocation11], %s46
      %s48 = sshll.u32 [#allocation12], 4
      %s49 = int_to_ptr.vmem [resolvable:$true] %s48
      %54 = dma.hbm_to_vmem [thread:$0]  %s2, 1024, %s49, [#allocation11], 128, 128, 8
    $region13: #{sse_forward.5} parent=1 // pred_fallthru
      _
    // Predicated region
    $region14: #{sse_forward.5} parent=1 // pred_check
      _
    $region15: #{sse_forward.5} parent=1 // pred_check_branch
      %56 = sbr.rel (0) target = $region17
    $region16: #{sse_forward.5} parent=1 // pred_region
      %s58 = ssub.s32 8192, 8192
      %59 = vsyncadd [#allocation14], %s58
      %s60 = sshll.u32 [#allocation13], 4
      %s61 = int_to_ptr.vmem [resolvable:$true] %s60
      %66 = dma.hbm_to_vmem [thread:$0]  %s3, 8192, %s61, [#allocation14], 512, 512, 32
    $region17: #{sse_forward.5} parent=1 // pred_fallthru
      _
    // Predicated region
    $region18: #{sse_forward.5} parent=1 // pred_check
      _
    $region19: #{sse_forward.5} parent=1 // pred_check_branch
      %68 = sbr.rel (0) target = $region21
    $region20: #{sse_forward.5} parent=1 // pred_region
      %s70 = ssub.s32 16384, 16384
      %71 = vsyncadd [#allocation14], %s70
      %s72 = sshll.u32 [#allocation15], 4
      %s73 = int_to_ptr.vmem [resolvable:$true] %s72
      %78 = dma.hbm_to_vmem [thread:$0]  %s4, 16384, %s73, [#allocation14], 512, 512, 32
    $region21: #{sse_forward.5} parent=1 // pred_fallthru
      _
    // Predicated region
    $region22: #{sse_forward.5} parent=1 // pred_check
      _
    $region23: #{sse_forward.5} parent=1 // pred_check_branch
      %80 = sbr.rel (0) target = $region25
    $region24: #{sse_forward.5} parent=1 // pred_region
      %s82 = ssub.s32 4096, 4096
      %83 = vsyncadd [#allocation17], %s82
      %s84 = sshll.u32 [#allocation16], 4
      %s85 = int_to_ptr.vmem [resolvable:$true] %s84
      %90 = dma.hbm_to_vmem [thread:$0]  %s5, 4096, %s85, [#allocation17], 256, 256, 16
    $region25: #{sse_forward.5} parent=1 // pred_fallthru
      _
    // Predicated region
    $region26: #{sse_forward.5} parent=1 // pred_check
      _
    $region27: #{sse_forward.5} parent=1 // pred_check_branch
      %92 = sbr.rel (0) target = $region29
    $region28: #{sse_forward.5} parent=1 // pred_region
      %s94 = ssub.s32 4096, 4096
      %95 = vsyncadd [#allocation17], %s94
      %s96 = sshll.u32 [#allocation18], 4
      %s97 = int_to_ptr.vmem [resolvable:$true] %s96
      %102 = dma.hbm_to_vmem [thread:$0]  %s6, 4096, %s97, [#allocation17], 256, 256, 16
    $region29: #{sse_forward.5} parent=1 // pred_fallthru
      _
    // Predicated region
    $region30: #{sse_forward.5} parent=1 // pred_check
      _
    $region31: #{sse_forward.5} parent=1 // pred_check_branch
      %104 = sbr.rel (0) target = $region33
    $region32: #{sse_forward.5} parent=1 // pred_region
      %s106 = ssub.s32 128, 128
      %107 = vsyncadd [#allocation20], %s106
      %s109 = sshll.u32 [#allocation19], 4
      %s110 = int_to_ptr.vmem [resolvable:$true] %s109
      %112 = dma.hbm_to_vmem [thread:$0]  %s7, 128, %s110, [#allocation20]
    $region33: #{sse_forward.5} parent=1 // pred_fallthru
      _
    // Predicated region
    $region34: #{sse_forward.5} parent=1 // pred_check
      _
    $region35: #{sse_forward.5} parent=1 // pred_check_branch
      %114 = sbr.rel (0) target = $region37
    $region36: #{sse_forward.5} parent=1 // pred_region
      %115 = dma.done [#allocation8], 512
    $region37: #{sse_forward.5} parent=1 // pred_fallthru
      _
    // Predicated region
    $region38: #{sse_forward.5} parent=1 // pred_check
      _
    $region39: #{sse_forward.5} parent=1 // pred_check_branch
      %117 = sbr.rel (0) target = $region41
    $region40: #{sse_forward.5} parent=1 // pred_region
      %118 = dma.done [#allocation11], 1024
    $region41: #{sse_forward.5} parent=1 // pred_fallthru
      _
    // Predicated region
    $region42: #{sse_forward.5} parent=1 // pred_check
      _
    $region43: #{sse_forward.5} parent=1 // pred_check_branch
      %120 = sbr.rel (0) target = $region45
    $region44: #{sse_forward.5} parent=1 // pred_region
      %121 = dma.done [#allocation11], 1024
    $region45: #{sse_forward.5} parent=1 // pred_fallthru
      _
    // Predicated region
    $region46: #{sse_forward.5} parent=1 // pred_check
      _
    $region47: #{sse_forward.5} parent=1 // pred_check_branch
      %123 = sbr.rel (0) target = $region49
    $region48: #{sse_forward.5} parent=1 // pred_region
      %124 = dma.done [#allocation14], 8192
    $region49: #{sse_forward.5} parent=1 // pred_fallthru
      _
    // Predicated region
    $region50: #{sse_forward.5} parent=1 // pred_check
      _
    $region51: #{sse_forward.5} parent=1 // pred_check_branch
      %126 = sbr.rel (0) target = $region53
    $region52: #{sse_forward.5} parent=1 // pred_region
      %127 = dma.done [#allocation14], 16384
    $region53: #{sse_forward.5} parent=1 // pred_fallthru
      _
    // Predicated region
    $region54: #{sse_forward.5} parent=1 // pred_check
      _
    $region55: #{sse_forward.5} parent=1 // pred_check_branch
      %129 = sbr.rel (0) target = $region57
    $region56: #{sse_forward.5} parent=1 // pred_region
      %130 = dma.done [#allocation17], 4096
    $region57: #{sse_forward.5} parent=1 // pred_fallthru
      _
    // Predicated region
    $region58: #{sse_forward.5} parent=1 // pred_check
      _
    $region59: #{sse_forward.5} parent=1 // pred_check_branch
      %132 = sbr.rel (0) target = $region61
    $region60: #{sse_forward.5} parent=1 // pred_region
      %133 = dma.done [#allocation17], 4096
    $region61: #{sse_forward.5} parent=1 // pred_fallthru
      _
    // Predicated region
    $region62: #{sse_forward.5} parent=1 // pred_check
      _
    $region63: #{sse_forward.5} parent=1 // pred_check_branch
      %135 = sbr.rel (0) target = $region65
    $region64: #{sse_forward.5} parent=1 // pred_region
      %136 = dma.done [#allocation20], 128
    $region65: #{sse_forward.5} parent=1 // pred_fallthru
      _
    %v138 = vld [vmem:[#allocation7] sm:$0xf]
    %v139 = vld [vmem:[#allocation7 + $0x4] sm:$0xf]
    %v140 = vld [vmem:[#allocation7 + $0x8] sm:$0xf]
    %v141 = vld [vmem:[#allocation7 + $0xc] sm:$0xf]
    %v142 = vld [vmem:[#allocation7 + $0x10] sm:$0xf]
    %v143 = vld [vmem:[#allocation7 + $0x14] sm:$0xf]
    %v144 = vld [vmem:[#allocation7 + $0x18] sm:$0xf]
    %v145 = vld [vmem:[#allocation7 + $0x1c] sm:$0xf]
    %v146 = vld [vmem:[#allocation13] sm:$0xff]
    %v147 = vld [vmem:[#allocation13 + $0x8] sm:$0xff]
    %v148 = vld [vmem:[#allocation13 + $0x10] sm:$0xff]
    %v149 = vld [vmem:[#allocation13 + $0x18] sm:$0xff]
    %v150 = vld [vmem:[#allocation13 + $0x20] sm:$0xff]
    %v151 = vld [vmem:[#allocation13 + $0x28] sm:$0xff]
    %v152 = vld [vmem:[#allocation13 + $0x30] sm:$0xff]
    %v153 = vld [vmem:[#allocation13 + $0x38] sm:$0xff]
    %v154 = vld [vmem:[#allocation13 + $0x40] sm:$0xff]
    %v155 = vld [vmem:[#allocation13 + $0x48] sm:$0xff]
    %v156 = vld [vmem:[#allocation13 + $0x50] sm:$0xff]
    %v157 = vld [vmem:[#allocation13 + $0x58] sm:$0xff]
    %v158 = vld [vmem:[#allocation13 + $0x60] sm:$0xff]
    %v159 = vld [vmem:[#allocation13 + $0x68] sm:$0xff]
    %v160 = vld [vmem:[#allocation13 + $0x70] sm:$0xff]
    %v161 = vld [vmem:[#allocation13 + $0x78] sm:$0xff]
    %v162 = vld [vmem:[#allocation13 + $0x80] sm:$0xff]
    %v163 = vld [vmem:[#allocation13 + $0x88] sm:$0xff]
    %v164 = vld [vmem:[#allocation13 + $0x90] sm:$0xff]
    %v165 = vld [vmem:[#allocation13 + $0x98] sm:$0xff]
    %v166 = vld [vmem:[#allocation13 + $0xa0] sm:$0xff]
    %v167 = vld [vmem:[#allocation13 + $0xa8] sm:$0xff]
    %v168 = vld [vmem:[#allocation13 + $0xb0] sm:$0xff]
    %v169 = vld [vmem:[#allocation13 + $0xb8] sm:$0xff]
    %v170 = vld [vmem:[#allocation13 + $0xc0] sm:$0xff]
    %v171 = vld [vmem:[#allocation13 + $0xc8] sm:$0xff]
    %v172 = vld [vmem:[#allocation13 + $0xd0] sm:$0xff]
    %v173 = vld [vmem:[#allocation13 + $0xd8] sm:$0xff]
    %v174 = vld [vmem:[#allocation13 + $0xe0] sm:$0xff]
    %v175 = vld [vmem:[#allocation13 + $0xe8] sm:$0xff]
    %v176 = vld [vmem:[#allocation13 + $0xf0] sm:$0xff]
    %v177 = vld [vmem:[#allocation13 + $0xf8] sm:$0xff]
    %v178 = vld [vmem:[#allocation13 + $0x100] sm:$0xff]
    %v179 = vld [vmem:[#allocation13 + $0x108] sm:$0xff]
    %v180 = vld [vmem:[#allocation13 + $0x110] sm:$0xff]
    %v181 = vld [vmem:[#allocation13 + $0x118] sm:$0xff]
    %v182 = vld [vmem:[#allocation13 + $0x120] sm:$0xff]
    %v183 = vld [vmem:[#allocation13 + $0x128] sm:$0xff]
    %v184 = vld [vmem:[#allocation13 + $0x130] sm:$0xff]
    %v185 = vld [vmem:[#allocation13 + $0x138] sm:$0xff]
    %v186 = vld [vmem:[#allocation13 + $0x140] sm:$0xff]
    %v187 = vld [vmem:[#allocation13 + $0x148] sm:$0xff]
    %v188 = vld [vmem:[#allocation13 + $0x150] sm:$0xff]
    %v189 = vld [vmem:[#allocation13 + $0x158] sm:$0xff]
    %v190 = vld [vmem:[#allocation13 + $0x160] sm:$0xff]
    %v191 = vld [vmem:[#allocation13 + $0x168] sm:$0xff]
    %v192 = vld [vmem:[#allocation13 + $0x170] sm:$0xff]
    %v193 = vld [vmem:[#allocation13 + $0x178] sm:$0xff]
    %v194 = vld [vmem:[#allocation13 + $0x180] sm:$0xff]
    %v195 = vld [vmem:[#allocation13 + $0x188] sm:$0xff]
    %v196 = vld [vmem:[#allocation13 + $0x190] sm:$0xff]
    %v197 = vld [vmem:[#allocation13 + $0x198] sm:$0xff]
    %v198 = vld [vmem:[#allocation13 + $0x1a0] sm:$0xff]
    %v199 = vld [vmem:[#allocation13 + $0x1a8] sm:$0xff]
    %v200 = vld [vmem:[#allocation13 + $0x1b0] sm:$0xff]
    %v201 = vld [vmem:[#allocation13 + $0x1b8] sm:$0xff]
    %v202 = vld [vmem:[#allocation13 + $0x1c0] sm:$0xff]
    %v203 = vld [vmem:[#allocation13 + $0x1c8] sm:$0xff]
    %v204 = vld [vmem:[#allocation13 + $0x1d0] sm:$0xff]
    %v205 = vld [vmem:[#allocation13 + $0x1d8] sm:$0xff]
    %v206 = vld [vmem:[#allocation13 + $0x1e0] sm:$0xff]
    %v207 = vld [vmem:[#allocation13 + $0x1e8] sm:$0xff]
    %v208 = vld [vmem:[#allocation13 + $0x1f0] sm:$0xff]
    %v209 = vld [vmem:[#allocation13 + $0x1f8] sm:$0xff]
    %v210 = vld [vmem:[#allocation10] sm:$0xff]
    %v211 = vld [vmem:[#allocation10 + $0x8] sm:$0xff]
    %v212 = vld [vmem:[#allocation10 + $0x10] sm:$0xff]
    %v213 = vld [vmem:[#allocation10 + $0x18] sm:$0xff]
    %v214 = vld [vmem:[#allocation10 + $0x20] sm:$0xff]
    %v215 = vld [vmem:[#allocation10 + $0x28] sm:$0xff]
    %v216 = vld [vmem:[#allocation10 + $0x30] sm:$0xff]
    %v217 = vld [vmem:[#allocation10 + $0x38] sm:$0xff]
    %v218 = vld [vmem:[#allocation15] sm:$0xff]
    %v219 = vld [vmem:[#allocation15 + $0x8] sm:$0xff]
    %v220 = vld [vmem:[#allocation15 + $0x10] sm:$0xff]
    %v221 = vld [vmem:[#allocation15 + $0x18] sm:$0xff]
    %v222 = vld [vmem:[#allocation15 + $0x20] sm:$0xff]
    %v223 = vld [vmem:[#allocation15 + $0x28] sm:$0xff]
    %v224 = vld [vmem:[#allocation15 + $0x30] sm:$0xff]
    %v225 = vld [vmem:[#allocation15 + $0x38] sm:$0xff]
    %v226 = vld [vmem:[#allocation15 + $0x40] sm:$0xff]
    %v227 = vld [vmem:[#allocation15 + $0x48] sm:$0xff]
    %v228 = vld [vmem:[#allocation15 + $0x50] sm:$0xff]
    %v229 = vld [vmem:[#allocation15 + $0x58] sm:$0xff]
    %v230 = vld [vmem:[#allocation15 + $0x60] sm:$0xff]
    %v231 = vld [vmem:[#allocation15 + $0x68] sm:$0xff]
    %v232 = vld [vmem:[#allocation15 + $0x70] sm:$0xff]
    %v233 = vld [vmem:[#allocation15 + $0x78] sm:$0xff]
    %v234 = vld [vmem:[#allocation15 + $0x80] sm:$0xff]
    %v235 = vld [vmem:[#allocation15 + $0x88] sm:$0xff]
    %v236 = vld [vmem:[#allocation15 + $0x90] sm:$0xff]
    %v237 = vld [vmem:[#allocation15 + $0x98] sm:$0xff]
    %v238 = vld [vmem:[#allocation15 + $0xa0] sm:$0xff]
    %v239 = vld [vmem:[#allocation15 + $0xa8] sm:$0xff]
    %v240 = vld [vmem:[#allocation15 + $0xb0] sm:$0xff]
    %v241 = vld [vmem:[#allocation15 + $0xb8] sm:$0xff]
    %v242 = vld [vmem:[#allocation15 + $0xc0] sm:$0xff]
    %v243 = vld [vmem:[#allocation15 + $0xc8] sm:$0xff]
    %v244 = vld [vmem:[#allocation15 + $0xd0] sm:$0xff]
    %v245 = vld [vmem:[#allocation15 + $0xd8] sm:$0xff]
    %v246 = vld [vmem:[#allocation15 + $0xe0] sm:$0xff]
    %v247 = vld [vmem:[#allocation15 + $0xe8] sm:$0xff]
    %v248 = vld [vmem:[#allocation15 + $0xf0] sm:$0xff]
    %v249 = vld [vmem:[#allocation15 + $0xf8] sm:$0xff]
    %v250 = vld [vmem:[#allocation15 + $0x100] sm:$0xff]
    %v251 = vld [vmem:[#allocation15 + $0x108] sm:$0xff]
    %v252 = vld [vmem:[#allocation15 + $0x110] sm:$0xff]
    %v253 = vld [vmem:[#allocation15 + $0x118] sm:$0xff]
    %v254 = vld [vmem:[#allocation15 + $0x120] sm:$0xff]
    %v255 = vld [vmem:[#allocation15 + $0x128] sm:$0xff]
    %v256 = vld [vmem:[#allocation15 + $0x130] sm:$0xff]
    %v257 = vld [vmem:[#allocation15 + $0x138] sm:$0xff]
    %v258 = vld [vmem:[#allocation15 + $0x140] sm:$0xff]
    %v259 = vld [vmem:[#allocation15 + $0x148] sm:$0xff]
    %v260 = vld [vmem:[#allocation15 + $0x150] sm:$0xff]
    %v261 = vld [vmem:[#allocation15 + $0x158] sm:$0xff]
    %v262 = vld [vmem:[#allocation15 + $0x160] sm:$0xff]
    %v263 = vld [vmem:[#allocation15 + $0x168] sm:$0xff]
    %v264 = vld [vmem:[#allocation15 + $0x170] sm:$0xff]
    %v265 = vld [vmem:[#allocation15 + $0x178] sm:$0xff]
    %v266 = vld [vmem:[#allocation15 + $0x180] sm:$0xff]
    %v267 = vld [vmem:[#allocation15 + $0x188] sm:$0xff]
    %v268 = vld [vmem:[#allocation15 + $0x190] sm:$0xff]
    %v269 = vld [vmem:[#allocation15 + $0x198] sm:$0xff]
    %v270 = vld [vmem:[#allocation15 + $0x1a0] sm:$0xff]
    %v271 = vld [vmem:[#allocation15 + $0x1a8] sm:$0xff]
    %v272 = vld [vmem:[#allocation15 + $0x1b0] sm:$0xff]
    %v273 = vld [vmem:[#allocation15 + $0x1b8] sm:$0xff]
    %v274 = vld [vmem:[#allocation15 + $0x1c0] sm:$0xff]
    %v275 = vld [vmem:[#allocation15 + $0x1c8] sm:$0xff]
    %v276 = vld [vmem:[#allocation15 + $0x1d0] sm:$0xff]
    %v277 = vld [vmem:[#allocation15 + $0x1d8] sm:$0xff]
    %v278 = vld [vmem:[#allocation15 + $0x1e0] sm:$0xff]
    %v279 = vld [vmem:[#allocation15 + $0x1e8] sm:$0xff]
    %v280 = vld [vmem:[#allocation15 + $0x1f0] sm:$0xff]
    %v281 = vld [vmem:[#allocation15 + $0x1f8] sm:$0xff]
    %v282 = vld [vmem:[#allocation15 + $0x200] sm:$0xff]
    %v283 = vld [vmem:[#allocation15 + $0x208] sm:$0xff]
    %v284 = vld [vmem:[#allocation15 + $0x210] sm:$0xff]
    %v285 = vld [vmem:[#allocation15 + $0x218] sm:$0xff]
    %v286 = vld [vmem:[#allocation15 + $0x220] sm:$0xff]
    %v287 = vld [vmem:[#allocation15 + $0x228] sm:$0xff]
    %v288 = vld [vmem:[#allocation15 + $0x230] sm:$0xff]
    %v289 = vld [vmem:[#allocation15 + $0x238] sm:$0xff]
    %v290 = vld [vmem:[#allocation15 + $0x240] sm:$0xff]
    %v291 = vld [vmem:[#allocation15 + $0x248] sm:$0xff]
    %v292 = vld [vmem:[#allocation15 + $0x250] sm:$0xff]
    %v293 = vld [vmem:[#allocation15 + $0x258] sm:$0xff]
    %v294 = vld [vmem:[#allocation15 + $0x260] sm:$0xff]
    %v295 = vld [vmem:[#allocation15 + $0x268] sm:$0xff]
    %v296 = vld [vmem:[#allocation15 + $0x270] sm:$0xff]
    %v297 = vld [vmem:[#allocation15 + $0x278] sm:$0xff]
    %v298 = vld [vmem:[#allocation15 + $0x280] sm:$0xff]
    %v299 = vld [vmem:[#allocation15 + $0x288] sm:$0xff]
    %v300 = vld [vmem:[#allocation15 + $0x290] sm:$0xff]
    %v301 = vld [vmem:[#allocation15 + $0x298] sm:$0xff]
    %v302 = vld [vmem:[#allocation15 + $0x2a0] sm:$0xff]
    %v303 = vld [vmem:[#allocation15 + $0x2a8] sm:$0xff]
    %v304 = vld [vmem:[#allocation15 + $0x2b0] sm:$0xff]
    %v305 = vld [vmem:[#allocation15 + $0x2b8] sm:$0xff]
    %v306 = vld [vmem:[#allocation15 + $0x2c0] sm:$0xff]
    %v307 = vld [vmem:[#allocation15 + $0x2c8] sm:$0xff]
    %v308 = vld [vmem:[#allocation15 + $0x2d0] sm:$0xff]
    %v309 = vld [vmem:[#allocation15 + $0x2d8] sm:$0xff]
    %v310 = vld [vmem:[#allocation15 + $0x2e0] sm:$0xff]
    %v311 = vld [vmem:[#allocation15 + $0x2e8] sm:$0xff]
    %v312 = vld [vmem:[#allocation15 + $0x2f0] sm:$0xff]
    %v313 = vld [vmem:[#allocation15 + $0x2f8] sm:$0xff]
    %v314 = vld [vmem:[#allocation15 + $0x300] sm:$0xff]
    %v315 = vld [vmem:[#allocation15 + $0x308] sm:$0xff]
    %v316 = vld [vmem:[#allocation15 + $0x310] sm:$0xff]
    %v317 = vld [vmem:[#allocation15 + $0x318] sm:$0xff]
    %v318 = vld [vmem:[#allocation15 + $0x320] sm:$0xff]
    %v319 = vld [vmem:[#allocation15 + $0x328] sm:$0xff]
    %v320 = vld [vmem:[#allocation15 + $0x330] sm:$0xff]
    %v321 = vld [vmem:[#allocation15 + $0x338] sm:$0xff]
    %v322 = vld [vmem:[#allocation15 + $0x340] sm:$0xff]
    %v323 = vld [vmem:[#allocation15 + $0x348] sm:$0xff]
    %v324 = vld [vmem:[#allocation15 + $0x350] sm:$0xff]
    %v325 = vld [vmem:[#allocation15 + $0x358] sm:$0xff]
    %v326 = vld [vmem:[#allocation15 + $0x360] sm:$0xff]
    %v327 = vld [vmem:[#allocation15 + $0x368] sm:$0xff]
    %v328 = vld [vmem:[#allocation15 + $0x370] sm:$0xff]
    %v329 = vld [vmem:[#allocation15 + $0x378] sm:$0xff]
    %v330 = vld [vmem:[#allocation15 + $0x380] sm:$0xff]
    %v331 = vld [vmem:[#allocation15 + $0x388] sm:$0xff]
    %v332 = vld [vmem:[#allocation15 + $0x390] sm:$0xff]
    %v333 = vld [vmem:[#allocation15 + $0x398] sm:$0xff]
    %v334 = vld [vmem:[#allocation15 + $0x3a0] sm:$0xff]
    %v335 = vld [vmem:[#allocation15 + $0x3a8] sm:$0xff]
    %v336 = vld [vmem:[#allocation15 + $0x3b0] sm:$0xff]
    %v337 = vld [vmem:[#allocation15 + $0x3b8] sm:$0xff]
    %v338 = vld [vmem:[#allocation15 + $0x3c0] sm:$0xff]
    %v339 = vld [vmem:[#allocation15 + $0x3c8] sm:$0xff]
    %v340 = vld [vmem:[#allocation15 + $0x3d0] sm:$0xff]
    %v341 = vld [vmem:[#allocation15 + $0x3d8] sm:$0xff]
    %v342 = vld [vmem:[#allocation15 + $0x3e0] sm:$0xff]
    %v343 = vld [vmem:[#allocation15 + $0x3e8] sm:$0xff]
    %v344 = vld [vmem:[#allocation15 + $0x3f0] sm:$0xff]
    %v345 = vld [vmem:[#allocation15 + $0x3f8] sm:$0xff]
    %v354 = vunpack.c.l.b16 %v210
    %v355 = vunpack.c.h.b16 %v210
    %v356 = vunpack.c.l.b16 %v211
    %v357 = vunpack.c.h.b16 %v211
    %v358 = vunpack.c.l.b16 %v212
    %v359 = vunpack.c.h.b16 %v212
    %v360 = vunpack.c.l.b16 %v213
    %v361 = vunpack.c.h.b16 %v213
    %v362 = vunpack.c.l.b16 %v214
    %v363 = vunpack.c.h.b16 %v214
    %v364 = vunpack.c.l.b16 %v215
    %v365 = vunpack.c.h.b16 %v215
    %v366 = vunpack.c.l.b16 %v216
    %v367 = vunpack.c.h.b16 %v216
    %v368 = vunpack.c.l.b16 %v217
    %v369 = vunpack.c.h.b16 %v217
    %v370 = vpack.c.b16 %v356, %v354
    %v371 = vpack.c.b16 %v357, %v355
    %v372 = vpack.c.b16 %v360, %v358
    %v373 = vpack.c.b16 %v361, %v359
    %v374 = vpack.c.b16 %v364, %v362
    %v375 = vpack.c.b16 %v365, %v363
    %v376 = vpack.c.b16 %v368, %v366
    %v377 = vpack.c.b16 %v369, %v367
    %v514 = vunpack.c.l.b16 %v218
    %v515 = vunpack.c.h.b16 %v218
    %v516 = vunpack.c.l.b16 %v219
    %v517 = vunpack.c.h.b16 %v219
    %v518 = vunpack.c.l.b16 %v220
    %v519 = vunpack.c.h.b16 %v220
    %v520 = vunpack.c.l.b16 %v221
    %v521 = vunpack.c.h.b16 %v221
    %v522 = vunpack.c.l.b16 %v222
    %v523 = vunpack.c.h.b16 %v222
    %v524 = vunpack.c.l.b16 %v223
    %v525 = vunpack.c.h.b16 %v223
    %v526 = vunpack.c.l.b16 %v224
    %v527 = vunpack.c.h.b16 %v224
    %v528 = vunpack.c.l.b16 %v225
    %v529 = vunpack.c.h.b16 %v225
    %v530 = vunpack.c.l.b16 %v226
    %v531 = vunpack.c.h.b16 %v226
    %v532 = vunpack.c.l.b16 %v227
    %v533 = vunpack.c.h.b16 %v227
    %v534 = vunpack.c.l.b16 %v228
    %v535 = vunpack.c.h.b16 %v228
    %v536 = vunpack.c.l.b16 %v229
    %v537 = vunpack.c.h.b16 %v229
    %v538 = vunpack.c.l.b16 %v230
    %v539 = vunpack.c.h.b16 %v230
    %v540 = vunpack.c.l.b16 %v231
    %v541 = vunpack.c.h.b16 %v231
    %v542 = vunpack.c.l.b16 %v232
    %v543 = vunpack.c.h.b16 %v232
    %v544 = vunpack.c.l.b16 %v233
    %v545 = vunpack.c.h.b16 %v233
    %v546 = vunpack.c.l.b16 %v234
    %v547 = vunpack.c.h.b16 %v234
    %v548 = vunpack.c.l.b16 %v235
    %v549 = vunpack.c.h.b16 %v235
    %v550 = vunpack.c.l.b16 %v236
    %v551 = vunpack.c.h.b16 %v236
    %v552 = vunpack.c.l.b16 %v237
    %v553 = vunpack.c.h.b16 %v237
    %v554 = vunpack.c.l.b16 %v238
    %v555 = vunpack.c.h.b16 %v238
    %v556 = vunpack.c.l.b16 %v239
    %v557 = vunpack.c.h.b16 %v239
    %v558 = vunpack.c.l.b16 %v240
    %v559 = vunpack.c.h.b16 %v240
    %v560 = vunpack.c.l.b16 %v241
    %v561 = vunpack.c.h.b16 %v241
    %v562 = vunpack.c.l.b16 %v242
    %v563 = vunpack.c.h.b16 %v242
    %v564 = vunpack.c.l.b16 %v243
    %v565 = vunpack.c.h.b16 %v243
    %v566 = vunpack.c.l.b16 %v244
    %v567 = vunpack.c.h.b16 %v244
    %v568 = vunpack.c.l.b16 %v245
    %v569 = vunpack.c.h.b16 %v245
    %v570 = vunpack.c.l.b16 %v246
    %v571 = vunpack.c.h.b16 %v246
    %v572 = vunpack.c.l.b16 %v247
    %v573 = vunpack.c.h.b16 %v247
    %v574 = vunpack.c.l.b16 %v248
    %v575 = vunpack.c.h.b16 %v248
    %v576 = vunpack.c.l.b16 %v249
    %v577 = vunpack.c.h.b16 %v249
    %v578 = vunpack.c.l.b16 %v250
    %v579 = vunpack.c.h.b16 %v250
    %v580 = vunpack.c.l.b16 %v251
    %v581 = vunpack.c.h.b16 %v251
    %v582 = vunpack.c.l.b16 %v252
    %v583 = vunpack.c.h.b16 %v252
    %v584 = vunpack.c.l.b16 %v253
    %v585 = vunpack.c.h.b16 %v253
    %v586 = vunpack.c.l.b16 %v254
    %v587 = vunpack.c.h.b16 %v254
    %v588 = vunpack.c.l.b16 %v255
    %v589 = vunpack.c.h.b16 %v255
    %v590 = vunpack.c.l.b16 %v256
    %v591 = vunpack.c.h.b16 %v256
    %v592 = vunpack.c.l.b16 %v257
    %v593 = vunpack.c.h.b16 %v257
    %v594 = vunpack.c.l.b16 %v258
    %v595 = vunpack.c.h.b16 %v258
    %v596 = vunpack.c.l.b16 %v259
    %v597 = vunpack.c.h.b16 %v259
    %v598 = vunpack.c.l.b16 %v260
    %v599 = vunpack.c.h.b16 %v260
    %v600 = vunpack.c.l.b16 %v261
    %v601 = vunpack.c.h.b16 %v261
    %v602 = vunpack.c.l.b16 %v262
    %v603 = vunpack.c.h.b16 %v262
    %v604 = vunpack.c.l.b16 %v263
    %v605 = vunpack.c.h.b16 %v263
    %v606 = vunpack.c.l.b16 %v264
    %v607 = vunpack.c.h.b16 %v264
    %v608 = vunpack.c.l.b16 %v265
    %v609 = vunpack.c.h.b16 %v265
    %v610 = vunpack.c.l.b16 %v266
    %v611 = vunpack.c.h.b16 %v266
    %v612 = vunpack.c.l.b16 %v267
    %v613 = vunpack.c.h.b16 %v267
    %v614 = vunpack.c.l.b16 %v268
    %v615 = vunpack.c.h.b16 %v268
    %v616 = vunpack.c.l.b16 %v269
    %v617 = vunpack.c.h.b16 %v269
    %v618 = vunpack.c.l.b16 %v270
    %v619 = vunpack.c.h.b16 %v270
    %v620 = vunpack.c.l.b16 %v271
    %v621 = vunpack.c.h.b16 %v271
    %v622 = vunpack.c.l.b16 %v272
    %v623 = vunpack.c.h.b16 %v272
    %v624 = vunpack.c.l.b16 %v273
    %v625 = vunpack.c.h.b16 %v273
    %v626 = vunpack.c.l.b16 %v274
    %v627 = vunpack.c.h.b16 %v274
    %v628 = vunpack.c.l.b16 %v275
    %v629 = vunpack.c.h.b16 %v275
    %v630 = vunpack.c.l.b16 %v276
    %v631 = vunpack.c.h.b16 %v276
    %v632 = vunpack.c.l.b16 %v277
    %v633 = vunpack.c.h.b16 %v277
    %v634 = vunpack.c.l.b16 %v278
    %v635 = vunpack.c.h.b16 %v278
    %v636 = vunpack.c.l.b16 %v279
    %v637 = vunpack.c.h.b16 %v279
    %v638 = vunpack.c.l.b16 %v280
    %v639 = vunpack.c.h.b16 %v280
    %v640 = vunpack.c.l.b16 %v281
    %v641 = vunpack.c.h.b16 %v281
    %v642 = vunpack.c.l.b16 %v282
    %v643 = vunpack.c.h.b16 %v282
    %v644 = vunpack.c.l.b16 %v283
    %v645 = vunpack.c.h.b16 %v283
    %v646 = vunpack.c.l.b16 %v284
    %v647 = vunpack.c.h.b16 %v284
    %v648 = vunpack.c.l.b16 %v285
    %v649 = vunpack.c.h.b16 %v285
    %v650 = vunpack.c.l.b16 %v286
    %v651 = vunpack.c.h.b16 %v286
    %v652 = vunpack.c.l.b16 %v287
    %v653 = vunpack.c.h.b16 %v287
    %v654 = vunpack.c.l.b16 %v288
    %v655 = vunpack.c.h.b16 %v288
    %v656 = vunpack.c.l.b16 %v289
    %v657 = vunpack.c.h.b16 %v289
    %v658 = vunpack.c.l.b16 %v290
    %v659 = vunpack.c.h.b16 %v290
    %v660 = vunpack.c.l.b16 %v291
    %v661 = vunpack.c.h.b16 %v291
    %v662 = vunpack.c.l.b16 %v292
    %v663 = vunpack.c.h.b16 %v292
    %v664 = vunpack.c.l.b16 %v293
    %v665 = vunpack.c.h.b16 %v293
    %v666 = vunpack.c.l.b16 %v294
    %v667 = vunpack.c.h.b16 %v294
    %v668 = vunpack.c.l.b16 %v295
    %v669 = vunpack.c.h.b16 %v295
    %v670 = vunpack.c.l.b16 %v296
    %v671 = vunpack.c.h.b16 %v296
    %v672 = vunpack.c.l.b16 %v297
    %v673 = vunpack.c.h.b16 %v297
    %v674 = vunpack.c.l.b16 %v298
    %v675 = vunpack.c.h.b16 %v298
    %v676 = vunpack.c.l.b16 %v299
    %v677 = vunpack.c.h.b16 %v299
    %v678 = vunpack.c.l.b16 %v300
    %v679 = vunpack.c.h.b16 %v300
    %v680 = vunpack.c.l.b16 %v301
    %v681 = vunpack.c.h.b16 %v301
    %v682 = vunpack.c.l.b16 %v302
    %v683 = vunpack.c.h.b16 %v302
    %v684 = vunpack.c.l.b16 %v303
    %v685 = vunpack.c.h.b16 %v303
    %v686 = vunpack.c.l.b16 %v304
    %v687 = vunpack.c.h.b16 %v304
    %v688 = vunpack.c.l.b16 %v305
    %v689 = vunpack.c.h.b16 %v305
    %v690 = vunpack.c.l.b16 %v306
    %v691 = vunpack.c.h.b16 %v306
    %v692 = vunpack.c.l.b16 %v307
    %v693 = vunpack.c.h.b16 %v307
    %v694 = vunpack.c.l.b16 %v308
    %v695 = vunpack.c.h.b16 %v308
    %v696 = vunpack.c.l.b16 %v309
    %v697 = vunpack.c.h.b16 %v309
    %v698 = vunpack.c.l.b16 %v310
    %v699 = vunpack.c.h.b16 %v310
    %v700 = vunpack.c.l.b16 %v311
    %v701 = vunpack.c.h.b16 %v311
    %v702 = vunpack.c.l.b16 %v312
    %v703 = vunpack.c.h.b16 %v312
    %v704 = vunpack.c.l.b16 %v313
    %v705 = vunpack.c.h.b16 %v313
    %v706 = vunpack.c.l.b16 %v314
    %v707 = vunpack.c.h.b16 %v314
    %v708 = vunpack.c.l.b16 %v315
    %v709 = vunpack.c.h.b16 %v315
    %v710 = vunpack.c.l.b16 %v316
    %v711 = vunpack.c.h.b16 %v316
    %v712 = vunpack.c.l.b16 %v317
    %v713 = vunpack.c.h.b16 %v317
    %v714 = vunpack.c.l.b16 %v318
    %v715 = vunpack.c.h.b16 %v318
    %v716 = vunpack.c.l.b16 %v319
    %v717 = vunpack.c.h.b16 %v319
    %v718 = vunpack.c.l.b16 %v320
    %v719 = vunpack.c.h.b16 %v320
    %v720 = vunpack.c.l.b16 %v321
    %v721 = vunpack.c.h.b16 %v321
    %v722 = vunpack.c.l.b16 %v322
    %v723 = vunpack.c.h.b16 %v322
    %v724 = vunpack.c.l.b16 %v323
    %v725 = vunpack.c.h.b16 %v323
    %v726 = vunpack.c.l.b16 %v324
    %v727 = vunpack.c.h.b16 %v324
    %v728 = vunpack.c.l.b16 %v325
    %v729 = vunpack.c.h.b16 %v325
    %v730 = vunpack.c.l.b16 %v326
    %v731 = vunpack.c.h.b16 %v326
    %v732 = vunpack.c.l.b16 %v327
    %v733 = vunpack.c.h.b16 %v327
    %v734 = vunpack.c.l.b16 %v328
    %v735 = vunpack.c.h.b16 %v328
    %v736 = vunpack.c.l.b16 %v329
    %v737 = vunpack.c.h.b16 %v329
    %v738 = vunpack.c.l.b16 %v330
    %v739 = vunpack.c.h.b16 %v330
    %v740 = vunpack.c.l.b16 %v331
    %v741 = vunpack.c.h.b16 %v331
    %v742 = vunpack.c.l.b16 %v332
    %v743 = vunpack.c.h.b16 %v332
    %v744 = vunpack.c.l.b16 %v333
    %v745 = vunpack.c.h.b16 %v333
    %v746 = vunpack.c.l.b16 %v334
    %v747 = vunpack.c.h.b16 %v334
    %v748 = vunpack.c.l.b16 %v335
    %v749 = vunpack.c.h.b16 %v335
    %v750 = vunpack.c.l.b16 %v336
    %v751 = vunpack.c.h.b16 %v336
    %v752 = vunpack.c.l.b16 %v337
    %v753 = vunpack.c.h.b16 %v337
    %v754 = vunpack.c.l.b16 %v338
    %v755 = vunpack.c.h.b16 %v338
    %v756 = vunpack.c.l.b16 %v339
    %v757 = vunpack.c.h.b16 %v339
    %v758 = vunpack.c.l.b16 %v340
    %v759 = vunpack.c.h.b16 %v340
    %v760 = vunpack.c.l.b16 %v341
    %v761 = vunpack.c.h.b16 %v341
    %v762 = vunpack.c.l.b16 %v342
    %v763 = vunpack.c.h.b16 %v342
    %v764 = vunpack.c.l.b16 %v343
    %v765 = vunpack.c.h.b16 %v343
    %v766 = vunpack.c.l.b16 %v344
    %v767 = vunpack.c.h.b16 %v344
    %v768 = vunpack.c.l.b16 %v345
    %v769 = vunpack.c.h.b16 %v345
    %v770 = vpack.c.b16 %v522, %v514
    %v771 = vpack.c.b16 %v523, %v515
    %v772 = vpack.c.b16 %v524, %v516
    %v773 = vpack.c.b16 %v525, %v517
    %v774 = vpack.c.b16 %v526, %v518
    %v775 = vpack.c.b16 %v527, %v519
    %v776 = vpack.c.b16 %v528, %v520
    %v777 = vpack.c.b16 %v529, %v521
    %v778 = vpack.c.b16 %v538, %v530
    %v779 = vpack.c.b16 %v539, %v531
    %v780 = vpack.c.b16 %v540, %v532
    %v781 = vpack.c.b16 %v541, %v533
    %v782 = vpack.c.b16 %v542, %v534
    %v783 = vpack.c.b16 %v543, %v535
    %v784 = vpack.c.b16 %v544, %v536
    %v785 = vpack.c.b16 %v545, %v537
    %v786 = vpack.c.b16 %v554, %v546
    %v787 = vpack.c.b16 %v555, %v547
    %v788 = vpack.c.b16 %v556, %v548
    %v789 = vpack.c.b16 %v557, %v549
    %v790 = vpack.c.b16 %v558, %v550
    %v791 = vpack.c.b16 %v559, %v551
    %v792 = vpack.c.b16 %v560, %v552
    %v793 = vpack.c.b16 %v561, %v553
    %v794 = vpack.c.b16 %v570, %v562
    %v795 = vpack.c.b16 %v571, %v563
    %v796 = vpack.c.b16 %v572, %v564
    %v797 = vpack.c.b16 %v573, %v565
    %v798 = vpack.c.b16 %v574, %v566
    %v799 = vpack.c.b16 %v575, %v567
    %v800 = vpack.c.b16 %v576, %v568
    %v801 = vpack.c.b16 %v577, %v569
    %v802 = vpack.c.b16 %v586, %v578
    %v803 = vpack.c.b16 %v587, %v579
    %v804 = vpack.c.b16 %v588, %v580
    %v805 = vpack.c.b16 %v589, %v581
    %v806 = vpack.c.b16 %v590, %v582
    %v807 = vpack.c.b16 %v591, %v583
    %v808 = vpack.c.b16 %v592, %v584
    %v809 = vpack.c.b16 %v593, %v585
    %v810 = vpack.c.b16 %v602, %v594
    %v811 = vpack.c.b16 %v603, %v595
    %v812 = vpack.c.b16 %v604, %v596
    %v813 = vpack.c.b16 %v605, %v597
    %v814 = vpack.c.b16 %v606, %v598
    %v815 = vpack.c.b16 %v607, %v599
    %v816 = vpack.c.b16 %v608, %v600
    %v817 = vpack.c.b16 %v609, %v601
    %v818 = vpack.c.b16 %v618, %v610
    %v819 = vpack.c.b16 %v619, %v611
    %v820 = vpack.c.b16 %v620, %v612
    %v821 = vpack.c.b16 %v621, %v613
    %v822 = vpack.c.b16 %v622, %v614
    %v823 = vpack.c.b16 %v623, %v615
    %v824 = vpack.c.b16 %v624, %v616
    %v825 = vpack.c.b16 %v625, %v617
    %v826 = vpack.c.b16 %v634, %v626
    %v827 = vpack.c.b16 %v635, %v627
    %v828 = vpack.c.b16 %v636, %v628
    %v829 = vpack.c.b16 %v637, %v629
    %v830 = vpack.c.b16 %v638, %v630
    %v831 = vpack.c.b16 %v639, %v631
    %v832 = vpack.c.b16 %v640, %v632
    %v833 = vpack.c.b16 %v641, %v633
    %v834 = vpack.c.b16 %v650, %v642
    %v835 = vpack.c.b16 %v651, %v643
    %v836 = vpack.c.b16 %v652, %v644
    %v837 = vpack.c.b16 %v653, %v645
    %v838 = vpack.c.b16 %v654, %v646
    %v839 = vpack.c.b16 %v655, %v647
    %v840 = vpack.c.b16 %v656, %v648
    %v841 = vpack.c.b16 %v657, %v649
    %v842 = vpack.c.b16 %v666, %v658
    %v843 = vpack.c.b16 %v667, %v659
    %v844 = vpack.c.b16 %v668, %v660
    %v845 = vpack.c.b16 %v669, %v661
    %v846 = vpack.c.b16 %v670, %v662
    %v847 = vpack.c.b16 %v671, %v663
    %v848 = vpack.c.b16 %v672, %v664
    %v849 = vpack.c.b16 %v673, %v665
    %v850 = vpack.c.b16 %v682, %v674
    %v851 = vpack.c.b16 %v683, %v675
    %v852 = vpack.c.b16 %v684, %v676
    %v853 = vpack.c.b16 %v685, %v677
    %v854 = vpack.c.b16 %v686, %v678
    %v855 = vpack.c.b16 %v687, %v679
    %v856 = vpack.c.b16 %v688, %v680
    %v857 = vpack.c.b16 %v689, %v681
    %v858 = vpack.c.b16 %v698, %v690
    %v859 = vpack.c.b16 %v699, %v691
    %v860 = vpack.c.b16 %v700, %v692
    %v861 = vpack.c.b16 %v701, %v693
    %v862 = vpack.c.b16 %v702, %v694
    %v863 = vpack.c.b16 %v703, %v695
    %v864 = vpack.c.b16 %v704, %v696
    %v865 = vpack.c.b16 %v705, %v697
    %v866 = vpack.c.b16 %v714, %v706
    %v867 = vpack.c.b16 %v715, %v707
    %v868 = vpack.c.b16 %v716, %v708
    %v869 = vpack.c.b16 %v717, %v709
    %v870 = vpack.c.b16 %v718, %v710
    %v871 = vpack.c.b16 %v719, %v711
    %v872 = vpack.c.b16 %v720, %v712
    %v873 = vpack.c.b16 %v721, %v713
    %v874 = vpack.c.b16 %v730, %v722
    %v875 = vpack.c.b16 %v731, %v723
    %v876 = vpack.c.b16 %v732, %v724
    %v877 = vpack.c.b16 %v733, %v725
    %v878 = vpack.c.b16 %v734, %v726
    %v879 = vpack.c.b16 %v735, %v727
    %v880 = vpack.c.b16 %v736, %v728
    %v881 = vpack.c.b16 %v737, %v729
    %v882 = vpack.c.b16 %v746, %v738
    %v883 = vpack.c.b16 %v747, %v739
    %v884 = vpack.c.b16 %v748, %v740
    %v885 = vpack.c.b16 %v749, %v741
    %v886 = vpack.c.b16 %v750, %v742
    %v887 = vpack.c.b16 %v751, %v743
    %v888 = vpack.c.b16 %v752, %v744
    %v889 = vpack.c.b16 %v753, %v745
    %v890 = vpack.c.b16 %v762, %v754
    %v891 = vpack.c.b16 %v763, %v755
    %v892 = vpack.c.b16 %v764, %v756
    %v893 = vpack.c.b16 %v765, %v757
    %v894 = vpack.c.b16 %v766, %v758
    %v895 = vpack.c.b16 %v767, %v759
    %v896 = vpack.c.b16 %v768, %v760
    %v897 = vpack.c.b16 %v769, %v761
    %1026 = vmatprep.subr.bf16.mxu0 %v771
    %1027 = vmatpush1.bf16.msra.mxu0 %v770
    %1028 = vmatprep.subr.bf16.mxu0 %v779
    %1029 = vmatpush1.bf16.msra.mxu0 %v778
    %1030 = vmatprep.subr.bf16.mxu0 %v787
    %1031 = vmatpush1.bf16.msra.mxu0 %v786
    %1032 = vmatprep.subr.bf16.mxu0 %v795
    %1033 = vmatpush1.bf16.msra.mxu0 %v794
    %1034 = vmatprep.subr.bf16.mxu0 %v803
    %1035 = vmatpush1.bf16.msra.mxu0 %v802
    %1036 = vmatprep.subr.bf16.mxu0 %v811
    %1037 = vmatpush1.bf16.msra.mxu0 %v810
    %1038 = vmatprep.subr.bf16.mxu0 %v819
    %1039 = vmatpush1.bf16.msra.mxu0 %v818
    %1040 = vmatprep.subr.bf16.mxu0 %v827
    %1041 = vmatpush1.bf16.msra.mxu0 %v826
    %1042 = vmatprep.subr.bf16.mxu0 %v835
    %1043 = vmatpush1.bf16.msra.mxu0 %v834
    %1044 = vmatprep.subr.bf16.mxu0 %v843
    %1045 = vmatpush1.bf16.msra.mxu0 %v842
    %1046 = vmatprep.subr.bf16.mxu0 %v851
    %1047 = vmatpush1.bf16.msra.mxu0 %v850
    %1048 = vmatprep.subr.bf16.mxu0 %v859
    %1049 = vmatpush1.bf16.msra.mxu0 %v858
    %1050 = vmatprep.subr.bf16.mxu0 %v867
    %1051 = vmatpush1.bf16.msra.mxu0 %v866
    %1052 = vmatprep.subr.bf16.mxu0 %v875
    %1053 = vmatpush1.bf16.msra.mxu0 %v874
    %1054 = vmatprep.subr.bf16.mxu0 %v883
    %1055 = vmatpush1.bf16.msra.mxu0 %v882
    %1056 = vmatprep.subr.bf16.mxu0 %v891
    %1057 = vmatpush1.bf16.msra.mxu0 %v890
    %1058 = vmatprep.mubr.bf16.mxu0 %v371
    %1059 = vmatmul.mubr.bf16.gmra.mrb[0].mxu0 %v370
    %v1060 = vpop.f32.mrb[0].mxu0
    %v1061 = vadd.f32 0.0, %v1060
    %v1062 = vpop.f32.mrb[0].mxu0
    %v1063 = vadd.f32 0.0, %v1062
    %v1064 = vpop.f32.mrb[0].mxu0
    %v1065 = vadd.f32 0.0, %v1064
    %v1066 = vpop.f32.mrb[0].mxu0
    %v1067 = vadd.f32 0.0, %v1066
    %1068 = vmatprep.mubr.bf16.mxu0 %v373
    %1069 = vmatmul.mubr.bf16.gmra.mrb[0].mxu0 %v372
    %v1070 = vpop.f32.mrb[0].mxu0
    %v1071 = vadd.f32 0.0, %v1070
    %v1072 = vpop.f32.mrb[0].mxu0
    %v1073 = vadd.f32 0.0, %v1072
    %v1074 = vpop.f32.mrb[0].mxu0
    %v1075 = vadd.f32 0.0, %v1074
    %v1076 = vpop.f32.mrb[0].mxu0
    %v1077 = vadd.f32 0.0, %v1076
    %1078 = vmatprep.mubr.bf16.mxu0 %v375
    %1079 = vmatmul.mubr.bf16.gmra.mrb[0].mxu0 %v374
    %v1080 = vpop.f32.mrb[0].mxu0
    %v1081 = vadd.f32 0.0, %v1080
    %v1082 = vpop.f32.mrb[0].mxu0
    %v1083 = vadd.f32 0.0, %v1082
    %v1084 = vpop.f32.mrb[0].mxu0
    %v1085 = vadd.f32 0.0, %v1084
    %v1086 = vpop.f32.mrb[0].mxu0
    %v1087 = vadd.f32 0.0, %v1086
    %1088 = vmatprep.mubr.bf16.mxu0 %v377
    %1089 = vmatmul.mubr.bf16.gmra.mrb[0].mxu0 %v376
    %v1090 = vpop.f32.mrb[0].mxu0
    %v1091 = vadd.f32 0.0, %v1090
    %v1092 = vpop.f32.mrb[0].mxu0
    %v1093 = vadd.f32 0.0, %v1092
    %v1094 = vpop.f32.mrb[0].mxu0
    %v1095 = vadd.f32 0.0, %v1094
    %v1096 = vpop.f32.mrb[0].mxu0
    %v1097 = vadd.f32 0.0, %v1096
    %1098 = vdwg.mxu0
    %1099 = vmatprep.subr.bf16.mxu0 %v773
    %1100 = vmatpush1.bf16.msra.mxu0 %v772
    %1101 = vmatprep.subr.bf16.mxu0 %v781
    %1102 = vmatpush1.bf16.msra.mxu0 %v780
    %1103 = vmatprep.subr.bf16.mxu0 %v789
    %1104 = vmatpush1.bf16.msra.mxu0 %v788
    %1105 = vmatprep.subr.bf16.mxu0 %v797
    %1106 = vmatpush1.bf16.msra.mxu0 %v796
    %1107 = vmatprep.subr.bf16.mxu0 %v805
    %1108 = vmatpush1.bf16.msra.mxu0 %v804
    %1109 = vmatprep.subr.bf16.mxu0 %v813
    %1110 = vmatpush1.bf16.msra.mxu0 %v812
    %1111 = vmatprep.subr.bf16.mxu0 %v821
    %1112 = vmatpush1.bf16.msra.mxu0 %v820
    %1113 = vmatprep.subr.bf16.mxu0 %v829
    %1114 = vmatpush1.bf16.msra.mxu0 %v828
    %1115 = vmatprep.subr.bf16.mxu0 %v837
    %1116 = vmatpush1.bf16.msra.mxu0 %v836
    %1117 = vmatprep.subr.bf16.mxu0 %v845
    %1118 = vmatpush1.bf16.msra.mxu0 %v844
    %1119 = vmatprep.subr.bf16.mxu0 %v853
    %1120 = vmatpush1.bf16.msra.mxu0 %v852
    %1121 = vmatprep.subr.bf16.mxu0 %v861
    %1122 = vmatpush1.bf16.msra.mxu0 %v860
    %1123 = vmatprep.subr.bf16.mxu0 %v869
    %1124 = vmatpush1.bf16.msra.mxu0 %v868
    %1125 = vmatprep.subr.bf16.mxu0 %v877
    %1126 = vmatpush1.bf16.msra.mxu0 %v876
    %1127 = vmatprep.subr.bf16.mxu0 %v885
    %1128 = vmatpush1.bf16.msra.mxu0 %v884
    %1129 = vmatprep.subr.bf16.mxu0 %v893
    %1130 = vmatpush1.bf16.msra.mxu0 %v892
    %1131 = vmatprep.mubr.bf16.mxu0 %v371
    %1132 = vmatmul.mubr.bf16.gmra.mrb[0].mxu0 %v370
    %v1133 = vpop.f32.mrb[0].mxu0
    %v1134 = vadd.f32 0.0, %v1133
    %v1135 = vpop.f32.mrb[0].mxu0
    %v1136 = vadd.f32 0.0, %v1135
    %v1137 = vpop.f32.mrb[0].mxu0
    %v1138 = vadd.f32 0.0, %v1137
    %v1139 = vpop.f32.mrb[0].mxu0
    %v1140 = vadd.f32 0.0, %v1139
    %1141 = vmatprep.mubr.bf16.mxu0 %v373
    %1142 = vmatmul.mubr.bf16.gmra.mrb[0].mxu0 %v372
    %v1143 = vpop.f32.mrb[0].mxu0
    %v1144 = vadd.f32 0.0, %v1143
    %v1145 = vpop.f32.mrb[0].mxu0
    %v1146 = vadd.f32 0.0, %v1145
    %v1147 = vpop.f32.mrb[0].mxu0
    %v1148 = vadd.f32 0.0, %v1147
    %v1149 = vpop.f32.mrb[0].mxu0
    %v1150 = vadd.f32 0.0, %v1149
    %1151 = vmatprep.mubr.bf16.mxu0 %v375
    %1152 = vmatmul.mubr.bf16.gmra.mrb[0].mxu0 %v374
    %v1153 = vpop.f32.mrb[0].mxu0
    %v1154 = vadd.f32 0.0, %v1153
    %v1155 = vpop.f32.mrb[0].mxu0
    %v1156 = vadd.f32 0.0, %v1155
    %v1157 = vpop.f32.mrb[0].mxu0
    %v1158 = vadd.f32 0.0, %v1157
    %v1159 = vpop.f32.mrb[0].mxu0
    %v1160 = vadd.f32 0.0, %v1159
    %1161 = vmatprep.mubr.bf16.mxu0 %v377
    %1162 = vmatmul.mubr.bf16.gmra.mrb[0].mxu0 %v376
    %v1163 = vpop.f32.mrb[0].mxu0
    %v1164 = vadd.f32 0.0, %v1163
    %v1165 = vpop.f32.mrb[0].mxu0
    %v1166 = vadd.f32 0.0, %v1165
    %v1167 = vpop.f32.mrb[0].mxu0
    %v1168 = vadd.f32 0.0, %v1167
    %v1169 = vpop.f32.mrb[0].mxu0
    %v1170 = vadd.f32 0.0, %v1169
    %1171 = vdwg.mxu0
    %1172 = vmatprep.subr.bf16.mxu0 %v775
    %1173 = vmatpush1.bf16.msra.mxu0 %v774
    %1174 = vmatprep.subr.bf16.mxu0 %v783
    %1175 = vmatpush1.bf16.msra.mxu0 %v782
    %1176 = vmatprep.subr.bf16.mxu0 %v791
    %1177 = vmatpush1.bf16.msra.mxu0 %v790
    %1178 = vmatprep.subr.bf16.mxu0 %v799
    %1179 = vmatpush1.bf16.msra.mxu0 %v798
    %1180 = vmatprep.subr.bf16.mxu0 %v807
    %1181 = vmatpush1.bf16.msra.mxu0 %v806
    %1182 = vmatprep.subr.bf16.mxu0 %v815
    %1183 = vmatpush1.bf16.msra.mxu0 %v814
    %1184 = vmatprep.subr.bf16.mxu0 %v823
    %1185 = vmatpush1.bf16.msra.mxu0 %v822
    %1186 = vmatprep.subr.bf16.mxu0 %v831
    %1187 = vmatpush1.bf16.msra.mxu0 %v830
    %1188 = vmatprep.subr.bf16.mxu0 %v839
    %1189 = vmatpush1.bf16.msra.mxu0 %v838
    %1190 = vmatprep.subr.bf16.mxu0 %v847
    %1191 = vmatpush1.bf16.msra.mxu0 %v846
    %1192 = vmatprep.subr.bf16.mxu0 %v855
    %1193 = vmatpush1.bf16.msra.mxu0 %v854
    %1194 = vmatprep.subr.bf16.mxu0 %v863
    %1195 = vmatpush1.bf16.msra.mxu0 %v862
    %1196 = vmatprep.subr.bf16.mxu0 %v871
    %1197 = vmatpush1.bf16.msra.mxu0 %v870
    %1198 = vmatprep.subr.bf16.mxu0 %v879
    %1199 = vmatpush1.bf16.msra.mxu0 %v878
    %1200 = vmatprep.subr.bf16.mxu0 %v887
    %1201 = vmatpush1.bf16.msra.mxu0 %v886
    %1202 = vmatprep.subr.bf16.mxu0 %v895
    %1203 = vmatpush1.bf16.msra.mxu0 %v894
    %1204 = vmatprep.mubr.bf16.mxu0 %v371
    %1205 = vmatmul.mubr.bf16.gmra.mrb[0].mxu0 %v370
    %v1206 = vpop.f32.mrb[0].mxu0
    %v1207 = vadd.f32 0.0, %v1206
    %v1208 = vpop.f32.mrb[0].mxu0
    %v1209 = vadd.f32 0.0, %v1208
    %v1210 = vpop.f32.mrb[0].mxu0
    %v1211 = vadd.f32 0.0, %v1210
    %v1212 = vpop.f32.mrb[0].mxu0
    %v1213 = vadd.f32 0.0, %v1212
    %1214 = vmatprep.mubr.bf16.mxu0 %v373
    %1215 = vmatmul.mubr.bf16.gmra.mrb[0].mxu0 %v372
    %v1216 = vpop.f32.mrb[0].mxu0
    %v1217 = vadd.f32 0.0, %v1216
    %v1218 = vpop.f32.mrb[0].mxu0
    %v1219 = vadd.f32 0.0, %v1218
    %v1220 = vpop.f32.mrb[0].mxu0
    %v1221 = vadd.f32 0.0, %v1220
    %v1222 = vpop.f32.mrb[0].mxu0
    %v1223 = vadd.f32 0.0, %v1222
    %1224 = vmatprep.mubr.bf16.mxu0 %v375
    %1225 = vmatmul.mubr.bf16.gmra.mrb[0].mxu0 %v374
    %v1226 = vpop.f32.mrb[0].mxu0
    %v1227 = vadd.f32 0.0, %v1226
    %v1228 = vpop.f32.mrb[0].mxu0
    %v1229 = vadd.f32 0.0, %v1228
    %v1230 = vpop.f32.mrb[0].mxu0
    %v1231 = vadd.f32 0.0, %v1230
    %v1232 = vpop.f32.mrb[0].mxu0
    %v1233 = vadd.f32 0.0, %v1232
    %1234 = vmatprep.mubr.bf16.mxu0 %v377
    %1235 = vmatmul.mubr.bf16.gmra.mrb[0].mxu0 %v376
    %v1236 = vpop.f32.mrb[0].mxu0
    %v1237 = vadd.f32 0.0, %v1236
    %v1238 = vpop.f32.mrb[0].mxu0
    %v1239 = vadd.f32 0.0, %v1238
    %v1240 = vpop.f32.mrb[0].mxu0
    %v1241 = vadd.f32 0.0, %v1240
    %v1242 = vpop.f32.mrb[0].mxu0
    %v1243 = vadd.f32 0.0, %v1242
    %1244 = vdwg.mxu0
    %1245 = vmatprep.subr.bf16.mxu0 %v777
    %1246 = vmatpush1.bf16.msra.mxu0 %v776
    %1247 = vmatprep.subr.bf16.mxu0 %v785
    %1248 = vmatpush1.bf16.msra.mxu0 %v784
    %1249 = vmatprep.subr.bf16.mxu0 %v793
    %1250 = vmatpush1.bf16.msra.mxu0 %v792
    %1251 = vmatprep.subr.bf16.mxu0 %v801
    %1252 = vmatpush1.bf16.msra.mxu0 %v800
    %1253 = vmatprep.subr.bf16.mxu0 %v809
    %1254 = vmatpush1.bf16.msra.mxu0 %v808
    %1255 = vmatprep.subr.bf16.mxu0 %v817
    %1256 = vmatpush1.bf16.msra.mxu0 %v816
    %1257 = vmatprep.subr.bf16.mxu0 %v825
    %1258 = vmatpush1.bf16.msra.mxu0 %v824
    %1259 = vmatprep.subr.bf16.mxu0 %v833
    %1260 = vmatpush1.bf16.msra.mxu0 %v832
    %1261 = vmatprep.subr.bf16.mxu0 %v841
    %1262 = vmatpush1.bf16.msra.mxu0 %v840
    %1263 = vmatprep.subr.bf16.mxu0 %v849
    %1264 = vmatpush1.bf16.msra.mxu0 %v848
    %1265 = vmatprep.subr.bf16.mxu0 %v857
    %1266 = vmatpush1.bf16.msra.mxu0 %v856
    %1267 = vmatprep.subr.bf16.mxu0 %v865
    %1268 = vmatpush1.bf16.msra.mxu0 %v864
    %1269 = vmatprep.subr.bf16.mxu0 %v873
    %1270 = vmatpush1.bf16.msra.mxu0 %v872
    %1271 = vmatprep.subr.bf16.mxu0 %v881
    %1272 = vmatpush1.bf16.msra.mxu0 %v880
    %1273 = vmatprep.subr.bf16.mxu0 %v889
    %1274 = vmatpush1.bf16.msra.mxu0 %v888
    %1275 = vmatprep.subr.bf16.mxu0 %v897
    %1276 = vmatpush1.bf16.msra.mxu0 %v896
    %1277 = vmatprep.mubr.bf16.mxu0 %v371
    %1278 = vmatmul.mubr.bf16.gmra.mrb[0].mxu0 %v370
    %v1279 = vpop.f32.mrb[0].mxu0
    %v1280 = vadd.f32 0.0, %v1279
    %v1281 = vpop.f32.mrb[0].mxu0
    %v1282 = vadd.f32 0.0, %v1281
    %v1283 = vpop.f32.mrb[0].mxu0
    %v1284 = vadd.f32 0.0, %v1283
    %v1285 = vpop.f32.mrb[0].mxu0
    %v1286 = vadd.f32 0.0, %v1285
    %1287 = vmatprep.mubr.bf16.mxu0 %v373
    %1288 = vmatmul.mubr.bf16.gmra.mrb[0].mxu0 %v372
    %v1289 = vpop.f32.mrb[0].mxu0
    %v1290 = vadd.f32 0.0, %v1289
    %v1291 = vpop.f32.mrb[0].mxu0
    %v1292 = vadd.f32 0.0, %v1291
    %v1293 = vpop.f32.mrb[0].mxu0
    %v1294 = vadd.f32 0.0, %v1293
    %v1295 = vpop.f32.mrb[0].mxu0
    %v1296 = vadd.f32 0.0, %v1295
    %1297 = vmatprep.mubr.bf16.mxu0 %v375
    %1298 = vmatmul.mubr.bf16.gmra.mrb[0].mxu0 %v374
    %v1299 = vpop.f32.mrb[0].mxu0
    %v1300 = vadd.f32 0.0, %v1299
    %v1301 = vpop.f32.mrb[0].mxu0
    %v1302 = vadd.f32 0.0, %v1301
    %v1303 = vpop.f32.mrb[0].mxu0
    %v1304 = vadd.f32 0.0, %v1303
    %v1305 = vpop.f32.mrb[0].mxu0
    %v1306 = vadd.f32 0.0, %v1305
    %1307 = vmatprep.mubr.bf16.mxu0 %v377
    %1308 = vmatmul.mubr.bf16.gmra.mrb[0].mxu0 %v376
    %v1309 = vpop.f32.mrb[0].mxu0
    %v1310 = vadd.f32 0.0, %v1309
    %v1311 = vpop.f32.mrb[0].mxu0
    %v1312 = vadd.f32 0.0, %v1311
    %v1313 = vpop.f32.mrb[0].mxu0
    %v1314 = vadd.f32 0.0, %v1313
    %v1315 = vpop.f32.mrb[0].mxu0
    %v1316 = vadd.f32 0.0, %v1315
    %1317 = vdwg.mxu0
    %v1326 = vunpack.c.l.b16 %v138
    %v1327 = vunpack.c.l.b16 %v139
    %v1328 = vunpack.c.l.b16 %v140
    %v1329 = vunpack.c.l.b16 %v141
    %v1330 = vunpack.c.l.b16 %v142
    %v1331 = vunpack.c.l.b16 %v143
    %v1332 = vunpack.c.l.b16 %v144
    %v1333 = vunpack.c.l.b16 %v145
    %v1334 = vpack.c.b16 %v1327, %v1326
    %v1335 = vpack.c.b16 %v1329, %v1328
    %v1336 = vpack.c.b16 %v1331, %v1330
    %v1337 = vpack.c.b16 %v1333, %v1332
    %v1406 = vunpack.c.l.b16 %v146
    %v1407 = vunpack.c.h.b16 %v146
    %v1408 = vunpack.c.l.b16 %v147
    %v1409 = vunpack.c.h.b16 %v147
    %v1410 = vunpack.c.l.b16 %v148
    %v1411 = vunpack.c.h.b16 %v148
    %v1412 = vunpack.c.l.b16 %v149
    %v1413 = vunpack.c.h.b16 %v149
    %v1414 = vunpack.c.l.b16 %v150
    %v1415 = vunpack.c.h.b16 %v150
    %v1416 = vunpack.c.l.b16 %v151
    %v1417 = vunpack.c.h.b16 %v151
    %v1418 = vunpack.c.l.b16 %v152
    %v1419 = vunpack.c.h.b16 %v152
    %v1420 = vunpack.c.l.b16 %v153
    %v1421 = vunpack.c.h.b16 %v153
    %v1422 = vunpack.c.l.b16 %v154
    %v1423 = vunpack.c.h.b16 %v154
    %v1424 = vunpack.c.l.b16 %v155
    %v1425 = vunpack.c.h.b16 %v155
    %v1426 = vunpack.c.l.b16 %v156
    %v1427 = vunpack.c.h.b16 %v156
    %v1428 = vunpack.c.l.b16 %v157
    %v1429 = vunpack.c.h.b16 %v157
    %v1430 = vunpack.c.l.b16 %v158
    %v1431 = vunpack.c.h.b16 %v158
    %v1432 = vunpack.c.l.b16 %v159
    %v1433 = vunpack.c.h.b16 %v159
    %v1434 = vunpack.c.l.b16 %v160
    %v1435 = vunpack.c.h.b16 %v160
    %v1436 = vunpack.c.l.b16 %v161
    %v1437 = vunpack.c.h.b16 %v161
    %v1438 = vunpack.c.l.b16 %v162
    %v1439 = vunpack.c.h.b16 %v162
    %v1440 = vunpack.c.l.b16 %v163
    %v1441 = vunpack.c.h.b16 %v163
    %v1442 = vunpack.c.l.b16 %v164
    %v1443 = vunpack.c.h.b16 %v164
    %v1444 = vunpack.c.l.b16 %v165
    %v1445 = vunpack.c.h.b16 %v165
    %v1446 = vunpack.c.l.b16 %v166
    %v1447 = vunpack.c.h.b16 %v166
    %v1448 = vunpack.c.l.b16 %v167
    %v1449 = vunpack.c.h.b16 %v167
    %v1450 = vunpack.c.l.b16 %v168
    %v1451 = vunpack.c.h.b16 %v168
    %v1452 = vunpack.c.l.b16 %v169
    %v1453 = vunpack.c.h.b16 %v169
    %v1454 = vunpack.c.l.b16 %v170
    %v1455 = vunpack.c.h.b16 %v170
    %v1456 = vunpack.c.l.b16 %v171
    %v1457 = vunpack.c.h.b16 %v171
    %v1458 = vunpack.c.l.b16 %v172
    %v1459 = vunpack.c.h.b16 %v172
    %v1460 = vunpack.c.l.b16 %v173
    %v1461 = vunpack.c.h.b16 %v173
    %v1462 = vunpack.c.l.b16 %v174
    %v1463 = vunpack.c.h.b16 %v174
    %v1464 = vunpack.c.l.b16 %v175
    %v1465 = vunpack.c.h.b16 %v175
    %v1466 = vunpack.c.l.b16 %v176
    %v1467 = vunpack.c.h.b16 %v176
    %v1468 = vunpack.c.l.b16 %v177
    %v1469 = vunpack.c.h.b16 %v177
    %v1470 = vunpack.c.l.b16 %v178
    %v1471 = vunpack.c.h.b16 %v178
    %v1472 = vunpack.c.l.b16 %v179
    %v1473 = vunpack.c.h.b16 %v179
    %v1474 = vunpack.c.l.b16 %v180
    %v1475 = vunpack.c.h.b16 %v180
    %v1476 = vunpack.c.l.b16 %v181
    %v1477 = vunpack.c.h.b16 %v181
    %v1478 = vunpack.c.l.b16 %v182
    %v1479 = vunpack.c.h.b16 %v182
    %v1480 = vunpack.c.l.b16 %v183
    %v1481 = vunpack.c.h.b16 %v183
    %v1482 = vunpack.c.l.b16 %v184
    %v1483 = vunpack.c.h.b16 %v184
    %v1484 = vunpack.c.l.b16 %v185
    %v1485 = vunpack.c.h.b16 %v185
    %v1486 = vunpack.c.l.b16 %v186
    %v1487 = vunpack.c.h.b16 %v186
    %v1488 = vunpack.c.l.b16 %v187
    %v1489 = vunpack.c.h.b16 %v187
    %v1490 = vunpack.c.l.b16 %v188
    %v1491 = vunpack.c.h.b16 %v188
    %v1492 = vunpack.c.l.b16 %v189
    %v1493 = vunpack.c.h.b16 %v189
    %v1494 = vunpack.c.l.b16 %v190
    %v1495 = vunpack.c.h.b16 %v190
    %v1496 = vunpack.c.l.b16 %v191
    %v1497 = vunpack.c.h.b16 %v191
    %v1498 = vunpack.c.l.b16 %v192
    %v1499 = vunpack.c.h.b16 %v192
    %v1500 = vunpack.c.l.b16 %v193
    %v1501 = vunpack.c.h.b16 %v193
    %v1502 = vunpack.c.l.b16 %v194
    %v1503 = vunpack.c.h.b16 %v194
    %v1504 = vunpack.c.l.b16 %v195
    %v1505 = vunpack.c.h.b16 %v195
    %v1506 = vunpack.c.l.b16 %v196
    %v1507 = vunpack.c.h.b16 %v196
    %v1508 = vunpack.c.l.b16 %v197
    %v1509 = vunpack.c.h.b16 %v197
    %v1510 = vunpack.c.l.b16 %v198
    %v1511 = vunpack.c.h.b16 %v198
    %v1512 = vunpack.c.l.b16 %v199
    %v1513 = vunpack.c.h.b16 %v199
    %v1514 = vunpack.c.l.b16 %v200
    %v1515 = vunpack.c.h.b16 %v200
    %v1516 = vunpack.c.l.b16 %v201
    %v1517 = vunpack.c.h.b16 %v201
    %v1518 = vunpack.c.l.b16 %v202
    %v1519 = vunpack.c.h.b16 %v202
    %v1520 = vunpack.c.l.b16 %v203
    %v1521 = vunpack.c.h.b16 %v203
    %v1522 = vunpack.c.l.b16 %v204
    %v1523 = vunpack.c.h.b16 %v204
    %v1524 = vunpack.c.l.b16 %v205
    %v1525 = vunpack.c.h.b16 %v205
    %v1526 = vunpack.c.l.b16 %v206
    %v1527 = vunpack.c.h.b16 %v206
    %v1528 = vunpack.c.l.b16 %v207
    %v1529 = vunpack.c.h.b16 %v207
    %v1530 = vunpack.c.l.b16 %v208
    %v1531 = vunpack.c.h.b16 %v208
    %v1532 = vunpack.c.l.b16 %v209
    %v1533 = vunpack.c.h.b16 %v209
    %v1534 = vpack.c.b16 %v1414, %v1406
    %v1535 = vpack.c.b16 %v1415, %v1407
    %v1536 = vpack.c.b16 %v1416, %v1408
    %v1537 = vpack.c.b16 %v1417, %v1409
    %v1538 = vpack.c.b16 %v1418, %v1410
    %v1539 = vpack.c.b16 %v1419, %v1411
    %v1540 = vpack.c.b16 %v1420, %v1412
    %v1541 = vpack.c.b16 %v1421, %v1413
    %v1542 = vpack.c.b16 %v1430, %v1422
    %v1543 = vpack.c.b16 %v1431, %v1423
    %v1544 = vpack.c.b16 %v1432, %v1424
    %v1545 = vpack.c.b16 %v1433, %v1425
    %v1546 = vpack.c.b16 %v1434, %v1426
    %v1547 = vpack.c.b16 %v1435, %v1427
    %v1548 = vpack.c.b16 %v1436, %v1428
    %v1549 = vpack.c.b16 %v1437, %v1429
    %v1550 = vpack.c.b16 %v1446, %v1438
    %v1551 = vpack.c.b16 %v1447, %v1439
    %v1552 = vpack.c.b16 %v1448, %v1440
    %v1553 = vpack.c.b16 %v1449, %v1441
    %v1554 = vpack.c.b16 %v1450, %v1442
    %v1555 = vpack.c.b16 %v1451, %v1443
    %v1556 = vpack.c.b16 %v1452, %v1444
    %v1557 = vpack.c.b16 %v1453, %v1445
    %v1558 = vpack.c.b16 %v1462, %v1454
    %v1559 = vpack.c.b16 %v1463, %v1455
    %v1560 = vpack.c.b16 %v1464, %v1456
    %v1561 = vpack.c.b16 %v1465, %v1457
    %v1562 = vpack.c.b16 %v1466, %v1458
    %v1563 = vpack.c.b16 %v1467, %v1459
    %v1564 = vpack.c.b16 %v1468, %v1460
    %v1565 = vpack.c.b16 %v1469, %v1461
    %v1566 = vpack.c.b16 %v1478, %v1470
    %v1567 = vpack.c.b16 %v1479, %v1471
    %v1568 = vpack.c.b16 %v1480, %v1472
    %v1569 = vpack.c.b16 %v1481, %v1473
    %v1570 = vpack.c.b16 %v1482, %v1474
    %v1571 = vpack.c.b16 %v1483, %v1475
    %v1572 = vpack.c.b16 %v1484, %v1476
    %v1573 = vpack.c.b16 %v1485, %v1477
    %v1574 = vpack.c.b16 %v1494, %v1486
    %v1575 = vpack.c.b16 %v1495, %v1487
    %v1576 = vpack.c.b16 %v1496, %v1488
    %v1577 = vpack.c.b16 %v1497, %v1489
    %v1578 = vpack.c.b16 %v1498, %v1490
    %v1579 = vpack.c.b16 %v1499, %v1491
    %v1580 = vpack.c.b16 %v1500, %v1492
    %v1581 = vpack.c.b16 %v1501, %v1493
    %v1582 = vpack.c.b16 %v1510, %v1502
    %v1583 = vpack.c.b16 %v1511, %v1503
    %v1584 = vpack.c.b16 %v1512, %v1504
    %v1585 = vpack.c.b16 %v1513, %v1505
    %v1586 = vpack.c.b16 %v1514, %v1506
    %v1587 = vpack.c.b16 %v1515, %v1507
    %v1588 = vpack.c.b16 %v1516, %v1508
    %v1589 = vpack.c.b16 %v1517, %v1509
    %v1590 = vpack.c.b16 %v1526, %v1518
    %v1591 = vpack.c.b16 %v1527, %v1519
    %v1592 = vpack.c.b16 %v1528, %v1520
    %v1593 = vpack.c.b16 %v1529, %v1521
    %v1594 = vpack.c.b16 %v1530, %v1522
    %v1595 = vpack.c.b16 %v1531, %v1523
    %v1596 = vpack.c.b16 %v1532, %v1524
    %v1597 = vpack.c.b16 %v1533, %v1525
    %1662 = vmatprep.subr.bf16.mxu0 %v1535
    %1663 = vmatpush1.bf16.msra.mxu0 %v1534
    %1664 = vmatprep.subr.bf16.mxu0 %v1543
    %1665 = vmatpush1.bf16.msra.mxu0 %v1542
    %1666 = vmatprep.subr.bf16.mxu0 %v1551
    %1667 = vmatpush1.bf16.msra.mxu0 %v1550
    %1668 = vmatprep.subr.bf16.mxu0 %v1559
    %1669 = vmatpush1.bf16.msra.mxu0 %v1558
    %1670 = vmatprep.subr.bf16.mxu0 %v1567
    %1671 = vmatpush1.bf16.msra.mxu0 %v1566
    %1672 = vmatprep.subr.bf16.mxu0 %v1575
    %1673 = vmatpush1.bf16.msra.mxu0 %v1574
    %1674 = vmatprep.subr.bf16.mxu0 %v1583
    %1675 = vmatpush1.bf16.msra.mxu0 %v1582
    %1676 = vmatprep.subr.bf16.mxu0 %v1591
    %1677 = vmatpush1.bf16.msra.mxu0 %v1590
    %1678 = vmatprep.subr.bf16.mxu0 0
    %1679 = vmatpush1.bf16.msra.mxu0 0
    %1680 = vmatprep.subr.bf16.mxu0 0
    %1681 = vmatpush1.bf16.msra.mxu0 0
    %1682 = vmatprep.subr.bf16.mxu0 0
    %1683 = vmatpush1.bf16.msra.mxu0 0
    %1684 = vmatprep.subr.bf16.mxu0 0
    %1685 = vmatpush1.bf16.msra.mxu0 0
    %1686 = vmatprep.subr.bf16.mxu0 0
    %1687 = vmatpush1.bf16.msra.mxu0 0
    %1688 = vmatprep.subr.bf16.mxu0 0
    %1689 = vmatpush1.bf16.msra.mxu0 0
    %1690 = vmatprep.subr.bf16.mxu0 0
    %1691 = vmatpush1.bf16.msra.mxu0 0
    %1692 = vmatprep.subr.bf16.mxu0 0
    %1693 = vmatpush1.bf16.msra.mxu0 0
    %1694 = vmatprep.mubr.bf16.mxu0 0
    %1695 = vmatmul.mubr.bf16.gmra.mrb[0].mxu0 %v1334
    %v1696 = vpop.f32.mrb[0].mxu0
    %v1697 = vadd.f32 %v1061, %v1696
    %v1698 = vpop.f32.mrb[0].mxu0
    %v1699 = vadd.f32 %v1063, %v1698
    %v1700 = vpop.f32.mrb[0].mxu0
    %v1701 = vadd.f32 %v1065, %v1700
    %v1702 = vpop.f32.mrb[0].mxu0
    %v1703 = vadd.f32 %v1067, %v1702
    %1704 = vmatprep.mubr.bf16.mxu0 0
    %1705 = vmatmul.mubr.bf16.gmra.mrb[0].mxu0 %v1335
    %v1706 = vpop.f32.mrb[0].mxu0
    %v1707 = vadd.f32 %v1071, %v1706
    %v1708 = vpop.f32.mrb[0].mxu0
    %v1709 = vadd.f32 %v1073, %v1708
    %v1710 = vpop.f32.mrb[0].mxu0
    %v1711 = vadd.f32 %v1075, %v1710
    %v1712 = vpop.f32.mrb[0].mxu0
    %v1713 = vadd.f32 %v1077, %v1712
    %1714 = vmatprep.mubr.bf16.mxu0 0
    %1715 = vmatmul.mubr.bf16.gmra.mrb[0].mxu0 %v1336
    %v1716 = vpop.f32.mrb[0].mxu0
    %v1717 = vadd.f32 %v1081, %v1716
    %v1718 = vpop.f32.mrb[0].mxu0
    %v1719 = vadd.f32 %v1083, %v1718
    %v1720 = vpop.f32.mrb[0].mxu0
    %v1721 = vadd.f32 %v1085, %v1720
    %v1722 = vpop.f32.mrb[0].mxu0
    %v1723 = vadd.f32 %v1087, %v1722
    %1724 = vmatprep.mubr.bf16.mxu0 0
    %1725 = vmatmul.mubr.bf16.gmra.mrb[0].mxu0 %v1337
    %v1726 = vpop.f32.mrb[0].mxu0
    %v1727 = vadd.f32 %v1091, %v1726
    %v1728 = vpop.f32.mrb[0].mxu0
    %v1729 = vadd.f32 %v1093, %v1728
    %v1730 = vpop.f32.mrb[0].mxu0
    %v1731 = vadd.f32 %v1095, %v1730
    %v1732 = vpop.f32.mrb[0].mxu0
    %v1733 = vadd.f32 %v1097, %v1732
    %1734 = vdwg.mxu0
    %1735 = vmatprep.subr.bf16.mxu0 %v1537
    %1736 = vmatpush1.bf16.msra.mxu0 %v1536
    %1737 = vmatprep.subr.bf16.mxu0 %v1545
    %1738 = vmatpush1.bf16.msra.mxu0 %v1544
    %1739 = vmatprep.subr.bf16.mxu0 %v1553
    %1740 = vmatpush1.bf16.msra.mxu0 %v1552
    %1741 = vmatprep.subr.bf16.mxu0 %v1561
    %1742 = vmatpush1.bf16.msra.mxu0 %v1560
    %1743 = vmatprep.subr.bf16.mxu0 %v1569
    %1744 = vmatpush1.bf16.msra.mxu0 %v1568
    %1745 = vmatprep.subr.bf16.mxu0 %v1577
    %1746 = vmatpush1.bf16.msra.mxu0 %v1576
    %1747 = vmatprep.subr.bf16.mxu0 %v1585
    %1748 = vmatpush1.bf16.msra.mxu0 %v1584
    %1749 = vmatprep.subr.bf16.mxu0 %v1593
    %1750 = vmatpush1.bf16.msra.mxu0 %v1592
    %1751 = vmatprep.subr.bf16.mxu0 0
    %1752 = vmatpush1.bf16.msra.mxu0 0
    %1753 = vmatprep.subr.bf16.mxu0 0
    %1754 = vmatpush1.bf16.msra.mxu0 0
    %1755 = vmatprep.subr.bf16.mxu0 0
    %1756 = vmatpush1.bf16.msra.mxu0 0
    %1757 = vmatprep.subr.bf16.mxu0 0
    %1758 = vmatpush1.bf16.msra.mxu0 0
    %1759 = vmatprep.subr.bf16.mxu0 0
    %1760 = vmatpush1.bf16.msra.mxu0 0
    %1761 = vmatprep.subr.bf16.mxu0 0
    %1762 = vmatpush1.bf16.msra.mxu0 0
    %1763 = vmatprep.subr.bf16.mxu0 0
    %1764 = vmatpush1.bf16.msra.mxu0 0
    %1765 = vmatprep.subr.bf16.mxu0 0
    %1766 = vmatpush1.bf16.msra.mxu0 0
    %1767 = vmatprep.mubr.bf16.mxu0 0
    %1768 = vmatmul.mubr.bf16.gmra.mrb[0].mxu0 %v1334
    %v1769 = vpop.f32.mrb[0].mxu0
    %v1770 = vadd.f32 %v1134, %v1769
    %v1771 = vpop.f32.mrb[0].mxu0
    %v1772 = vadd.f32 %v1136, %v1771
    %v1773 = vpop.f32.mrb[0].mxu0
    %v1774 = vadd.f32 %v1138, %v1773
    %v1775 = vpop.f32.mrb[0].mxu0
    %v1776 = vadd.f32 %v1140, %v1775
    %1777 = vmatprep.mubr.bf16.mxu0 0
    %1778 = vmatmul.mubr.bf16.gmra.mrb[0].mxu0 %v1335
    %v1779 = vpop.f32.mrb[0].mxu0
    %v1780 = vadd.f32 %v1144, %v1779
    %v1781 = vpop.f32.mrb[0].mxu0
    %v1782 = vadd.f32 %v1146, %v1781
    %v1783 = vpop.f32.mrb[0].mxu0
    %v1784 = vadd.f32 %v1148, %v1783
    %v1785 = vpop.f32.mrb[0].mxu0
    %v1786 = vadd.f32 %v1150, %v1785
    %1787 = vmatprep.mubr.bf16.mxu0 0
    %1788 = vmatmul.mubr.bf16.gmra.mrb[0].mxu0 %v1336
    %v1789 = vpop.f32.mrb[0].mxu0
    %v1790 = vadd.f32 %v1154, %v1789
    %v1791 = vpop.f32.mrb[0].mxu0
    %v1792 = vadd.f32 %v1156, %v1791
    %v1793 = vpop.f32.mrb[0].mxu0
    %v1794 = vadd.f32 %v1158, %v1793
    %v1795 = vpop.f32.mrb[0].mxu0
    %v1796 = vadd.f32 %v1160, %v1795
    %1797 = vmatprep.mubr.bf16.mxu0 0
    %1798 = vmatmul.mubr.bf16.gmra.mrb[0].mxu0 %v1337
    %v1799 = vpop.f32.mrb[0].mxu0
    %v1800 = vadd.f32 %v1164, %v1799
    %v1801 = vpop.f32.mrb[0].mxu0
    %v1802 = vadd.f32 %v1166, %v1801
    %v1803 = vpop.f32.mrb[0].mxu0
    %v1804 = vadd.f32 %v1168, %v1803
    %v1805 = vpop.f32.mrb[0].mxu0
    %v1806 = vadd.f32 %v1170, %v1805
    %1807 = vdwg.mxu0
    %1808 = vmatprep.subr.bf16.mxu0 %v1539
    %1809 = vmatpush1.bf16.msra.mxu0 %v1538
    %1810 = vmatprep.subr.bf16.mxu0 %v1547
    %1811 = vmatpush1.bf16.msra.mxu0 %v1546
    %1812 = vmatprep.subr.bf16.mxu0 %v1555
    %1813 = vmatpush1.bf16.msra.mxu0 %v1554
    %1814 = vmatprep.subr.bf16.mxu0 %v1563
    %1815 = vmatpush1.bf16.msra.mxu0 %v1562
    %1816 = vmatprep.subr.bf16.mxu0 %v1571
    %1817 = vmatpush1.bf16.msra.mxu0 %v1570
    %1818 = vmatprep.subr.bf16.mxu0 %v1579
    %1819 = vmatpush1.bf16.msra.mxu0 %v1578
    %1820 = vmatprep.subr.bf16.mxu0 %v1587
    %1821 = vmatpush1.bf16.msra.mxu0 %v1586
    %1822 = vmatprep.subr.bf16.mxu0 %v1595
    %1823 = vmatpush1.bf16.msra.mxu0 %v1594
    %1824 = vmatprep.subr.bf16.mxu0 0
    %1825 = vmatpush1.bf16.msra.mxu0 0
    %1826 = vmatprep.subr.bf16.mxu0 0
    %1827 = vmatpush1.bf16.msra.mxu0 0
    %1828 = vmatprep.subr.bf16.mxu0 0
    %1829 = vmatpush1.bf16.msra.mxu0 0
    %1830 = vmatprep.subr.bf16.mxu0 0
    %1831 = vmatpush1.bf16.msra.mxu0 0
    %1832 = vmatprep.subr.bf16.mxu0 0
    %1833 = vmatpush1.bf16.msra.mxu0 0
    %1834 = vmatprep.subr.bf16.mxu0 0
    %1835 = vmatpush1.bf16.msra.mxu0 0
    %1836 = vmatprep.subr.bf16.mxu0 0
    %1837 = vmatpush1.bf16.msra.mxu0 0
    %1838 = vmatprep.subr.bf16.mxu0 0
    %1839 = vmatpush1.bf16.msra.mxu0 0
    %1840 = vmatprep.mubr.bf16.mxu0 0
    %1841 = vmatmul.mubr.bf16.gmra.mrb[0].mxu0 %v1334
    %v1842 = vpop.f32.mrb[0].mxu0
    %v1843 = vadd.f32 %v1207, %v1842
    %v1844 = vpop.f32.mrb[0].mxu0
    %v1845 = vadd.f32 %v1209, %v1844
    %v1846 = vpop.f32.mrb[0].mxu0
    %v1847 = vadd.f32 %v1211, %v1846
    %v1848 = vpop.f32.mrb[0].mxu0
    %v1849 = vadd.f32 %v1213, %v1848
    %1850 = vmatprep.mubr.bf16.mxu0 0
    %1851 = vmatmul.mubr.bf16.gmra.mrb[0].mxu0 %v1335
    %v1852 = vpop.f32.mrb[0].mxu0
    %v1853 = vadd.f32 %v1217, %v1852
    %v1854 = vpop.f32.mrb[0].mxu0
    %v1855 = vadd.f32 %v1219, %v1854
    %v1856 = vpop.f32.mrb[0].mxu0
    %v1857 = vadd.f32 %v1221, %v1856
    %v1858 = vpop.f32.mrb[0].mxu0
    %v1859 = vadd.f32 %v1223, %v1858
    %1860 = vmatprep.mubr.bf16.mxu0 0
    %1861 = vmatmul.mubr.bf16.gmra.mrb[0].mxu0 %v1336
    %v1862 = vpop.f32.mrb[0].mxu0
    %v1863 = vadd.f32 %v1227, %v1862
    %v1864 = vpop.f32.mrb[0].mxu0
    %v1865 = vadd.f32 %v1229, %v1864
    %v1866 = vpop.f32.mrb[0].mxu0
    %v1867 = vadd.f32 %v1231, %v1866
    %v1868 = vpop.f32.mrb[0].mxu0
    %v1869 = vadd.f32 %v1233, %v1868
    %1870 = vmatprep.mubr.bf16.mxu0 0
    %1871 = vmatmul.mubr.bf16.gmra.mrb[0].mxu0 %v1337
    %v1872 = vpop.f32.mrb[0].mxu0
    %v1873 = vadd.f32 %v1237, %v1872
    %v1874 = vpop.f32.mrb[0].mxu0
    %v1875 = vadd.f32 %v1239, %v1874
    %v1876 = vpop.f32.mrb[0].mxu0
    %v1877 = vadd.f32 %v1241, %v1876
    %v1878 = vpop.f32.mrb[0].mxu0
    %v1879 = vadd.f32 %v1243, %v1878
    %1880 = vdwg.mxu0
    %1881 = vmatprep.subr.bf16.mxu0 %v1541
    %1882 = vmatpush1.bf16.msra.mxu0 %v1540
    %1883 = vmatprep.subr.bf16.mxu0 %v1549
    %1884 = vmatpush1.bf16.msra.mxu0 %v1548
    %1885 = vmatprep.subr.bf16.mxu0 %v1557
    %1886 = vmatpush1.bf16.msra.mxu0 %v1556
    %1887 = vmatprep.subr.bf16.mxu0 %v1565
    %1888 = vmatpush1.bf16.msra.mxu0 %v1564
    %1889 = vmatprep.subr.bf16.mxu0 %v1573
    %1890 = vmatpush1.bf16.msra.mxu0 %v1572
    %1891 = vmatprep.subr.bf16.mxu0 %v1581
    %1892 = vmatpush1.bf16.msra.mxu0 %v1580
    %1893 = vmatprep.subr.bf16.mxu0 %v1589
    %1894 = vmatpush1.bf16.msra.mxu0 %v1588
    %1895 = vmatprep.subr.bf16.mxu0 %v1597
    %1896 = vmatpush1.bf16.msra.mxu0 %v1596
    %1897 = vmatprep.subr.bf16.mxu0 0
    %1898 = vmatpush1.bf16.msra.mxu0 0
    %1899 = vmatprep.subr.bf16.mxu0 0
    %1900 = vmatpush1.bf16.msra.mxu0 0
    %1901 = vmatprep.subr.bf16.mxu0 0
    %1902 = vmatpush1.bf16.msra.mxu0 0
    %1903 = vmatprep.subr.bf16.mxu0 0
    %1904 = vmatpush1.bf16.msra.mxu0 0
    %1905 = vmatprep.subr.bf16.mxu0 0
    %1906 = vmatpush1.bf16.msra.mxu0 0
    %1907 = vmatprep.subr.bf16.mxu0 0
    %1908 = vmatpush1.bf16.msra.mxu0 0
    %1909 = vmatprep.subr.bf16.mxu0 0
    %1910 = vmatpush1.bf16.msra.mxu0 0
    %1911 = vmatprep.subr.bf16.mxu0 0
    %1912 = vmatpush1.bf16.msra.mxu0 0
    %1913 = vmatprep.mubr.bf16.mxu0 0
    %1914 = vmatmul.mubr.bf16.gmra.mrb[0].mxu0 %v1334
    %v1915 = vpop.f32.mrb[0].mxu0
    %v1916 = vadd.f32 %v1280, %v1915
    %v1917 = vpop.f32.mrb[0].mxu0
    %v1918 = vadd.f32 %v1282, %v1917
    %v1919 = vpop.f32.mrb[0].mxu0
    %v1920 = vadd.f32 %v1284, %v1919
    %v1921 = vpop.f32.mrb[0].mxu0
    %v1922 = vadd.f32 %v1286, %v1921
    %1923 = vmatprep.mubr.bf16.mxu0 0
    %1924 = vmatmul.mubr.bf16.gmra.mrb[0].mxu0 %v1335
    %v1925 = vpop.f32.mrb[0].mxu0
    %v1926 = vadd.f32 %v1290, %v1925
    %v1927 = vpop.f32.mrb[0].mxu0
    %v1928 = vadd.f32 %v1292, %v1927
    %v1929 = vpop.f32.mrb[0].mxu0
    %v1930 = vadd.f32 %v1294, %v1929
    %v1931 = vpop.f32.mrb[0].mxu0
    %v1932 = vadd.f32 %v1296, %v1931
    %1933 = vmatprep.mubr.bf16.mxu0 0
    %1934 = vmatmul.mubr.bf16.gmra.mrb[0].mxu0 %v1336
    %v1935 = vpop.f32.mrb[0].mxu0
    %v1936 = vadd.f32 %v1300, %v1935
    %v1937 = vpop.f32.mrb[0].mxu0
    %v1938 = vadd.f32 %v1302, %v1937
    %v1939 = vpop.f32.mrb[0].mxu0
    %v1940 = vadd.f32 %v1304, %v1939
    %v1941 = vpop.f32.mrb[0].mxu0
    %v1942 = vadd.f32 %v1306, %v1941
    %1943 = vmatprep.mubr.bf16.mxu0 0
    %1944 = vmatmul.mubr.bf16.gmra.mrb[0].mxu0 %v1337
    %v1945 = vpop.f32.mrb[0].mxu0
    %v1946 = vadd.f32 %v1310, %v1945
    %v1947 = vpop.f32.mrb[0].mxu0
    %v1948 = vadd.f32 %v1312, %v1947
    %v1949 = vpop.f32.mrb[0].mxu0
    %v1950 = vadd.f32 %v1314, %v1949
    %v1951 = vpop.f32.mrb[0].mxu0
    %v1952 = vadd.f32 %v1316, %v1951
    %1953 = vdwg.mxu0
    %v1954 = vld [vmem:[#allocation19] sm:$0xff]
    %v1956 = vlaneseq
    %v1957 = vshrl.u32 %v1956, 7
    %v1958 = vsub.s32 0, %v1957
    %v1959 = vrot.slane %v1954, %v1958
    %v1960 = vlaneseq
    %v1961 = vshrl.u32 %v1960, 7
    %v1962 = vsub.s32 1, %v1961
    %v1963 = vrot.slane %v1954, %v1962
    %v1964 = vlaneseq
    %v1965 = vshrl.u32 %v1964, 7
    %v1966 = vsub.s32 2, %v1965
    %v1967 = vrot.slane %v1954, %v1966
    %v1968 = vlaneseq
    %v1969 = vshrl.u32 %v1968, 7
    %v1970 = vsub.s32 3, %v1969
    %v1971 = vrot.slane %v1954, %v1970
    %v1972 = vlaneseq
    %v1973 = vshrl.u32 %v1972, 7
    %v1974 = vsub.s32 4, %v1973
    %v1975 = vrot.slane %v1954, %v1974
    %v1976 = vlaneseq
    %v1977 = vshrl.u32 %v1976, 7
    %v1978 = vsub.s32 5, %v1977
    %v1979 = vrot.slane %v1954, %v1978
    %v1980 = vlaneseq
    %v1981 = vshrl.u32 %v1980, 7
    %v1982 = vsub.s32 6, %v1981
    %v1983 = vrot.slane %v1954, %v1982
    %v1984 = vlaneseq
    %v1985 = vshrl.u32 %v1984, 7
    %v1986 = vsub.s32 7, %v1985
    %v1987 = vrot.slane %v1954, %v1986
    %v1996 = vadd.f32 %v1697, %v1959
    %v1997 = vadd.f32 %v1699, %v1963
    %v1998 = vadd.f32 %v1770, %v1967
    %v1999 = vadd.f32 %v1772, %v1971
    %v2000 = vadd.f32 %v1843, %v1975
    %v2001 = vadd.f32 %v1845, %v1979
    %v2002 = vadd.f32 %v1916, %v1983
    %v2003 = vadd.f32 %v1918, %v1987
    %v2004 = vadd.f32 %v1701, %v1959
    %v2005 = vadd.f32 %v1703, %v1963
    %v2006 = vadd.f32 %v1774, %v1967
    %v2007 = vadd.f32 %v1776, %v1971
    %v2008 = vadd.f32 %v1847, %v1975
    %v2009 = vadd.f32 %v1849, %v1979
    %v2010 = vadd.f32 %v1920, %v1983
    %v2011 = vadd.f32 %v1922, %v1987
    %v2012 = vadd.f32 %v1707, %v1959
    %v2013 = vadd.f32 %v1709, %v1963
    %v2014 = vadd.f32 %v1780, %v1967
    %v2015 = vadd.f32 %v1782, %v1971
    %v2016 = vadd.f32 %v1853, %v1975
    %v2017 = vadd.f32 %v1855, %v1979
    %v2018 = vadd.f32 %v1926, %v1983
    %v2019 = vadd.f32 %v1928, %v1987
    %v2020 = vadd.f32 %v1711, %v1959
    %v2021 = vadd.f32 %v1713, %v1963
    %v2022 = vadd.f32 %v1784, %v1967
    %v2023 = vadd.f32 %v1786, %v1971
    %v2024 = vadd.f32 %v1857, %v1975
    %v2025 = vadd.f32 %v1859, %v1979
    %v2026 = vadd.f32 %v1930, %v1983
    %v2027 = vadd.f32 %v1932, %v1987
    %v2028 = vadd.f32 %v1717, %v1959
    %v2029 = vadd.f32 %v1719, %v1963
    %v2030 = vadd.f32 %v1790, %v1967
    %v2031 = vadd.f32 %v1792, %v1971
    %v2032 = vadd.f32 %v1863, %v1975
    %v2033 = vadd.f32 %v1865, %v1979
    %v2034 = vadd.f32 %v1936, %v1983
    %v2035 = vadd.f32 %v1938, %v1987
    %v2036 = vadd.f32 %v1721, %v1959
    %v2037 = vadd.f32 %v1723, %v1963
    %v2038 = vadd.f32 %v1794, %v1967
    %v2039 = vadd.f32 %v1796, %v1971
    %v2040 = vadd.f32 %v1867, %v1975
    %v2041 = vadd.f32 %v1869, %v1979
    %v2042 = vadd.f32 %v1940, %v1983
    %v2043 = vadd.f32 %v1942, %v1987
    %v2044 = vadd.f32 %v1727, %v1959
    %v2045 = vadd.f32 %v1729, %v1963
    %v2046 = vadd.f32 %v1800, %v1967
    %v2047 = vadd.f32 %v1802, %v1971
    %v2048 = vadd.f32 %v1873, %v1975
    %v2049 = vadd.f32 %v1875, %v1979
    %v2050 = vadd.f32 %v1946, %v1983
    %v2051 = vadd.f32 %v1948, %v1987
    %v2052 = vadd.f32 %v1731, %v1959
    %v2053 = vadd.f32 %v1733, %v1963
    %v2054 = vadd.f32 %v1804, %v1967
    %v2055 = vadd.f32 %v1806, %v1971
    %v2056 = vadd.f32 %v1877, %v1975
    %v2057 = vadd.f32 %v1879, %v1979
    %v2058 = vadd.f32 %v1950, %v1983
    %v2059 = vadd.f32 %v1952, %v1987
    %2060 = vst [vmem:[#allocation2] sm:$0xff] %v1996
    %2061 = vst [vmem:[#allocation2 + $0x8] sm:$0xff] %v1997
    %2062 = vst [vmem:[#allocation2 + $0x10] sm:$0xff] %v1998
    %2063 = vst [vmem:[#allocation2 + $0x18] sm:$0xff] %v1999
    %2064 = vst [vmem:[#allocation2 + $0x20] sm:$0xff] %v2000
    %2065 = vst [vmem:[#allocation2 + $0x28] sm:$0xff] %v2001
    %2066 = vst [vmem:[#allocation2 + $0x30] sm:$0xff] %v2002
    %2067 = vst [vmem:[#allocation2 + $0x38] sm:$0xff] %v2003
    %2068 = vst [vmem:[#allocation2 + $0x40] sm:$0xff] %v2004
    %2069 = vst [vmem:[#allocation2 + $0x48] sm:$0xff] %v2005
    %2070 = vst [vmem:[#allocation2 + $0x50] sm:$0xff] %v2006
    %2071 = vst [vmem:[#allocation2 + $0x58] sm:$0xff] %v2007
    %2072 = vst [vmem:[#allocation2 + $0x60] sm:$0xff] %v2008
    %2073 = vst [vmem:[#allocation2 + $0x68] sm:$0xff] %v2009
    %2074 = vst [vmem:[#allocation2 + $0x70] sm:$0xff] %v2010
    %2075 = vst [vmem:[#allocation2 + $0x78] sm:$0xff] %v2011
    %2076 = vst [vmem:[#allocation2 + $0x80] sm:$0xff] %v2012
    %2077 = vst [vmem:[#allocation2 + $0x88] sm:$0xff] %v2013
    %2078 = vst [vmem:[#allocation2 + $0x90] sm:$0xff] %v2014
    %2079 = vst [vmem:[#allocation2 + $0x98] sm:$0xff] %v2015
    %2080 = vst [vmem:[#allocation2 + $0xa0] sm:$0xff] %v2016
    %2081 = vst [vmem:[#allocation2 + $0xa8] sm:$0xff] %v2017
    %2082 = vst [vmem:[#allocation2 + $0xb0] sm:$0xff] %v2018
    %2083 = vst [vmem:[#allocation2 + $0xb8] sm:$0xff] %v2019
    %2084 = vst [vmem:[#allocation2 + $0xc0] sm:$0xff] %v2020
    %2085 = vst [vmem:[#allocation2 + $0xc8] sm:$0xff] %v2021
    %2086 = vst [vmem:[#allocation2 + $0xd0] sm:$0xff] %v2022
    %2087 = vst [vmem:[#allocation2 + $0xd8] sm:$0xff] %v2023
    %2088 = vst [vmem:[#allocation2 + $0xe0] sm:$0xff] %v2024
    %2089 = vst [vmem:[#allocation2 + $0xe8] sm:$0xff] %v2025
    %2090 = vst [vmem:[#allocation2 + $0xf0] sm:$0xff] %v2026
    %2091 = vst [vmem:[#allocation2 + $0xf8] sm:$0xff] %v2027
    %2092 = vst [vmem:[#allocation2 + $0x100] sm:$0xff] %v2028
    %2093 = vst [vmem:[#allocation2 + $0x108] sm:$0xff] %v2029
    %2094 = vst [vmem:[#allocation2 + $0x110] sm:$0xff] %v2030
    %2095 = vst [vmem:[#allocation2 + $0x118] sm:$0xff] %v2031
    %2096 = vst [vmem:[#allocation2 + $0x120] sm:$0xff] %v2032
    %2097 = vst [vmem:[#allocation2 + $0x128] sm:$0xff] %v2033
    %2098 = vst [vmem:[#allocation2 + $0x130] sm:$0xff] %v2034
    %2099 = vst [vmem:[#allocation2 + $0x138] sm:$0xff] %v2035
    %2100 = vst [vmem:[#allocation2 + $0x140] sm:$0xff] %v2036
    %2101 = vst [vmem:[#allocation2 + $0x148] sm:$0xff] %v2037
    %2102 = vst [vmem:[#allocation2 + $0x150] sm:$0xff] %v2038
    %2103 = vst [vmem:[#allocation2 + $0x158] sm:$0xff] %v2039
    %2104 = vst [vmem:[#allocation2 + $0x160] sm:$0xff] %v2040
    %2105 = vst [vmem:[#allocation2 + $0x168] sm:$0xff] %v2041
    %2106 = vst [vmem:[#allocation2 + $0x170] sm:$0xff] %v2042
    %2107 = vst [vmem:[#allocation2 + $0x178] sm:$0xff] %v2043
    %2108 = vst [vmem:[#allocation2 + $0x180] sm:$0xff] %v2044
    %2109 = vst [vmem:[#allocation2 + $0x188] sm:$0xff] %v2045
    %2110 = vst [vmem:[#allocation2 + $0x190] sm:$0xff] %v2046
    %2111 = vst [vmem:[#allocation2 + $0x198] sm:$0xff] %v2047
    %2112 = vst [vmem:[#allocation2 + $0x1a0] sm:$0xff] %v2048
    %2113 = vst [vmem:[#allocation2 + $0x1a8] sm:$0xff] %v2049
    %2114 = vst [vmem:[#allocation2 + $0x1b0] sm:$0xff] %v2050
    %2115 = vst [vmem:[#allocation2 + $0x1b8] sm:$0xff] %v2051
    %2116 = vst [vmem:[#allocation2 + $0x1c0] sm:$0xff] %v2052
    %2117 = vst [vmem:[#allocation2 + $0x1c8] sm:$0xff] %v2053
    %2118 = vst [vmem:[#allocation2 + $0x1d0] sm:$0xff] %v2054
    %2119 = vst [vmem:[#allocation2 + $0x1d8] sm:$0xff] %v2055
    %2120 = vst [vmem:[#allocation2 + $0x1e0] sm:$0xff] %v2056
    %2121 = vst [vmem:[#allocation2 + $0x1e8] sm:$0xff] %v2057
    %2122 = vst [vmem:[#allocation2 + $0x1f0] sm:$0xff] %v2058
    %2123 = vst [vmem:[#allocation2 + $0x1f8] sm:$0xff] %v2059
    %2124 = vst [vmem:[#allocation3] sm:$0xff] 0.0
    %2125 = vst [vmem:[#allocation4] sm:$0xff] 0.0
    %2126 = vst [vmem:[#allocation5] sm:$0xff] 0.0
    %2127 = vst [vmem:[#allocation6] sm:$0xff] 0.0
    loop: start=0, step=1, limit=8
    $region66: #{sse_forward.5} parent=1 // loop_pre_header
      _
    $region67: #{sse_forward.5} parent=1 // loop_header
      %s2129 = sphi 0, %s2133
      %p2130 = scmp.ge.s32.totalorder %s2129, 8
    $region68: #{sse_forward.5} parent=1 // loop_header_branch
      %2132 = sbr.rel (%p2130) target = $region72
    $region69: #{sse_forward.5} parent=1 // loop_body
      %s2134 = ssub.s32 7, %s2129
      %s2135 = smul.u32 %s2129, 8
      %s2136 = scalar_lea.vmem [#allocation12], %s2135
      %v2137 = vld [vmem:[%s2136] sm:$0xff]
      %s2138 = sshra.s32 %s2135, 3
      %s2139 = sand.u32 %s2135, 7
      %s2140 = smul.u32 %s2138, 8
      %s2141 = smul.addr %s2140, 8
      %s2142 = scalar_lea.vmem [#allocation2], %s2141
      %v2143 = vld [vmem:[%s2142] sm:$0xff]
      %v2144 = vld [vmem:[%s2142 + $0x8] sm:$0xff]
      %v2145 = vld [vmem:[%s2142 + $0x10] sm:$0xff]
      %v2146 = vld [vmem:[%s2142 + $0x18] sm:$0xff]
      %v2147 = vld [vmem:[#allocation3] sm:$0xff]
      %v2148 = vpack.c.bf16 %v2147, %v2147
      %v2149 = vld [vmem:[#allocation16] sm:$0xff]
      %v2150 = vld [vmem:[#allocation16 + $0x8] sm:$0xff]
      %v2151 = vld [vmem:[#allocation16 + $0x10] sm:$0xff]
      %v2152 = vld [vmem:[#allocation16 + $0x18] sm:$0xff]
      %v2153 = vld [vmem:[#allocation16 + $0x20] sm:$0xff]
      %v2154 = vld [vmem:[#allocation16 + $0x28] sm:$0xff]
      %v2155 = vld [vmem:[#allocation16 + $0x30] sm:$0xff]
      %v2156 = vld [vmem:[#allocation16 + $0x38] sm:$0xff]
      %v2157 = vld [vmem:[#allocation16 + $0x40] sm:$0xff]
      %v2158 = vld [vmem:[#allocation16 + $0x48] sm:$0xff]
      %v2159 = vld [vmem:[#allocation16 + $0x50] sm:$0xff]
      %v2160 = vld [vmem:[#allocation16 + $0x58] sm:$0xff]
      %v2161 = vld [vmem:[#allocation16 + $0x60] sm:$0xff]
      %v2162 = vld [vmem:[#allocation16 + $0x68] sm:$0xff]
      %v2163 = vld [vmem:[#allocation16 + $0x70] sm:$0xff]
      %v2164 = vld [vmem:[#allocation16 + $0x78] sm:$0xff]
      %v2165 = vld [vmem:[#allocation16 + $0x80] sm:$0xff]
      %v2166 = vld [vmem:[#allocation16 + $0x88] sm:$0xff]
      %v2167 = vld [vmem:[#allocation16 + $0x90] sm:$0xff]
      %v2168 = vld [vmem:[#allocation16 + $0x98] sm:$0xff]
      %v2169 = vld [vmem:[#allocation16 + $0xa0] sm:$0xff]
      %v2170 = vld [vmem:[#allocation16 + $0xa8] sm:$0xff]
      %v2171 = vld [vmem:[#allocation16 + $0xb0] sm:$0xff]
      %v2172 = vld [vmem:[#allocation16 + $0xb8] sm:$0xff]
      %v2173 = vld [vmem:[#allocation16 + $0xc0] sm:$0xff]
      %v2174 = vld [vmem:[#allocation16 + $0xc8] sm:$0xff]
      %v2175 = vld [vmem:[#allocation16 + $0xd0] sm:$0xff]
      %v2176 = vld [vmem:[#allocation16 + $0xd8] sm:$0xff]
      %v2177 = vld [vmem:[#allocation16 + $0xe0] sm:$0xff]
      %v2178 = vld [vmem:[#allocation16 + $0xe8] sm:$0xff]
      %v2179 = vld [vmem:[#allocation16 + $0xf0] sm:$0xff]
      %v2180 = vld [vmem:[#allocation16 + $0xf8] sm:$0xff]
      %v2213 = vunpack.c.l.b16 %v2149
      %v2214 = vunpack.c.h.b16 %v2149
      %v2215 = vunpack.c.l.b16 %v2150
      %v2216 = vunpack.c.h.b16 %v2150
      %v2217 = vunpack.c.l.b16 %v2151
      %v2218 = vunpack.c.h.b16 %v2151
      %v2219 = vunpack.c.l.b16 %v2152
      %v2220 = vunpack.c.h.b16 %v2152
      %v2221 = vunpack.c.l.b16 %v2153
      %v2222 = vunpack.c.h.b16 %v2153
      %v2223 = vunpack.c.l.b16 %v2154
      %v2224 = vunpack.c.h.b16 %v2154
      %v2225 = vunpack.c.l.b16 %v2155
      %v2226 = vunpack.c.h.b16 %v2155
      %v2227 = vunpack.c.l.b16 %v2156
      %v2228 = vunpack.c.h.b16 %v2156
      %v2229 = vunpack.c.l.b16 %v2157
      %v2230 = vunpack.c.h.b16 %v2157
      %v2231 = vunpack.c.l.b16 %v2158
      %v2232 = vunpack.c.h.b16 %v2158
      %v2233 = vunpack.c.l.b16 %v2159
      %v2234 = vunpack.c.h.b16 %v2159
      %v2235 = vunpack.c.l.b16 %v2160
      %v2236 = vunpack.c.h.b16 %v2160
      %v2237 = vunpack.c.l.b16 %v2161
      %v2238 = vunpack.c.h.b16 %v2161
      %v2239 = vunpack.c.l.b16 %v2162
      %v2240 = vunpack.c.h.b16 %v2162
      %v2241 = vunpack.c.l.b16 %v2163
      %v2242 = vunpack.c.h.b16 %v2163
      %v2243 = vunpack.c.l.b16 %v2164
      %v2244 = vunpack.c.h.b16 %v2164
      %v2245 = vunpack.c.l.b16 %v2165
      %v2246 = vunpack.c.h.b16 %v2165
      %v2247 = vunpack.c.l.b16 %v2166
      %v2248 = vunpack.c.h.b16 %v2166
      %v2249 = vunpack.c.l.b16 %v2167
      %v2250 = vunpack.c.h.b16 %v2167
      %v2251 = vunpack.c.l.b16 %v2168
      %v2252 = vunpack.c.h.b16 %v2168
      %v2253 = vunpack.c.l.b16 %v2169
      %v2254 = vunpack.c.h.b16 %v2169
      %v2255 = vunpack.c.l.b16 %v2170
      %v2256 = vunpack.c.h.b16 %v2170
      %v2257 = vunpack.c.l.b16 %v2171
      %v2258 = vunpack.c.h.b16 %v2171
      %v2259 = vunpack.c.l.b16 %v2172
      %v2260 = vunpack.c.h.b16 %v2172
      %v2261 = vunpack.c.l.b16 %v2173
      %v2262 = vunpack.c.h.b16 %v2173
      %v2263 = vunpack.c.l.b16 %v2174
      %v2264 = vunpack.c.h.b16 %v2174
      %v2265 = vunpack.c.l.b16 %v2175
      %v2266 = vunpack.c.h.b16 %v2175
      %v2267 = vunpack.c.l.b16 %v2176
      %v2268 = vunpack.c.h.b16 %v2176
      %v2269 = vunpack.c.l.b16 %v2177
      %v2270 = vunpack.c.h.b16 %v2177
      %v2271 = vunpack.c.l.b16 %v2178
      %v2272 = vunpack.c.h.b16 %v2178
      %v2273 = vunpack.c.l.b16 %v2179
      %v2274 = vunpack.c.h.b16 %v2179
      %v2275 = vunpack.c.l.b16 %v2180
      %v2276 = vunpack.c.h.b16 %v2180
      %v2277 = vpack.c.b16 %v2217, %v2213
      %v2278 = vpack.c.b16 %v2218, %v2214
      %v2279 = vpack.c.b16 %v2219, %v2215
      %v2280 = vpack.c.b16 %v2220, %v2216
      %v2281 = vpack.c.b16 %v2225, %v2221
      %v2282 = vpack.c.b16 %v2226, %v2222
      %v2283 = vpack.c.b16 %v2227, %v2223
      %v2284 = vpack.c.b16 %v2228, %v2224
      %v2285 = vpack.c.b16 %v2233, %v2229
      %v2286 = vpack.c.b16 %v2234, %v2230
      %v2287 = vpack.c.b16 %v2235, %v2231
      %v2288 = vpack.c.b16 %v2236, %v2232
      %v2289 = vpack.c.b16 %v2241, %v2237
      %v2290 = vpack.c.b16 %v2242, %v2238
      %v2291 = vpack.c.b16 %v2243, %v2239
      %v2292 = vpack.c.b16 %v2244, %v2240
      %v2293 = vpack.c.b16 %v2249, %v2245
      %v2294 = vpack.c.b16 %v2250, %v2246
      %v2295 = vpack.c.b16 %v2251, %v2247
      %v2296 = vpack.c.b16 %v2252, %v2248
      %v2297 = vpack.c.b16 %v2257, %v2253
      %v2298 = vpack.c.b16 %v2258, %v2254
      %v2299 = vpack.c.b16 %v2259, %v2255
      %v2300 = vpack.c.b16 %v2260, %v2256
      %v2301 = vpack.c.b16 %v2265, %v2261
      %v2302 = vpack.c.b16 %v2266, %v2262
      %v2303 = vpack.c.b16 %v2267, %v2263
      %v2304 = vpack.c.b16 %v2268, %v2264
      %v2305 = vpack.c.b16 %v2273, %v2269
      %v2306 = vpack.c.b16 %v2274, %v2270
      %v2307 = vpack.c.b16 %v2275, %v2271
      %v2308 = vpack.c.b16 %v2276, %v2272
      %2341 = vmatprep.subr.bf16.mxu0 %v2278
      %2342 = vmatpush1.bf16.msra.mxu0 %v2277
      %2343 = vmatprep.subr.bf16.mxu0 %v2282
      %2344 = vmatpush1.bf16.msra.mxu0 %v2281
      %2345 = vmatprep.subr.bf16.mxu0 %v2286
      %2346 = vmatpush1.bf16.msra.mxu0 %v2285
      %2347 = vmatprep.subr.bf16.mxu0 %v2290
      %2348 = vmatpush1.bf16.msra.mxu0 %v2289
      %2349 = vmatprep.subr.bf16.mxu0 %v2294
      %2350 = vmatpush1.bf16.msra.mxu0 %v2293
      %2351 = vmatprep.subr.bf16.mxu0 %v2298
      %2352 = vmatpush1.bf16.msra.mxu0 %v2297
      %2353 = vmatprep.subr.bf16.mxu0 %v2302
      %2354 = vmatpush1.bf16.msra.mxu0 %v2301
      %2355 = vmatprep.subr.bf16.mxu0 %v2306
      %2356 = vmatpush1.bf16.msra.mxu0 %v2305
      %2357 = vmatprep.subr.bf16.mxu0 0
      %2358 = vmatpush1.bf16.msra.mxu0 0
      %2359 = vmatprep.subr.bf16.mxu0 0
      %2360 = vmatpush1.bf16.msra.mxu0 0
      %2361 = vmatprep.subr.bf16.mxu0 0
      %2362 = vmatpush1.bf16.msra.mxu0 0
      %2363 = vmatprep.subr.bf16.mxu0 0
      %2364 = vmatpush1.bf16.msra.mxu0 0
      %2365 = vmatprep.subr.bf16.mxu0 0
      %2366 = vmatpush1.bf16.msra.mxu0 0
      %2367 = vmatprep.subr.bf16.mxu0 0
      %2368 = vmatpush1.bf16.msra.mxu0 0
      %2369 = vmatprep.subr.bf16.mxu0 0
      %2370 = vmatpush1.bf16.msra.mxu0 0
      %2371 = vmatprep.subr.bf16.mxu0 0
      %2372 = vmatpush1.bf16.msra.mxu0 0
      %2373 = vmatprep.mubr.bf16.mxu0 0
      %2374 = vmatmul.mubr.bf16.gmra.mrb[0].mxu0 %v2148
      %v2375 = vpop.f32.mrb[0].mxu0
      %v2376 = vadd.f32 0.0, %v2375
      %v2377 = vpop.f32.mrb[0].mxu0
      %v2378 = vadd.f32 0.0, %v2377
      %v2379 = vpop.f32.mrb[0].mxu0
      %v2380 = vpop.f32.mrb[0].mxu0
      %2381 = vdwg.mxu0
      %2382 = vmatprep.subr.bf16.mxu0 %v2280
      %2383 = vmatpush1.bf16.msra.mxu0 %v2279
      %2384 = vmatprep.subr.bf16.mxu0 %v2284
      %2385 = vmatpush1.bf16.msra.mxu0 %v2283
      %2386 = vmatprep.subr.bf16.mxu0 %v2288
      %2387 = vmatpush1.bf16.msra.mxu0 %v2287
      %2388 = vmatprep.subr.bf16.mxu0 %v2292
      %2389 = vmatpush1.bf16.msra.mxu0 %v2291
      %2390 = vmatprep.subr.bf16.mxu0 %v2296
      %2391 = vmatpush1.bf16.msra.mxu0 %v2295
      %2392 = vmatprep.subr.bf16.mxu0 %v2300
      %2393 = vmatpush1.bf16.msra.mxu0 %v2299
      %2394 = vmatprep.subr.bf16.mxu0 %v2304
      %2395 = vmatpush1.bf16.msra.mxu0 %v2303
      %2396 = vmatprep.subr.bf16.mxu0 %v2308
      %2397 = vmatpush1.bf16.msra.mxu0 %v2307
      %2398 = vmatprep.subr.bf16.mxu0 0
      %2399 = vmatpush1.bf16.msra.mxu0 0
      %2400 = vmatprep.subr.bf16.mxu0 0
      %2401 = vmatpush1.bf16.msra.mxu0 0
      %2402 = vmatprep.subr.bf16.mxu0 0
      %2403 = vmatpush1.bf16.msra.mxu0 0
      %2404 = vmatprep.subr.bf16.mxu0 0
      %2405 = vmatpush1.bf16.msra.mxu0 0
      %2406 = vmatprep.subr.bf16.mxu0 0
      %2407 = vmatpush1.bf16.msra.mxu0 0
      %2408 = vmatprep.subr.bf16.mxu0 0
      %2409 = vmatpush1.bf16.msra.mxu0 0
      %2410 = vmatprep.subr.bf16.mxu0 0
      %2411 = vmatpush1.bf16.msra.mxu0 0
      %2412 = vmatprep.subr.bf16.mxu0 0
      %2413 = vmatpush1.bf16.msra.mxu0 0
      %2414 = vmatprep.mubr.bf16.mxu0 0
      %2415 = vmatmul.mubr.bf16.gmra.mrb[0].mxu0 %v2148
      %v2416 = vpop.f32.mrb[0].mxu0
      %v2417 = vadd.f32 0.0, %v2416
      %v2418 = vpop.f32.mrb[0].mxu0
      %v2419 = vadd.f32 0.0, %v2418
      %v2420 = vpop.f32.mrb[0].mxu0
      %v2421 = vpop.f32.mrb[0].mxu0
      %2422 = vdwg.mxu0
      %v2423 = vadd.f32 %v2143, %v2376
      %v2424 = vadd.f32 %v2144, %v2378
      %v2425 = vadd.f32 %v2145, %v2417
      %v2426 = vadd.f32 %v2146, %v2419
      %v2427 = vld [vmem:[#allocation4] sm:$0xff]
      %v2428 = vxor.u32 %v2423, 2147483648
      %v2429 = vmul.f32 %v2428, 1.442695
      %v2430 = vpow.pop %v2429
      %v2431 = vadd.f32 %v2430, 1.0
      %v2432 = vrcp.pop %v2431
      %v2433 = vmul.f32 1.0, %v2432
      %v2434 = vxor.u32 %v2424, 2147483648
      %v2435 = vmul.f32 %v2434, 1.442695
      %v2436 = vpow.pop %v2435
      %v2437 = vadd.f32 %v2436, 1.0
      %v2438 = vrcp.pop %v2437
      %v2439 = vmul.f32 1.0, %v2438
      %v2440 = vtanh.pop %v2425
      %v2441 = vxor.u32 %v2426, 2147483648
      %v2442 = vmul.f32 %v2441, 1.442695
      %v2443 = vpow.pop %v2442
      %v2444 = vadd.f32 %v2443, 1.0
      %v2445 = vrcp.pop %v2444
      %v2446 = vmul.f32 1.0, %v2445
      %v2447 = vmul.f32 %v2439, %v2427
      %v2448 = vmul.f32 %v2433, %v2440
      %v2449 = vadd.f32 %v2447, %v2448
      %v2450 = vtanh.pop %v2449
      %v2451 = vmul.f32 %v2446, %v2450
      %vm2452 = vcmp.gt.f32.partialorder %v2137, 0.0
      %v2453 = vsel %vm2452, 1, 0
      %2454 = vset.pattern.permute.xlu0 0
      %2455 = vperm.xlu0 %2454, %v2453
      %v2456 = vpop.permute.xlu0 %2455
      %vm2457 = vcmp.eq.s32.totalorder %v2456, 1
      %v2458 = vsel %vm2457, %v2449, %v2427
      %v2459 = vsel %vm2457, %v2451, %v2147
      %2460 = vst [vmem:[#allocation3] sm:$0xff] %v2459
      %2461 = vst [vmem:[#allocation4] sm:$0xff] %v2458
      %v2462 = vsel %vm2457, %v2451, 0.0
      %v2463 = vpack.c.bf16 %v2462, %v2462
      %s2464 = smul.u32 %s2129, 2
      %s2465 = smul.addr %s2464, 4
      %s2466 = scalar_lea.vmem [#allocation21], %s2465
      %2467 = vst [vmem:[%s2466] sm:$0xf] %v2463
      %s2468 = smul.u32 %s2134, 8
      %s2469 = scalar_lea.vmem [#allocation12], %s2468
      %v2470 = vld [vmem:[%s2469] sm:$0xff]
      %s2471 = sshra.s32 %s2468, 3
      %s2472 = sand.u32 %s2468, 7
      %s2473 = smul.u32 %s2471, 8
      %s2474 = smul.addr %s2473, 8
      %s2475 = scalar_lea.vmem [#allocation2], %s2474
      %v2476 = vld [vmem:[%s2475 + $0x20] sm:$0xff]
      %v2477 = vld [vmem:[%s2475 + $0x28] sm:$0xff]
      %v2478 = vld [vmem:[%s2475 + $0x30] sm:$0xff]
      %v2479 = vld [vmem:[%s2475 + $0x38] sm:$0xff]
      %v2480 = vld [vmem:[#allocation5] sm:$0xff]
      %v2481 = vpack.c.bf16 %v2480, %v2480
      %v2482 = vld [vmem:[#allocation18] sm:$0xff]
      %v2483 = vld [vmem:[#allocation18 + $0x8] sm:$0xff]
      %v2484 = vld [vmem:[#allocation18 + $0x10] sm:$0xff]
      %v2485 = vld [vmem:[#allocation18 + $0x18] sm:$0xff]
      %v2486 = vld [vmem:[#allocation18 + $0x20] sm:$0xff]
      %v2487 = vld [vmem:[#allocation18 + $0x28] sm:$0xff]
      %v2488 = vld [vmem:[#allocation18 + $0x30] sm:$0xff]
      %v2489 = vld [vmem:[#allocation18 + $0x38] sm:$0xff]
      %v2490 = vld [vmem:[#allocation18 + $0x40] sm:$0xff]
      %v2491 = vld [vmem:[#allocation18 + $0x48] sm:$0xff]
      %v2492 = vld [vmem:[#allocation18 + $0x50] sm:$0xff]
      %v2493 = vld [vmem:[#allocation18 + $0x58] sm:$0xff]
      %v2494 = vld [vmem:[#allocation18 + $0x60] sm:$0xff]
      %v2495 = vld [vmem:[#allocation18 + $0x68] sm:$0xff]
      %v2496 = vld [vmem:[#allocation18 + $0x70] sm:$0xff]
      %v2497 = vld [vmem:[#allocation18 + $0x78] sm:$0xff]
      %v2498 = vld [vmem:[#allocation18 + $0x80] sm:$0xff]
      %v2499 = vld [vmem:[#allocation18 + $0x88] sm:$0xff]
      %v2500 = vld [vmem:[#allocation18 + $0x90] sm:$0xff]
      %v2501 = vld [vmem:[#allocation18 + $0x98] sm:$0xff]
      %v2502 = vld [vmem:[#allocation18 + $0xa0] sm:$0xff]
      %v2503 = vld [vmem:[#allocation18 + $0xa8] sm:$0xff]
      %v2504 = vld [vmem:[#allocation18 + $0xb0] sm:$0xff]
      %v2505 = vld [vmem:[#allocation18 + $0xb8] sm:$0xff]
      %v2506 = vld [vmem:[#allocation18 + $0xc0] sm:$0xff]
      %v2507 = vld [vmem:[#allocation18 + $0xc8] sm:$0xff]
      %v2508 = vld [vmem:[#allocation18 + $0xd0] sm:$0xff]
      %v2509 = vld [vmem:[#allocation18 + $0xd8] sm:$0xff]
      %v2510 = vld [vmem:[#allocation18 + $0xe0] sm:$0xff]
      %v2511 = vld [vmem:[#allocation18 + $0xe8] sm:$0xff]
      %v2512 = vld [vmem:[#allocation18 + $0xf0] sm:$0xff]
      %v2513 = vld [vmem:[#allocation18 + $0xf8] sm:$0xff]
      %v2546 = vunpack.c.l.b16 %v2482
      %v2547 = vunpack.c.h.b16 %v2482
      %v2548 = vunpack.c.l.b16 %v2483
      %v2549 = vunpack.c.h.b16 %v2483
      %v2550 = vunpack.c.l.b16 %v2484
      %v2551 = vunpack.c.h.b16 %v2484
      %v2552 = vunpack.c.l.b16 %v2485
      %v2553 = vunpack.c.h.b16 %v2485
      %v2554 = vunpack.c.l.b16 %v2486
      %v2555 = vunpack.c.h.b16 %v2486
      %v2556 = vunpack.c.l.b16 %v2487
      %v2557 = vunpack.c.h.b16 %v2487
      %v2558 = vunpack.c.l.b16 %v2488
      %v2559 = vunpack.c.h.b16 %v2488
      %v2560 = vunpack.c.l.b16 %v2489
      %v2561 = vunpack.c.h.b16 %v2489
      %v2562 = vunpack.c.l.b16 %v2490
      %v2563 = vunpack.c.h.b16 %v2490
      %v2564 = vunpack.c.l.b16 %v2491
      %v2565 = vunpack.c.h.b16 %v2491
      %v2566 = vunpack.c.l.b16 %v2492
      %v2567 = vunpack.c.h.b16 %v2492
      %v2568 = vunpack.c.l.b16 %v2493
      %v2569 = vunpack.c.h.b16 %v2493
      %v2570 = vunpack.c.l.b16 %v2494
      %v2571 = vunpack.c.h.b16 %v2494
      %v2572 = vunpack.c.l.b16 %v2495
      %v2573 = vunpack.c.h.b16 %v2495
      %v2574 = vunpack.c.l.b16 %v2496
      %v2575 = vunpack.c.h.b16 %v2496
      %v2576 = vunpack.c.l.b16 %v2497
      %v2577 = vunpack.c.h.b16 %v2497
      %v2578 = vunpack.c.l.b16 %v2498
      %v2579 = vunpack.c.h.b16 %v2498
      %v2580 = vunpack.c.l.b16 %v2499
      %v2581 = vunpack.c.h.b16 %v2499
      %v2582 = vunpack.c.l.b16 %v2500
      %v2583 = vunpack.c.h.b16 %v2500
      %v2584 = vunpack.c.l.b16 %v2501
      %v2585 = vunpack.c.h.b16 %v2501
      %v2586 = vunpack.c.l.b16 %v2502
      %v2587 = vunpack.c.h.b16 %v2502
      %v2588 = vunpack.c.l.b16 %v2503
      %v2589 = vunpack.c.h.b16 %v2503
      %v2590 = vunpack.c.l.b16 %v2504
      %v2591 = vunpack.c.h.b16 %v2504
      %v2592 = vunpack.c.l.b16 %v2505
      %v2593 = vunpack.c.h.b16 %v2505
      %v2594 = vunpack.c.l.b16 %v2506
      %v2595 = vunpack.c.h.b16 %v2506
      %v2596 = vunpack.c.l.b16 %v2507
      %v2597 = vunpack.c.h.b16 %v2507
      %v2598 = vunpack.c.l.b16 %v2508
      %v2599 = vunpack.c.h.b16 %v2508
      %v2600 = vunpack.c.l.b16 %v2509
      %v2601 = vunpack.c.h.b16 %v2509
      %v2602 = vunpack.c.l.b16 %v2510
      %v2603 = vunpack.c.h.b16 %v2510
      %v2604 = vunpack.c.l.b16 %v2511
      %v2605 = vunpack.c.h.b16 %v2511
      %v2606 = vunpack.c.l.b16 %v2512
      %v2607 = vunpack.c.h.b16 %v2512
      %v2608 = vunpack.c.l.b16 %v2513
      %v2609 = vunpack.c.h.b16 %v2513
      %v2610 = vpack.c.b16 %v2550, %v2546
      %v2611 = vpack.c.b16 %v2551, %v2547
      %v2612 = vpack.c.b16 %v2552, %v2548
      %v2613 = vpack.c.b16 %v2553, %v2549
      %v2614 = vpack.c.b16 %v2558, %v2554
      %v2615 = vpack.c.b16 %v2559, %v2555
      %v2616 = vpack.c.b16 %v2560, %v2556
      %v2617 = vpack.c.b16 %v2561, %v2557
      %v2618 = vpack.c.b16 %v2566, %v2562
      %v2619 = vpack.c.b16 %v2567, %v2563
      %v2620 = vpack.c.b16 %v2568, %v2564
      %v2621 = vpack.c.b16 %v2569, %v2565
      %v2622 = vpack.c.b16 %v2574, %v2570
      %v2623 = vpack.c.b16 %v2575, %v2571
      %v2624 = vpack.c.b16 %v2576, %v2572
      %v2625 = vpack.c.b16 %v2577, %v2573
      %v2626 = vpack.c.b16 %v2582, %v2578
      %v2627 = vpack.c.b16 %v2583, %v2579
      %v2628 = vpack.c.b16 %v2584, %v2580
      %v2629 = vpack.c.b16 %v2585, %v2581
      %v2630 = vpack.c.b16 %v2590, %v2586
      %v2631 = vpack.c.b16 %v2591, %v2587
      %v2632 = vpack.c.b16 %v2592, %v2588
      %v2633 = vpack.c.b16 %v2593, %v2589
      %v2634 = vpack.c.b16 %v2598, %v2594
      %v2635 = vpack.c.b16 %v2599, %v2595
      %v2636 = vpack.c.b16 %v2600, %v2596
      %v2637 = vpack.c.b16 %v2601, %v2597
      %v2638 = vpack.c.b16 %v2606, %v2602
      %v2639 = vpack.c.b16 %v2607, %v2603
      %v2640 = vpack.c.b16 %v2608, %v2604
      %v2641 = vpack.c.b16 %v2609, %v2605
      %2674 = vmatprep.subr.bf16.mxu0 %v2611
      %2675 = vmatpush1.bf16.msra.mxu0 %v2610
      %2676 = vmatprep.subr.bf16.mxu0 %v2615
      %2677 = vmatpush1.bf16.msra.mxu0 %v2614
      %2678 = vmatprep.subr.bf16.mxu0 %v2619
      %2679 = vmatpush1.bf16.msra.mxu0 %v2618
      %2680 = vmatprep.subr.bf16.mxu0 %v2623
      %2681 = vmatpush1.bf16.msra.mxu0 %v2622
      %2682 = vmatprep.subr.bf16.mxu0 %v2627
      %2683 = vmatpush1.bf16.msra.mxu0 %v2626
      %2684 = vmatprep.subr.bf16.mxu0 %v2631
      %2685 = vmatpush1.bf16.msra.mxu0 %v2630
      %2686 = vmatprep.subr.bf16.mxu0 %v2635
      %2687 = vmatpush1.bf16.msra.mxu0 %v2634
      %2688 = vmatprep.subr.bf16.mxu0 %v2639
      %2689 = vmatpush1.bf16.msra.mxu0 %v2638
      %2690 = vmatprep.subr.bf16.mxu0 0
      %2691 = vmatpush1.bf16.msra.mxu0 0
      %2692 = vmatprep.subr.bf16.mxu0 0
      %2693 = vmatpush1.bf16.msra.mxu0 0
      %2694 = vmatprep.subr.bf16.mxu0 0
      %2695 = vmatpush1.bf16.msra.mxu0 0
      %2696 = vmatprep.subr.bf16.mxu0 0
      %2697 = vmatpush1.bf16.msra.mxu0 0
      %2698 = vmatprep.subr.bf16.mxu0 0
      %2699 = vmatpush1.bf16.msra.mxu0 0
      %2700 = vmatprep.subr.bf16.mxu0 0
      %2701 = vmatpush1.bf16.msra.mxu0 0
      %2702 = vmatprep.subr.bf16.mxu0 0
      %2703 = vmatpush1.bf16.msra.mxu0 0
      %2704 = vmatprep.subr.bf16.mxu0 0
      %2705 = vmatpush1.bf16.msra.mxu0 0
      %2706 = vmatprep.mubr.bf16.mxu0 0
      %2707 = vmatmul.mubr.bf16.gmra.mrb[0].mxu0 %v2481
      %v2708 = vpop.f32.mrb[0].mxu0
      %v2709 = vadd.f32 0.0, %v2708
      %v2710 = vpop.f32.mrb[0].mxu0
      %v2711 = vadd.f32 0.0, %v2710
      %v2712 = vpop.f32.mrb[0].mxu0
      %v2713 = vpop.f32.mrb[0].mxu0
      %2714 = vdwg.mxu0
      %2715 = vmatprep.subr.bf16.mxu0 %v2613
      %2716 = vmatpush1.bf16.msra.mxu0 %v2612
      %2717 = vmatprep.subr.bf16.mxu0 %v2617
      %2718 = vmatpush1.bf16.msra.mxu0 %v2616
      %2719 = vmatprep.subr.bf16.mxu0 %v2621
      %2720 = vmatpush1.bf16.msra.mxu0 %v2620
      %2721 = vmatprep.subr.bf16.mxu0 %v2625
      %2722 = vmatpush1.bf16.msra.mxu0 %v2624
      %2723 = vmatprep.subr.bf16.mxu0 %v2629
      %2724 = vmatpush1.bf16.msra.mxu0 %v2628
      %2725 = vmatprep.subr.bf16.mxu0 %v2633
      %2726 = vmatpush1.bf16.msra.mxu0 %v2632
      %2727 = vmatprep.subr.bf16.mxu0 %v2637
      %2728 = vmatpush1.bf16.msra.mxu0 %v2636
      %2729 = vmatprep.subr.bf16.mxu0 %v2641
      %2730 = vmatpush1.bf16.msra.mxu0 %v2640
      %2731 = vmatprep.subr.bf16.mxu0 0
      %2732 = vmatpush1.bf16.msra.mxu0 0
      %2733 = vmatprep.subr.bf16.mxu0 0
      %2734 = vmatpush1.bf16.msra.mxu0 0
      %2735 = vmatprep.subr.bf16.mxu0 0
      %2736 = vmatpush1.bf16.msra.mxu0 0
      %2737 = vmatprep.subr.bf16.mxu0 0
      %2738 = vmatpush1.bf16.msra.mxu0 0
      %2739 = vmatprep.subr.bf16.mxu0 0
      %2740 = vmatpush1.bf16.msra.mxu0 0
      %2741 = vmatprep.subr.bf16.mxu0 0
      %2742 = vmatpush1.bf16.msra.mxu0 0
      %2743 = vmatprep.subr.bf16.mxu0 0
      %2744 = vmatpush1.bf16.msra.mxu0 0
      %2745 = vmatprep.subr.bf16.mxu0 0
      %2746 = vmatpush1.bf16.msra.mxu0 0
      %2747 = vmatprep.mubr.bf16.mxu0 0
      %2748 = vmatmul.mubr.bf16.gmra.mrb[0].mxu0 %v2481
      %v2749 = vpop.f32.mrb[0].mxu0
      %v2750 = vadd.f32 0.0, %v2749
      %v2751 = vpop.f32.mrb[0].mxu0
      %v2752 = vadd.f32 0.0, %v2751
      %v2753 = vpop.f32.mrb[0].mxu0
      %v2754 = vpop.f32.mrb[0].mxu0
      %2755 = vdwg.mxu0
      %v2756 = vadd.f32 %v2476, %v2709
      %v2757 = vadd.f32 %v2477, %v2711
      %v2758 = vadd.f32 %v2478, %v2750
      %v2759 = vadd.f32 %v2479, %v2752
      %v2760 = vld [vmem:[#allocation6] sm:$0xff]
      %v2761 = vxor.u32 %v2756, 2147483648
      %v2762 = vmul.f32 %v2761, 1.442695
      %v2763 = vpow.pop %v2762
      %v2764 = vadd.f32 %v2763, 1.0
      %v2765 = vrcp.pop %v2764
      %v2766 = vmul.f32 1.0, %v2765
      %v2767 = vxor.u32 %v2757, 2147483648
      %v2768 = vmul.f32 %v2767, 1.442695
      %v2769 = vpow.pop %v2768
      %v2770 = vadd.f32 %v2769, 1.0
      %v2771 = vrcp.pop %v2770
      %v2772 = vmul.f32 1.0, %v2771
      %v2773 = vtanh.pop %v2758
      %v2774 = vxor.u32 %v2759, 2147483648
      %v2775 = vmul.f32 %v2774, 1.442695
      %v2776 = vpow.pop %v2775
      %v2777 = vadd.f32 %v2776, 1.0
      %v2778 = vrcp.pop %v2777
      %v2779 = vmul.f32 1.0, %v2778
      %v2780 = vmul.f32 %v2772, %v2760
      %v2781 = vmul.f32 %v2766, %v2773
      %v2782 = vadd.f32 %v2780, %v2781
      %v2783 = vtanh.pop %v2782
      %v2784 = vmul.f32 %v2779, %v2783
      %vm2785 = vcmp.gt.f32.partialorder %v2470, 0.0
      %v2786 = vsel %vm2785, 1, 0
      %2787 = vset.pattern.permute.xlu0 0
      %2788 = vperm.xlu0 %2787, %v2786
      %v2789 = vpop.permute.xlu0 %2788
      %vm2790 = vcmp.eq.s32.totalorder %v2789, 1
      %v2791 = vsel %vm2790, %v2782, %v2760
      %v2792 = vsel %vm2790, %v2784, %v2480
      %2793 = vst [vmem:[#allocation5] sm:$0xff] %v2792
      %2794 = vst [vmem:[#allocation6] sm:$0xff] %v2791
      %v2795 = vsel %vm2790, %v2784, 0.0
      %v2796 = vpack.c.bf16 %v2795, %v2795
      %s2797 = smul.u32 %s2134, 2
      %s2798 = smul.addr %s2797, 4
      %s2799 = scalar_lea.vmem [#allocation21], %s2798
      %2800 = vst [vmem:[%s2799 + $0x4] sm:$0xf] %v2796
    $region70: #{sse_forward.5} parent=1 // loop_footer
      %s2133 = sadd.s32 1, %s2129
    $region71: #{sse_forward.5} parent=1 // loop_footer_branch
      %2128 = sbr.rel target = $region67
    $region72: #{sse_forward.5} parent=1 // loop_exit
      _
    // Predicated region
    $region73: #{sse_forward.5} parent=1 // pred_check
      _
    $region74: #{sse_forward.5} parent=1 // pred_check_branch
      %2802 = sbr.rel (0) target = $region76
    $region75: #{sse_forward.5} parent=1 // pred_region
      %s2804 = ssub.s32 1024, 1024
      %2805 = vsyncadd [#allocation9], %s2804
      %s2806 = sshll.u32 [#allocation21], 4
      %s2807 = int_to_ptr.vmem [resolvable:$true] %s2806
      %2812 = dma.vmem_to_hbm [thread:$0]  %s2807, 1024, %s8, [#allocation9], 128, 128, 8
    $region76: #{sse_forward.5} parent=1 // pred_fallthru
      _
    // Predicated region
    $region77: #{sse_forward.5} parent=1 // pred_check
      _
    $region78: #{sse_forward.5} parent=1 // pred_check_branch
      %2814 = sbr.rel (0) target = $region80
    $region79: #{sse_forward.5} parent=1 // pred_region
      %2815 = dma.done [#allocation9], 1024
    $region80: #{sse_forward.5} parent=1 // pred_fallthru
      _
    %2816 = vsyncpa [#allocation8], 1
    %2817 = vsyncpa [#allocation11], 1
    %2818 = vsyncpa [#allocation14], 1
    %2819 = vsyncpa [#allocation17], 1
    %2820 = vsyncpa [#allocation20], 1
    %2821 = vsyncpa [#allocation9], 1

// kernel: sse_forward.6
$region0: #{sse_forward.6}
  #allocation0 [shape = 'u32[]', space=smem, size = 0x4, offset = 0x4, fixed_abs, tag = 'smem constant byte address 0x4 - core index']
  #allocation1 [shape = 'u32[144,128]{1,0:T(1,128)}', space=vmem, size = 0x12000, scoped, tag = 'internal scratch']
  #allocation2 [shape = 'f32[64,1024]{1,0:T(8,128)}', space=vmem, size = 0x40000, scoped, tag = 'scratch operand']
  #allocation3 [shape = 'f32[8,128]{1,0:T(8,128)}', space=vmem, size = 0x1000, scoped, tag = 'scratch operand']
  #allocation4 [shape = 'f32[8,128]{1,0:T(8,128)}', space=vmem, size = 0x1000, scoped, tag = 'scratch operand']
  #allocation5 [shape = 'f32[8,128]{1,0:T(8,128)}', space=vmem, size = 0x1000, scoped, tag = 'scratch operand']
  #allocation6 [shape = 'f32[8,128]{1,0:T(8,128)}', space=vmem, size = 0x1000, scoped, tag = 'scratch operand']
  %s0 = inlined_call_operand.hbm [shape: bf16[64,128], index: 0, kind: input, shape index: {}]
  %s1 = inlined_call_operand.hbm [shape: bf16[64,256], index: 1, kind: input, shape index: {}]
  %s2 = inlined_call_operand.hbm [shape: bf16[64,256], index: 2, kind: input, shape index: {}]
  %s3 = inlined_call_operand.hbm [shape: f32[8,8,1], index: 3, kind: input, shape index: {}]
  %s4 = inlined_call_operand.hbm [shape: bf16[128,1024], index: 4, kind: input, shape index: {}]
  %s5 = inlined_call_operand.hbm [shape: bf16[256,1024], index: 5, kind: input, shape index: {}]
  %s6 = inlined_call_operand.hbm [shape: bf16[256,1024], index: 6, kind: input, shape index: {}]
  %s7 = inlined_call_operand.hbm [shape: bf16[128,512], index: 7, kind: input, shape index: {}]
  %s8 = inlined_call_operand.hbm [shape: bf16[128,512], index: 8, kind: input, shape index: {}]
  %s9 = inlined_call_operand.hbm [shape: f32[1,1024], index: 9, kind: input, shape index: {}]
  %s10 = inlined_call_operand.hbm [shape: bf16[8,8,256], index: 10, kind: output, shape index: {}]
  %s11 = sld [smem:[#allocation0]]
  $region97: #{sse_forward.6} parent=0
    _
  %s13 = ssub.s32 1, %s11
  %s14 = scalar_select 0, %s13, %s11
  $region1: #{sse_forward.6} parent=0
    #allocation7 [shape = 'u8[16384]{0}', space=vmem, size = 0x4000, scoped, tag = 'input window, operand 0, single buffered']
    #allocation8 [shape = 's32[1]{0}', space=sflag, size = 0x4, scoped, tag = 'scoped memory for sse_forward.6']
    #allocation9 [shape = 's32[1]{0}', space=sflag, size = 0x4, scoped, tag = 'scoped memory for sse_forward.6']
    #allocation10 [shape = 'u8[32768]{0}', space=vmem, size = 0x8000, scoped, tag = 'input window, operand 1, single buffered']
    #allocation11 [shape = 's32[1]{0}', space=sflag, size = 0x4, scoped, tag = 'scoped memory for sse_forward.6']
    #allocation12 [shape = 'u8[32768]{0}', space=vmem, size = 0x8000, scoped, tag = 'input window, operand 2, single buffered']
    #allocation13 [shape = 'u8[32768]{0}', space=vmem, size = 0x8000, scoped, tag = 'input window, operand 3, single buffered']
    #allocation14 [shape = 's32[1]{0}', space=sflag, size = 0x4, scoped, tag = 'scoped memory for sse_forward.6']
    #allocation15 [shape = 'u8[262144]{0}', space=vmem, size = 0x40000, scoped, tag = 'input window, operand 4, single buffered']
    #allocation16 [shape = 'u8[524288]{0}', space=vmem, size = 0x80000, scoped, tag = 'input window, operand 5, single buffered']
    #allocation17 [shape = 's32[1]{0}', space=sflag, size = 0x4, scoped, tag = 'scoped memory for sse_forward.6']
    #allocation18 [shape = 'u8[524288]{0}', space=vmem, size = 0x80000, scoped, tag = 'input window, operand 6, single buffered']
    #allocation19 [shape = 'u8[131072]{0}', space=vmem, size = 0x20000, scoped, tag = 'input window, operand 7, single buffered']
    #allocation20 [shape = 's32[1]{0}', space=sflag, size = 0x4, scoped, tag = 'scoped memory for sse_forward.6']
    #allocation21 [shape = 'u8[131072]{0}', space=vmem, size = 0x20000, scoped, tag = 'input window, operand 8, single buffered']
    #allocation22 [shape = 'u8[4096]{0}', space=vmem, size = 0x1000, scoped, tag = 'input window, operand 9, single buffered']
    #allocation23 [shape = 's32[1]{0}', space=sflag, size = 0x4, scoped, tag = 'scoped memory for sse_forward.6']
    #allocation24 [shape = 'u8[32768]{0}', space=vmem, size = 0x8000, scoped, tag = 'output window, operand 0, single buffered']
    %15 = vsyncpa [#allocation8], 0
    %16 = vsyncpa [#allocation11], 0
    %17 = vsyncpa [#allocation14], 0
    %18 = vsyncpa [#allocation17], 0
    %19 = vsyncpa [#allocation20], 0
    %20 = vsyncpa [#allocation23], 0
    %21 = vsyncpa [#allocation9], 0
    // Predicated region
    $region2: #{sse_forward.6} parent=1 // pred_check
      _
    $region3: #{sse_forward.6} parent=1 // pred_check_branch
      %23 = sbr.rel (0) target = $region5
    $region4: #{sse_forward.6} parent=1 // pred_region
      %s25 = ssub.s32 512, 512
      %26 = vsyncadd [#allocation8], %s25
      %s27 = sshll.u32 [#allocation7], 4
      %s28 = int_to_ptr.vmem [resolvable:$true] %s27
      %33 = dma.hbm_to_vmem [thread:$0]  %s0, 512, %s28, [#allocation8], 64, 64, 4
    $region5: #{sse_forward.6} parent=1 // pred_fallthru
      _
    // Predicated region
    $region6: #{sse_forward.6} parent=1 // pred_check
      _
    $region7: #{sse_forward.6} parent=1 // pred_check_branch
      %35 = sbr.rel (0) target = $region9
    $region8: #{sse_forward.6} parent=1 // pred_region
      %s37 = ssub.s32 1024, 1024
      %38 = vsyncadd [#allocation11], %s37
      %s39 = sshll.u32 [#allocation10], 4
      %s40 = int_to_ptr.vmem [resolvable:$true] %s39
      %45 = dma.hbm_to_vmem [thread:$0]  %s1, 1024, %s40, [#allocation11], 128, 128, 8
    $region9: #{sse_forward.6} parent=1 // pred_fallthru
      _
    // Predicated region
    $region10: #{sse_forward.6} parent=1 // pred_check
      _
    $region11: #{sse_forward.6} parent=1 // pred_check_branch
      %47 = sbr.rel (0) target = $region13
    $region12: #{sse_forward.6} parent=1 // pred_region
      %s49 = ssub.s32 1024, 1024
      %50 = vsyncadd [#allocation11], %s49
      %s51 = sshll.u32 [#allocation12], 4
      %s52 = int_to_ptr.vmem [resolvable:$true] %s51
      %57 = dma.hbm_to_vmem [thread:$0]  %s2, 1024, %s52, [#allocation11], 128, 128, 8
    $region13: #{sse_forward.6} parent=1 // pred_fallthru
      _
    // Predicated region
    $region14: #{sse_forward.6} parent=1 // pred_check
      _
    $region15: #{sse_forward.6} parent=1 // pred_check_branch
      %59 = sbr.rel (0) target = $region17
    $region16: #{sse_forward.6} parent=1 // pred_region
      %s61 = ssub.s32 1024, 1024
      %62 = vsyncadd [#allocation14], %s61
      %s63 = sshll.u32 [#allocation13], 4
      %s64 = int_to_ptr.vmem [resolvable:$true] %s63
      %69 = dma.hbm_to_vmem [thread:$0]  %s3, 1024, %s64, [#allocation14], 128, 128, 8
    $region17: #{sse_forward.6} parent=1 // pred_fallthru
      _
    // Predicated region
    $region18: #{sse_forward.6} parent=1 // pred_check
      _
    $region19: #{sse_forward.6} parent=1 // pred_check_branch
      %71 = sbr.rel (0) target = $region21
    $region20: #{sse_forward.6} parent=1 // pred_region
      %s73 = ssub.s32 8192, 8192
      %74 = vsyncadd [#allocation14], %s73
      %s75 = sshll.u32 [#allocation15], 4
      %s76 = int_to_ptr.vmem [resolvable:$true] %s75
      %81 = dma.hbm_to_vmem [thread:$0]  %s4, 8192, %s76, [#allocation14], 512, 512, 32
    $region21: #{sse_forward.6} parent=1 // pred_fallthru
      _
    // Predicated region
    $region22: #{sse_forward.6} parent=1 // pred_check
      _
    $region23: #{sse_forward.6} parent=1 // pred_check_branch
      %83 = sbr.rel (0) target = $region25
    $region24: #{sse_forward.6} parent=1 // pred_region
      %s85 = ssub.s32 16384, 16384
      %86 = vsyncadd [#allocation17], %s85
      %s87 = sshll.u32 [#allocation16], 4
      %s88 = int_to_ptr.vmem [resolvable:$true] %s87
      %93 = dma.hbm_to_vmem [thread:$0]  %s5, 16384, %s88, [#allocation17], 512, 512, 32
    $region25: #{sse_forward.6} parent=1 // pred_fallthru
      _
    // Predicated region
    $region26: #{sse_forward.6} parent=1 // pred_check
      _
    $region27: #{sse_forward.6} parent=1 // pred_check_branch
      %95 = sbr.rel (0) target = $region29
    $region28: #{sse_forward.6} parent=1 // pred_region
      %s97 = ssub.s32 16384, 16384
      %98 = vsyncadd [#allocation17], %s97
      %s99 = sshll.u32 [#allocation18], 4
      %s100 = int_to_ptr.vmem [resolvable:$true] %s99
      %105 = dma.hbm_to_vmem [thread:$0]  %s6, 16384, %s100, [#allocation17], 512, 512, 32
    $region29: #{sse_forward.6} parent=1 // pred_fallthru
      _
    // Predicated region
    $region30: #{sse_forward.6} parent=1 // pred_check
      _
    $region31: #{sse_forward.6} parent=1 // pred_check_branch
      %107 = sbr.rel (0) target = $region33
    $region32: #{sse_forward.6} parent=1 // pred_region
      %s109 = ssub.s32 4096, 4096
      %110 = vsyncadd [#allocation20], %s109
      %s111 = sshll.u32 [#allocation19], 4
      %s112 = int_to_ptr.vmem [resolvable:$true] %s111
      %117 = dma.hbm_to_vmem [thread:$0]  %s7, 4096, %s112, [#allocation20], 256, 256, 16
    $region33: #{sse_forward.6} parent=1 // pred_fallthru
      _
    // Predicated region
    $region34: #{sse_forward.6} parent=1 // pred_check
      _
    $region35: #{sse_forward.6} parent=1 // pred_check_branch
      %119 = sbr.rel (0) target = $region37
    $region36: #{sse_forward.6} parent=1 // pred_region
      %s121 = ssub.s32 4096, 4096
      %122 = vsyncadd [#allocation20], %s121
      %s123 = sshll.u32 [#allocation21], 4
      %s124 = int_to_ptr.vmem [resolvable:$true] %s123
      %129 = dma.hbm_to_vmem [thread:$0]  %s8, 4096, %s124, [#allocation20], 256, 256, 16
    $region37: #{sse_forward.6} parent=1 // pred_fallthru
      _
    // Predicated region
    $region38: #{sse_forward.6} parent=1 // pred_check
      _
    $region39: #{sse_forward.6} parent=1 // pred_check_branch
      %131 = sbr.rel (0) target = $region41
    $region40: #{sse_forward.6} parent=1 // pred_region
      %s133 = ssub.s32 128, 128
      %134 = vsyncadd [#allocation23], %s133
      %s136 = sshll.u32 [#allocation22], 4
      %s137 = int_to_ptr.vmem [resolvable:$true] %s136
      %139 = dma.hbm_to_vmem [thread:$0]  %s9, 128, %s137, [#allocation23]
    $region41: #{sse_forward.6} parent=1 // pred_fallthru
      _
    // Predicated region
    $region42: #{sse_forward.6} parent=1 // pred_check
      _
    $region43: #{sse_forward.6} parent=1 // pred_check_branch
      %141 = sbr.rel (0) target = $region45
    $region44: #{sse_forward.6} parent=1 // pred_region
      %142 = dma.done [#allocation8], 512
    $region45: #{sse_forward.6} parent=1 // pred_fallthru
      _
    // Predicated region
    $region46: #{sse_forward.6} parent=1 // pred_check
      _
    $region47: #{sse_forward.6} parent=1 // pred_check_branch
      %144 = sbr.rel (0) target = $region49
    $region48: #{sse_forward.6} parent=1 // pred_region
      %145 = dma.done [#allocation11], 1024
    $region49: #{sse_forward.6} parent=1 // pred_fallthru
      _
    // Predicated region
    $region50: #{sse_forward.6} parent=1 // pred_check
      _
    $region51: #{sse_forward.6} parent=1 // pred_check_branch
      %147 = sbr.rel (0) target = $region53
    $region52: #{sse_forward.6} parent=1 // pred_region
      %148 = dma.done [#allocation11], 1024
    $region53: #{sse_forward.6} parent=1 // pred_fallthru
      _
    // Predicated region
    $region54: #{sse_forward.6} parent=1 // pred_check
      _
    $region55: #{sse_forward.6} parent=1 // pred_check_branch
      %150 = sbr.rel (0) target = $region57
    $region56: #{sse_forward.6} parent=1 // pred_region
      %151 = dma.done [#allocation14], 1024
    $region57: #{sse_forward.6} parent=1 // pred_fallthru
      _
    // Predicated region
    $region58: #{sse_forward.6} parent=1 // pred_check
      _
    $region59: #{sse_forward.6} parent=1 // pred_check_branch
      %153 = sbr.rel (0) target = $region61
    $region60: #{sse_forward.6} parent=1 // pred_region
      %154 = dma.done [#allocation14], 8192
    $region61: #{sse_forward.6} parent=1 // pred_fallthru
      _
    // Predicated region
    $region62: #{sse_forward.6} parent=1 // pred_check
      _
    $region63: #{sse_forward.6} parent=1 // pred_check_branch
      %156 = sbr.rel (0) target = $region65
    $region64: #{sse_forward.6} parent=1 // pred_region
      %157 = dma.done [#allocation17], 16384
    $region65: #{sse_forward.6} parent=1 // pred_fallthru
      _
    // Predicated region
    $region66: #{sse_forward.6} parent=1 // pred_check
      _
    $region67: #{sse_forward.6} parent=1 // pred_check_branch
      %159 = sbr.rel (0) target = $region69
    $region68: #{sse_forward.6} parent=1 // pred_region
      %160 = dma.done [#allocation17], 16384
    $region69: #{sse_forward.6} parent=1 // pred_fallthru
      _
    // Predicated region
    $region70: #{sse_forward.6} parent=1 // pred_check
      _
    $region71: #{sse_forward.6} parent=1 // pred_check_branch
      %162 = sbr.rel (0) target = $region73
    $region72: #{sse_forward.6} parent=1 // pred_region
      %163 = dma.done [#allocation20], 4096
    $region73: #{sse_forward.6} parent=1 // pred_fallthru
      _
    // Predicated region
    $region74: #{sse_forward.6} parent=1 // pred_check
      _
    $region75: #{sse_forward.6} parent=1 // pred_check_branch
      %165 = sbr.rel (0) target = $region77
    $region76: #{sse_forward.6} parent=1 // pred_region
      %166 = dma.done [#allocation20], 4096
    $region77: #{sse_forward.6} parent=1 // pred_fallthru
      _
    // Predicated region
    $region78: #{sse_forward.6} parent=1 // pred_check
      _
    $region79: #{sse_forward.6} parent=1 // pred_check_branch
      %168 = sbr.rel (0) target = $region81
    $region80: #{sse_forward.6} parent=1 // pred_region
      %169 = dma.done [#allocation23], 128
    $region81: #{sse_forward.6} parent=1 // pred_fallthru
      _
    %v171 = vld [vmem:[#allocation7] sm:$0xf]
    %v172 = vld [vmem:[#allocation7 + $0x4] sm:$0xf]
    %v173 = vld [vmem:[#allocation7 + $0x8] sm:$0xf]
    %v174 = vld [vmem:[#allocation7 + $0xc] sm:$0xf]
    %v175 = vld [vmem:[#allocation7 + $0x10] sm:$0xf]
    %v176 = vld [vmem:[#allocation7 + $0x14] sm:$0xf]
    %v177 = vld [vmem:[#allocation7 + $0x18] sm:$0xf]
    %v178 = vld [vmem:[#allocation7 + $0x1c] sm:$0xf]
    %v179 = vld [vmem:[#allocation15] sm:$0xff]
    %v180 = vld [vmem:[#allocation15 + $0x8] sm:$0xff]
    %v181 = vld [vmem:[#allocation15 + $0x10] sm:$0xff]
    %v182 = vld [vmem:[#allocation15 + $0x18] sm:$0xff]
    %v183 = vld [vmem:[#allocation15 + $0x20] sm:$0xff]
    %v184 = vld [vmem:[#allocation15 + $0x28] sm:$0xff]
    %v185 = vld [vmem:[#allocation15 + $0x30] sm:$0xff]
    %v186 = vld [vmem:[#allocation15 + $0x38] sm:$0xff]
    %v187 = vld [vmem:[#allocation15 + $0x40] sm:$0xff]
    %v188 = vld [vmem:[#allocation15 + $0x48] sm:$0xff]
    %v189 = vld [vmem:[#allocation15 + $0x50] sm:$0xff]
    %v190 = vld [vmem:[#allocation15 + $0x58] sm:$0xff]
    %v191 = vld [vmem:[#allocation15 + $0x60] sm:$0xff]
    %v192 = vld [vmem:[#allocation15 + $0x68] sm:$0xff]
    %v193 = vld [vmem:[#allocation15 + $0x70] sm:$0xff]
    %v194 = vld [vmem:[#allocation15 + $0x78] sm:$0xff]
    %v195 = vld [vmem:[#allocation15 + $0x80] sm:$0xff]
    %v196 = vld [vmem:[#allocation15 + $0x88] sm:$0xff]
    %v197 = vld [vmem:[#allocation15 + $0x90] sm:$0xff]
    %v198 = vld [vmem:[#allocation15 + $0x98] sm:$0xff]
    %v199 = vld [vmem:[#allocation15 + $0xa0] sm:$0xff]
    %v200 = vld [vmem:[#allocation15 + $0xa8] sm:$0xff]
    %v201 = vld [vmem:[#allocation15 + $0xb0] sm:$0xff]
    %v202 = vld [vmem:[#allocation15 + $0xb8] sm:$0xff]
    %v203 = vld [vmem:[#allocation15 + $0xc0] sm:$0xff]
    %v204 = vld [vmem:[#allocation15 + $0xc8] sm:$0xff]
    %v205 = vld [vmem:[#allocation15 + $0xd0] sm:$0xff]
    %v206 = vld [vmem:[#allocation15 + $0xd8] sm:$0xff]
    %v207 = vld [vmem:[#allocation15 + $0xe0] sm:$0xff]
    %v208 = vld [vmem:[#allocation15 + $0xe8] sm:$0xff]
    %v209 = vld [vmem:[#allocation15 + $0xf0] sm:$0xff]
    %v210 = vld [vmem:[#allocation15 + $0xf8] sm:$0xff]
    %v211 = vld [vmem:[#allocation15 + $0x100] sm:$0xff]
    %v212 = vld [vmem:[#allocation15 + $0x108] sm:$0xff]
    %v213 = vld [vmem:[#allocation15 + $0x110] sm:$0xff]
    %v214 = vld [vmem:[#allocation15 + $0x118] sm:$0xff]
    %v215 = vld [vmem:[#allocation15 + $0x120] sm:$0xff]
    %v216 = vld [vmem:[#allocation15 + $0x128] sm:$0xff]
    %v217 = vld [vmem:[#allocation15 + $0x130] sm:$0xff]
    %v218 = vld [vmem:[#allocation15 + $0x138] sm:$0xff]
    %v219 = vld [vmem:[#allocation15 + $0x140] sm:$0xff]
    %v220 = vld [vmem:[#allocation15 + $0x148] sm:$0xff]
    %v221 = vld [vmem:[#allocation15 + $0x150] sm:$0xff]
    %v222 = vld [vmem:[#allocation15 + $0x158] sm:$0xff]
    %v223 = vld [vmem:[#allocation15 + $0x160] sm:$0xff]
    %v224 = vld [vmem:[#allocation15 + $0x168] sm:$0xff]
    %v225 = vld [vmem:[#allocation15 + $0x170] sm:$0xff]
    %v226 = vld [vmem:[#allocation15 + $0x178] sm:$0xff]
    %v227 = vld [vmem:[#allocation15 + $0x180] sm:$0xff]
    %v228 = vld [vmem:[#allocation15 + $0x188] sm:$0xff]
    %v229 = vld [vmem:[#allocation15 + $0x190] sm:$0xff]
    %v230 = vld [vmem:[#allocation15 + $0x198] sm:$0xff]
    %v231 = vld [vmem:[#allocation15 + $0x1a0] sm:$0xff]
    %v232 = vld [vmem:[#allocation15 + $0x1a8] sm:$0xff]
    %v233 = vld [vmem:[#allocation15 + $0x1b0] sm:$0xff]
    %v234 = vld [vmem:[#allocation15 + $0x1b8] sm:$0xff]
    %v235 = vld [vmem:[#allocation15 + $0x1c0] sm:$0xff]
    %v236 = vld [vmem:[#allocation15 + $0x1c8] sm:$0xff]
    %v237 = vld [vmem:[#allocation15 + $0x1d0] sm:$0xff]
    %v238 = vld [vmem:[#allocation15 + $0x1d8] sm:$0xff]
    %v239 = vld [vmem:[#allocation15 + $0x1e0] sm:$0xff]
    %v240 = vld [vmem:[#allocation15 + $0x1e8] sm:$0xff]
    %v241 = vld [vmem:[#allocation15 + $0x1f0] sm:$0xff]
    %v242 = vld [vmem:[#allocation15 + $0x1f8] sm:$0xff]
    %v243 = vld [vmem:[#allocation10] sm:$0xff]
    %v244 = vld [vmem:[#allocation10 + $0x8] sm:$0xff]
    %v245 = vld [vmem:[#allocation10 + $0x10] sm:$0xff]
    %v246 = vld [vmem:[#allocation10 + $0x18] sm:$0xff]
    %v247 = vld [vmem:[#allocation10 + $0x20] sm:$0xff]
    %v248 = vld [vmem:[#allocation10 + $0x28] sm:$0xff]
    %v249 = vld [vmem:[#allocation10 + $0x30] sm:$0xff]
    %v250 = vld [vmem:[#allocation10 + $0x38] sm:$0xff]
    %v251 = vld [vmem:[#allocation16] sm:$0xff]
    %v252 = vld [vmem:[#allocation16 + $0x8] sm:$0xff]
    %v253 = vld [vmem:[#allocation16 + $0x10] sm:$0xff]
    %v254 = vld [vmem:[#allocation16 + $0x18] sm:$0xff]
    %v255 = vld [vmem:[#allocation16 + $0x20] sm:$0xff]
    %v256 = vld [vmem:[#allocation16 + $0x28] sm:$0xff]
    %v257 = vld [vmem:[#allocation16 + $0x30] sm:$0xff]
    %v258 = vld [vmem:[#allocation16 + $0x38] sm:$0xff]
    %v259 = vld [vmem:[#allocation16 + $0x40] sm:$0xff]
    %v260 = vld [vmem:[#allocation16 + $0x48] sm:$0xff]
    %v261 = vld [vmem:[#allocation16 + $0x50] sm:$0xff]
    %v262 = vld [vmem:[#allocation16 + $0x58] sm:$0xff]
    %v263 = vld [vmem:[#allocation16 + $0x60] sm:$0xff]
    %v264 = vld [vmem:[#allocation16 + $0x68] sm:$0xff]
    %v265 = vld [vmem:[#allocation16 + $0x70] sm:$0xff]
    %v266 = vld [vmem:[#allocation16 + $0x78] sm:$0xff]
    %v267 = vld [vmem:[#allocation16 + $0x80] sm:$0xff]
    %v268 = vld [vmem:[#allocation16 + $0x88] sm:$0xff]
    %v269 = vld [vmem:[#allocation16 + $0x90] sm:$0xff]
    %v270 = vld [vmem:[#allocation16 + $0x98] sm:$0xff]
    %v271 = vld [vmem:[#allocation16 + $0xa0] sm:$0xff]
    %v272 = vld [vmem:[#allocation16 + $0xa8] sm:$0xff]
    %v273 = vld [vmem:[#allocation16 + $0xb0] sm:$0xff]
    %v274 = vld [vmem:[#allocation16 + $0xb8] sm:$0xff]
    %v275 = vld [vmem:[#allocation16 + $0xc0] sm:$0xff]
    %v276 = vld [vmem:[#allocation16 + $0xc8] sm:$0xff]
    %v277 = vld [vmem:[#allocation16 + $0xd0] sm:$0xff]
    %v278 = vld [vmem:[#allocation16 + $0xd8] sm:$0xff]
    %v279 = vld [vmem:[#allocation16 + $0xe0] sm:$0xff]
    %v280 = vld [vmem:[#allocation16 + $0xe8] sm:$0xff]
    %v281 = vld [vmem:[#allocation16 + $0xf0] sm:$0xff]
    %v282 = vld [vmem:[#allocation16 + $0xf8] sm:$0xff]
    %v283 = vld [vmem:[#allocation16 + $0x100] sm:$0xff]
    %v284 = vld [vmem:[#allocation16 + $0x108] sm:$0xff]
    %v285 = vld [vmem:[#allocation16 + $0x110] sm:$0xff]
    %v286 = vld [vmem:[#allocation16 + $0x118] sm:$0xff]
    %v287 = vld [vmem:[#allocation16 + $0x120] sm:$0xff]
    %v288 = vld [vmem:[#allocation16 + $0x128] sm:$0xff]
    %v289 = vld [vmem:[#allocation16 + $0x130] sm:$0xff]
    %v290 = vld [vmem:[#allocation16 + $0x138] sm:$0xff]
    %v291 = vld [vmem:[#allocation16 + $0x140] sm:$0xff]
    %v292 = vld [vmem:[#allocation16 + $0x148] sm:$0xff]
    %v293 = vld [vmem:[#allocation16 + $0x150] sm:$0xff]
    %v294 = vld [vmem:[#allocation16 + $0x158] sm:$0xff]
    %v295 = vld [vmem:[#allocation16 + $0x160] sm:$0xff]
    %v296 = vld [vmem:[#allocation16 + $0x168] sm:$0xff]
    %v297 = vld [vmem:[#allocation16 + $0x170] sm:$0xff]
    %v298 = vld [vmem:[#allocation16 + $0x178] sm:$0xff]
    %v299 = vld [vmem:[#allocation16 + $0x180] sm:$0xff]
    %v300 = vld [vmem:[#allocation16 + $0x188] sm:$0xff]
    %v301 = vld [vmem:[#allocation16 + $0x190] sm:$0xff]
    %v302 = vld [vmem:[#allocation16 + $0x198] sm:$0xff]
    %v303 = vld [vmem:[#allocation16 + $0x1a0] sm:$0xff]
    %v304 = vld [vmem:[#allocation16 + $0x1a8] sm:$0xff]
    %v305 = vld [vmem:[#allocation16 + $0x1b0] sm:$0xff]
    %v306 = vld [vmem:[#allocation16 + $0x1b8] sm:$0xff]
    %v307 = vld [vmem:[#allocation16 + $0x1c0] sm:$0xff]
    %v308 = vld [vmem:[#allocation16 + $0x1c8] sm:$0xff]
    %v309 = vld [vmem:[#allocation16 + $0x1d0] sm:$0xff]
    %v310 = vld [vmem:[#allocation16 + $0x1d8] sm:$0xff]
    %v311 = vld [vmem:[#allocation16 + $0x1e0] sm:$0xff]
    %v312 = vld [vmem:[#allocation16 + $0x1e8] sm:$0xff]
    %v313 = vld [vmem:[#allocation16 + $0x1f0] sm:$0xff]
    %v314 = vld [vmem:[#allocation16 + $0x1f8] sm:$0xff]
    %v315 = vld [vmem:[#allocation16 + $0x200] sm:$0xff]
    %v316 = vld [vmem:[#allocation16 + $0x208] sm:$0xff]
    %v317 = vld [vmem:[#allocation16 + $0x210] sm:$0xff]
    %v318 = vld [vmem:[#allocation16 + $0x218] sm:$0xff]
    %v319 = vld [vmem:[#allocation16 + $0x220] sm:$0xff]
    %v320 = vld [vmem:[#allocation16 + $0x228] sm:$0xff]
    %v321 = vld [vmem:[#allocation16 + $0x230] sm:$0xff]
    %v322 = vld [vmem:[#allocation16 + $0x238] sm:$0xff]
    %v323 = vld [vmem:[#allocation16 + $0x240] sm:$0xff]
    %v324 = vld [vmem:[#allocation16 + $0x248] sm:$0xff]
    %v325 = vld [vmem:[#allocation16 + $0x250] sm:$0xff]
    %v326 = vld [vmem:[#allocation16 + $0x258] sm:$0xff]
    %v327 = vld [vmem:[#allocation16 + $0x260] sm:$0xff]
    %v328 = vld [vmem:[#allocation16 + $0x268] sm:$0xff]
    %v329 = vld [vmem:[#allocation16 + $0x270] sm:$0xff]
    %v330 = vld [vmem:[#allocation16 + $0x278] sm:$0xff]
    %v331 = vld [vmem:[#allocation16 + $0x280] sm:$0xff]
    %v332 = vld [vmem:[#allocation16 + $0x288] sm:$0xff]
    %v333 = vld [vmem:[#allocation16 + $0x290] sm:$0xff]
    %v334 = vld [vmem:[#allocation16 + $0x298] sm:$0xff]
    %v335 = vld [vmem:[#allocation16 + $0x2a0] sm:$0xff]
    %v336 = vld [vmem:[#allocation16 + $0x2a8] sm:$0xff]
    %v337 = vld [vmem:[#allocation16 + $0x2b0] sm:$0xff]
    %v338 = vld [vmem:[#allocation16 + $0x2b8] sm:$0xff]
    %v339 = vld [vmem:[#allocation16 + $0x2c0] sm:$0xff]
    %v340 = vld [vmem:[#allocation16 + $0x2c8] sm:$0xff]
    %v341 = vld [vmem:[#allocation16 + $0x2d0] sm:$0xff]
    %v342 = vld [vmem:[#allocation16 + $0x2d8] sm:$0xff]
    %v343 = vld [vmem:[#allocation16 + $0x2e0] sm:$0xff]
    %v344 = vld [vmem:[#allocation16 + $0x2e8] sm:$0xff]
    %v345 = vld [vmem:[#allocation16 + $0x2f0] sm:$0xff]
    %v346 = vld [vmem:[#allocation16 + $0x2f8] sm:$0xff]
    %v347 = vld [vmem:[#allocation16 + $0x300] sm:$0xff]
    %v348 = vld [vmem:[#allocation16 + $0x308] sm:$0xff]
    %v349 = vld [vmem:[#allocation16 + $0x310] sm:$0xff]
    %v350 = vld [vmem:[#allocation16 + $0x318] sm:$0xff]
    %v351 = vld [vmem:[#allocation16 + $0x320] sm:$0xff]
    %v352 = vld [vmem:[#allocation16 + $0x328] sm:$0xff]
    %v353 = vld [vmem:[#allocation16 + $0x330] sm:$0xff]
    %v354 = vld [vmem:[#allocation16 + $0x338] sm:$0xff]
    %v355 = vld [vmem:[#allocation16 + $0x340] sm:$0xff]
    %v356 = vld [vmem:[#allocation16 + $0x348] sm:$0xff]
    %v357 = vld [vmem:[#allocation16 + $0x350] sm:$0xff]
    %v358 = vld [vmem:[#allocation16 + $0x358] sm:$0xff]
    %v359 = vld [vmem:[#allocation16 + $0x360] sm:$0xff]
    %v360 = vld [vmem:[#allocation16 + $0x368] sm:$0xff]
    %v361 = vld [vmem:[#allocation16 + $0x370] sm:$0xff]
    %v362 = vld [vmem:[#allocation16 + $0x378] sm:$0xff]
    %v363 = vld [vmem:[#allocation16 + $0x380] sm:$0xff]
    %v364 = vld [vmem:[#allocation16 + $0x388] sm:$0xff]
    %v365 = vld [vmem:[#allocation16 + $0x390] sm:$0xff]
    %v366 = vld [vmem:[#allocation16 + $0x398] sm:$0xff]
    %v367 = vld [vmem:[#allocation16 + $0x3a0] sm:$0xff]
    %v368 = vld [vmem:[#allocation16 + $0x3a8] sm:$0xff]
    %v369 = vld [vmem:[#allocation16 + $0x3b0] sm:$0xff]
    %v370 = vld [vmem:[#allocation16 + $0x3b8] sm:$0xff]
    %v371 = vld [vmem:[#allocation16 + $0x3c0] sm:$0xff]
    %v372 = vld [vmem:[#allocation16 + $0x3c8] sm:$0xff]
    %v373 = vld [vmem:[#allocation16 + $0x3d0] sm:$0xff]
    %v374 = vld [vmem:[#allocation16 + $0x3d8] sm:$0xff]
    %v375 = vld [vmem:[#allocation16 + $0x3e0] sm:$0xff]
    %v376 = vld [vmem:[#allocation16 + $0x3e8] sm:$0xff]
    %v377 = vld [vmem:[#allocation16 + $0x3f0] sm:$0xff]
    %v378 = vld [vmem:[#allocation16 + $0x3f8] sm:$0xff]
    %v387 = vunpack.c.l.b16 %v243
    %v388 = vunpack.c.h.b16 %v243
    %v389 = vunpack.c.l.b16 %v244
    %v390 = vunpack.c.h.b16 %v244
    %v391 = vunpack.c.l.b16 %v245
    %v392 = vunpack.c.h.b16 %v245
    %v393 = vunpack.c.l.b16 %v246
    %v394 = vunpack.c.h.b16 %v246
    %v395 = vunpack.c.l.b16 %v247
    %v396 = vunpack.c.h.b16 %v247
    %v397 = vunpack.c.l.b16 %v248
    %v398 = vunpack.c.h.b16 %v248
    %v399 = vunpack.c.l.b16 %v249
    %v400 = vunpack.c.h.b16 %v249
    %v401 = vunpack.c.l.b16 %v250
    %v402 = vunpack.c.h.b16 %v250
    %v403 = vpack.c.b16 %v389, %v387
    %v404 = vpack.c.b16 %v390, %v388
    %v405 = vpack.c.b16 %v393, %v391
    %v406 = vpack.c.b16 %v394, %v392
    %v407 = vpack.c.b16 %v397, %v395
    %v408 = vpack.c.b16 %v398, %v396
    %v409 = vpack.c.b16 %v401, %v399
    %v410 = vpack.c.b16 %v402, %v400
    %v547 = vunpack.c.l.b16 %v251
    %v548 = vunpack.c.h.b16 %v251
    %v549 = vunpack.c.l.b16 %v252
    %v550 = vunpack.c.h.b16 %v252
    %v551 = vunpack.c.l.b16 %v253
    %v552 = vunpack.c.h.b16 %v253
    %v553 = vunpack.c.l.b16 %v254
    %v554 = vunpack.c.h.b16 %v254
    %v555 = vunpack.c.l.b16 %v255
    %v556 = vunpack.c.h.b16 %v255
    %v557 = vunpack.c.l.b16 %v256
    %v558 = vunpack.c.h.b16 %v256
    %v559 = vunpack.c.l.b16 %v257
    %v560 = vunpack.c.h.b16 %v257
    %v561 = vunpack.c.l.b16 %v258
    %v562 = vunpack.c.h.b16 %v258
    %v563 = vunpack.c.l.b16 %v259
    %v564 = vunpack.c.h.b16 %v259
    %v565 = vunpack.c.l.b16 %v260
    %v566 = vunpack.c.h.b16 %v260
    %v567 = vunpack.c.l.b16 %v261
    %v568 = vunpack.c.h.b16 %v261
    %v569 = vunpack.c.l.b16 %v262
    %v570 = vunpack.c.h.b16 %v262
    %v571 = vunpack.c.l.b16 %v263
    %v572 = vunpack.c.h.b16 %v263
    %v573 = vunpack.c.l.b16 %v264
    %v574 = vunpack.c.h.b16 %v264
    %v575 = vunpack.c.l.b16 %v265
    %v576 = vunpack.c.h.b16 %v265
    %v577 = vunpack.c.l.b16 %v266
    %v578 = vunpack.c.h.b16 %v266
    %v579 = vunpack.c.l.b16 %v267
    %v580 = vunpack.c.h.b16 %v267
    %v581 = vunpack.c.l.b16 %v268
    %v582 = vunpack.c.h.b16 %v268
    %v583 = vunpack.c.l.b16 %v269
    %v584 = vunpack.c.h.b16 %v269
    %v585 = vunpack.c.l.b16 %v270
    %v586 = vunpack.c.h.b16 %v270
    %v587 = vunpack.c.l.b16 %v271
    %v588 = vunpack.c.h.b16 %v271
    %v589 = vunpack.c.l.b16 %v272
    %v590 = vunpack.c.h.b16 %v272
    %v591 = vunpack.c.l.b16 %v273
    %v592 = vunpack.c.h.b16 %v273
    %v593 = vunpack.c.l.b16 %v274
    %v594 = vunpack.c.h.b16 %v274
    %v595 = vunpack.c.l.b16 %v275
    %v596 = vunpack.c.h.b16 %v275
    %v597 = vunpack.c.l.b16 %v276
    %v598 = vunpack.c.h.b16 %v276
    %v599 = vunpack.c.l.b16 %v277
    %v600 = vunpack.c.h.b16 %v277
    %v601 = vunpack.c.l.b16 %v278
    %v602 = vunpack.c.h.b16 %v278
    %v603 = vunpack.c.l.b16 %v279
    %v604 = vunpack.c.h.b16 %v279
    %v605 = vunpack.c.l.b16 %v280
    %v606 = vunpack.c.h.b16 %v280
    %v607 = vunpack.c.l.b16 %v281
    %v608 = vunpack.c.h.b16 %v281
    %v609 = vunpack.c.l.b16 %v282
    %v610 = vunpack.c.h.b16 %v282
    %v611 = vunpack.c.l.b16 %v283
    %v612 = vunpack.c.h.b16 %v283
    %v613 = vunpack.c.l.b16 %v284
    %v614 = vunpack.c.h.b16 %v284
    %v615 = vunpack.c.l.b16 %v285
    %v616 = vunpack.c.h.b16 %v285
    %v617 = vunpack.c.l.b16 %v286
    %v618 = vunpack.c.h.b16 %v286
    %v619 = vunpack.c.l.b16 %v287
    %v620 = vunpack.c.h.b16 %v287
    %v621 = vunpack.c.l.b16 %v288
    %v622 = vunpack.c.h.b16 %v288
    %v623 = vunpack.c.l.b16 %v289
    %v624 = vunpack.c.h.b16 %v289
    %v625 = vunpack.c.l.b16 %v290
    %v626 = vunpack.c.h.b16 %v290
    %v627 = vunpack.c.l.b16 %v291
    %v628 = vunpack.c.h.b16 %v291
    %v629 = vunpack.c.l.b16 %v292
    %v630 = vunpack.c.h.b16 %v292
    %v631 = vunpack.c.l.b16 %v293
    %v632 = vunpack.c.h.b16 %v293
    %v633 = vunpack.c.l.b16 %v294
    %v634 = vunpack.c.h.b16 %v294
    %v635 = vunpack.c.l.b16 %v295
    %v636 = vunpack.c.h.b16 %v295
    %v637 = vunpack.c.l.b16 %v296
    %v638 = vunpack.c.h.b16 %v296
    %v639 = vunpack.c.l.b16 %v297
    %v640 = vunpack.c.h.b16 %v297
    %v641 = vunpack.c.l.b16 %v298
    %v642 = vunpack.c.h.b16 %v298
    %v643 = vunpack.c.l.b16 %v299
    %v644 = vunpack.c.h.b16 %v299
    %v645 = vunpack.c.l.b16 %v300
    %v646 = vunpack.c.h.b16 %v300
    %v647 = vunpack.c.l.b16 %v301
    %v648 = vunpack.c.h.b16 %v301
    %v649 = vunpack.c.l.b16 %v302
    %v650 = vunpack.c.h.b16 %v302
    %v651 = vunpack.c.l.b16 %v303
    %v652 = vunpack.c.h.b16 %v303
    %v653 = vunpack.c.l.b16 %v304
    %v654 = vunpack.c.h.b16 %v304
    %v655 = vunpack.c.l.b16 %v305
    %v656 = vunpack.c.h.b16 %v305
    %v657 = vunpack.c.l.b16 %v306
    %v658 = vunpack.c.h.b16 %v306
    %v659 = vunpack.c.l.b16 %v307
    %v660 = vunpack.c.h.b16 %v307
    %v661 = vunpack.c.l.b16 %v308
    %v662 = vunpack.c.h.b16 %v308
    %v663 = vunpack.c.l.b16 %v309
    %v664 = vunpack.c.h.b16 %v309
    %v665 = vunpack.c.l.b16 %v310
    %v666 = vunpack.c.h.b16 %v310
    %v667 = vunpack.c.l.b16 %v311
    %v668 = vunpack.c.h.b16 %v311
    %v669 = vunpack.c.l.b16 %v312
    %v670 = vunpack.c.h.b16 %v312
    %v671 = vunpack.c.l.b16 %v313
    %v672 = vunpack.c.h.b16 %v313
    %v673 = vunpack.c.l.b16 %v314
    %v674 = vunpack.c.h.b16 %v314
    %v675 = vunpack.c.l.b16 %v315
    %v676 = vunpack.c.h.b16 %v315
    %v677 = vunpack.c.l.b16 %v316
    %v678 = vunpack.c.h.b16 %v316
    %v679 = vunpack.c.l.b16 %v317
    %v680 = vunpack.c.h.b16 %v317
    %v681 = vunpack.c.l.b16 %v318
    %v682 = vunpack.c.h.b16 %v318
    %v683 = vunpack.c.l.b16 %v319
    %v684 = vunpack.c.h.b16 %v319
    %v685 = vunpack.c.l.b16 %v320
    %v686 = vunpack.c.h.b16 %v320
    %v687 = vunpack.c.l.b16 %v321
    %v688 = vunpack.c.h.b16 %v321
    %v689 = vunpack.c.l.b16 %v322
    %v690 = vunpack.c.h.b16 %v322
    %v691 = vunpack.c.l.b16 %v323
    %v692 = vunpack.c.h.b16 %v323
    %v693 = vunpack.c.l.b16 %v324
    %v694 = vunpack.c.h.b16 %v324
    %v695 = vunpack.c.l.b16 %v325
    %v696 = vunpack.c.h.b16 %v325
    %v697 = vunpack.c.l.b16 %v326
    %v698 = vunpack.c.h.b16 %v326
    %v699 = vunpack.c.l.b16 %v327
    %v700 = vunpack.c.h.b16 %v327
    %v701 = vunpack.c.l.b16 %v328
    %v702 = vunpack.c.h.b16 %v328
    %v703 = vunpack.c.l.b16 %v329
    %v704 = vunpack.c.h.b16 %v329
    %v705 = vunpack.c.l.b16 %v330
    %v706 = vunpack.c.h.b16 %v330
    %v707 = vunpack.c.l.b16 %v331
    %v708 = vunpack.c.h.b16 %v331
    %v709 = vunpack.c.l.b16 %v332
    %v710 = vunpack.c.h.b16 %v332
    %v711 = vunpack.c.l.b16 %v333
    %v712 = vunpack.c.h.b16 %v333
    %v713 = vunpack.c.l.b16 %v334
    %v714 = vunpack.c.h.b16 %v334
    %v715 = vunpack.c.l.b16 %v335
    %v716 = vunpack.c.h.b16 %v335
    %v717 = vunpack.c.l.b16 %v336
    %v718 = vunpack.c.h.b16 %v336
    %v719 = vunpack.c.l.b16 %v337
    %v720 = vunpack.c.h.b16 %v337
    %v721 = vunpack.c.l.b16 %v338
    %v722 = vunpack.c.h.b16 %v338
    %v723 = vunpack.c.l.b16 %v339
    %v724 = vunpack.c.h.b16 %v339
    %v725 = vunpack.c.l.b16 %v340
    %v726 = vunpack.c.h.b16 %v340
    %v727 = vunpack.c.l.b16 %v341
    %v728 = vunpack.c.h.b16 %v341
    %v729 = vunpack.c.l.b16 %v342
    %v730 = vunpack.c.h.b16 %v342
    %v731 = vunpack.c.l.b16 %v343
    %v732 = vunpack.c.h.b16 %v343
    %v733 = vunpack.c.l.b16 %v344
    %v734 = vunpack.c.h.b16 %v344
    %v735 = vunpack.c.l.b16 %v345
    %v736 = vunpack.c.h.b16 %v345
    %v737 = vunpack.c.l.b16 %v346
    %v738 = vunpack.c.h.b16 %v346
    %v739 = vunpack.c.l.b16 %v347
    %v740 = vunpack.c.h.b16 %v347
    %v741 = vunpack.c.l.b16 %v348
    %v742 = vunpack.c.h.b16 %v348
    %v743 = vunpack.c.l.b16 %v349
    %v744 = vunpack.c.h.b16 %v349
    %v745 = vunpack.c.l.b16 %v350
    %v746 = vunpack.c.h.b16 %v350
    %v747 = vunpack.c.l.b16 %v351
    %v748 = vunpack.c.h.b16 %v351
    %v749 = vunpack.c.l.b16 %v352
    %v750 = vunpack.c.h.b16 %v352
    %v751 = vunpack.c.l.b16 %v353
    %v752 = vunpack.c.h.b16 %v353
    %v753 = vunpack.c.l.b16 %v354
    %v754 = vunpack.c.h.b16 %v354
    %v755 = vunpack.c.l.b16 %v355
    %v756 = vunpack.c.h.b16 %v355
    %v757 = vunpack.c.l.b16 %v356
    %v758 = vunpack.c.h.b16 %v356
    %v759 = vunpack.c.l.b16 %v357
    %v760 = vunpack.c.h.b16 %v357
    %v761 = vunpack.c.l.b16 %v358
    %v762 = vunpack.c.h.b16 %v358
    %v763 = vunpack.c.l.b16 %v359
    %v764 = vunpack.c.h.b16 %v359
    %v765 = vunpack.c.l.b16 %v360
    %v766 = vunpack.c.h.b16 %v360
    %v767 = vunpack.c.l.b16 %v361
    %v768 = vunpack.c.h.b16 %v361
    %v769 = vunpack.c.l.b16 %v362
    %v770 = vunpack.c.h.b16 %v362
    %v771 = vunpack.c.l.b16 %v363
    %v772 = vunpack.c.h.b16 %v363
    %v773 = vunpack.c.l.b16 %v364
    %v774 = vunpack.c.h.b16 %v364
    %v775 = vunpack.c.l.b16 %v365
    %v776 = vunpack.c.h.b16 %v365
    %v777 = vunpack.c.l.b16 %v366
    %v778 = vunpack.c.h.b16 %v366
    %v779 = vunpack.c.l.b16 %v367
    %v780 = vunpack.c.h.b16 %v367
    %v781 = vunpack.c.l.b16 %v368
    %v782 = vunpack.c.h.b16 %v368
    %v783 = vunpack.c.l.b16 %v369
    %v784 = vunpack.c.h.b16 %v369
    %v785 = vunpack.c.l.b16 %v370
    %v786 = vunpack.c.h.b16 %v370
    %v787 = vunpack.c.l.b16 %v371
    %v788 = vunpack.c.h.b16 %v371
    %v789 = vunpack.c.l.b16 %v372
    %v790 = vunpack.c.h.b16 %v372
    %v791 = vunpack.c.l.b16 %v373
    %v792 = vunpack.c.h.b16 %v373
    %v793 = vunpack.c.l.b16 %v374
    %v794 = vunpack.c.h.b16 %v374
    %v795 = vunpack.c.l.b16 %v375
    %v796 = vunpack.c.h.b16 %v375
    %v797 = vunpack.c.l.b16 %v376
    %v798 = vunpack.c.h.b16 %v376
    %v799 = vunpack.c.l.b16 %v377
    %v800 = vunpack.c.h.b16 %v377
    %v801 = vunpack.c.l.b16 %v378
    %v802 = vunpack.c.h.b16 %v378
    %v803 = vpack.c.b16 %v555, %v547
    %v804 = vpack.c.b16 %v556, %v548
    %v805 = vpack.c.b16 %v557, %v549
    %v806 = vpack.c.b16 %v558, %v550
    %v807 = vpack.c.b16 %v559, %v551
    %v808 = vpack.c.b16 %v560, %v552
    %v809 = vpack.c.b16 %v561, %v553
    %v810 = vpack.c.b16 %v562, %v554
    %v811 = vpack.c.b16 %v571, %v563
    %v812 = vpack.c.b16 %v572, %v564
    %v813 = vpack.c.b16 %v573, %v565
    %v814 = vpack.c.b16 %v574, %v566
    %v815 = vpack.c.b16 %v575, %v567
    %v816 = vpack.c.b16 %v576, %v568
    %v817 = vpack.c.b16 %v577, %v569
    %v818 = vpack.c.b16 %v578, %v570
    %v819 = vpack.c.b16 %v587, %v579
    %v820 = vpack.c.b16 %v588, %v580
    %v821 = vpack.c.b16 %v589, %v581
    %v822 = vpack.c.b16 %v590, %v582
    %v823 = vpack.c.b16 %v591, %v583
    %v824 = vpack.c.b16 %v592, %v584
    %v825 = vpack.c.b16 %v593, %v585
    %v826 = vpack.c.b16 %v594, %v586
    %v827 = vpack.c.b16 %v603, %v595
    %v828 = vpack.c.b16 %v604, %v596
    %v829 = vpack.c.b16 %v605, %v597
    %v830 = vpack.c.b16 %v606, %v598
    %v831 = vpack.c.b16 %v607, %v599
    %v832 = vpack.c.b16 %v608, %v600
    %v833 = vpack.c.b16 %v609, %v601
    %v834 = vpack.c.b16 %v610, %v602
    %v835 = vpack.c.b16 %v619, %v611
    %v836 = vpack.c.b16 %v620, %v612
    %v837 = vpack.c.b16 %v621, %v613
    %v838 = vpack.c.b16 %v622, %v614
    %v839 = vpack.c.b16 %v623, %v615
    %v840 = vpack.c.b16 %v624, %v616
    %v841 = vpack.c.b16 %v625, %v617
    %v842 = vpack.c.b16 %v626, %v618
    %v843 = vpack.c.b16 %v635, %v627
    %v844 = vpack.c.b16 %v636, %v628
    %v845 = vpack.c.b16 %v637, %v629
    %v846 = vpack.c.b16 %v638, %v630
    %v847 = vpack.c.b16 %v639, %v631
    %v848 = vpack.c.b16 %v640, %v632
    %v849 = vpack.c.b16 %v641, %v633
    %v850 = vpack.c.b16 %v642, %v634
    %v851 = vpack.c.b16 %v651, %v643
    %v852 = vpack.c.b16 %v652, %v644
    %v853 = vpack.c.b16 %v653, %v645
    %v854 = vpack.c.b16 %v654, %v646
    %v855 = vpack.c.b16 %v655, %v647
    %v856 = vpack.c.b16 %v656, %v648
    %v857 = vpack.c.b16 %v657, %v649
    %v858 = vpack.c.b16 %v658, %v650
    %v859 = vpack.c.b16 %v667, %v659
    %v860 = vpack.c.b16 %v668, %v660
    %v861 = vpack.c.b16 %v669, %v661
    %v862 = vpack.c.b16 %v670, %v662
    %v863 = vpack.c.b16 %v671, %v663
    %v864 = vpack.c.b16 %v672, %v664
    %v865 = vpack.c.b16 %v673, %v665
    %v866 = vpack.c.b16 %v674, %v666
    %v867 = vpack.c.b16 %v683, %v675
    %v868 = vpack.c.b16 %v684, %v676
    %v869 = vpack.c.b16 %v685, %v677
    %v870 = vpack.c.b16 %v686, %v678
    %v871 = vpack.c.b16 %v687, %v679
    %v872 = vpack.c.b16 %v688, %v680
    %v873 = vpack.c.b16 %v689, %v681
    %v874 = vpack.c.b16 %v690, %v682
    %v875 = vpack.c.b16 %v699, %v691
    %v876 = vpack.c.b16 %v700, %v692
    %v877 = vpack.c.b16 %v701, %v693
    %v878 = vpack.c.b16 %v702, %v694
    %v879 = vpack.c.b16 %v703, %v695
    %v880 = vpack.c.b16 %v704, %v696
    %v881 = vpack.c.b16 %v705, %v697
    %v882 = vpack.c.b16 %v706, %v698
    %v883 = vpack.c.b16 %v715, %v707
    %v884 = vpack.c.b16 %v716, %v708
    %v885 = vpack.c.b16 %v717, %v709
    %v886 = vpack.c.b16 %v718, %v710
    %v887 = vpack.c.b16 %v719, %v711
    %v888 = vpack.c.b16 %v720, %v712
    %v889 = vpack.c.b16 %v721, %v713
    %v890 = vpack.c.b16 %v722, %v714
    %v891 = vpack.c.b16 %v731, %v723
    %v892 = vpack.c.b16 %v732, %v724
    %v893 = vpack.c.b16 %v733, %v725
    %v894 = vpack.c.b16 %v734, %v726
    %v895 = vpack.c.b16 %v735, %v727
    %v896 = vpack.c.b16 %v736, %v728
    %v897 = vpack.c.b16 %v737, %v729
    %v898 = vpack.c.b16 %v738, %v730
    %v899 = vpack.c.b16 %v747, %v739
    %v900 = vpack.c.b16 %v748, %v740
    %v901 = vpack.c.b16 %v749, %v741
    %v902 = vpack.c.b16 %v750, %v742
    %v903 = vpack.c.b16 %v751, %v743
    %v904 = vpack.c.b16 %v752, %v744
    %v905 = vpack.c.b16 %v753, %v745
    %v906 = vpack.c.b16 %v754, %v746
    %v907 = vpack.c.b16 %v763, %v755
    %v908 = vpack.c.b16 %v764, %v756
    %v909 = vpack.c.b16 %v765, %v757
    %v910 = vpack.c.b16 %v766, %v758
    %v911 = vpack.c.b16 %v767, %v759
    %v912 = vpack.c.b16 %v768, %v760
    %v913 = vpack.c.b16 %v769, %v761
    %v914 = vpack.c.b16 %v770, %v762
    %v915 = vpack.c.b16 %v779, %v771
    %v916 = vpack.c.b16 %v780, %v772
    %v917 = vpack.c.b16 %v781, %v773
    %v918 = vpack.c.b16 %v782, %v774
    %v919 = vpack.c.b16 %v783, %v775
    %v920 = vpack.c.b16 %v784, %v776
    %v921 = vpack.c.b16 %v785, %v777
    %v922 = vpack.c.b16 %v786, %v778
    %v923 = vpack.c.b16 %v795, %v787
    %v924 = vpack.c.b16 %v796, %v788
    %v925 = vpack.c.b16 %v797, %v789
    %v926 = vpack.c.b16 %v798, %v790
    %v927 = vpack.c.b16 %v799, %v791
    %v928 = vpack.c.b16 %v800, %v792
    %v929 = vpack.c.b16 %v801, %v793
    %v930 = vpack.c.b16 %v802, %v794
    %1059 = vmatprep.subr.bf16.mxu0 %v804
    %1060 = vmatpush1.bf16.msra.mxu0 %v803
    %1061 = vmatprep.subr.bf16.mxu0 %v812
    %1062 = vmatpush1.bf16.msra.mxu0 %v811
    %1063 = vmatprep.subr.bf16.mxu0 %v820
    %1064 = vmatpush1.bf16.msra.mxu0 %v819
    %1065 = vmatprep.subr.bf16.mxu0 %v828
    %1066 = vmatpush1.bf16.msra.mxu0 %v827
    %1067 = vmatprep.subr.bf16.mxu0 %v836
    %1068 = vmatpush1.bf16.msra.mxu0 %v835
    %1069 = vmatprep.subr.bf16.mxu0 %v844
    %1070 = vmatpush1.bf16.msra.mxu0 %v843
    %1071 = vmatprep.subr.bf16.mxu0 %v852
    %1072 = vmatpush1.bf16.msra.mxu0 %v851
    %1073 = vmatprep.subr.bf16.mxu0 %v860
    %1074 = vmatpush1.bf16.msra.mxu0 %v859
    %1075 = vmatprep.subr.bf16.mxu0 %v868
    %1076 = vmatpush1.bf16.msra.mxu0 %v867
    %1077 = vmatprep.subr.bf16.mxu0 %v876
    %1078 = vmatpush1.bf16.msra.mxu0 %v875
    %1079 = vmatprep.subr.bf16.mxu0 %v884
    %1080 = vmatpush1.bf16.msra.mxu0 %v883
    %1081 = vmatprep.subr.bf16.mxu0 %v892
    %1082 = vmatpush1.bf16.msra.mxu0 %v891
    %1083 = vmatprep.subr.bf16.mxu0 %v900
    %1084 = vmatpush1.bf16.msra.mxu0 %v899
    %1085 = vmatprep.subr.bf16.mxu0 %v908
    %1086 = vmatpush1.bf16.msra.mxu0 %v907
    %1087 = vmatprep.subr.bf16.mxu0 %v916
    %1088 = vmatpush1.bf16.msra.mxu0 %v915
    %1089 = vmatprep.subr.bf16.mxu0 %v924
    %1090 = vmatpush1.bf16.msra.mxu0 %v923
    %1091 = vmatprep.mubr.bf16.mxu0 %v404
    %1092 = vmatmul.mubr.bf16.gmra.mrb[0].mxu0 %v403
    %v1093 = vpop.f32.mrb[0].mxu0
    %v1094 = vadd.f32 0.0, %v1093
    %v1095 = vpop.f32.mrb[0].mxu0
    %v1096 = vadd.f32 0.0, %v1095
    %v1097 = vpop.f32.mrb[0].mxu0
    %v1098 = vadd.f32 0.0, %v1097
    %v1099 = vpop.f32.mrb[0].mxu0
    %v1100 = vadd.f32 0.0, %v1099
    %1101 = vmatprep.mubr.bf16.mxu0 %v406
    %1102 = vmatmul.mubr.bf16.gmra.mrb[0].mxu0 %v405
    %v1103 = vpop.f32.mrb[0].mxu0
    %v1104 = vadd.f32 0.0, %v1103
    %v1105 = vpop.f32.mrb[0].mxu0
    %v1106 = vadd.f32 0.0, %v1105
    %v1107 = vpop.f32.mrb[0].mxu0
    %v1108 = vadd.f32 0.0, %v1107
    %v1109 = vpop.f32.mrb[0].mxu0
    %v1110 = vadd.f32 0.0, %v1109
    %1111 = vmatprep.mubr.bf16.mxu0 %v408
    %1112 = vmatmul.mubr.bf16.gmra.mrb[0].mxu0 %v407
    %v1113 = vpop.f32.mrb[0].mxu0
    %v1114 = vadd.f32 0.0, %v1113
    %v1115 = vpop.f32.mrb[0].mxu0
    %v1116 = vadd.f32 0.0, %v1115
    %v1117 = vpop.f32.mrb[0].mxu0
    %v1118 = vadd.f32 0.0, %v1117
    %v1119 = vpop.f32.mrb[0].mxu0
    %v1120 = vadd.f32 0.0, %v1119
    %1121 = vmatprep.mubr.bf16.mxu0 %v410
    %1122 = vmatmul.mubr.bf16.gmra.mrb[0].mxu0 %v409
    %v1123 = vpop.f32.mrb[0].mxu0
    %v1124 = vadd.f32 0.0, %v1123
    %v1125 = vpop.f32.mrb[0].mxu0
    %v1126 = vadd.f32 0.0, %v1125
    %v1127 = vpop.f32.mrb[0].mxu0
    %v1128 = vadd.f32 0.0, %v1127
    %v1129 = vpop.f32.mrb[0].mxu0
    %v1130 = vadd.f32 0.0, %v1129
    %1131 = vdwg.mxu0
    %1132 = vmatprep.subr.bf16.mxu0 %v806
    %1133 = vmatpush1.bf16.msra.mxu0 %v805
    %1134 = vmatprep.subr.bf16.mxu0 %v814
    %1135 = vmatpush1.bf16.msra.mxu0 %v813
    %1136 = vmatprep.subr.bf16.mxu0 %v822
    %1137 = vmatpush1.bf16.msra.mxu0 %v821
    %1138 = vmatprep.subr.bf16.mxu0 %v830
    %1139 = vmatpush1.bf16.msra.mxu0 %v829
    %1140 = vmatprep.subr.bf16.mxu0 %v838
    %1141 = vmatpush1.bf16.msra.mxu0 %v837
    %1142 = vmatprep.subr.bf16.mxu0 %v846
    %1143 = vmatpush1.bf16.msra.mxu0 %v845
    %1144 = vmatprep.subr.bf16.mxu0 %v854
    %1145 = vmatpush1.bf16.msra.mxu0 %v853
    %1146 = vmatprep.subr.bf16.mxu0 %v862
    %1147 = vmatpush1.bf16.msra.mxu0 %v861
    %1148 = vmatprep.subr.bf16.mxu0 %v870
    %1149 = vmatpush1.bf16.msra.mxu0 %v869
    %1150 = vmatprep.subr.bf16.mxu0 %v878
    %1151 = vmatpush1.bf16.msra.mxu0 %v877
    %1152 = vmatprep.subr.bf16.mxu0 %v886
    %1153 = vmatpush1.bf16.msra.mxu0 %v885
    %1154 = vmatprep.subr.bf16.mxu0 %v894
    %1155 = vmatpush1.bf16.msra.mxu0 %v893
    %1156 = vmatprep.subr.bf16.mxu0 %v902
    %1157 = vmatpush1.bf16.msra.mxu0 %v901
    %1158 = vmatprep.subr.bf16.mxu0 %v910
    %1159 = vmatpush1.bf16.msra.mxu0 %v909
    %1160 = vmatprep.subr.bf16.mxu0 %v918
    %1161 = vmatpush1.bf16.msra.mxu0 %v917
    %1162 = vmatprep.subr.bf16.mxu0 %v926
    %1163 = vmatpush1.bf16.msra.mxu0 %v925
    %1164 = vmatprep.mubr.bf16.mxu0 %v404
    %1165 = vmatmul.mubr.bf16.gmra.mrb[0].mxu0 %v403
    %v1166 = vpop.f32.mrb[0].mxu0
    %v1167 = vadd.f32 0.0, %v1166
    %v1168 = vpop.f32.mrb[0].mxu0
    %v1169 = vadd.f32 0.0, %v1168
    %v1170 = vpop.f32.mrb[0].mxu0
    %v1171 = vadd.f32 0.0, %v1170
    %v1172 = vpop.f32.mrb[0].mxu0
    %v1173 = vadd.f32 0.0, %v1172
    %1174 = vmatprep.mubr.bf16.mxu0 %v406
    %1175 = vmatmul.mubr.bf16.gmra.mrb[0].mxu0 %v405
    %v1176 = vpop.f32.mrb[0].mxu0
    %v1177 = vadd.f32 0.0, %v1176
    %v1178 = vpop.f32.mrb[0].mxu0
    %v1179 = vadd.f32 0.0, %v1178
    %v1180 = vpop.f32.mrb[0].mxu0
    %v1181 = vadd.f32 0.0, %v1180
    %v1182 = vpop.f32.mrb[0].mxu0
    %v1183 = vadd.f32 0.0, %v1182
    %1184 = vmatprep.mubr.bf16.mxu0 %v408
    %1185 = vmatmul.mubr.bf16.gmra.mrb[0].mxu0 %v407
    %v1186 = vpop.f32.mrb[0].mxu0
    %v1187 = vadd.f32 0.0, %v1186
    %v1188 = vpop.f32.mrb[0].mxu0
    %v1189 = vadd.f32 0.0, %v1188
    %v1190 = vpop.f32.mrb[0].mxu0
    %v1191 = vadd.f32 0.0, %v1190
    %v1192 = vpop.f32.mrb[0].mxu0
    %v1193 = vadd.f32 0.0, %v1192
    %1194 = vmatprep.mubr.bf16.mxu0 %v410
    %1195 = vmatmul.mubr.bf16.gmra.mrb[0].mxu0 %v409
    %v1196 = vpop.f32.mrb[0].mxu0
    %v1197 = vadd.f32 0.0, %v1196
    %v1198 = vpop.f32.mrb[0].mxu0
    %v1199 = vadd.f32 0.0, %v1198
    %v1200 = vpop.f32.mrb[0].mxu0
    %v1201 = vadd.f32 0.0, %v1200
    %v1202 = vpop.f32.mrb[0].mxu0
    %v1203 = vadd.f32 0.0, %v1202
    %1204 = vdwg.mxu0
    %1205 = vmatprep.subr.bf16.mxu0 %v808
    %1206 = vmatpush1.bf16.msra.mxu0 %v807
    %1207 = vmatprep.subr.bf16.mxu0 %v816
    %1208 = vmatpush1.bf16.msra.mxu0 %v815
    %1209 = vmatprep.subr.bf16.mxu0 %v824
    %1210 = vmatpush1.bf16.msra.mxu0 %v823
    %1211 = vmatprep.subr.bf16.mxu0 %v832
    %1212 = vmatpush1.bf16.msra.mxu0 %v831
    %1213 = vmatprep.subr.bf16.mxu0 %v840
    %1214 = vmatpush1.bf16.msra.mxu0 %v839
    %1215 = vmatprep.subr.bf16.mxu0 %v848
    %1216 = vmatpush1.bf16.msra.mxu0 %v847
    %1217 = vmatprep.subr.bf16.mxu0 %v856
    %1218 = vmatpush1.bf16.msra.mxu0 %v855
    %1219 = vmatprep.subr.bf16.mxu0 %v864
    %1220 = vmatpush1.bf16.msra.mxu0 %v863
    %1221 = vmatprep.subr.bf16.mxu0 %v872
    %1222 = vmatpush1.bf16.msra.mxu0 %v871
    %1223 = vmatprep.subr.bf16.mxu0 %v880
    %1224 = vmatpush1.bf16.msra.mxu0 %v879
    %1225 = vmatprep.subr.bf16.mxu0 %v888
    %1226 = vmatpush1.bf16.msra.mxu0 %v887
    %1227 = vmatprep.subr.bf16.mxu0 %v896
    %1228 = vmatpush1.bf16.msra.mxu0 %v895
    %1229 = vmatprep.subr.bf16.mxu0 %v904
    %1230 = vmatpush1.bf16.msra.mxu0 %v903
    %1231 = vmatprep.subr.bf16.mxu0 %v912
    %1232 = vmatpush1.bf16.msra.mxu0 %v911
    %1233 = vmatprep.subr.bf16.mxu0 %v920
    %1234 = vmatpush1.bf16.msra.mxu0 %v919
    %1235 = vmatprep.subr.bf16.mxu0 %v928
    %1236 = vmatpush1.bf16.msra.mxu0 %v927
    %1237 = vmatprep.mubr.bf16.mxu0 %v404
    %1238 = vmatmul.mubr.bf16.gmra.mrb[0].mxu0 %v403
    %v1239 = vpop.f32.mrb[0].mxu0
    %v1240 = vadd.f32 0.0, %v1239
    %v1241 = vpop.f32.mrb[0].mxu0
    %v1242 = vadd.f32 0.0, %v1241
    %v1243 = vpop.f32.mrb[0].mxu0
    %v1244 = vadd.f32 0.0, %v1243
    %v1245 = vpop.f32.mrb[0].mxu0
    %v1246 = vadd.f32 0.0, %v1245
    %1247 = vmatprep.mubr.bf16.mxu0 %v406
    %1248 = vmatmul.mubr.bf16.gmra.mrb[0].mxu0 %v405
    %v1249 = vpop.f32.mrb[0].mxu0
    %v1250 = vadd.f32 0.0, %v1249
    %v1251 = vpop.f32.mrb[0].mxu0
    %v1252 = vadd.f32 0.0, %v1251
    %v1253 = vpop.f32.mrb[0].mxu0
    %v1254 = vadd.f32 0.0, %v1253
    %v1255 = vpop.f32.mrb[0].mxu0
    %v1256 = vadd.f32 0.0, %v1255
    %1257 = vmatprep.mubr.bf16.mxu0 %v408
    %1258 = vmatmul.mubr.bf16.gmra.mrb[0].mxu0 %v407
    %v1259 = vpop.f32.mrb[0].mxu0
    %v1260 = vadd.f32 0.0, %v1259
    %v1261 = vpop.f32.mrb[0].mxu0
    %v1262 = vadd.f32 0.0, %v1261
    %v1263 = vpop.f32.mrb[0].mxu0
    %v1264 = vadd.f32 0.0, %v1263
    %v1265 = vpop.f32.mrb[0].mxu0
    %v1266 = vadd.f32 0.0, %v1265
    %1267 = vmatprep.mubr.bf16.mxu0 %v410
    %1268 = vmatmul.mubr.bf16.gmra.mrb[0].mxu0 %v409
    %v1269 = vpop.f32.mrb[0].mxu0
    %v1270 = vadd.f32 0.0, %v1269
    %v1271 = vpop.f32.mrb[0].mxu0
    %v1272 = vadd.f32 0.0, %v1271
    %v1273 = vpop.f32.mrb[0].mxu0
    %v1274 = vadd.f32 0.0, %v1273
    %v1275 = vpop.f32.mrb[0].mxu0
    %v1276 = vadd.f32 0.0, %v1275
    %1277 = vdwg.mxu0
    %1278 = vmatprep.subr.bf16.mxu0 %v810
    %1279 = vmatpush1.bf16.msra.mxu0 %v809
    %1280 = vmatprep.subr.bf16.mxu0 %v818
    %1281 = vmatpush1.bf16.msra.mxu0 %v817
    %1282 = vmatprep.subr.bf16.mxu0 %v826
    %1283 = vmatpush1.bf16.msra.mxu0 %v825
    %1284 = vmatprep.subr.bf16.mxu0 %v834
    %1285 = vmatpush1.bf16.msra.mxu0 %v833
    %1286 = vmatprep.subr.bf16.mxu0 %v842
    %1287 = vmatpush1.bf16.msra.mxu0 %v841
    %1288 = vmatprep.subr.bf16.mxu0 %v850
    %1289 = vmatpush1.bf16.msra.mxu0 %v849
    %1290 = vmatprep.subr.bf16.mxu0 %v858
    %1291 = vmatpush1.bf16.msra.mxu0 %v857
    %1292 = vmatprep.subr.bf16.mxu0 %v866
    %1293 = vmatpush1.bf16.msra.mxu0 %v865
    %1294 = vmatprep.subr.bf16.mxu0 %v874
    %1295 = vmatpush1.bf16.msra.mxu0 %v873
    %1296 = vmatprep.subr.bf16.mxu0 %v882
    %1297 = vmatpush1.bf16.msra.mxu0 %v881
    %1298 = vmatprep.subr.bf16.mxu0 %v890
    %1299 = vmatpush1.bf16.msra.mxu0 %v889
    %1300 = vmatprep.subr.bf16.mxu0 %v898
    %1301 = vmatpush1.bf16.msra.mxu0 %v897
    %1302 = vmatprep.subr.bf16.mxu0 %v906
    %1303 = vmatpush1.bf16.msra.mxu0 %v905
    %1304 = vmatprep.subr.bf16.mxu0 %v914
    %1305 = vmatpush1.bf16.msra.mxu0 %v913
    %1306 = vmatprep.subr.bf16.mxu0 %v922
    %1307 = vmatpush1.bf16.msra.mxu0 %v921
    %1308 = vmatprep.subr.bf16.mxu0 %v930
    %1309 = vmatpush1.bf16.msra.mxu0 %v929
    %1310 = vmatprep.mubr.bf16.mxu0 %v404
    %1311 = vmatmul.mubr.bf16.gmra.mrb[0].mxu0 %v403
    %v1312 = vpop.f32.mrb[0].mxu0
    %v1313 = vadd.f32 0.0, %v1312
    %v1314 = vpop.f32.mrb[0].mxu0
    %v1315 = vadd.f32 0.0, %v1314
    %v1316 = vpop.f32.mrb[0].mxu0
    %v1317 = vadd.f32 0.0, %v1316
    %v1318 = vpop.f32.mrb[0].mxu0
    %v1319 = vadd.f32 0.0, %v1318
    %1320 = vmatprep.mubr.bf16.mxu0 %v406
    %1321 = vmatmul.mubr.bf16.gmra.mrb[0].mxu0 %v405
    %v1322 = vpop.f32.mrb[0].mxu0
    %v1323 = vadd.f32 0.0, %v1322
    %v1324 = vpop.f32.mrb[0].mxu0
    %v1325 = vadd.f32 0.0, %v1324
    %v1326 = vpop.f32.mrb[0].mxu0
    %v1327 = vadd.f32 0.0, %v1326
    %v1328 = vpop.f32.mrb[0].mxu0
    %v1329 = vadd.f32 0.0, %v1328
    %1330 = vmatprep.mubr.bf16.mxu0 %v408
    %1331 = vmatmul.mubr.bf16.gmra.mrb[0].mxu0 %v407
    %v1332 = vpop.f32.mrb[0].mxu0
    %v1333 = vadd.f32 0.0, %v1332
    %v1334 = vpop.f32.mrb[0].mxu0
    %v1335 = vadd.f32 0.0, %v1334
    %v1336 = vpop.f32.mrb[0].mxu0
    %v1337 = vadd.f32 0.0, %v1336
    %v1338 = vpop.f32.mrb[0].mxu0
    %v1339 = vadd.f32 0.0, %v1338
    %1340 = vmatprep.mubr.bf16.mxu0 %v410
    %1341 = vmatmul.mubr.bf16.gmra.mrb[0].mxu0 %v409
    %v1342 = vpop.f32.mrb[0].mxu0
    %v1343 = vadd.f32 0.0, %v1342
    %v1344 = vpop.f32.mrb[0].mxu0
    %v1345 = vadd.f32 0.0, %v1344
    %v1346 = vpop.f32.mrb[0].mxu0
    %v1347 = vadd.f32 0.0, %v1346
    %v1348 = vpop.f32.mrb[0].mxu0
    %v1349 = vadd.f32 0.0, %v1348
    %1350 = vdwg.mxu0
    %v1359 = vunpack.c.l.b16 %v171
    %v1360 = vunpack.c.l.b16 %v172
    %v1361 = vunpack.c.l.b16 %v173
    %v1362 = vunpack.c.l.b16 %v174
    %v1363 = vunpack.c.l.b16 %v175
    %v1364 = vunpack.c.l.b16 %v176
    %v1365 = vunpack.c.l.b16 %v177
    %v1366 = vunpack.c.l.b16 %v178
    %v1367 = vpack.c.b16 %v1360, %v1359
    %v1368 = vpack.c.b16 %v1362, %v1361
    %v1369 = vpack.c.b16 %v1364, %v1363
    %v1370 = vpack.c.b16 %v1366, %v1365
    %v1439 = vunpack.c.l.b16 %v179
    %v1440 = vunpack.c.h.b16 %v179
    %v1441 = vunpack.c.l.b16 %v180
    %v1442 = vunpack.c.h.b16 %v180
    %v1443 = vunpack.c.l.b16 %v181
    %v1444 = vunpack.c.h.b16 %v181
    %v1445 = vunpack.c.l.b16 %v182
    %v1446 = vunpack.c.h.b16 %v182
    %v1447 = vunpack.c.l.b16 %v183
    %v1448 = vunpack.c.h.b16 %v183
    %v1449 = vunpack.c.l.b16 %v184
    %v1450 = vunpack.c.h.b16 %v184
    %v1451 = vunpack.c.l.b16 %v185
    %v1452 = vunpack.c.h.b16 %v185
    %v1453 = vunpack.c.l.b16 %v186
    %v1454 = vunpack.c.h.b16 %v186
    %v1455 = vunpack.c.l.b16 %v187
    %v1456 = vunpack.c.h.b16 %v187
    %v1457 = vunpack.c.l.b16 %v188
    %v1458 = vunpack.c.h.b16 %v188
    %v1459 = vunpack.c.l.b16 %v189
    %v1460 = vunpack.c.h.b16 %v189
    %v1461 = vunpack.c.l.b16 %v190
    %v1462 = vunpack.c.h.b16 %v190
    %v1463 = vunpack.c.l.b16 %v191
    %v1464 = vunpack.c.h.b16 %v191
    %v1465 = vunpack.c.l.b16 %v192
    %v1466 = vunpack.c.h.b16 %v192
    %v1467 = vunpack.c.l.b16 %v193
    %v1468 = vunpack.c.h.b16 %v193
    %v1469 = vunpack.c.l.b16 %v194
    %v1470 = vunpack.c.h.b16 %v194
    %v1471 = vunpack.c.l.b16 %v195
    %v1472 = vunpack.c.h.b16 %v195
    %v1473 = vunpack.c.l.b16 %v196
    %v1474 = vunpack.c.h.b16 %v196
    %v1475 = vunpack.c.l.b16 %v197
    %v1476 = vunpack.c.h.b16 %v197
    %v1477 = vunpack.c.l.b16 %v198
    %v1478 = vunpack.c.h.b16 %v198
    %v1479 = vunpack.c.l.b16 %v199
    %v1480 = vunpack.c.h.b16 %v199
    %v1481 = vunpack.c.l.b16 %v200
    %v1482 = vunpack.c.h.b16 %v200
    %v1483 = vunpack.c.l.b16 %v201
    %v1484 = vunpack.c.h.b16 %v201
    %v1485 = vunpack.c.l.b16 %v202
    %v1486 = vunpack.c.h.b16 %v202
    %v1487 = vunpack.c.l.b16 %v203
    %v1488 = vunpack.c.h.b16 %v203
    %v1489 = vunpack.c.l.b16 %v204
    %v1490 = vunpack.c.h.b16 %v204
    %v1491 = vunpack.c.l.b16 %v205
    %v1492 = vunpack.c.h.b16 %v205
    %v1493 = vunpack.c.l.b16 %v206
    %v1494 = vunpack.c.h.b16 %v206
    %v1495 = vunpack.c.l.b16 %v207
    %v1496 = vunpack.c.h.b16 %v207
    %v1497 = vunpack.c.l.b16 %v208
    %v1498 = vunpack.c.h.b16 %v208
    %v1499 = vunpack.c.l.b16 %v209
    %v1500 = vunpack.c.h.b16 %v209
    %v1501 = vunpack.c.l.b16 %v210
    %v1502 = vunpack.c.h.b16 %v210
    %v1503 = vunpack.c.l.b16 %v211
    %v1504 = vunpack.c.h.b16 %v211
    %v1505 = vunpack.c.l.b16 %v212
    %v1506 = vunpack.c.h.b16 %v212
    %v1507 = vunpack.c.l.b16 %v213
    %v1508 = vunpack.c.h.b16 %v213
    %v1509 = vunpack.c.l.b16 %v214
    %v1510 = vunpack.c.h.b16 %v214
    %v1511 = vunpack.c.l.b16 %v215
    %v1512 = vunpack.c.h.b16 %v215
    %v1513 = vunpack.c.l.b16 %v216
    %v1514 = vunpack.c.h.b16 %v216
    %v1515 = vunpack.c.l.b16 %v217
    %v1516 = vunpack.c.h.b16 %v217
    %v1517 = vunpack.c.l.b16 %v218
    %v1518 = vunpack.c.h.b16 %v218
    %v1519 = vunpack.c.l.b16 %v219
    %v1520 = vunpack.c.h.b16 %v219
    %v1521 = vunpack.c.l.b16 %v220
    %v1522 = vunpack.c.h.b16 %v220
    %v1523 = vunpack.c.l.b16 %v221
    %v1524 = vunpack.c.h.b16 %v221
    %v1525 = vunpack.c.l.b16 %v222
    %v1526 = vunpack.c.h.b16 %v222
    %v1527 = vunpack.c.l.b16 %v223
    %v1528 = vunpack.c.h.b16 %v223
    %v1529 = vunpack.c.l.b16 %v224
    %v1530 = vunpack.c.h.b16 %v224
    %v1531 = vunpack.c.l.b16 %v225
    %v1532 = vunpack.c.h.b16 %v225
    %v1533 = vunpack.c.l.b16 %v226
    %v1534 = vunpack.c.h.b16 %v226
    %v1535 = vunpack.c.l.b16 %v227
    %v1536 = vunpack.c.h.b16 %v227
    %v1537 = vunpack.c.l.b16 %v228
    %v1538 = vunpack.c.h.b16 %v228
    %v1539 = vunpack.c.l.b16 %v229
    %v1540 = vunpack.c.h.b16 %v229
    %v1541 = vunpack.c.l.b16 %v230
    %v1542 = vunpack.c.h.b16 %v230
    %v1543 = vunpack.c.l.b16 %v231
    %v1544 = vunpack.c.h.b16 %v231
    %v1545 = vunpack.c.l.b16 %v232
    %v1546 = vunpack.c.h.b16 %v232
    %v1547 = vunpack.c.l.b16 %v233
    %v1548 = vunpack.c.h.b16 %v233
    %v1549 = vunpack.c.l.b16 %v234
    %v1550 = vunpack.c.h.b16 %v234
    %v1551 = vunpack.c.l.b16 %v235
    %v1552 = vunpack.c.h.b16 %v235
    %v1553 = vunpack.c.l.b16 %v236
    %v1554 = vunpack.c.h.b16 %v236
    %v1555 = vunpack.c.l.b16 %v237
    %v1556 = vunpack.c.h.b16 %v237
    %v1557 = vunpack.c.l.b16 %v238
    %v1558 = vunpack.c.h.b16 %v238
    %v1559 = vunpack.c.l.b16 %v239
    %v1560 = vunpack.c.h.b16 %v239
    %v1561 = vunpack.c.l.b16 %v240
    %v1562 = vunpack.c.h.b16 %v240
    %v1563 = vunpack.c.l.b16 %v241
    %v1564 = vunpack.c.h.b16 %v241
    %v1565 = vunpack.c.l.b16 %v242
    %v1566 = vunpack.c.h.b16 %v242
    %v1567 = vpack.c.b16 %v1447, %v1439
    %v1568 = vpack.c.b16 %v1448, %v1440
    %v1569 = vpack.c.b16 %v1449, %v1441
    %v1570 = vpack.c.b16 %v1450, %v1442
    %v1571 = vpack.c.b16 %v1451, %v1443
    %v1572 = vpack.c.b16 %v1452, %v1444
    %v1573 = vpack.c.b16 %v1453, %v1445
    %v1574 = vpack.c.b16 %v1454, %v1446
    %v1575 = vpack.c.b16 %v1463, %v1455
    %v1576 = vpack.c.b16 %v1464, %v1456
    %v1577 = vpack.c.b16 %v1465, %v1457
    %v1578 = vpack.c.b16 %v1466, %v1458
    %v1579 = vpack.c.b16 %v1467, %v1459
    %v1580 = vpack.c.b16 %v1468, %v1460
    %v1581 = vpack.c.b16 %v1469, %v1461
    %v1582 = vpack.c.b16 %v1470, %v1462
    %v1583 = vpack.c.b16 %v1479, %v1471
    %v1584 = vpack.c.b16 %v1480, %v1472
    %v1585 = vpack.c.b16 %v1481, %v1473
    %v1586 = vpack.c.b16 %v1482, %v1474
    %v1587 = vpack.c.b16 %v1483, %v1475
    %v1588 = vpack.c.b16 %v1484, %v1476
    %v1589 = vpack.c.b16 %v1485, %v1477
    %v1590 = vpack.c.b16 %v1486, %v1478
    %v1591 = vpack.c.b16 %v1495, %v1487
    %v1592 = vpack.c.b16 %v1496, %v1488
    %v1593 = vpack.c.b16 %v1497, %v1489
    %v1594 = vpack.c.b16 %v1498, %v1490
    %v1595 = vpack.c.b16 %v1499, %v1491
    %v1596 = vpack.c.b16 %v1500, %v1492
    %v1597 = vpack.c.b16 %v1501, %v1493
    %v1598 = vpack.c.b16 %v1502, %v1494
    %v1599 = vpack.c.b16 %v1511, %v1503
    %v1600 = vpack.c.b16 %v1512, %v1504
    %v1601 = vpack.c.b16 %v1513, %v1505
    %v1602 = vpack.c.b16 %v1514, %v1506
    %v1603 = vpack.c.b16 %v1515, %v1507
    %v1604 = vpack.c.b16 %v1516, %v1508
    %v1605 = vpack.c.b16 %v1517, %v1509
    %v1606 = vpack.c.b16 %v1518, %v1510
    %v1607 = vpack.c.b16 %v1527, %v1519
    %v1608 = vpack.c.b16 %v1528, %v1520
    %v1609 = vpack.c.b16 %v1529, %v1521
    %v1610 = vpack.c.b16 %v1530, %v1522
    %v1611 = vpack.c.b16 %v1531, %v1523
    %v1612 = vpack.c.b16 %v1532, %v1524
    %v1613 = vpack.c.b16 %v1533, %v1525
    %v1614 = vpack.c.b16 %v1534, %v1526
    %v1615 = vpack.c.b16 %v1543, %v1535
    %v1616 = vpack.c.b16 %v1544, %v1536
    %v1617 = vpack.c.b16 %v1545, %v1537
    %v1618 = vpack.c.b16 %v1546, %v1538
    %v1619 = vpack.c.b16 %v1547, %v1539
    %v1620 = vpack.c.b16 %v1548, %v1540
    %v1621 = vpack.c.b16 %v1549, %v1541
    %v1622 = vpack.c.b16 %v1550, %v1542
    %v1623 = vpack.c.b16 %v1559, %v1551
    %v1624 = vpack.c.b16 %v1560, %v1552
    %v1625 = vpack.c.b16 %v1561, %v1553
    %v1626 = vpack.c.b16 %v1562, %v1554
    %v1627 = vpack.c.b16 %v1563, %v1555
    %v1628 = vpack.c.b16 %v1564, %v1556
    %v1629 = vpack.c.b16 %v1565, %v1557
    %v1630 = vpack.c.b16 %v1566, %v1558
    %1695 = vmatprep.subr.bf16.mxu0 %v1568
    %1696 = vmatpush1.bf16.msra.mxu0 %v1567
    %1697 = vmatprep.subr.bf16.mxu0 %v1576
    %1698 = vmatpush1.bf16.msra.mxu0 %v1575
    %1699 = vmatprep.subr.bf16.mxu0 %v1584
    %1700 = vmatpush1.bf16.msra.mxu0 %v1583
    %1701 = vmatprep.subr.bf16.mxu0 %v1592
    %1702 = vmatpush1.bf16.msra.mxu0 %v1591
    %1703 = vmatprep.subr.bf16.mxu0 %v1600
    %1704 = vmatpush1.bf16.msra.mxu0 %v1599
    %1705 = vmatprep.subr.bf16.mxu0 %v1608
    %1706 = vmatpush1.bf16.msra.mxu0 %v1607
    %1707 = vmatprep.subr.bf16.mxu0 %v1616
    %1708 = vmatpush1.bf16.msra.mxu0 %v1615
    %1709 = vmatprep.subr.bf16.mxu0 %v1624
    %1710 = vmatpush1.bf16.msra.mxu0 %v1623
    %1711 = vmatprep.subr.bf16.mxu0 0
    %1712 = vmatpush1.bf16.msra.mxu0 0
    %1713 = vmatprep.subr.bf16.mxu0 0
    %1714 = vmatpush1.bf16.msra.mxu0 0
    %1715 = vmatprep.subr.bf16.mxu0 0
    %1716 = vmatpush1.bf16.msra.mxu0 0
    %1717 = vmatprep.subr.bf16.mxu0 0
    %1718 = vmatpush1.bf16.msra.mxu0 0
    %1719 = vmatprep.subr.bf16.mxu0 0
    %1720 = vmatpush1.bf16.msra.mxu0 0
    %1721 = vmatprep.subr.bf16.mxu0 0
    %1722 = vmatpush1.bf16.msra.mxu0 0
    %1723 = vmatprep.subr.bf16.mxu0 0
    %1724 = vmatpush1.bf16.msra.mxu0 0
    %1725 = vmatprep.subr.bf16.mxu0 0
    %1726 = vmatpush1.bf16.msra.mxu0 0
    %1727 = vmatprep.mubr.bf16.mxu0 0
    %1728 = vmatmul.mubr.bf16.gmra.mrb[0].mxu0 %v1367
    %v1729 = vpop.f32.mrb[0].mxu0
    %v1730 = vadd.f32 %v1094, %v1729
    %v1731 = vpop.f32.mrb[0].mxu0
    %v1732 = vadd.f32 %v1096, %v1731
    %v1733 = vpop.f32.mrb[0].mxu0
    %v1734 = vadd.f32 %v1098, %v1733
    %v1735 = vpop.f32.mrb[0].mxu0
    %v1736 = vadd.f32 %v1100, %v1735
    %1737 = vmatprep.mubr.bf16.mxu0 0
    %1738 = vmatmul.mubr.bf16.gmra.mrb[0].mxu0 %v1368
    %v1739 = vpop.f32.mrb[0].mxu0
    %v1740 = vadd.f32 %v1104, %v1739
    %v1741 = vpop.f32.mrb[0].mxu0
    %v1742 = vadd.f32 %v1106, %v1741
    %v1743 = vpop.f32.mrb[0].mxu0
    %v1744 = vadd.f32 %v1108, %v1743
    %v1745 = vpop.f32.mrb[0].mxu0
    %v1746 = vadd.f32 %v1110, %v1745
    %1747 = vmatprep.mubr.bf16.mxu0 0
    %1748 = vmatmul.mubr.bf16.gmra.mrb[0].mxu0 %v1369
    %v1749 = vpop.f32.mrb[0].mxu0
    %v1750 = vadd.f32 %v1114, %v1749
    %v1751 = vpop.f32.mrb[0].mxu0
    %v1752 = vadd.f32 %v1116, %v1751
    %v1753 = vpop.f32.mrb[0].mxu0
    %v1754 = vadd.f32 %v1118, %v1753
    %v1755 = vpop.f32.mrb[0].mxu0
    %v1756 = vadd.f32 %v1120, %v1755
    %1757 = vmatprep.mubr.bf16.mxu0 0
    %1758 = vmatmul.mubr.bf16.gmra.mrb[0].mxu0 %v1370
    %v1759 = vpop.f32.mrb[0].mxu0
    %v1760 = vadd.f32 %v1124, %v1759
    %v1761 = vpop.f32.mrb[0].mxu0
    %v1762 = vadd.f32 %v1126, %v1761
    %v1763 = vpop.f32.mrb[0].mxu0
    %v1764 = vadd.f32 %v1128, %v1763
    %v1765 = vpop.f32.mrb[0].mxu0
    %v1766 = vadd.f32 %v1130, %v1765
    %1767 = vdwg.mxu0
    %1768 = vmatprep.subr.bf16.mxu0 %v1570
    %1769 = vmatpush1.bf16.msra.mxu0 %v1569
    %1770 = vmatprep.subr.bf16.mxu0 %v1578
    %1771 = vmatpush1.bf16.msra.mxu0 %v1577
    %1772 = vmatprep.subr.bf16.mxu0 %v1586
    %1773 = vmatpush1.bf16.msra.mxu0 %v1585
    %1774 = vmatprep.subr.bf16.mxu0 %v1594
    %1775 = vmatpush1.bf16.msra.mxu0 %v1593
    %1776 = vmatprep.subr.bf16.mxu0 %v1602
    %1777 = vmatpush1.bf16.msra.mxu0 %v1601
    %1778 = vmatprep.subr.bf16.mxu0 %v1610
    %1779 = vmatpush1.bf16.msra.mxu0 %v1609
    %1780 = vmatprep.subr.bf16.mxu0 %v1618
    %1781 = vmatpush1.bf16.msra.mxu0 %v1617
    %1782 = vmatprep.subr.bf16.mxu0 %v1626
    %1783 = vmatpush1.bf16.msra.mxu0 %v1625
    %1784 = vmatprep.subr.bf16.mxu0 0
    %1785 = vmatpush1.bf16.msra.mxu0 0
    %1786 = vmatprep.subr.bf16.mxu0 0
    %1787 = vmatpush1.bf16.msra.mxu0 0
    %1788 = vmatprep.subr.bf16.mxu0 0
    %1789 = vmatpush1.bf16.msra.mxu0 0
    %1790 = vmatprep.subr.bf16.mxu0 0
    %1791 = vmatpush1.bf16.msra.mxu0 0
    %1792 = vmatprep.subr.bf16.mxu0 0
    %1793 = vmatpush1.bf16.msra.mxu0 0
    %1794 = vmatprep.subr.bf16.mxu0 0
    %1795 = vmatpush1.bf16.msra.mxu0 0
    %1796 = vmatprep.subr.bf16.mxu0 0
    %1797 = vmatpush1.bf16.msra.mxu0 0
    %1798 = vmatprep.subr.bf16.mxu0 0
    %1799 = vmatpush1.bf16.msra.mxu0 0
    %1800 = vmatprep.mubr.bf16.mxu0 0
    %1801 = vmatmul.mubr.bf16.gmra.mrb[0].mxu0 %v1367
    %v1802 = vpop.f32.mrb[0].mxu0
    %v1803 = vadd.f32 %v1167, %v1802
    %v1804 = vpop.f32.mrb[0].mxu0
    %v1805 = vadd.f32 %v1169, %v1804
    %v1806 = vpop.f32.mrb[0].mxu0
    %v1807 = vadd.f32 %v1171, %v1806
    %v1808 = vpop.f32.mrb[0].mxu0
    %v1809 = vadd.f32 %v1173, %v1808
    %1810 = vmatprep.mubr.bf16.mxu0 0
    %1811 = vmatmul.mubr.bf16.gmra.mrb[0].mxu0 %v1368
    %v1812 = vpop.f32.mrb[0].mxu0
    %v1813 = vadd.f32 %v1177, %v1812
    %v1814 = vpop.f32.mrb[0].mxu0
    %v1815 = vadd.f32 %v1179, %v1814
    %v1816 = vpop.f32.mrb[0].mxu0
    %v1817 = vadd.f32 %v1181, %v1816
    %v1818 = vpop.f32.mrb[0].mxu0
    %v1819 = vadd.f32 %v1183, %v1818
    %1820 = vmatprep.mubr.bf16.mxu0 0
    %1821 = vmatmul.mubr.bf16.gmra.mrb[0].mxu0 %v1369
    %v1822 = vpop.f32.mrb[0].mxu0
    %v1823 = vadd.f32 %v1187, %v1822
    %v1824 = vpop.f32.mrb[0].mxu0
    %v1825 = vadd.f32 %v1189, %v1824
    %v1826 = vpop.f32.mrb[0].mxu0
    %v1827 = vadd.f32 %v1191, %v1826
    %v1828 = vpop.f32.mrb[0].mxu0
    %v1829 = vadd.f32 %v1193, %v1828
    %1830 = vmatprep.mubr.bf16.mxu0 0
    %1831 = vmatmul.mubr.bf16.gmra.mrb[0].mxu0 %v1370
    %v1832 = vpop.f32.mrb[0].mxu0
    %v1833 = vadd.f32 %v1197, %v1832
    %v1834 = vpop.f32.mrb[0].mxu0
    %v1835 = vadd.f32 %v1199, %v1834
    %v1836 = vpop.f32.mrb[0].mxu0
    %v1837 = vadd.f32 %v1201, %v1836
    %v1838 = vpop.f32.mrb[0].mxu0
    %v1839 = vadd.f32 %v1203, %v1838
    %1840 = vdwg.mxu0
    %1841 = vmatprep.subr.bf16.mxu0 %v1572
    %1842 = vmatpush1.bf16.msra.mxu0 %v1571
    %1843 = vmatprep.subr.bf16.mxu0 %v1580
    %1844 = vmatpush1.bf16.msra.mxu0 %v1579
    %1845 = vmatprep.subr.bf16.mxu0 %v1588
    %1846 = vmatpush1.bf16.msra.mxu0 %v1587
    %1847 = vmatprep.subr.bf16.mxu0 %v1596
    %1848 = vmatpush1.bf16.msra.mxu0 %v1595
    %1849 = vmatprep.subr.bf16.mxu0 %v1604
    %1850 = vmatpush1.bf16.msra.mxu0 %v1603
    %1851 = vmatprep.subr.bf16.mxu0 %v1612
    %1852 = vmatpush1.bf16.msra.mxu0 %v1611
    %1853 = vmatprep.subr.bf16.mxu0 %v1620
    %1854 = vmatpush1.bf16.msra.mxu0 %v1619
    %1855 = vmatprep.subr.bf16.mxu0 %v1628
    %1856 = vmatpush1.bf16.msra.mxu0 %v1627
    %1857 = vmatprep.subr.bf16.mxu0 0
    %1858 = vmatpush1.bf16.msra.mxu0 0
    %1859 = vmatprep.subr.bf16.mxu0 0
    %1860 = vmatpush1.bf16.msra.mxu0 0
    %1861 = vmatprep.subr.bf16.mxu0 0
    %1862 = vmatpush1.bf16.msra.mxu0 0
    %1863 = vmatprep.subr.bf16.mxu0 0
    %1864 = vmatpush1.bf16.msra.mxu0 0
    %1865 = vmatprep.subr.bf16.mxu0 0
    %1866 = vmatpush1.bf16.msra.mxu0 0
    %1867 = vmatprep.subr.bf16.mxu0 0
    %1868 = vmatpush1.bf16.msra.mxu0 0
    %1869 = vmatprep.subr.bf16.mxu0 0
    %1870 = vmatpush1.bf16.msra.mxu0 0
    %1871 = vmatprep.subr.bf16.mxu0 0
    %1872 = vmatpush1.bf16.msra.mxu0 0
    %1873 = vmatprep.mubr.bf16.mxu0 0
    %1874 = vmatmul.mubr.bf16.gmra.mrb[0].mxu0 %v1367
    %v1875 = vpop.f32.mrb[0].mxu0
    %v1876 = vadd.f32 %v1240, %v1875
    %v1877 = vpop.f32.mrb[0].mxu0
    %v1878 = vadd.f32 %v1242, %v1877
    %v1879 = vpop.f32.mrb[0].mxu0
    %v1880 = vadd.f32 %v1244, %v1879
    %v1881 = vpop.f32.mrb[0].mxu0
    %v1882 = vadd.f32 %v1246, %v1881
    %1883 = vmatprep.mubr.bf16.mxu0 0
    %1884 = vmatmul.mubr.bf16.gmra.mrb[0].mxu0 %v1368
    %v1885 = vpop.f32.mrb[0].mxu0
    %v1886 = vadd.f32 %v1250, %v1885
    %v1887 = vpop.f32.mrb[0].mxu0
    %v1888 = vadd.f32 %v1252, %v1887
    %v1889 = vpop.f32.mrb[0].mxu0
    %v1890 = vadd.f32 %v1254, %v1889
    %v1891 = vpop.f32.mrb[0].mxu0
    %v1892 = vadd.f32 %v1256, %v1891
    %1893 = vmatprep.mubr.bf16.mxu0 0
    %1894 = vmatmul.mubr.bf16.gmra.mrb[0].mxu0 %v1369
    %v1895 = vpop.f32.mrb[0].mxu0
    %v1896 = vadd.f32 %v1260, %v1895
    %v1897 = vpop.f32.mrb[0].mxu0
    %v1898 = vadd.f32 %v1262, %v1897
    %v1899 = vpop.f32.mrb[0].mxu0
    %v1900 = vadd.f32 %v1264, %v1899
    %v1901 = vpop.f32.mrb[0].mxu0
    %v1902 = vadd.f32 %v1266, %v1901
    %1903 = vmatprep.mubr.bf16.mxu0 0
    %1904 = vmatmul.mubr.bf16.gmra.mrb[0].mxu0 %v1370
    %v1905 = vpop.f32.mrb[0].mxu0
    %v1906 = vadd.f32 %v1270, %v1905
    %v1907 = vpop.f32.mrb[0].mxu0
    %v1908 = vadd.f32 %v1272, %v1907
    %v1909 = vpop.f32.mrb[0].mxu0
    %v1910 = vadd.f32 %v1274, %v1909
    %v1911 = vpop.f32.mrb[0].mxu0
    %v1912 = vadd.f32 %v1276, %v1911
    %1913 = vdwg.mxu0
    %1914 = vmatprep.subr.bf16.mxu0 %v1574
    %1915 = vmatpush1.bf16.msra.mxu0 %v1573
    %1916 = vmatprep.subr.bf16.mxu0 %v1582
    %1917 = vmatpush1.bf16.msra.mxu0 %v1581
    %1918 = vmatprep.subr.bf16.mxu0 %v1590
    %1919 = vmatpush1.bf16.msra.mxu0 %v1589
    %1920 = vmatprep.subr.bf16.mxu0 %v1598
    %1921 = vmatpush1.bf16.msra.mxu0 %v1597
    %1922 = vmatprep.subr.bf16.mxu0 %v1606
    %1923 = vmatpush1.bf16.msra.mxu0 %v1605
    %1924 = vmatprep.subr.bf16.mxu0 %v1614
    %1925 = vmatpush1.bf16.msra.mxu0 %v1613
    %1926 = vmatprep.subr.bf16.mxu0 %v1622
    %1927 = vmatpush1.bf16.msra.mxu0 %v1621
    %1928 = vmatprep.subr.bf16.mxu0 %v1630
    %1929 = vmatpush1.bf16.msra.mxu0 %v1629
    %1930 = vmatprep.subr.bf16.mxu0 0
    %1931 = vmatpush1.bf16.msra.mxu0 0
    %1932 = vmatprep.subr.bf16.mxu0 0
    %1933 = vmatpush1.bf16.msra.mxu0 0
    %1934 = vmatprep.subr.bf16.mxu0 0
    %1935 = vmatpush1.bf16.msra.mxu0 0
    %1936 = vmatprep.subr.bf16.mxu0 0
    %1937 = vmatpush1.bf16.msra.mxu0 0
    %1938 = vmatprep.subr.bf16.mxu0 0
    %1939 = vmatpush1.bf16.msra.mxu0 0
    %1940 = vmatprep.subr.bf16.mxu0 0
    %1941 = vmatpush1.bf16.msra.mxu0 0
    %1942 = vmatprep.subr.bf16.mxu0 0
    %1943 = vmatpush1.bf16.msra.mxu0 0
    %1944 = vmatprep.subr.bf16.mxu0 0
    %1945 = vmatpush1.bf16.msra.mxu0 0
    %1946 = vmatprep.mubr.bf16.mxu0 0
    %1947 = vmatmul.mubr.bf16.gmra.mrb[0].mxu0 %v1367
    %v1948 = vpop.f32.mrb[0].mxu0
    %v1949 = vadd.f32 %v1313, %v1948
    %v1950 = vpop.f32.mrb[0].mxu0
    %v1951 = vadd.f32 %v1315, %v1950
    %v1952 = vpop.f32.mrb[0].mxu0
    %v1953 = vadd.f32 %v1317, %v1952
    %v1954 = vpop.f32.mrb[0].mxu0
    %v1955 = vadd.f32 %v1319, %v1954
    %1956 = vmatprep.mubr.bf16.mxu0 0
    %1957 = vmatmul.mubr.bf16.gmra.mrb[0].mxu0 %v1368
    %v1958 = vpop.f32.mrb[0].mxu0
    %v1959 = vadd.f32 %v1323, %v1958
    %v1960 = vpop.f32.mrb[0].mxu0
    %v1961 = vadd.f32 %v1325, %v1960
    %v1962 = vpop.f32.mrb[0].mxu0
    %v1963 = vadd.f32 %v1327, %v1962
    %v1964 = vpop.f32.mrb[0].mxu0
    %v1965 = vadd.f32 %v1329, %v1964
    %1966 = vmatprep.mubr.bf16.mxu0 0
    %1967 = vmatmul.mubr.bf16.gmra.mrb[0].mxu0 %v1369
    %v1968 = vpop.f32.mrb[0].mxu0
    %v1969 = vadd.f32 %v1333, %v1968
    %v1970 = vpop.f32.mrb[0].mxu0
    %v1971 = vadd.f32 %v1335, %v1970
    %v1972 = vpop.f32.mrb[0].mxu0
    %v1973 = vadd.f32 %v1337, %v1972
    %v1974 = vpop.f32.mrb[0].mxu0
    %v1975 = vadd.f32 %v1339, %v1974
    %1976 = vmatprep.mubr.bf16.mxu0 0
    %1977 = vmatmul.mubr.bf16.gmra.mrb[0].mxu0 %v1370
    %v1978 = vpop.f32.mrb[0].mxu0
    %v1979 = vadd.f32 %v1343, %v1978
    %v1980 = vpop.f32.mrb[0].mxu0
    %v1981 = vadd.f32 %v1345, %v1980
    %v1982 = vpop.f32.mrb[0].mxu0
    %v1983 = vadd.f32 %v1347, %v1982
    %v1984 = vpop.f32.mrb[0].mxu0
    %v1985 = vadd.f32 %v1349, %v1984
    %1986 = vdwg.mxu0
    %v1987 = vld [vmem:[#allocation12] sm:$0xff]
    %v1988 = vld [vmem:[#allocation12 + $0x8] sm:$0xff]
    %v1989 = vld [vmem:[#allocation12 + $0x10] sm:$0xff]
    %v1990 = vld [vmem:[#allocation12 + $0x18] sm:$0xff]
    %v1991 = vld [vmem:[#allocation12 + $0x20] sm:$0xff]
    %v1992 = vld [vmem:[#allocation12 + $0x28] sm:$0xff]
    %v1993 = vld [vmem:[#allocation12 + $0x30] sm:$0xff]
    %v1994 = vld [vmem:[#allocation12 + $0x38] sm:$0xff]
    %v1995 = vld [vmem:[#allocation18] sm:$0xff]
    %v1996 = vld [vmem:[#allocation18 + $0x8] sm:$0xff]
    %v1997 = vld [vmem:[#allocation18 + $0x10] sm:$0xff]
    %v1998 = vld [vmem:[#allocation18 + $0x18] sm:$0xff]
    %v1999 = vld [vmem:[#allocation18 + $0x20] sm:$0xff]
    %v2000 = vld [vmem:[#allocation18 + $0x28] sm:$0xff]
    %v2001 = vld [vmem:[#allocation18 + $0x30] sm:$0xff]
    %v2002 = vld [vmem:[#allocation18 + $0x38] sm:$0xff]
    %v2003 = vld [vmem:[#allocation18 + $0x40] sm:$0xff]
    %v2004 = vld [vmem:[#allocation18 + $0x48] sm:$0xff]
    %v2005 = vld [vmem:[#allocation18 + $0x50] sm:$0xff]
    %v2006 = vld [vmem:[#allocation18 + $0x58] sm:$0xff]
    %v2007 = vld [vmem:[#allocation18 + $0x60] sm:$0xff]
    %v2008 = vld [vmem:[#allocation18 + $0x68] sm:$0xff]
    %v2009 = vld [vmem:[#allocation18 + $0x70] sm:$0xff]
    %v2010 = vld [vmem:[#allocation18 + $0x78] sm:$0xff]
    %v2011 = vld [vmem:[#allocation18 + $0x80] sm:$0xff]
    %v2012 = vld [vmem:[#allocation18 + $0x88] sm:$0xff]
    %v2013 = vld [vmem:[#allocation18 + $0x90] sm:$0xff]
    %v2014 = vld [vmem:[#allocation18 + $0x98] sm:$0xff]
    %v2015 = vld [vmem:[#allocation18 + $0xa0] sm:$0xff]
    %v2016 = vld [vmem:[#allocation18 + $0xa8] sm:$0xff]
    %v2017 = vld [vmem:[#allocation18 + $0xb0] sm:$0xff]
    %v2018 = vld [vmem:[#allocation18 + $0xb8] sm:$0xff]
    %v2019 = vld [vmem:[#allocation18 + $0xc0] sm:$0xff]
    %v2020 = vld [vmem:[#allocation18 + $0xc8] sm:$0xff]
    %v2021 = vld [vmem:[#allocation18 + $0xd0] sm:$0xff]
    %v2022 = vld [vmem:[#allocation18 + $0xd8] sm:$0xff]
    %v2023 = vld [vmem:[#allocation18 + $0xe0] sm:$0xff]
    %v2024 = vld [vmem:[#allocation18 + $0xe8] sm:$0xff]
    %v2025 = vld [vmem:[#allocation18 + $0xf0] sm:$0xff]
    %v2026 = vld [vmem:[#allocation18 + $0xf8] sm:$0xff]
    %v2027 = vld [vmem:[#allocation18 + $0x100] sm:$0xff]
    %v2028 = vld [vmem:[#allocation18 + $0x108] sm:$0xff]
    %v2029 = vld [vmem:[#allocation18 + $0x110] sm:$0xff]
    %v2030 = vld [vmem:[#allocation18 + $0x118] sm:$0xff]
    %v2031 = vld [vmem:[#allocation18 + $0x120] sm:$0xff]
    %v2032 = vld [vmem:[#allocation18 + $0x128] sm:$0xff]
    %v2033 = vld [vmem:[#allocation18 + $0x130] sm:$0xff]
    %v2034 = vld [vmem:[#allocation18 + $0x138] sm:$0xff]
    %v2035 = vld [vmem:[#allocation18 + $0x140] sm:$0xff]
    %v2036 = vld [vmem:[#allocation18 + $0x148] sm:$0xff]
    %v2037 = vld [vmem:[#allocation18 + $0x150] sm:$0xff]
    %v2038 = vld [vmem:[#allocation18 + $0x158] sm:$0xff]
    %v2039 = vld [vmem:[#allocation18 + $0x160] sm:$0xff]
    %v2040 = vld [vmem:[#allocation18 + $0x168] sm:$0xff]
    %v2041 = vld [vmem:[#allocation18 + $0x170] sm:$0xff]
    %v2042 = vld [vmem:[#allocation18 + $0x178] sm:$0xff]
    %v2043 = vld [vmem:[#allocation18 + $0x180] sm:$0xff]
    %v2044 = vld [vmem:[#allocation18 + $0x188] sm:$0xff]
    %v2045 = vld [vmem:[#allocation18 + $0x190] sm:$0xff]
    %v2046 = vld [vmem:[#allocation18 + $0x198] sm:$0xff]
    %v2047 = vld [vmem:[#allocation18 + $0x1a0] sm:$0xff]
    %v2048 = vld [vmem:[#allocation18 + $0x1a8] sm:$0xff]
    %v2049 = vld [vmem:[#allocation18 + $0x1b0] sm:$0xff]
    %v2050 = vld [vmem:[#allocation18 + $0x1b8] sm:$0xff]
    %v2051 = vld [vmem:[#allocation18 + $0x1c0] sm:$0xff]
    %v2052 = vld [vmem:[#allocation18 + $0x1c8] sm:$0xff]
    %v2053 = vld [vmem:[#allocation18 + $0x1d0] sm:$0xff]
    %v2054 = vld [vmem:[#allocation18 + $0x1d8] sm:$0xff]
    %v2055 = vld [vmem:[#allocation18 + $0x1e0] sm:$0xff]
    %v2056 = vld [vmem:[#allocation18 + $0x1e8] sm:$0xff]
    %v2057 = vld [vmem:[#allocation18 + $0x1f0] sm:$0xff]
    %v2058 = vld [vmem:[#allocation18 + $0x1f8] sm:$0xff]
    %v2059 = vld [vmem:[#allocation18 + $0x200] sm:$0xff]
    %v2060 = vld [vmem:[#allocation18 + $0x208] sm:$0xff]
    %v2061 = vld [vmem:[#allocation18 + $0x210] sm:$0xff]
    %v2062 = vld [vmem:[#allocation18 + $0x218] sm:$0xff]
    %v2063 = vld [vmem:[#allocation18 + $0x220] sm:$0xff]
    %v2064 = vld [vmem:[#allocation18 + $0x228] sm:$0xff]
    %v2065 = vld [vmem:[#allocation18 + $0x230] sm:$0xff]
    %v2066 = vld [vmem:[#allocation18 + $0x238] sm:$0xff]
    %v2067 = vld [vmem:[#allocation18 + $0x240] sm:$0xff]
    %v2068 = vld [vmem:[#allocation18 + $0x248] sm:$0xff]
    %v2069 = vld [vmem:[#allocation18 + $0x250] sm:$0xff]
    %v2070 = vld [vmem:[#allocation18 + $0x258] sm:$0xff]
    %v2071 = vld [vmem:[#allocation18 + $0x260] sm:$0xff]
    %v2072 = vld [vmem:[#allocation18 + $0x268] sm:$0xff]
    %v2073 = vld [vmem:[#allocation18 + $0x270] sm:$0xff]
    %v2074 = vld [vmem:[#allocation18 + $0x278] sm:$0xff]
    %v2075 = vld [vmem:[#allocation18 + $0x280] sm:$0xff]
    %v2076 = vld [vmem:[#allocation18 + $0x288] sm:$0xff]
    %v2077 = vld [vmem:[#allocation18 + $0x290] sm:$0xff]
    %v2078 = vld [vmem:[#allocation18 + $0x298] sm:$0xff]
    %v2079 = vld [vmem:[#allocation18 + $0x2a0] sm:$0xff]
    %v2080 = vld [vmem:[#allocation18 + $0x2a8] sm:$0xff]
    %v2081 = vld [vmem:[#allocation18 + $0x2b0] sm:$0xff]
    %v2082 = vld [vmem:[#allocation18 + $0x2b8] sm:$0xff]
    %v2083 = vld [vmem:[#allocation18 + $0x2c0] sm:$0xff]
    %v2084 = vld [vmem:[#allocation18 + $0x2c8] sm:$0xff]
    %v2085 = vld [vmem:[#allocation18 + $0x2d0] sm:$0xff]
    %v2086 = vld [vmem:[#allocation18 + $0x2d8] sm:$0xff]
    %v2087 = vld [vmem:[#allocation18 + $0x2e0] sm:$0xff]
    %v2088 = vld [vmem:[#allocation18 + $0x2e8] sm:$0xff]
    %v2089 = vld [vmem:[#allocation18 + $0x2f0] sm:$0xff]
    %v2090 = vld [vmem:[#allocation18 + $0x2f8] sm:$0xff]
    %v2091 = vld [vmem:[#allocation18 + $0x300] sm:$0xff]
    %v2092 = vld [vmem:[#allocation18 + $0x308] sm:$0xff]
    %v2093 = vld [vmem:[#allocation18 + $0x310] sm:$0xff]
    %v2094 = vld [vmem:[#allocation18 + $0x318] sm:$0xff]
    %v2095 = vld [vmem:[#allocation18 + $0x320] sm:$0xff]
    %v2096 = vld [vmem:[#allocation18 + $0x328] sm:$0xff]
    %v2097 = vld [vmem:[#allocation18 + $0x330] sm:$0xff]
    %v2098 = vld [vmem:[#allocation18 + $0x338] sm:$0xff]
    %v2099 = vld [vmem:[#allocation18 + $0x340] sm:$0xff]
    %v2100 = vld [vmem:[#allocation18 + $0x348] sm:$0xff]
    %v2101 = vld [vmem:[#allocation18 + $0x350] sm:$0xff]
    %v2102 = vld [vmem:[#allocation18 + $0x358] sm:$0xff]
    %v2103 = vld [vmem:[#allocation18 + $0x360] sm:$0xff]
    %v2104 = vld [vmem:[#allocation18 + $0x368] sm:$0xff]
    %v2105 = vld [vmem:[#allocation18 + $0x370] sm:$0xff]
    %v2106 = vld [vmem:[#allocation18 + $0x378] sm:$0xff]
    %v2107 = vld [vmem:[#allocation18 + $0x380] sm:$0xff]
    %v2108 = vld [vmem:[#allocation18 + $0x388] sm:$0xff]
    %v2109 = vld [vmem:[#allocation18 + $0x390] sm:$0xff]
    %v2110 = vld [vmem:[#allocation18 + $0x398] sm:$0xff]
    %v2111 = vld [vmem:[#allocation18 + $0x3a0] sm:$0xff]
    %v2112 = vld [vmem:[#allocation18 + $0x3a8] sm:$0xff]
    %v2113 = vld [vmem:[#allocation18 + $0x3b0] sm:$0xff]
    %v2114 = vld [vmem:[#allocation18 + $0x3b8] sm:$0xff]
    %v2115 = vld [vmem:[#allocation18 + $0x3c0] sm:$0xff]
    %v2116 = vld [vmem:[#allocation18 + $0x3c8] sm:$0xff]
    %v2117 = vld [vmem:[#allocation18 + $0x3d0] sm:$0xff]
    %v2118 = vld [vmem:[#allocation18 + $0x3d8] sm:$0xff]
    %v2119 = vld [vmem:[#allocation18 + $0x3e0] sm:$0xff]
    %v2120 = vld [vmem:[#allocation18 + $0x3e8] sm:$0xff]
    %v2121 = vld [vmem:[#allocation18 + $0x3f0] sm:$0xff]
    %v2122 = vld [vmem:[#allocation18 + $0x3f8] sm:$0xff]
    %v2131 = vunpack.c.l.b16 %v1987
    %v2132 = vunpack.c.h.b16 %v1987
    %v2133 = vunpack.c.l.b16 %v1988
    %v2134 = vunpack.c.h.b16 %v1988
    %v2135 = vunpack.c.l.b16 %v1989
    %v2136 = vunpack.c.h.b16 %v1989
    %v2137 = vunpack.c.l.b16 %v1990
    %v2138 = vunpack.c.h.b16 %v1990
    %v2139 = vunpack.c.l.b16 %v1991
    %v2140 = vunpack.c.h.b16 %v1991
    %v2141 = vunpack.c.l.b16 %v1992
    %v2142 = vunpack.c.h.b16 %v1992
    %v2143 = vunpack.c.l.b16 %v1993
    %v2144 = vunpack.c.h.b16 %v1993
    %v2145 = vunpack.c.l.b16 %v1994
    %v2146 = vunpack.c.h.b16 %v1994
    %v2147 = vpack.c.b16 %v2133, %v2131
    %v2148 = vpack.c.b16 %v2134, %v2132
    %v2149 = vpack.c.b16 %v2137, %v2135
    %v2150 = vpack.c.b16 %v2138, %v2136
    %v2151 = vpack.c.b16 %v2141, %v2139
    %v2152 = vpack.c.b16 %v2142, %v2140
    %v2153 = vpack.c.b16 %v2145, %v2143
    %v2154 = vpack.c.b16 %v2146, %v2144
    %v2291 = vunpack.c.l.b16 %v1995
    %v2292 = vunpack.c.h.b16 %v1995
    %v2293 = vunpack.c.l.b16 %v1996
    %v2294 = vunpack.c.h.b16 %v1996
    %v2295 = vunpack.c.l.b16 %v1997
    %v2296 = vunpack.c.h.b16 %v1997
    %v2297 = vunpack.c.l.b16 %v1998
    %v2298 = vunpack.c.h.b16 %v1998
    %v2299 = vunpack.c.l.b16 %v1999
    %v2300 = vunpack.c.h.b16 %v1999
    %v2301 = vunpack.c.l.b16 %v2000
    %v2302 = vunpack.c.h.b16 %v2000
    %v2303 = vunpack.c.l.b16 %v2001
    %v2304 = vunpack.c.h.b16 %v2001
    %v2305 = vunpack.c.l.b16 %v2002
    %v2306 = vunpack.c.h.b16 %v2002
    %v2307 = vunpack.c.l.b16 %v2003
    %v2308 = vunpack.c.h.b16 %v2003
    %v2309 = vunpack.c.l.b16 %v2004
    %v2310 = vunpack.c.h.b16 %v2004
    %v2311 = vunpack.c.l.b16 %v2005
    %v2312 = vunpack.c.h.b16 %v2005
    %v2313 = vunpack.c.l.b16 %v2006
    %v2314 = vunpack.c.h.b16 %v2006
    %v2315 = vunpack.c.l.b16 %v2007
    %v2316 = vunpack.c.h.b16 %v2007
    %v2317 = vunpack.c.l.b16 %v2008
    %v2318 = vunpack.c.h.b16 %v2008
    %v2319 = vunpack.c.l.b16 %v2009
    %v2320 = vunpack.c.h.b16 %v2009
    %v2321 = vunpack.c.l.b16 %v2010
    %v2322 = vunpack.c.h.b16 %v2010
    %v2323 = vunpack.c.l.b16 %v2011
    %v2324 = vunpack.c.h.b16 %v2011
    %v2325 = vunpack.c.l.b16 %v2012
    %v2326 = vunpack.c.h.b16 %v2012
    %v2327 = vunpack.c.l.b16 %v2013
    %v2328 = vunpack.c.h.b16 %v2013
    %v2329 = vunpack.c.l.b16 %v2014
    %v2330 = vunpack.c.h.b16 %v2014
    %v2331 = vunpack.c.l.b16 %v2015
    %v2332 = vunpack.c.h.b16 %v2015
    %v2333 = vunpack.c.l.b16 %v2016
    %v2334 = vunpack.c.h.b16 %v2016
    %v2335 = vunpack.c.l.b16 %v2017
    %v2336 = vunpack.c.h.b16 %v2017
    %v2337 = vunpack.c.l.b16 %v2018
    %v2338 = vunpack.c.h.b16 %v2018
    %v2339 = vunpack.c.l.b16 %v2019
    %v2340 = vunpack.c.h.b16 %v2019
    %v2341 = vunpack.c.l.b16 %v2020
    %v2342 = vunpack.c.h.b16 %v2020
    %v2343 = vunpack.c.l.b16 %v2021
    %v2344 = vunpack.c.h.b16 %v2021
    %v2345 = vunpack.c.l.b16 %v2022
    %v2346 = vunpack.c.h.b16 %v2022
    %v2347 = vunpack.c.l.b16 %v2023
    %v2348 = vunpack.c.h.b16 %v2023
    %v2349 = vunpack.c.l.b16 %v2024
    %v2350 = vunpack.c.h.b16 %v2024
    %v2351 = vunpack.c.l.b16 %v2025
    %v2352 = vunpack.c.h.b16 %v2025
    %v2353 = vunpack.c.l.b16 %v2026
    %v2354 = vunpack.c.h.b16 %v2026
    %v2355 = vunpack.c.l.b16 %v2027
    %v2356 = vunpack.c.h.b16 %v2027
    %v2357 = vunpack.c.l.b16 %v2028
    %v2358 = vunpack.c.h.b16 %v2028
    %v2359 = vunpack.c.l.b16 %v2029
    %v2360 = vunpack.c.h.b16 %v2029
    %v2361 = vunpack.c.l.b16 %v2030
    %v2362 = vunpack.c.h.b16 %v2030
    %v2363 = vunpack.c.l.b16 %v2031
    %v2364 = vunpack.c.h.b16 %v2031
    %v2365 = vunpack.c.l.b16 %v2032
    %v2366 = vunpack.c.h.b16 %v2032
    %v2367 = vunpack.c.l.b16 %v2033
    %v2368 = vunpack.c.h.b16 %v2033
    %v2369 = vunpack.c.l.b16 %v2034
    %v2370 = vunpack.c.h.b16 %v2034
    %v2371 = vunpack.c.l.b16 %v2035
    %v2372 = vunpack.c.h.b16 %v2035
    %v2373 = vunpack.c.l.b16 %v2036
    %v2374 = vunpack.c.h.b16 %v2036
    %v2375 = vunpack.c.l.b16 %v2037
    %v2376 = vunpack.c.h.b16 %v2037
    %v2377 = vunpack.c.l.b16 %v2038
    %v2378 = vunpack.c.h.b16 %v2038
    %v2379 = vunpack.c.l.b16 %v2039
    %v2380 = vunpack.c.h.b16 %v2039
    %v2381 = vunpack.c.l.b16 %v2040
    %v2382 = vunpack.c.h.b16 %v2040
    %v2383 = vunpack.c.l.b16 %v2041
    %v2384 = vunpack.c.h.b16 %v2041
    %v2385 = vunpack.c.l.b16 %v2042
    %v2386 = vunpack.c.h.b16 %v2042
    %v2387 = vunpack.c.l.b16 %v2043
    %v2388 = vunpack.c.h.b16 %v2043
    %v2389 = vunpack.c.l.b16 %v2044
    %v2390 = vunpack.c.h.b16 %v2044
    %v2391 = vunpack.c.l.b16 %v2045
    %v2392 = vunpack.c.h.b16 %v2045
    %v2393 = vunpack.c.l.b16 %v2046
    %v2394 = vunpack.c.h.b16 %v2046
    %v2395 = vunpack.c.l.b16 %v2047
    %v2396 = vunpack.c.h.b16 %v2047
    %v2397 = vunpack.c.l.b16 %v2048
    %v2398 = vunpack.c.h.b16 %v2048
    %v2399 = vunpack.c.l.b16 %v2049
    %v2400 = vunpack.c.h.b16 %v2049
    %v2401 = vunpack.c.l.b16 %v2050
    %v2402 = vunpack.c.h.b16 %v2050
    %v2403 = vunpack.c.l.b16 %v2051
    %v2404 = vunpack.c.h.b16 %v2051
    %v2405 = vunpack.c.l.b16 %v2052
    %v2406 = vunpack.c.h.b16 %v2052
    %v2407 = vunpack.c.l.b16 %v2053
    %v2408 = vunpack.c.h.b16 %v2053
    %v2409 = vunpack.c.l.b16 %v2054
    %v2410 = vunpack.c.h.b16 %v2054
    %v2411 = vunpack.c.l.b16 %v2055
    %v2412 = vunpack.c.h.b16 %v2055
    %v2413 = vunpack.c.l.b16 %v2056
    %v2414 = vunpack.c.h.b16 %v2056
    %v2415 = vunpack.c.l.b16 %v2057
    %v2416 = vunpack.c.h.b16 %v2057
    %v2417 = vunpack.c.l.b16 %v2058
    %v2418 = vunpack.c.h.b16 %v2058
    %v2419 = vunpack.c.l.b16 %v2059
    %v2420 = vunpack.c.h.b16 %v2059
    %v2421 = vunpack.c.l.b16 %v2060
    %v2422 = vunpack.c.h.b16 %v2060
    %v2423 = vunpack.c.l.b16 %v2061
    %v2424 = vunpack.c.h.b16 %v2061
    %v2425 = vunpack.c.l.b16 %v2062
    %v2426 = vunpack.c.h.b16 %v2062
    %v2427 = vunpack.c.l.b16 %v2063
    %v2428 = vunpack.c.h.b16 %v2063
    %v2429 = vunpack.c.l.b16 %v2064
    %v2430 = vunpack.c.h.b16 %v2064
    %v2431 = vunpack.c.l.b16 %v2065
    %v2432 = vunpack.c.h.b16 %v2065
    %v2433 = vunpack.c.l.b16 %v2066
    %v2434 = vunpack.c.h.b16 %v2066
    %v2435 = vunpack.c.l.b16 %v2067
    %v2436 = vunpack.c.h.b16 %v2067
    %v2437 = vunpack.c.l.b16 %v2068
    %v2438 = vunpack.c.h.b16 %v2068
    %v2439 = vunpack.c.l.b16 %v2069
    %v2440 = vunpack.c.h.b16 %v2069
    %v2441 = vunpack.c.l.b16 %v2070
    %v2442 = vunpack.c.h.b16 %v2070
    %v2443 = vunpack.c.l.b16 %v2071
    %v2444 = vunpack.c.h.b16 %v2071
    %v2445 = vunpack.c.l.b16 %v2072
    %v2446 = vunpack.c.h.b16 %v2072
    %v2447 = vunpack.c.l.b16 %v2073
    %v2448 = vunpack.c.h.b16 %v2073
    %v2449 = vunpack.c.l.b16 %v2074
    %v2450 = vunpack.c.h.b16 %v2074
    %v2451 = vunpack.c.l.b16 %v2075
    %v2452 = vunpack.c.h.b16 %v2075
    %v2453 = vunpack.c.l.b16 %v2076
    %v2454 = vunpack.c.h.b16 %v2076
    %v2455 = vunpack.c.l.b16 %v2077
    %v2456 = vunpack.c.h.b16 %v2077
    %v2457 = vunpack.c.l.b16 %v2078
    %v2458 = vunpack.c.h.b16 %v2078
    %v2459 = vunpack.c.l.b16 %v2079
    %v2460 = vunpack.c.h.b16 %v2079
    %v2461 = vunpack.c.l.b16 %v2080
    %v2462 = vunpack.c.h.b16 %v2080
    %v2463 = vunpack.c.l.b16 %v2081
    %v2464 = vunpack.c.h.b16 %v2081
    %v2465 = vunpack.c.l.b16 %v2082
    %v2466 = vunpack.c.h.b16 %v2082
    %v2467 = vunpack.c.l.b16 %v2083
    %v2468 = vunpack.c.h.b16 %v2083
    %v2469 = vunpack.c.l.b16 %v2084
    %v2470 = vunpack.c.h.b16 %v2084
    %v2471 = vunpack.c.l.b16 %v2085
    %v2472 = vunpack.c.h.b16 %v2085
    %v2473 = vunpack.c.l.b16 %v2086
    %v2474 = vunpack.c.h.b16 %v2086
    %v2475 = vunpack.c.l.b16 %v2087
    %v2476 = vunpack.c.h.b16 %v2087
    %v2477 = vunpack.c.l.b16 %v2088
    %v2478 = vunpack.c.h.b16 %v2088
    %v2479 = vunpack.c.l.b16 %v2089
    %v2480 = vunpack.c.h.b16 %v2089
    %v2481 = vunpack.c.l.b16 %v2090
    %v2482 = vunpack.c.h.b16 %v2090
    %v2483 = vunpack.c.l.b16 %v2091
    %v2484 = vunpack.c.h.b16 %v2091
    %v2485 = vunpack.c.l.b16 %v2092
    %v2486 = vunpack.c.h.b16 %v2092
    %v2487 = vunpack.c.l.b16 %v2093
    %v2488 = vunpack.c.h.b16 %v2093
    %v2489 = vunpack.c.l.b16 %v2094
    %v2490 = vunpack.c.h.b16 %v2094
    %v2491 = vunpack.c.l.b16 %v2095
    %v2492 = vunpack.c.h.b16 %v2095
    %v2493 = vunpack.c.l.b16 %v2096
    %v2494 = vunpack.c.h.b16 %v2096
    %v2495 = vunpack.c.l.b16 %v2097
    %v2496 = vunpack.c.h.b16 %v2097
    %v2497 = vunpack.c.l.b16 %v2098
    %v2498 = vunpack.c.h.b16 %v2098
    %v2499 = vunpack.c.l.b16 %v2099
    %v2500 = vunpack.c.h.b16 %v2099
    %v2501 = vunpack.c.l.b16 %v2100
    %v2502 = vunpack.c.h.b16 %v2100
    %v2503 = vunpack.c.l.b16 %v2101
    %v2504 = vunpack.c.h.b16 %v2101
    %v2505 = vunpack.c.l.b16 %v2102
    %v2506 = vunpack.c.h.b16 %v2102
    %v2507 = vunpack.c.l.b16 %v2103
    %v2508 = vunpack.c.h.b16 %v2103
    %v2509 = vunpack.c.l.b16 %v2104
    %v2510 = vunpack.c.h.b16 %v2104
    %v2511 = vunpack.c.l.b16 %v2105
    %v2512 = vunpack.c.h.b16 %v2105
    %v2513 = vunpack.c.l.b16 %v2106
    %v2514 = vunpack.c.h.b16 %v2106
    %v2515 = vunpack.c.l.b16 %v2107
    %v2516 = vunpack.c.h.b16 %v2107
    %v2517 = vunpack.c.l.b16 %v2108
    %v2518 = vunpack.c.h.b16 %v2108
    %v2519 = vunpack.c.l.b16 %v2109
    %v2520 = vunpack.c.h.b16 %v2109
    %v2521 = vunpack.c.l.b16 %v2110
    %v2522 = vunpack.c.h.b16 %v2110
    %v2523 = vunpack.c.l.b16 %v2111
    %v2524 = vunpack.c.h.b16 %v2111
    %v2525 = vunpack.c.l.b16 %v2112
    %v2526 = vunpack.c.h.b16 %v2112
    %v2527 = vunpack.c.l.b16 %v2113
    %v2528 = vunpack.c.h.b16 %v2113
    %v2529 = vunpack.c.l.b16 %v2114
    %v2530 = vunpack.c.h.b16 %v2114
    %v2531 = vunpack.c.l.b16 %v2115
    %v2532 = vunpack.c.h.b16 %v2115
    %v2533 = vunpack.c.l.b16 %v2116
    %v2534 = vunpack.c.h.b16 %v2116
    %v2535 = vunpack.c.l.b16 %v2117
    %v2536 = vunpack.c.h.b16 %v2117
    %v2537 = vunpack.c.l.b16 %v2118
    %v2538 = vunpack.c.h.b16 %v2118
    %v2539 = vunpack.c.l.b16 %v2119
    %v2540 = vunpack.c.h.b16 %v2119
    %v2541 = vunpack.c.l.b16 %v2120
    %v2542 = vunpack.c.h.b16 %v2120
    %v2543 = vunpack.c.l.b16 %v2121
    %v2544 = vunpack.c.h.b16 %v2121
    %v2545 = vunpack.c.l.b16 %v2122
    %v2546 = vunpack.c.h.b16 %v2122
    %v2547 = vpack.c.b16 %v2299, %v2291
    %v2548 = vpack.c.b16 %v2300, %v2292
    %v2549 = vpack.c.b16 %v2301, %v2293
    %v2550 = vpack.c.b16 %v2302, %v2294
    %v2551 = vpack.c.b16 %v2303, %v2295
    %v2552 = vpack.c.b16 %v2304, %v2296
    %v2553 = vpack.c.b16 %v2305, %v2297
    %v2554 = vpack.c.b16 %v2306, %v2298
    %v2555 = vpack.c.b16 %v2315, %v2307
    %v2556 = vpack.c.b16 %v2316, %v2308
    %v2557 = vpack.c.b16 %v2317, %v2309
    %v2558 = vpack.c.b16 %v2318, %v2310
    %v2559 = vpack.c.b16 %v2319, %v2311
    %v2560 = vpack.c.b16 %v2320, %v2312
    %v2561 = vpack.c.b16 %v2321, %v2313
    %v2562 = vpack.c.b16 %v2322, %v2314
    %v2563 = vpack.c.b16 %v2331, %v2323
    %v2564 = vpack.c.b16 %v2332, %v2324
    %v2565 = vpack.c.b16 %v2333, %v2325
    %v2566 = vpack.c.b16 %v2334, %v2326
    %v2567 = vpack.c.b16 %v2335, %v2327
    %v2568 = vpack.c.b16 %v2336, %v2328
    %v2569 = vpack.c.b16 %v2337, %v2329
    %v2570 = vpack.c.b16 %v2338, %v2330
    %v2571 = vpack.c.b16 %v2347, %v2339
    %v2572 = vpack.c.b16 %v2348, %v2340
    %v2573 = vpack.c.b16 %v2349, %v2341
    %v2574 = vpack.c.b16 %v2350, %v2342
    %v2575 = vpack.c.b16 %v2351, %v2343
    %v2576 = vpack.c.b16 %v2352, %v2344
    %v2577 = vpack.c.b16 %v2353, %v2345
    %v2578 = vpack.c.b16 %v2354, %v2346
    %v2579 = vpack.c.b16 %v2363, %v2355
    %v2580 = vpack.c.b16 %v2364, %v2356
    %v2581 = vpack.c.b16 %v2365, %v2357
    %v2582 = vpack.c.b16 %v2366, %v2358
    %v2583 = vpack.c.b16 %v2367, %v2359
    %v2584 = vpack.c.b16 %v2368, %v2360
    %v2585 = vpack.c.b16 %v2369, %v2361
    %v2586 = vpack.c.b16 %v2370, %v2362
    %v2587 = vpack.c.b16 %v2379, %v2371
    %v2588 = vpack.c.b16 %v2380, %v2372
    %v2589 = vpack.c.b16 %v2381, %v2373
    %v2590 = vpack.c.b16 %v2382, %v2374
    %v2591 = vpack.c.b16 %v2383, %v2375
    %v2592 = vpack.c.b16 %v2384, %v2376
    %v2593 = vpack.c.b16 %v2385, %v2377
    %v2594 = vpack.c.b16 %v2386, %v2378
    %v2595 = vpack.c.b16 %v2395, %v2387
    %v2596 = vpack.c.b16 %v2396, %v2388
    %v2597 = vpack.c.b16 %v2397, %v2389
    %v2598 = vpack.c.b16 %v2398, %v2390
    %v2599 = vpack.c.b16 %v2399, %v2391
    %v2600 = vpack.c.b16 %v2400, %v2392
    %v2601 = vpack.c.b16 %v2401, %v2393
    %v2602 = vpack.c.b16 %v2402, %v2394
    %v2603 = vpack.c.b16 %v2411, %v2403
    %v2604 = vpack.c.b16 %v2412, %v2404
    %v2605 = vpack.c.b16 %v2413, %v2405
    %v2606 = vpack.c.b16 %v2414, %v2406
    %v2607 = vpack.c.b16 %v2415, %v2407
    %v2608 = vpack.c.b16 %v2416, %v2408
    %v2609 = vpack.c.b16 %v2417, %v2409
    %v2610 = vpack.c.b16 %v2418, %v2410
    %v2611 = vpack.c.b16 %v2427, %v2419
    %v2612 = vpack.c.b16 %v2428, %v2420
    %v2613 = vpack.c.b16 %v2429, %v2421
    %v2614 = vpack.c.b16 %v2430, %v2422
    %v2615 = vpack.c.b16 %v2431, %v2423
    %v2616 = vpack.c.b16 %v2432, %v2424
    %v2617 = vpack.c.b16 %v2433, %v2425
    %v2618 = vpack.c.b16 %v2434, %v2426
    %v2619 = vpack.c.b16 %v2443, %v2435
    %v2620 = vpack.c.b16 %v2444, %v2436
    %v2621 = vpack.c.b16 %v2445, %v2437
    %v2622 = vpack.c.b16 %v2446, %v2438
    %v2623 = vpack.c.b16 %v2447, %v2439
    %v2624 = vpack.c.b16 %v2448, %v2440
    %v2625 = vpack.c.b16 %v2449, %v2441
    %v2626 = vpack.c.b16 %v2450, %v2442
    %v2627 = vpack.c.b16 %v2459, %v2451
    %v2628 = vpack.c.b16 %v2460, %v2452
    %v2629 = vpack.c.b16 %v2461, %v2453
    %v2630 = vpack.c.b16 %v2462, %v2454
    %v2631 = vpack.c.b16 %v2463, %v2455
    %v2632 = vpack.c.b16 %v2464, %v2456
    %v2633 = vpack.c.b16 %v2465, %v2457
    %v2634 = vpack.c.b16 %v2466, %v2458
    %v2635 = vpack.c.b16 %v2475, %v2467
    %v2636 = vpack.c.b16 %v2476, %v2468
    %v2637 = vpack.c.b16 %v2477, %v2469
    %v2638 = vpack.c.b16 %v2478, %v2470
    %v2639 = vpack.c.b16 %v2479, %v2471
    %v2640 = vpack.c.b16 %v2480, %v2472
    %v2641 = vpack.c.b16 %v2481, %v2473
    %v2642 = vpack.c.b16 %v2482, %v2474
    %v2643 = vpack.c.b16 %v2491, %v2483
    %v2644 = vpack.c.b16 %v2492, %v2484
    %v2645 = vpack.c.b16 %v2493, %v2485
    %v2646 = vpack.c.b16 %v2494, %v2486
    %v2647 = vpack.c.b16 %v2495, %v2487
    %v2648 = vpack.c.b16 %v2496, %v2488
    %v2649 = vpack.c.b16 %v2497, %v2489
    %v2650 = vpack.c.b16 %v2498, %v2490
    %v2651 = vpack.c.b16 %v2507, %v2499
    %v2652 = vpack.c.b16 %v2508, %v2500
    %v2653 = vpack.c.b16 %v2509, %v2501
    %v2654 = vpack.c.b16 %v2510, %v2502
    %v2655 = vpack.c.b16 %v2511, %v2503
    %v2656 = vpack.c.b16 %v2512, %v2504
    %v2657 = vpack.c.b16 %v2513, %v2505
    %v2658 = vpack.c.b16 %v2514, %v2506
    %v2659 = vpack.c.b16 %v2523, %v2515
    %v2660 = vpack.c.b16 %v2524, %v2516
    %v2661 = vpack.c.b16 %v2525, %v2517
    %v2662 = vpack.c.b16 %v2526, %v2518
    %v2663 = vpack.c.b16 %v2527, %v2519
    %v2664 = vpack.c.b16 %v2528, %v2520
    %v2665 = vpack.c.b16 %v2529, %v2521
    %v2666 = vpack.c.b16 %v2530, %v2522
    %v2667 = vpack.c.b16 %v2539, %v2531
    %v2668 = vpack.c.b16 %v2540, %v2532
    %v2669 = vpack.c.b16 %v2541, %v2533
    %v2670 = vpack.c.b16 %v2542, %v2534
    %v2671 = vpack.c.b16 %v2543, %v2535
    %v2672 = vpack.c.b16 %v2544, %v2536
    %v2673 = vpack.c.b16 %v2545, %v2537
    %v2674 = vpack.c.b16 %v2546, %v2538
    %2803 = vmatprep.subr.bf16.mxu0 %v2548
    %2804 = vmatpush1.bf16.msra.mxu0 %v2547
    %2805 = vmatprep.subr.bf16.mxu0 %v2556
    %2806 = vmatpush1.bf16.msra.mxu0 %v2555
    %2807 = vmatprep.subr.bf16.mxu0 %v2564
    %2808 = vmatpush1.bf16.msra.mxu0 %v2563
    %2809 = vmatprep.subr.bf16.mxu0 %v2572
    %2810 = vmatpush1.bf16.msra.mxu0 %v2571
    %2811 = vmatprep.subr.bf16.mxu0 %v2580
    %2812 = vmatpush1.bf16.msra.mxu0 %v2579
    %2813 = vmatprep.subr.bf16.mxu0 %v2588
    %2814 = vmatpush1.bf16.msra.mxu0 %v2587
    %2815 = vmatprep.subr.bf16.mxu0 %v2596
    %2816 = vmatpush1.bf16.msra.mxu0 %v2595
    %2817 = vmatprep.subr.bf16.mxu0 %v2604
    %2818 = vmatpush1.bf16.msra.mxu0 %v2603
    %2819 = vmatprep.subr.bf16.mxu0 %v2612
    %2820 = vmatpush1.bf16.msra.mxu0 %v2611
    %2821 = vmatprep.subr.bf16.mxu0 %v2620
    %2822 = vmatpush1.bf16.msra.mxu0 %v2619
    %2823 = vmatprep.subr.bf16.mxu0 %v2628
    %2824 = vmatpush1.bf16.msra.mxu0 %v2627
    %2825 = vmatprep.subr.bf16.mxu0 %v2636
    %2826 = vmatpush1.bf16.msra.mxu0 %v2635
    %2827 = vmatprep.subr.bf16.mxu0 %v2644
    %2828 = vmatpush1.bf16.msra.mxu0 %v2643
    %2829 = vmatprep.subr.bf16.mxu0 %v2652
    %2830 = vmatpush1.bf16.msra.mxu0 %v2651
    %2831 = vmatprep.subr.bf16.mxu0 %v2660
    %2832 = vmatpush1.bf16.msra.mxu0 %v2659
    %2833 = vmatprep.subr.bf16.mxu0 %v2668
    %2834 = vmatpush1.bf16.msra.mxu0 %v2667
    %2835 = vmatprep.mubr.bf16.mxu0 %v2148
    %2836 = vmatmul.mubr.bf16.gmra.mrb[0].mxu0 %v2147
    %v2837 = vpop.f32.mrb[0].mxu0
    %v2838 = vadd.f32 0.0, %v2837
    %v2839 = vpop.f32.mrb[0].mxu0
    %v2840 = vadd.f32 0.0, %v2839
    %v2841 = vpop.f32.mrb[0].mxu0
    %v2842 = vadd.f32 0.0, %v2841
    %v2843 = vpop.f32.mrb[0].mxu0
    %v2844 = vadd.f32 0.0, %v2843
    %2845 = vmatprep.mubr.bf16.mxu0 %v2150
    %2846 = vmatmul.mubr.bf16.gmra.mrb[0].mxu0 %v2149
    %v2847 = vpop.f32.mrb[0].mxu0
    %v2848 = vadd.f32 0.0, %v2847
    %v2849 = vpop.f32.mrb[0].mxu0
    %v2850 = vadd.f32 0.0, %v2849
    %v2851 = vpop.f32.mrb[0].mxu0
    %v2852 = vadd.f32 0.0, %v2851
    %v2853 = vpop.f32.mrb[0].mxu0
    %v2854 = vadd.f32 0.0, %v2853
    %2855 = vmatprep.mubr.bf16.mxu0 %v2152
    %2856 = vmatmul.mubr.bf16.gmra.mrb[0].mxu0 %v2151
    %v2857 = vpop.f32.mrb[0].mxu0
    %v2858 = vadd.f32 0.0, %v2857
    %v2859 = vpop.f32.mrb[0].mxu0
    %v2860 = vadd.f32 0.0, %v2859
    %v2861 = vpop.f32.mrb[0].mxu0
    %v2862 = vadd.f32 0.0, %v2861
    %v2863 = vpop.f32.mrb[0].mxu0
    %v2864 = vadd.f32 0.0, %v2863
    %2865 = vmatprep.mubr.bf16.mxu0 %v2154
    %2866 = vmatmul.mubr.bf16.gmra.mrb[0].mxu0 %v2153
    %v2867 = vpop.f32.mrb[0].mxu0
    %v2868 = vadd.f32 0.0, %v2867
    %v2869 = vpop.f32.mrb[0].mxu0
    %v2870 = vadd.f32 0.0, %v2869
    %v2871 = vpop.f32.mrb[0].mxu0
    %v2872 = vadd.f32 0.0, %v2871
    %v2873 = vpop.f32.mrb[0].mxu0
    %v2874 = vadd.f32 0.0, %v2873
    %2875 = vdwg.mxu0
    %2876 = vmatprep.subr.bf16.mxu0 %v2550
    %2877 = vmatpush1.bf16.msra.mxu0 %v2549
    %2878 = vmatprep.subr.bf16.mxu0 %v2558
    %2879 = vmatpush1.bf16.msra.mxu0 %v2557
    %2880 = vmatprep.subr.bf16.mxu0 %v2566
    %2881 = vmatpush1.bf16.msra.mxu0 %v2565
    %2882 = vmatprep.subr.bf16.mxu0 %v2574
    %2883 = vmatpush1.bf16.msra.mxu0 %v2573
    %2884 = vmatprep.subr.bf16.mxu0 %v2582
    %2885 = vmatpush1.bf16.msra.mxu0 %v2581
    %2886 = vmatprep.subr.bf16.mxu0 %v2590
    %2887 = vmatpush1.bf16.msra.mxu0 %v2589
    %2888 = vmatprep.subr.bf16.mxu0 %v2598
    %2889 = vmatpush1.bf16.msra.mxu0 %v2597
    %2890 = vmatprep.subr.bf16.mxu0 %v2606
    %2891 = vmatpush1.bf16.msra.mxu0 %v2605
    %2892 = vmatprep.subr.bf16.mxu0 %v2614
    %2893 = vmatpush1.bf16.msra.mxu0 %v2613
    %2894 = vmatprep.subr.bf16.mxu0 %v2622
    %2895 = vmatpush1.bf16.msra.mxu0 %v2621
    %2896 = vmatprep.subr.bf16.mxu0 %v2630
    %2897 = vmatpush1.bf16.msra.mxu0 %v2629
    %2898 = vmatprep.subr.bf16.mxu0 %v2638
    %2899 = vmatpush1.bf16.msra.mxu0 %v2637
    %2900 = vmatprep.subr.bf16.mxu0 %v2646
    %2901 = vmatpush1.bf16.msra.mxu0 %v2645
    %2902 = vmatprep.subr.bf16.mxu0 %v2654
    %2903 = vmatpush1.bf16.msra.mxu0 %v2653
    %2904 = vmatprep.subr.bf16.mxu0 %v2662
    %2905 = vmatpush1.bf16.msra.mxu0 %v2661
    %2906 = vmatprep.subr.bf16.mxu0 %v2670
    %2907 = vmatpush1.bf16.msra.mxu0 %v2669
    %2908 = vmatprep.mubr.bf16.mxu0 %v2148
    %2909 = vmatmul.mubr.bf16.gmra.mrb[0].mxu0 %v2147
    %v2910 = vpop.f32.mrb[0].mxu0
    %v2911 = vadd.f32 0.0, %v2910
    %v2912 = vpop.f32.mrb[0].mxu0
    %v2913 = vadd.f32 0.0, %v2912
    %v2914 = vpop.f32.mrb[0].mxu0
    %v2915 = vadd.f32 0.0, %v2914
    %v2916 = vpop.f32.mrb[0].mxu0
    %v2917 = vadd.f32 0.0, %v2916
    %2918 = vmatprep.mubr.bf16.mxu0 %v2150
    %2919 = vmatmul.mubr.bf16.gmra.mrb[0].mxu0 %v2149
    %v2920 = vpop.f32.mrb[0].mxu0
    %v2921 = vadd.f32 0.0, %v2920
    %v2922 = vpop.f32.mrb[0].mxu0
    %v2923 = vadd.f32 0.0, %v2922
    %v2924 = vpop.f32.mrb[0].mxu0
    %v2925 = vadd.f32 0.0, %v2924
    %v2926 = vpop.f32.mrb[0].mxu0
    %v2927 = vadd.f32 0.0, %v2926
    %2928 = vmatprep.mubr.bf16.mxu0 %v2152
    %2929 = vmatmul.mubr.bf16.gmra.mrb[0].mxu0 %v2151
    %v2930 = vpop.f32.mrb[0].mxu0
    %v2931 = vadd.f32 0.0, %v2930
    %v2932 = vpop.f32.mrb[0].mxu0
    %v2933 = vadd.f32 0.0, %v2932
    %v2934 = vpop.f32.mrb[0].mxu0
    %v2935 = vadd.f32 0.0, %v2934
    %v2936 = vpop.f32.mrb[0].mxu0
    %v2937 = vadd.f32 0.0, %v2936
    %2938 = vmatprep.mubr.bf16.mxu0 %v2154
    %2939 = vmatmul.mubr.bf16.gmra.mrb[0].mxu0 %v2153
    %v2940 = vpop.f32.mrb[0].mxu0
    %v2941 = vadd.f32 0.0, %v2940
    %v2942 = vpop.f32.mrb[0].mxu0
    %v2943 = vadd.f32 0.0, %v2942
    %v2944 = vpop.f32.mrb[0].mxu0
    %v2945 = vadd.f32 0.0, %v2944
    %v2946 = vpop.f32.mrb[0].mxu0
    %v2947 = vadd.f32 0.0, %v2946
    %2948 = vdwg.mxu0
    %2949 = vmatprep.subr.bf16.mxu0 %v2552
    %2950 = vmatpush1.bf16.msra.mxu0 %v2551
    %2951 = vmatprep.subr.bf16.mxu0 %v2560
    %2952 = vmatpush1.bf16.msra.mxu0 %v2559
    %2953 = vmatprep.subr.bf16.mxu0 %v2568
    %2954 = vmatpush1.bf16.msra.mxu0 %v2567
    %2955 = vmatprep.subr.bf16.mxu0 %v2576
    %2956 = vmatpush1.bf16.msra.mxu0 %v2575
    %2957 = vmatprep.subr.bf16.mxu0 %v2584
    %2958 = vmatpush1.bf16.msra.mxu0 %v2583
    %2959 = vmatprep.subr.bf16.mxu0 %v2592
    %2960 = vmatpush1.bf16.msra.mxu0 %v2591
    %2961 = vmatprep.subr.bf16.mxu0 %v2600
    %2962 = vmatpush1.bf16.msra.mxu0 %v2599
    %2963 = vmatprep.subr.bf16.mxu0 %v2608
    %2964 = vmatpush1.bf16.msra.mxu0 %v2607
    %2965 = vmatprep.subr.bf16.mxu0 %v2616
    %2966 = vmatpush1.bf16.msra.mxu0 %v2615
    %2967 = vmatprep.subr.bf16.mxu0 %v2624
    %2968 = vmatpush1.bf16.msra.mxu0 %v2623
    %2969 = vmatprep.subr.bf16.mxu0 %v2632
    %2970 = vmatpush1.bf16.msra.mxu0 %v2631
    %2971 = vmatprep.subr.bf16.mxu0 %v2640
    %2972 = vmatpush1.bf16.msra.mxu0 %v2639
    %2973 = vmatprep.subr.bf16.mxu0 %v2648
    %2974 = vmatpush1.bf16.msra.mxu0 %v2647
    %2975 = vmatprep.subr.bf16.mxu0 %v2656
    %2976 = vmatpush1.bf16.msra.mxu0 %v2655
    %2977 = vmatprep.subr.bf16.mxu0 %v2664
    %2978 = vmatpush1.bf16.msra.mxu0 %v2663
    %2979 = vmatprep.subr.bf16.mxu0 %v2672
    %2980 = vmatpush1.bf16.msra.mxu0 %v2671
    %2981 = vmatprep.mubr.bf16.mxu0 %v2148
    %2982 = vmatmul.mubr.bf16.gmra.mrb[0].mxu0 %v2147
    %v2983 = vpop.f32.mrb[0].mxu0
    %v2984 = vadd.f32 0.0, %v2983
    %v2985 = vpop.f32.mrb[0].mxu0
    %v2986 = vadd.f32 0.0, %v2985
    %v2987 = vpop.f32.mrb[0].mxu0
    %v2988 = vadd.f32 0.0, %v2987
    %v2989 = vpop.f32.mrb[0].mxu0
    %v2990 = vadd.f32 0.0, %v2989
    %2991 = vmatprep.mubr.bf16.mxu0 %v2150
    %2992 = vmatmul.mubr.bf16.gmra.mrb[0].mxu0 %v2149
    %v2993 = vpop.f32.mrb[0].mxu0
    %v2994 = vadd.f32 0.0, %v2993
    %v2995 = vpop.f32.mrb[0].mxu0
    %v2996 = vadd.f32 0.0, %v2995
    %v2997 = vpop.f32.mrb[0].mxu0
    %v2998 = vadd.f32 0.0, %v2997
    %v2999 = vpop.f32.mrb[0].mxu0
    %v3000 = vadd.f32 0.0, %v2999
    %3001 = vmatprep.mubr.bf16.mxu0 %v2152
    %3002 = vmatmul.mubr.bf16.gmra.mrb[0].mxu0 %v2151
    %v3003 = vpop.f32.mrb[0].mxu0
    %v3004 = vadd.f32 0.0, %v3003
    %v3005 = vpop.f32.mrb[0].mxu0
    %v3006 = vadd.f32 0.0, %v3005
    %v3007 = vpop.f32.mrb[0].mxu0
    %v3008 = vadd.f32 0.0, %v3007
    %v3009 = vpop.f32.mrb[0].mxu0
    %v3010 = vadd.f32 0.0, %v3009
    %3011 = vmatprep.mubr.bf16.mxu0 %v2154
    %3012 = vmatmul.mubr.bf16.gmra.mrb[0].mxu0 %v2153
    %v3013 = vpop.f32.mrb[0].mxu0
    %v3014 = vadd.f32 0.0, %v3013
    %v3015 = vpop.f32.mrb[0].mxu0
    %v3016 = vadd.f32 0.0, %v3015
    %v3017 = vpop.f32.mrb[0].mxu0
    %v3018 = vadd.f32 0.0, %v3017
    %v3019 = vpop.f32.mrb[0].mxu0
    %v3020 = vadd.f32 0.0, %v3019
    %3021 = vdwg.mxu0
    %3022 = vmatprep.subr.bf16.mxu0 %v2554
    %3023 = vmatpush1.bf16.msra.mxu0 %v2553
    %3024 = vmatprep.subr.bf16.mxu0 %v2562
    %3025 = vmatpush1.bf16.msra.mxu0 %v2561
    %3026 = vmatprep.subr.bf16.mxu0 %v2570
    %3027 = vmatpush1.bf16.msra.mxu0 %v2569
    %3028 = vmatprep.subr.bf16.mxu0 %v2578
    %3029 = vmatpush1.bf16.msra.mxu0 %v2577
    %3030 = vmatprep.subr.bf16.mxu0 %v2586
    %3031 = vmatpush1.bf16.msra.mxu0 %v2585
    %3032 = vmatprep.subr.bf16.mxu0 %v2594
    %3033 = vmatpush1.bf16.msra.mxu0 %v2593
    %3034 = vmatprep.subr.bf16.mxu0 %v2602
    %3035 = vmatpush1.bf16.msra.mxu0 %v2601
    %3036 = vmatprep.subr.bf16.mxu0 %v2610
    %3037 = vmatpush1.bf16.msra.mxu0 %v2609
    %3038 = vmatprep.subr.bf16.mxu0 %v2618
    %3039 = vmatpush1.bf16.msra.mxu0 %v2617
    %3040 = vmatprep.subr.bf16.mxu0 %v2626
    %3041 = vmatpush1.bf16.msra.mxu0 %v2625
    %3042 = vmatprep.subr.bf16.mxu0 %v2634
    %3043 = vmatpush1.bf16.msra.mxu0 %v2633
    %3044 = vmatprep.subr.bf16.mxu0 %v2642
    %3045 = vmatpush1.bf16.msra.mxu0 %v2641
    %3046 = vmatprep.subr.bf16.mxu0 %v2650
    %3047 = vmatpush1.bf16.msra.mxu0 %v2649
    %3048 = vmatprep.subr.bf16.mxu0 %v2658
    %3049 = vmatpush1.bf16.msra.mxu0 %v2657
    %3050 = vmatprep.subr.bf16.mxu0 %v2666
    %3051 = vmatpush1.bf16.msra.mxu0 %v2665
    %3052 = vmatprep.subr.bf16.mxu0 %v2674
    %3053 = vmatpush1.bf16.msra.mxu0 %v2673
    %3054 = vmatprep.mubr.bf16.mxu0 %v2148
    %3055 = vmatmul.mubr.bf16.gmra.mrb[0].mxu0 %v2147
    %v3056 = vpop.f32.mrb[0].mxu0
    %v3057 = vadd.f32 0.0, %v3056
    %v3058 = vpop.f32.mrb[0].mxu0
    %v3059 = vadd.f32 0.0, %v3058
    %v3060 = vpop.f32.mrb[0].mxu0
    %v3061 = vadd.f32 0.0, %v3060
    %v3062 = vpop.f32.mrb[0].mxu0
    %v3063 = vadd.f32 0.0, %v3062
    %3064 = vmatprep.mubr.bf16.mxu0 %v2150
    %3065 = vmatmul.mubr.bf16.gmra.mrb[0].mxu0 %v2149
    %v3066 = vpop.f32.mrb[0].mxu0
    %v3067 = vadd.f32 0.0, %v3066
    %v3068 = vpop.f32.mrb[0].mxu0
    %v3069 = vadd.f32 0.0, %v3068
    %v3070 = vpop.f32.mrb[0].mxu0
    %v3071 = vadd.f32 0.0, %v3070
    %v3072 = vpop.f32.mrb[0].mxu0
    %v3073 = vadd.f32 0.0, %v3072
    %3074 = vmatprep.mubr.bf16.mxu0 %v2152
    %3075 = vmatmul.mubr.bf16.gmra.mrb[0].mxu0 %v2151
    %v3076 = vpop.f32.mrb[0].mxu0
    %v3077 = vadd.f32 0.0, %v3076
    %v3078 = vpop.f32.mrb[0].mxu0
    %v3079 = vadd.f32 0.0, %v3078
    %v3080 = vpop.f32.mrb[0].mxu0
    %v3081 = vadd.f32 0.0, %v3080
    %v3082 = vpop.f32.mrb[0].mxu0
    %v3083 = vadd.f32 0.0, %v3082
    %3084 = vmatprep.mubr.bf16.mxu0 %v2154
    %3085 = vmatmul.mubr.bf16.gmra.mrb[0].mxu0 %v2153
    %v3086 = vpop.f32.mrb[0].mxu0
    %v3087 = vadd.f32 0.0, %v3086
    %v3088 = vpop.f32.mrb[0].mxu0
    %v3089 = vadd.f32 0.0, %v3088
    %v3090 = vpop.f32.mrb[0].mxu0
    %v3091 = vadd.f32 0.0, %v3090
    %v3092 = vpop.f32.mrb[0].mxu0
    %v3093 = vadd.f32 0.0, %v3092
    %3094 = vdwg.mxu0
    %v3095 = vadd.f32 %v1730, %v2838
    %v3096 = vadd.f32 %v1732, %v2840
    %v3097 = vadd.f32 %v1803, %v2911
    %v3098 = vadd.f32 %v1805, %v2913
    %v3099 = vadd.f32 %v1876, %v2984
    %v3100 = vadd.f32 %v1878, %v2986
    %v3101 = vadd.f32 %v1949, %v3057
    %v3102 = vadd.f32 %v1951, %v3059
    %v3103 = vadd.f32 %v1734, %v2842
    %v3104 = vadd.f32 %v1736, %v2844
    %v3105 = vadd.f32 %v1807, %v2915
    %v3106 = vadd.f32 %v1809, %v2917
    %v3107 = vadd.f32 %v1880, %v2988
    %v3108 = vadd.f32 %v1882, %v2990
    %v3109 = vadd.f32 %v1953, %v3061
    %v3110 = vadd.f32 %v1955, %v3063
    %v3111 = vadd.f32 %v1740, %v2848
    %v3112 = vadd.f32 %v1742, %v2850
    %v3113 = vadd.f32 %v1813, %v2921
    %v3114 = vadd.f32 %v1815, %v2923
    %v3115 = vadd.f32 %v1886, %v2994
    %v3116 = vadd.f32 %v1888, %v2996
    %v3117 = vadd.f32 %v1959, %v3067
    %v3118 = vadd.f32 %v1961, %v3069
    %v3119 = vadd.f32 %v1744, %v2852
    %v3120 = vadd.f32 %v1746, %v2854
    %v3121 = vadd.f32 %v1817, %v2925
    %v3122 = vadd.f32 %v1819, %v2927
    %v3123 = vadd.f32 %v1890, %v2998
    %v3124 = vadd.f32 %v1892, %v3000
    %v3125 = vadd.f32 %v1963, %v3071
    %v3126 = vadd.f32 %v1965, %v3073
    %v3127 = vadd.f32 %v1750, %v2858
    %v3128 = vadd.f32 %v1752, %v2860
    %v3129 = vadd.f32 %v1823, %v2931
    %v3130 = vadd.f32 %v1825, %v2933
    %v3131 = vadd.f32 %v1896, %v3004
    %v3132 = vadd.f32 %v1898, %v3006
    %v3133 = vadd.f32 %v1969, %v3077
    %v3134 = vadd.f32 %v1971, %v3079
    %v3135 = vadd.f32 %v1754, %v2862
    %v3136 = vadd.f32 %v1756, %v2864
    %v3137 = vadd.f32 %v1827, %v2935
    %v3138 = vadd.f32 %v1829, %v2937
    %v3139 = vadd.f32 %v1900, %v3008
    %v3140 = vadd.f32 %v1902, %v3010
    %v3141 = vadd.f32 %v1973, %v3081
    %v3142 = vadd.f32 %v1975, %v3083
    %v3143 = vadd.f32 %v1760, %v2868
    %v3144 = vadd.f32 %v1762, %v2870
    %v3145 = vadd.f32 %v1833, %v2941
    %v3146 = vadd.f32 %v1835, %v2943
    %v3147 = vadd.f32 %v1906, %v3014
    %v3148 = vadd.f32 %v1908, %v3016
    %v3149 = vadd.f32 %v1979, %v3087
    %v3150 = vadd.f32 %v1981, %v3089
    %v3151 = vadd.f32 %v1764, %v2872
    %v3152 = vadd.f32 %v1766, %v2874
    %v3153 = vadd.f32 %v1837, %v2945
    %v3154 = vadd.f32 %v1839, %v2947
    %v3155 = vadd.f32 %v1910, %v3018
    %v3156 = vadd.f32 %v1912, %v3020
    %v3157 = vadd.f32 %v1983, %v3091
    %v3158 = vadd.f32 %v1985, %v3093
    %v3159 = vld [vmem:[#allocation22] sm:$0xff]
    %v3161 = vlaneseq
    %v3162 = vshrl.u32 %v3161, 7
    %v3163 = vsub.s32 0, %v3162
    %v3164 = vrot.slane %v3159, %v3163
    %v3165 = vlaneseq
    %v3166 = vshrl.u32 %v3165, 7
    %v3167 = vsub.s32 1, %v3166
    %v3168 = vrot.slane %v3159, %v3167
    %v3169 = vlaneseq
    %v3170 = vshrl.u32 %v3169, 7
    %v3171 = vsub.s32 2, %v3170
    %v3172 = vrot.slane %v3159, %v3171
    %v3173 = vlaneseq
    %v3174 = vshrl.u32 %v3173, 7
    %v3175 = vsub.s32 3, %v3174
    %v3176 = vrot.slane %v3159, %v3175
    %v3177 = vlaneseq
    %v3178 = vshrl.u32 %v3177, 7
    %v3179 = vsub.s32 4, %v3178
    %v3180 = vrot.slane %v3159, %v3179
    %v3181 = vlaneseq
    %v3182 = vshrl.u32 %v3181, 7
    %v3183 = vsub.s32 5, %v3182
    %v3184 = vrot.slane %v3159, %v3183
    %v3185 = vlaneseq
    %v3186 = vshrl.u32 %v3185, 7
    %v3187 = vsub.s32 6, %v3186
    %v3188 = vrot.slane %v3159, %v3187
    %v3189 = vlaneseq
    %v3190 = vshrl.u32 %v3189, 7
    %v3191 = vsub.s32 7, %v3190
    %v3192 = vrot.slane %v3159, %v3191
    %v3201 = vadd.f32 %v3095, %v3164
    %v3202 = vadd.f32 %v3096, %v3168
    %v3203 = vadd.f32 %v3097, %v3172
    %v3204 = vadd.f32 %v3098, %v3176
    %v3205 = vadd.f32 %v3099, %v3180
    %v3206 = vadd.f32 %v3100, %v3184
    %v3207 = vadd.f32 %v3101, %v3188
    %v3208 = vadd.f32 %v3102, %v3192
    %v3209 = vadd.f32 %v3103, %v3164
    %v3210 = vadd.f32 %v3104, %v3168
    %v3211 = vadd.f32 %v3105, %v3172
    %v3212 = vadd.f32 %v3106, %v3176
    %v3213 = vadd.f32 %v3107, %v3180
    %v3214 = vadd.f32 %v3108, %v3184
    %v3215 = vadd.f32 %v3109, %v3188
    %v3216 = vadd.f32 %v3110, %v3192
    %v3217 = vadd.f32 %v3111, %v3164
    %v3218 = vadd.f32 %v3112, %v3168
    %v3219 = vadd.f32 %v3113, %v3172
    %v3220 = vadd.f32 %v3114, %v3176
    %v3221 = vadd.f32 %v3115, %v3180
    %v3222 = vadd.f32 %v3116, %v3184
    %v3223 = vadd.f32 %v3117, %v3188
    %v3224 = vadd.f32 %v3118, %v3192
    %v3225 = vadd.f32 %v3119, %v3164
    %v3226 = vadd.f32 %v3120, %v3168
    %v3227 = vadd.f32 %v3121, %v3172
    %v3228 = vadd.f32 %v3122, %v3176
    %v3229 = vadd.f32 %v3123, %v3180
    %v3230 = vadd.f32 %v3124, %v3184
    %v3231 = vadd.f32 %v3125, %v3188
    %v3232 = vadd.f32 %v3126, %v3192
    %v3233 = vadd.f32 %v3127, %v3164
    %v3234 = vadd.f32 %v3128, %v3168
    %v3235 = vadd.f32 %v3129, %v3172
    %v3236 = vadd.f32 %v3130, %v3176
    %v3237 = vadd.f32 %v3131, %v3180
    %v3238 = vadd.f32 %v3132, %v3184
    %v3239 = vadd.f32 %v3133, %v3188
    %v3240 = vadd.f32 %v3134, %v3192
    %v3241 = vadd.f32 %v3135, %v3164
    %v3242 = vadd.f32 %v3136, %v3168
    %v3243 = vadd.f32 %v3137, %v3172
    %v3244 = vadd.f32 %v3138, %v3176
    %v3245 = vadd.f32 %v3139, %v3180
    %v3246 = vadd.f32 %v3140, %v3184
    %v3247 = vadd.f32 %v3141, %v3188
    %v3248 = vadd.f32 %v3142, %v3192
    %v3249 = vadd.f32 %v3143, %v3164
    %v3250 = vadd.f32 %v3144, %v3168
    %v3251 = vadd.f32 %v3145, %v3172
    %v3252 = vadd.f32 %v3146, %v3176
    %v3253 = vadd.f32 %v3147, %v3180
    %v3254 = vadd.f32 %v3148, %v3184
    %v3255 = vadd.f32 %v3149, %v3188
    %v3256 = vadd.f32 %v3150, %v3192
    %v3257 = vadd.f32 %v3151, %v3164
    %v3258 = vadd.f32 %v3152, %v3168
    %v3259 = vadd.f32 %v3153, %v3172
    %v3260 = vadd.f32 %v3154, %v3176
    %v3261 = vadd.f32 %v3155, %v3180
    %v3262 = vadd.f32 %v3156, %v3184
    %v3263 = vadd.f32 %v3157, %v3188
    %v3264 = vadd.f32 %v3158, %v3192
    %3265 = vst [vmem:[#allocation2] sm:$0xff] %v3201
    %3266 = vst [vmem:[#allocation2 + $0x8] sm:$0xff] %v3202
    %3267 = vst [vmem:[#allocation2 + $0x10] sm:$0xff] %v3203
    %3268 = vst [vmem:[#allocation2 + $0x18] sm:$0xff] %v3204
    %3269 = vst [vmem:[#allocation2 + $0x20] sm:$0xff] %v3205
    %3270 = vst [vmem:[#allocation2 + $0x28] sm:$0xff] %v3206
    %3271 = vst [vmem:[#allocation2 + $0x30] sm:$0xff] %v3207
    %3272 = vst [vmem:[#allocation2 + $0x38] sm:$0xff] %v3208
    %3273 = vst [vmem:[#allocation2 + $0x40] sm:$0xff] %v3209
    %3274 = vst [vmem:[#allocation2 + $0x48] sm:$0xff] %v3210
    %3275 = vst [vmem:[#allocation2 + $0x50] sm:$0xff] %v3211
    %3276 = vst [vmem:[#allocation2 + $0x58] sm:$0xff] %v3212
    %3277 = vst [vmem:[#allocation2 + $0x60] sm:$0xff] %v3213
    %3278 = vst [vmem:[#allocation2 + $0x68] sm:$0xff] %v3214
    %3279 = vst [vmem:[#allocation2 + $0x70] sm:$0xff] %v3215
    %3280 = vst [vmem:[#allocation2 + $0x78] sm:$0xff] %v3216
    %3281 = vst [vmem:[#allocation2 + $0x80] sm:$0xff] %v3217
    %3282 = vst [vmem:[#allocation2 + $0x88] sm:$0xff] %v3218
    %3283 = vst [vmem:[#allocation2 + $0x90] sm:$0xff] %v3219
    %3284 = vst [vmem:[#allocation2 + $0x98] sm:$0xff] %v3220
    %3285 = vst [vmem:[#allocation2 + $0xa0] sm:$0xff] %v3221
    %3286 = vst [vmem:[#allocation2 + $0xa8] sm:$0xff] %v3222
    %3287 = vst [vmem:[#allocation2 + $0xb0] sm:$0xff] %v3223
    %3288 = vst [vmem:[#allocation2 + $0xb8] sm:$0xff] %v3224
    %3289 = vst [vmem:[#allocation2 + $0xc0] sm:$0xff] %v3225
    %3290 = vst [vmem:[#allocation2 + $0xc8] sm:$0xff] %v3226
    %3291 = vst [vmem:[#allocation2 + $0xd0] sm:$0xff] %v3227
    %3292 = vst [vmem:[#allocation2 + $0xd8] sm:$0xff] %v3228
    %3293 = vst [vmem:[#allocation2 + $0xe0] sm:$0xff] %v3229
    %3294 = vst [vmem:[#allocation2 + $0xe8] sm:$0xff] %v3230
    %3295 = vst [vmem:[#allocation2 + $0xf0] sm:$0xff] %v3231
    %3296 = vst [vmem:[#allocation2 + $0xf8] sm:$0xff] %v3232
    %3297 = vst [vmem:[#allocation2 + $0x100] sm:$0xff] %v3233
    %3298 = vst [vmem:[#allocation2 + $0x108] sm:$0xff] %v3234
    %3299 = vst [vmem:[#allocation2 + $0x110] sm:$0xff] %v3235
    %3300 = vst [vmem:[#allocation2 + $0x118] sm:$0xff] %v3236
    %3301 = vst [vmem:[#allocation2 + $0x120] sm:$0xff] %v3237
    %3302 = vst [vmem:[#allocation2 + $0x128] sm:$0xff] %v3238
    %3303 = vst [vmem:[#allocation2 + $0x130] sm:$0xff] %v3239
    %3304 = vst [vmem:[#allocation2 + $0x138] sm:$0xff] %v3240
    %3305 = vst [vmem:[#allocation2 + $0x140] sm:$0xff] %v3241
    %3306 = vst [vmem:[#allocation2 + $0x148] sm:$0xff] %v3242
    %3307 = vst [vmem:[#allocation2 + $0x150] sm:$0xff] %v3243
    %3308 = vst [vmem:[#allocation2 + $0x158] sm:$0xff] %v3244
    %3309 = vst [vmem:[#allocation2 + $0x160] sm:$0xff] %v3245
    %3310 = vst [vmem:[#allocation2 + $0x168] sm:$0xff] %v3246
    %3311 = vst [vmem:[#allocation2 + $0x170] sm:$0xff] %v3247
    %3312 = vst [vmem:[#allocation2 + $0x178] sm:$0xff] %v3248
    %3313 = vst [vmem:[#allocation2 + $0x180] sm:$0xff] %v3249
    %3314 = vst [vmem:[#allocation2 + $0x188] sm:$0xff] %v3250
    %3315 = vst [vmem:[#allocation2 + $0x190] sm:$0xff] %v3251
    %3316 = vst [vmem:[#allocation2 + $0x198] sm:$0xff] %v3252
    %3317 = vst [vmem:[#allocation2 + $0x1a0] sm:$0xff] %v3253
    %3318 = vst [vmem:[#allocation2 + $0x1a8] sm:$0xff] %v3254
    %3319 = vst [vmem:[#allocation2 + $0x1b0] sm:$0xff] %v3255
    %3320 = vst [vmem:[#allocation2 + $0x1b8] sm:$0xff] %v3256
    %3321 = vst [vmem:[#allocation2 + $0x1c0] sm:$0xff] %v3257
    %3322 = vst [vmem:[#allocation2 + $0x1c8] sm:$0xff] %v3258
    %3323 = vst [vmem:[#allocation2 + $0x1d0] sm:$0xff] %v3259
    %3324 = vst [vmem:[#allocation2 + $0x1d8] sm:$0xff] %v3260
    %3325 = vst [vmem:[#allocation2 + $0x1e0] sm:$0xff] %v3261
    %3326 = vst [vmem:[#allocation2 + $0x1e8] sm:$0xff] %v3262
    %3327 = vst [vmem:[#allocation2 + $0x1f0] sm:$0xff] %v3263
    %3328 = vst [vmem:[#allocation2 + $0x1f8] sm:$0xff] %v3264
    %3329 = vst [vmem:[#allocation3] sm:$0xff] 0.0
    %3330 = vst [vmem:[#allocation4] sm:$0xff] 0.0
    %3331 = vst [vmem:[#allocation5] sm:$0xff] 0.0
    %3332 = vst [vmem:[#allocation6] sm:$0xff] 0.0
    loop: start=0, step=1, limit=8
    $region82: #{sse_forward.6} parent=1 // loop_pre_header
      _
    $region83: #{sse_forward.6} parent=1 // loop_header
      %s3334 = sphi 0, %s3338
      %p3335 = scmp.ge.s32.totalorder %s3334, 8
    $region84: #{sse_forward.6} parent=1 // loop_header_branch
      %3337 = sbr.rel (%p3335) target = $region88
    $region85: #{sse_forward.6} parent=1 // loop_body
      %s3339 = ssub.s32 7, %s3334
      %s3340 = smul.u32 %s3334, 8
      %s3341 = scalar_lea.vmem [#allocation13], %s3340
      %v3342 = vld [vmem:[%s3341] sm:$0xff]
      %s3343 = sshra.s32 %s3340, 3
      %s3344 = sand.u32 %s3340, 7
      %s3345 = smul.u32 %s3343, 8
      %s3346 = smul.addr %s3345, 8
      %s3347 = scalar_lea.vmem [#allocation2], %s3346
      %v3348 = vld [vmem:[%s3347] sm:$0xff]
      %v3349 = vld [vmem:[%s3347 + $0x8] sm:$0xff]
      %v3350 = vld [vmem:[%s3347 + $0x10] sm:$0xff]
      %v3351 = vld [vmem:[%s3347 + $0x18] sm:$0xff]
      %v3352 = vld [vmem:[#allocation3] sm:$0xff]
      %v3353 = vpack.c.bf16 %v3352, %v3352
      %v3354 = vld [vmem:[#allocation19] sm:$0xff]
      %v3355 = vld [vmem:[#allocation19 + $0x8] sm:$0xff]
      %v3356 = vld [vmem:[#allocation19 + $0x10] sm:$0xff]
      %v3357 = vld [vmem:[#allocation19 + $0x18] sm:$0xff]
      %v3358 = vld [vmem:[#allocation19 + $0x20] sm:$0xff]
      %v3359 = vld [vmem:[#allocation19 + $0x28] sm:$0xff]
      %v3360 = vld [vmem:[#allocation19 + $0x30] sm:$0xff]
      %v3361 = vld [vmem:[#allocation19 + $0x38] sm:$0xff]
      %v3362 = vld [vmem:[#allocation19 + $0x40] sm:$0xff]
      %v3363 = vld [vmem:[#allocation19 + $0x48] sm:$0xff]
      %v3364 = vld [vmem:[#allocation19 + $0x50] sm:$0xff]
      %v3365 = vld [vmem:[#allocation19 + $0x58] sm:$0xff]
      %v3366 = vld [vmem:[#allocation19 + $0x60] sm:$0xff]
      %v3367 = vld [vmem:[#allocation19 + $0x68] sm:$0xff]
      %v3368 = vld [vmem:[#allocation19 + $0x70] sm:$0xff]
      %v3369 = vld [vmem:[#allocation19 + $0x78] sm:$0xff]
      %v3370 = vld [vmem:[#allocation19 + $0x80] sm:$0xff]
      %v3371 = vld [vmem:[#allocation19 + $0x88] sm:$0xff]
      %v3372 = vld [vmem:[#allocation19 + $0x90] sm:$0xff]
      %v3373 = vld [vmem:[#allocation19 + $0x98] sm:$0xff]
      %v3374 = vld [vmem:[#allocation19 + $0xa0] sm:$0xff]
      %v3375 = vld [vmem:[#allocation19 + $0xa8] sm:$0xff]
      %v3376 = vld [vmem:[#allocation19 + $0xb0] sm:$0xff]
      %v3377 = vld [vmem:[#allocation19 + $0xb8] sm:$0xff]
      %v3378 = vld [vmem:[#allocation19 + $0xc0] sm:$0xff]
      %v3379 = vld [vmem:[#allocation19 + $0xc8] sm:$0xff]
      %v3380 = vld [vmem:[#allocation19 + $0xd0] sm:$0xff]
      %v3381 = vld [vmem:[#allocation19 + $0xd8] sm:$0xff]
      %v3382 = vld [vmem:[#allocation19 + $0xe0] sm:$0xff]
      %v3383 = vld [vmem:[#allocation19 + $0xe8] sm:$0xff]
      %v3384 = vld [vmem:[#allocation19 + $0xf0] sm:$0xff]
      %v3385 = vld [vmem:[#allocation19 + $0xf8] sm:$0xff]
      %v3418 = vunpack.c.l.b16 %v3354
      %v3419 = vunpack.c.h.b16 %v3354
      %v3420 = vunpack.c.l.b16 %v3355
      %v3421 = vunpack.c.h.b16 %v3355
      %v3422 = vunpack.c.l.b16 %v3356
      %v3423 = vunpack.c.h.b16 %v3356
      %v3424 = vunpack.c.l.b16 %v3357
      %v3425 = vunpack.c.h.b16 %v3357
      %v3426 = vunpack.c.l.b16 %v3358
      %v3427 = vunpack.c.h.b16 %v3358
      %v3428 = vunpack.c.l.b16 %v3359
      %v3429 = vunpack.c.h.b16 %v3359
      %v3430 = vunpack.c.l.b16 %v3360
      %v3431 = vunpack.c.h.b16 %v3360
      %v3432 = vunpack.c.l.b16 %v3361
      %v3433 = vunpack.c.h.b16 %v3361
      %v3434 = vunpack.c.l.b16 %v3362
      %v3435 = vunpack.c.h.b16 %v3362
      %v3436 = vunpack.c.l.b16 %v3363
      %v3437 = vunpack.c.h.b16 %v3363
      %v3438 = vunpack.c.l.b16 %v3364
      %v3439 = vunpack.c.h.b16 %v3364
      %v3440 = vunpack.c.l.b16 %v3365
      %v3441 = vunpack.c.h.b16 %v3365
      %v3442 = vunpack.c.l.b16 %v3366
      %v3443 = vunpack.c.h.b16 %v3366
      %v3444 = vunpack.c.l.b16 %v3367
      %v3445 = vunpack.c.h.b16 %v3367
      %v3446 = vunpack.c.l.b16 %v3368
      %v3447 = vunpack.c.h.b16 %v3368
      %v3448 = vunpack.c.l.b16 %v3369
      %v3449 = vunpack.c.h.b16 %v3369
      %v3450 = vunpack.c.l.b16 %v3370
      %v3451 = vunpack.c.h.b16 %v3370
      %v3452 = vunpack.c.l.b16 %v3371
      %v3453 = vunpack.c.h.b16 %v3371
      %v3454 = vunpack.c.l.b16 %v3372
      %v3455 = vunpack.c.h.b16 %v3372
      %v3456 = vunpack.c.l.b16 %v3373
      %v3457 = vunpack.c.h.b16 %v3373
      %v3458 = vunpack.c.l.b16 %v3374
      %v3459 = vunpack.c.h.b16 %v3374
      %v3460 = vunpack.c.l.b16 %v3375
      %v3461 = vunpack.c.h.b16 %v3375
      %v3462 = vunpack.c.l.b16 %v3376
      %v3463 = vunpack.c.h.b16 %v3376
      %v3464 = vunpack.c.l.b16 %v3377
      %v3465 = vunpack.c.h.b16 %v3377
      %v3466 = vunpack.c.l.b16 %v3378
      %v3467 = vunpack.c.h.b16 %v3378
      %v3468 = vunpack.c.l.b16 %v3379
      %v3469 = vunpack.c.h.b16 %v3379
      %v3470 = vunpack.c.l.b16 %v3380
      %v3471 = vunpack.c.h.b16 %v3380
      %v3472 = vunpack.c.l.b16 %v3381
      %v3473 = vunpack.c.h.b16 %v3381
      %v3474 = vunpack.c.l.b16 %v3382
      %v3475 = vunpack.c.h.b16 %v3382
      %v3476 = vunpack.c.l.b16 %v3383
      %v3477 = vunpack.c.h.b16 %v3383
      %v3478 = vunpack.c.l.b16 %v3384
      %v3479 = vunpack.c.h.b16 %v3384
      %v3480 = vunpack.c.l.b16 %v3385
      %v3481 = vunpack.c.h.b16 %v3385
      %v3482 = vpack.c.b16 %v3422, %v3418
      %v3483 = vpack.c.b16 %v3423, %v3419
      %v3484 = vpack.c.b16 %v3424, %v3420
      %v3485 = vpack.c.b16 %v3425, %v3421
      %v3486 = vpack.c.b16 %v3430, %v3426
      %v3487 = vpack.c.b16 %v3431, %v3427
      %v3488 = vpack.c.b16 %v3432, %v3428
      %v3489 = vpack.c.b16 %v3433, %v3429
      %v3490 = vpack.c.b16 %v3438, %v3434
      %v3491 = vpack.c.b16 %v3439, %v3435
      %v3492 = vpack.c.b16 %v3440, %v3436
      %v3493 = vpack.c.b16 %v3441, %v3437
      %v3494 = vpack.c.b16 %v3446, %v3442
      %v3495 = vpack.c.b16 %v3447, %v3443
      %v3496 = vpack.c.b16 %v3448, %v3444
      %v3497 = vpack.c.b16 %v3449, %v3445
      %v3498 = vpack.c.b16 %v3454, %v3450
      %v3499 = vpack.c.b16 %v3455, %v3451
      %v3500 = vpack.c.b16 %v3456, %v3452
      %v3501 = vpack.c.b16 %v3457, %v3453
      %v3502 = vpack.c.b16 %v3462, %v3458
      %v3503 = vpack.c.b16 %v3463, %v3459
      %v3504 = vpack.c.b16 %v3464, %v3460
      %v3505 = vpack.c.b16 %v3465, %v3461
      %v3506 = vpack.c.b16 %v3470, %v3466
      %v3507 = vpack.c.b16 %v3471, %v3467
      %v3508 = vpack.c.b16 %v3472, %v3468
      %v3509 = vpack.c.b16 %v3473, %v3469
      %v3510 = vpack.c.b16 %v3478, %v3474
      %v3511 = vpack.c.b16 %v3479, %v3475
      %v3512 = vpack.c.b16 %v3480, %v3476
      %v3513 = vpack.c.b16 %v3481, %v3477
      %3546 = vmatprep.subr.bf16.mxu0 %v3483
      %3547 = vmatpush1.bf16.msra.mxu0 %v3482
      %3548 = vmatprep.subr.bf16.mxu0 %v3487
      %3549 = vmatpush1.bf16.msra.mxu0 %v3486
      %3550 = vmatprep.subr.bf16.mxu0 %v3491
      %3551 = vmatpush1.bf16.msra.mxu0 %v3490
      %3552 = vmatprep.subr.bf16.mxu0 %v3495
      %3553 = vmatpush1.bf16.msra.mxu0 %v3494
      %3554 = vmatprep.subr.bf16.mxu0 %v3499
      %3555 = vmatpush1.bf16.msra.mxu0 %v3498
      %3556 = vmatprep.subr.bf16.mxu0 %v3503
      %3557 = vmatpush1.bf16.msra.mxu0 %v3502
      %3558 = vmatprep.subr.bf16.mxu0 %v3507
      %3559 = vmatpush1.bf16.msra.mxu0 %v3506
      %3560 = vmatprep.subr.bf16.mxu0 %v3511
      %3561 = vmatpush1.bf16.msra.mxu0 %v3510
      %3562 = vmatprep.subr.bf16.mxu0 0
      %3563 = vmatpush1.bf16.msra.mxu0 0
      %3564 = vmatprep.subr.bf16.mxu0 0
      %3565 = vmatpush1.bf16.msra.mxu0 0
      %3566 = vmatprep.subr.bf16.mxu0 0
      %3567 = vmatpush1.bf16.msra.mxu0 0
      %3568 = vmatprep.subr.bf16.mxu0 0
      %3569 = vmatpush1.bf16.msra.mxu0 0
      %3570 = vmatprep.subr.bf16.mxu0 0
      %3571 = vmatpush1.bf16.msra.mxu0 0
      %3572 = vmatprep.subr.bf16.mxu0 0
      %3573 = vmatpush1.bf16.msra.mxu0 0
      %3574 = vmatprep.subr.bf16.mxu0 0
      %3575 = vmatpush1.bf16.msra.mxu0 0
      %3576 = vmatprep.subr.bf16.mxu0 0
      %3577 = vmatpush1.bf16.msra.mxu0 0
      %3578 = vmatprep.mubr.bf16.mxu0 0
      %3579 = vmatmul.mubr.bf16.gmra.mrb[0].mxu0 %v3353
      %v3580 = vpop.f32.mrb[0].mxu0
      %v3581 = vadd.f32 0.0, %v3580
      %v3582 = vpop.f32.mrb[0].mxu0
      %v3583 = vadd.f32 0.0, %v3582
      %v3584 = vpop.f32.mrb[0].mxu0
      %v3585 = vpop.f32.mrb[0].mxu0
      %3586 = vdwg.mxu0
      %3587 = vmatprep.subr.bf16.mxu0 %v3485
      %3588 = vmatpush1.bf16.msra.mxu0 %v3484
      %3589 = vmatprep.subr.bf16.mxu0 %v3489
      %3590 = vmatpush1.bf16.msra.mxu0 %v3488
      %3591 = vmatprep.subr.bf16.mxu0 %v3493
      %3592 = vmatpush1.bf16.msra.mxu0 %v3492
      %3593 = vmatprep.subr.bf16.mxu0 %v3497
      %3594 = vmatpush1.bf16.msra.mxu0 %v3496
      %3595 = vmatprep.subr.bf16.mxu0 %v3501
      %3596 = vmatpush1.bf16.msra.mxu0 %v3500
      %3597 = vmatprep.subr.bf16.mxu0 %v3505
      %3598 = vmatpush1.bf16.msra.mxu0 %v3504
      %3599 = vmatprep.subr.bf16.mxu0 %v3509
      %3600 = vmatpush1.bf16.msra.mxu0 %v3508
      %3601 = vmatprep.subr.bf16.mxu0 %v3513
      %3602 = vmatpush1.bf16.msra.mxu0 %v3512
      %3603 = vmatprep.subr.bf16.mxu0 0
      %3604 = vmatpush1.bf16.msra.mxu0 0
      %3605 = vmatprep.subr.bf16.mxu0 0
      %3606 = vmatpush1.bf16.msra.mxu0 0
      %3607 = vmatprep.subr.bf16.mxu0 0
      %3608 = vmatpush1.bf16.msra.mxu0 0
      %3609 = vmatprep.subr.bf16.mxu0 0
      %3610 = vmatpush1.bf16.msra.mxu0 0
      %3611 = vmatprep.subr.bf16.mxu0 0
      %3612 = vmatpush1.bf16.msra.mxu0 0
      %3613 = vmatprep.subr.bf16.mxu0 0
      %3614 = vmatpush1.bf16.msra.mxu0 0
      %3615 = vmatprep.subr.bf16.mxu0 0
      %3616 = vmatpush1.bf16.msra.mxu0 0
      %3617 = vmatprep.subr.bf16.mxu0 0
      %3618 = vmatpush1.bf16.msra.mxu0 0
      %3619 = vmatprep.mubr.bf16.mxu0 0
      %3620 = vmatmul.mubr.bf16.gmra.mrb[0].mxu0 %v3353
      %v3621 = vpop.f32.mrb[0].mxu0
      %v3622 = vadd.f32 0.0, %v3621
      %v3623 = vpop.f32.mrb[0].mxu0
      %v3624 = vadd.f32 0.0, %v3623
      %v3625 = vpop.f32.mrb[0].mxu0
      %v3626 = vpop.f32.mrb[0].mxu0
      %3627 = vdwg.mxu0
      %v3628 = vadd.f32 %v3348, %v3581
      %v3629 = vadd.f32 %v3349, %v3583
      %v3630 = vadd.f32 %v3350, %v3622
      %v3631 = vadd.f32 %v3351, %v3624
      %v3632 = vld [vmem:[#allocation4] sm:$0xff]
      %v3633 = vxor.u32 %v3628, 2147483648
      %v3634 = vmul.f32 %v3633, 1.442695
      %v3635 = vpow.pop %v3634
      %v3636 = vadd.f32 %v3635, 1.0
      %v3637 = vrcp.pop %v3636
      %v3638 = vmul.f32 1.0, %v3637
      %v3639 = vxor.u32 %v3629, 2147483648
      %v3640 = vmul.f32 %v3639, 1.442695
      %v3641 = vpow.pop %v3640
      %v3642 = vadd.f32 %v3641, 1.0
      %v3643 = vrcp.pop %v3642
      %v3644 = vmul.f32 1.0, %v3643
      %v3645 = vtanh.pop %v3630
      %v3646 = vxor.u32 %v3631, 2147483648
      %v3647 = vmul.f32 %v3646, 1.442695
      %v3648 = vpow.pop %v3647
      %v3649 = vadd.f32 %v3648, 1.0
      %v3650 = vrcp.pop %v3649
      %v3651 = vmul.f32 1.0, %v3650
      %v3652 = vmul.f32 %v3644, %v3632
      %v3653 = vmul.f32 %v3638, %v3645
      %v3654 = vadd.f32 %v3652, %v3653
      %v3655 = vtanh.pop %v3654
      %v3656 = vmul.f32 %v3651, %v3655
      %vm3657 = vcmp.gt.f32.partialorder %v3342, 0.0
      %v3658 = vsel %vm3657, 1, 0
      %3659 = vset.pattern.permute.xlu0 0
      %3660 = vperm.xlu0 %3659, %v3658
      %v3661 = vpop.permute.xlu0 %3660
      %vm3662 = vcmp.eq.s32.totalorder %v3661, 1
      %v3663 = vsel %vm3662, %v3654, %v3632
      %v3664 = vsel %vm3662, %v3656, %v3352
      %3665 = vst [vmem:[#allocation3] sm:$0xff] %v3664
      %3666 = vst [vmem:[#allocation4] sm:$0xff] %v3663
      %v3667 = vsel %vm3662, %v3656, 0.0
      %v3668 = vpack.c.bf16 %v3667, %v3667
      %s3669 = smul.u32 %s3334, 2
      %s3670 = smul.addr %s3669, 4
      %s3671 = scalar_lea.vmem [#allocation24], %s3670
      %3672 = vst [vmem:[%s3671] sm:$0xf] %v3668
      %s3673 = smul.u32 %s3339, 8
      %s3674 = scalar_lea.vmem [#allocation13], %s3673
      %v3675 = vld [vmem:[%s3674] sm:$0xff]
      %s3676 = sshra.s32 %s3673, 3
      %s3677 = sand.u32 %s3673, 7
      %s3678 = smul.u32 %s3676, 8
      %s3679 = smul.addr %s3678, 8
      %s3680 = scalar_lea.vmem [#allocation2], %s3679
      %v3681 = vld [vmem:[%s3680 + $0x20] sm:$0xff]
      %v3682 = vld [vmem:[%s3680 + $0x28] sm:$0xff]
      %v3683 = vld [vmem:[%s3680 + $0x30] sm:$0xff]
      %v3684 = vld [vmem:[%s3680 + $0x38] sm:$0xff]
      %v3685 = vld [vmem:[#allocation5] sm:$0xff]
      %v3686 = vpack.c.bf16 %v3685, %v3685
      %v3687 = vld [vmem:[#allocation21] sm:$0xff]
      %v3688 = vld [vmem:[#allocation21 + $0x8] sm:$0xff]
      %v3689 = vld [vmem:[#allocation21 + $0x10] sm:$0xff]
      %v3690 = vld [vmem:[#allocation21 + $0x18] sm:$0xff]
      %v3691 = vld [vmem:[#allocation21 + $0x20] sm:$0xff]
      %v3692 = vld [vmem:[#allocation21 + $0x28] sm:$0xff]
      %v3693 = vld [vmem:[#allocation21 + $0x30] sm:$0xff]
      %v3694 = vld [vmem:[#allocation21 + $0x38] sm:$0xff]
      %v3695 = vld [vmem:[#allocation21 + $0x40] sm:$0xff]
      %v3696 = vld [vmem:[#allocation21 + $0x48] sm:$0xff]
      %v3697 = vld [vmem:[#allocation21 + $0x50] sm:$0xff]
      %v3698 = vld [vmem:[#allocation21 + $0x58] sm:$0xff]
      %v3699 = vld [vmem:[#allocation21 + $0x60] sm:$0xff]
      %v3700 = vld [vmem:[#allocation21 + $0x68] sm:$0xff]
      %v3701 = vld [vmem:[#allocation21 + $0x70] sm:$0xff]
      %v3702 = vld [vmem:[#allocation21 + $0x78] sm:$0xff]
      %v3703 = vld [vmem:[#allocation21 + $0x80] sm:$0xff]
      %v3704 = vld [vmem:[#allocation21 + $0x88] sm:$0xff]
      %v3705 = vld [vmem:[#allocation21 + $0x90] sm:$0xff]
      %v3706 = vld [vmem:[#allocation21 + $0x98] sm:$0xff]
      %v3707 = vld [vmem:[#allocation21 + $0xa0] sm:$0xff]
      %v3708 = vld [vmem:[#allocation21 + $0xa8] sm:$0xff]
      %v3709 = vld [vmem:[#allocation21 + $0xb0] sm:$0xff]
      %v3710 = vld [vmem:[#allocation21 + $0xb8] sm:$0xff]
      %v3711 = vld [vmem:[#allocation21 + $0xc0] sm:$0xff]
      %v3712 = vld [vmem:[#allocation21 + $0xc8] sm:$0xff]
      %v3713 = vld [vmem:[#allocation21 + $0xd0] sm:$0xff]
      %v3714 = vld [vmem:[#allocation21 + $0xd8] sm:$0xff]
      %v3715 = vld [vmem:[#allocation21 + $0xe0] sm:$0xff]
      %v3716 = vld [vmem:[#allocation21 + $0xe8] sm:$0xff]
      %v3717 = vld [vmem:[#allocation21 + $0xf0] sm:$0xff]
      %v3718 = vld [vmem:[#allocation21 + $0xf8] sm:$0xff]
      %v3751 = vunpack.c.l.b16 %v3687
      %v3752 = vunpack.c.h.b16 %v3687
      %v3753 = vunpack.c.l.b16 %v3688
      %v3754 = vunpack.c.h.b16 %v3688
      %v3755 = vunpack.c.l.b16 %v3689
      %v3756 = vunpack.c.h.b16 %v3689
      %v3757 = vunpack.c.l.b16 %v3690
      %v3758 = vunpack.c.h.b16 %v3690
      %v3759 = vunpack.c.l.b16 %v3691
      %v3760 = vunpack.c.h.b16 %v3691
      %v3761 = vunpack.c.l.b16 %v3692
      %v3762 = vunpack.c.h.b16 %v3692
      %v3763 = vunpack.c.l.b16 %v3693
      %v3764 = vunpack.c.h.b16 %v3693
      %v3765 = vunpack.c.l.b16 %v3694
      %v3766 = vunpack.c.h.b16 %v3694
      %v3767 = vunpack.c.l.b16 %v3695
      %v3768 = vunpack.c.h.b16 %v3695
      %v3769 = vunpack.c.l.b16 %v3696
      %v3770 = vunpack.c.h.b16 %v3696
      %v3771 = vunpack.c.l.b16 %v3697
      %v3772 = vunpack.c.h.b16 %v3697
      %v3773 = vunpack.c.l.b16 %v3698
      %v3774 = vunpack.c.h.b16 %v3698
      %v3775 = vunpack.c.l.b16 %v3699
      %v3776 = vunpack.c.h.b16 %v3699
      %v3777 = vunpack.c.l.b16 %v3700
      %v3778 = vunpack.c.h.b16 %v3700
      %v3779 = vunpack.c.l.b16 %v3701
      %v3780 = vunpack.c.h.b16 %v3701
      %v3781 = vunpack.c.l.b16 %v3702
      %v3782 = vunpack.c.h.b16 %v3702
      %v3783 = vunpack.c.l.b16 %v3703
      %v3784 = vunpack.c.h.b16 %v3703
      %v3785 = vunpack.c.l.b16 %v3704
      %v3786 = vunpack.c.h.b16 %v3704
      %v3787 = vunpack.c.l.b16 %v3705
      %v3788 = vunpack.c.h.b16 %v3705
      %v3789 = vunpack.c.l.b16 %v3706
      %v3790 = vunpack.c.h.b16 %v3706
      %v3791 = vunpack.c.l.b16 %v3707
      %v3792 = vunpack.c.h.b16 %v3707
      %v3793 = vunpack.c.l.b16 %v3708
      %v3794 = vunpack.c.h.b16 %v3708
      %v3795 = vunpack.c.l.b16 %v3709
      %v3796 = vunpack.c.h.b16 %v3709
      %v3797 = vunpack.c.l.b16 %v3710
      %v3798 = vunpack.c.h.b16 %v3710
      %v3799 = vunpack.c.l.b16 %v3711
      %v3800 = vunpack.c.h.b16 %v3711
      %v3801 = vunpack.c.l.b16 %v3712
      %v3802 = vunpack.c.h.b16 %v3712
      %v3803 = vunpack.c.l.b16 %v3713
      %v3804 = vunpack.c.h.b16 %v3713
      %v3805 = vunpack.c.l.b16 %v3714
      %v3806 = vunpack.c.h.b16 %v3714
      %v3807 = vunpack.c.l.b16 %v3715
      %v3808 = vunpack.c.h.b16 %v3715
      %v3809 = vunpack.c.l.b16 %v3716
      %v3810 = vunpack.c.h.b16 %v3716
      %v3811 = vunpack.c.l.b16 %v3717
      %v3812 = vunpack.c.h.b16 %v3717
      %v3813 = vunpack.c.l.b16 %v3718
      %v3814 = vunpack.c.h.b16 %v3718
      %v3815 = vpack.c.b16 %v3755, %v3751
      %v3816 = vpack.c.b16 %v3756, %v3752
      %v3817 = vpack.c.b16 %v3757, %v3753
      %v3818 = vpack.c.b16 %v3758, %v3754
      %v3819 = vpack.c.b16 %v3763, %v3759
      %v3820 = vpack.c.b16 %v3764, %v3760
      %v3821 = vpack.c.b16 %v3765, %v3761
      %v3822 = vpack.c.b16 %v3766, %v3762
      %v3823 = vpack.c.b16 %v3771, %v3767
      %v3824 = vpack.c.b16 %v3772, %v3768
      %v3825 = vpack.c.b16 %v3773, %v3769
      %v3826 = vpack.c.b16 %v3774, %v3770
      %v3827 = vpack.c.b16 %v3779, %v3775
      %v3828 = vpack.c.b16 %v3780, %v3776
      %v3829 = vpack.c.b16 %v3781, %v3777
      %v3830 = vpack.c.b16 %v3782, %v3778
      %v3831 = vpack.c.b16 %v3787, %v3783
      %v3832 = vpack.c.b16 %v3788, %v3784
      %v3833 = vpack.c.b16 %v3789, %v3785
      %v3834 = vpack.c.b16 %v3790, %v3786
      %v3835 = vpack.c.b16 %v3795, %v3791
      %v3836 = vpack.c.b16 %v3796, %v3792
      %v3837 = vpack.c.b16 %v3797, %v3793
      %v3838 = vpack.c.b16 %v3798, %v3794
      %v3839 = vpack.c.b16 %v3803, %v3799
      %v3840 = vpack.c.b16 %v3804, %v3800
      %v3841 = vpack.c.b16 %v3805, %v3801
      %v3842 = vpack.c.b16 %v3806, %v3802
      %v3843 = vpack.c.b16 %v3811, %v3807
      %v3844 = vpack.c.b16 %v3812, %v3808
      %v3845 = vpack.c.b16 %v3813, %v3809
      %v3846 = vpack.c.b16 %v3814, %v3810
      %3879 = vmatprep.subr.bf16.mxu0 %v3816
      %3880 = vmatpush1.bf16.msra.mxu0 %v3815
      %3881 = vmatprep.subr.bf16.mxu0 %v3820
      %3882 = vmatpush1.bf16.msra.mxu0 %v3819
      %3883 = vmatprep.subr.bf16.mxu0 %v3824
      %3884 = vmatpush1.bf16.msra.mxu0 %v3823
      %3885 = vmatprep.subr.bf16.mxu0 %v3828
      %3886 = vmatpush1.bf16.msra.mxu0 %v3827
      %3887 = vmatprep.subr.bf16.mxu0 %v3832
      %3888 = vmatpush1.bf16.msra.mxu0 %v3831
      %3889 = vmatprep.subr.bf16.mxu0 %v3836
      %3890 = vmatpush1.bf16.msra.mxu0 %v3835
      %3891 = vmatprep.subr.bf16.mxu0 %v3840
      %3892 = vmatpush1.bf16.msra.mxu0 %v3839
      %3893 = vmatprep.subr.bf16.mxu0 %v3844
      %3894 = vmatpush1.bf16.msra.mxu0 %v3843
      %3895 = vmatprep.subr.bf16.mxu0 0
      %3896 = vmatpush1.bf16.msra.mxu0 0
      %3897 = vmatprep.subr.bf16.mxu0 0
      %3898 = vmatpush1.bf16.msra.mxu0 0
      %3899 = vmatprep.subr.bf16.mxu0 0
      %3900 = vmatpush1.bf16.msra.mxu0 0
      %3901 = vmatprep.subr.bf16.mxu0 0
      %3902 = vmatpush1.bf16.msra.mxu0 0
      %3903 = vmatprep.subr.bf16.mxu0 0
      %3904 = vmatpush1.bf16.msra.mxu0 0
      %3905 = vmatprep.subr.bf16.mxu0 0
      %3906 = vmatpush1.bf16.msra.mxu0 0
      %3907 = vmatprep.subr.bf16.mxu0 0
      %3908 = vmatpush1.bf16.msra.mxu0 0
      %3909 = vmatprep.subr.bf16.mxu0 0
      %3910 = vmatpush1.bf16.msra.mxu0 0
      %3911 = vmatprep.mubr.bf16.mxu0 0
      %3912 = vmatmul.mubr.bf16.gmra.mrb[0].mxu0 %v3686
      %v3913 = vpop.f32.mrb[0].mxu0
      %v3914 = vadd.f32 0.0, %v3913
      %v3915 = vpop.f32.mrb[0].mxu0
      %v3916 = vadd.f32 0.0, %v3915
      %v3917 = vpop.f32.mrb[0].mxu0
      %v3918 = vpop.f32.mrb[0].mxu0
      %3919 = vdwg.mxu0
      %3920 = vmatprep.subr.bf16.mxu0 %v3818
      %3921 = vmatpush1.bf16.msra.mxu0 %v3817
      %3922 = vmatprep.subr.bf16.mxu0 %v3822
      %3923 = vmatpush1.bf16.msra.mxu0 %v3821
      %3924 = vmatprep.subr.bf16.mxu0 %v3826
      %3925 = vmatpush1.bf16.msra.mxu0 %v3825
      %3926 = vmatprep.subr.bf16.mxu0 %v3830
      %3927 = vmatpush1.bf16.msra.mxu0 %v3829
      %3928 = vmatprep.subr.bf16.mxu0 %v3834
      %3929 = vmatpush1.bf16.msra.mxu0 %v3833
      %3930 = vmatprep.subr.bf16.mxu0 %v3838
      %3931 = vmatpush1.bf16.msra.mxu0 %v3837
      %3932 = vmatprep.subr.bf16.mxu0 %v3842
      %3933 = vmatpush1.bf16.msra.mxu0 %v3841
      %3934 = vmatprep.subr.bf16.mxu0 %v3846
      %3935 = vmatpush1.bf16.msra.mxu0 %v3845
      %3936 = vmatprep.subr.bf16.mxu0 0
      %3937 = vmatpush1.bf16.msra.mxu0 0
      %3938 = vmatprep.subr.bf16.mxu0 0
      %3939 = vmatpush1.bf16.msra.mxu0 0
      %3940 = vmatprep.subr.bf16.mxu0 0
      %3941 = vmatpush1.bf16.msra.mxu0 0
      %3942 = vmatprep.subr.bf16.mxu0 0
      %3943 = vmatpush1.bf16.msra.mxu0 0
      %3944 = vmatprep.subr.bf16.mxu0 0
      %3945 = vmatpush1.bf16.msra.mxu0 0
      %3946 = vmatprep.subr.bf16.mxu0 0
      %3947 = vmatpush1.bf16.msra.mxu0 0
      %3948 = vmatprep.subr.bf16.mxu0 0
      %3949 = vmatpush1.bf16.msra.mxu0 0
      %3950 = vmatprep.subr.bf16.mxu0 0
      %3951 = vmatpush1.bf16.msra.mxu0 0
      %3952 = vmatprep.mubr.bf16.mxu0 0
      %3953 = vmatmul.mubr.bf16.gmra.mrb[0].mxu0 %v3686
      %v3954 = vpop.f32.mrb[0].mxu0
      %v3955 = vadd.f32 0.0, %v3954
      %v3956 = vpop.f32.mrb[0].mxu0
      %v3957 = vadd.f32 0.0, %v3956
      %v3958 = vpop.f32.mrb[0].mxu0
      %v3959 = vpop.f32.mrb[0].mxu0
      %3960 = vdwg.mxu0
      %v3961 = vadd.f32 %v3681, %v3914
      %v3962 = vadd.f32 %v3682, %v3916
      %v3963 = vadd.f32 %v3683, %v3955
      %v3964 = vadd.f32 %v3684, %v3957
      %v3965 = vld [vmem:[#allocation6] sm:$0xff]
      %v3966 = vxor.u32 %v3961, 2147483648
      %v3967 = vmul.f32 %v3966, 1.442695
      %v3968 = vpow.pop %v3967
      %v3969 = vadd.f32 %v3968, 1.0
      %v3970 = vrcp.pop %v3969
      %v3971 = vmul.f32 1.0, %v3970
      %v3972 = vxor.u32 %v3962, 2147483648
      %v3973 = vmul.f32 %v3972, 1.442695
      %v3974 = vpow.pop %v3973
      %v3975 = vadd.f32 %v3974, 1.0
      %v3976 = vrcp.pop %v3975
      %v3977 = vmul.f32 1.0, %v3976
      %v3978 = vtanh.pop %v3963
      %v3979 = vxor.u32 %v3964, 2147483648
      %v3980 = vmul.f32 %v3979, 1.442695
      %v3981 = vpow.pop %v3980
      %v3982 = vadd.f32 %v3981, 1.0
      %v3983 = vrcp.pop %v3982
      %v3984 = vmul.f32 1.0, %v3983
      %v3985 = vmul.f32 %v3977, %v3965
      %v3986 = vmul.f32 %v3971, %v3978
      %v3987 = vadd.f32 %v3985, %v3986
      %v3988 = vtanh.pop %v3987
      %v3989 = vmul.f32 %v3984, %v3988
      %vm3990 = vcmp.gt.f32.partialorder %v3675, 0.0
      %v3991 = vsel %vm3990, 1, 0
      %3992 = vset.pattern.permute.xlu0 0
      %3993 = vperm.xlu0 %3992, %v3991
      %v3994 = vpop.permute.xlu0 %3993
      %vm3995 = vcmp.eq.s32.totalorder %v3994, 1
      %v3996 = vsel %vm3995, %v3987, %v3965
      %v3997 = vsel %vm3995, %v3989, %v3685
      %3998 = vst [vmem:[#allocation5] sm:$0xff] %v3997
      %3999 = vst [vmem:[#allocation6] sm:$0xff] %v3996
      %v4000 = vsel %vm3995, %v3989, 0.0
      %v4001 = vpack.c.bf16 %v4000, %v4000
      %s4002 = smul.u32 %s3339, 2
      %s4003 = smul.addr %s4002, 4
      %s4004 = scalar_lea.vmem [#allocation24], %s4003
      %4005 = vst [vmem:[%s4004 + $0x4] sm:$0xf] %v4001
    $region86: #{sse_forward.6} parent=1 // loop_footer
      %s3338 = sadd.s32 1, %s3334
    $region87: #{sse_forward.6} parent=1 // loop_footer_branch
      %3333 = sbr.rel target = $region83
    $region88: #{sse_forward.6} parent=1 // loop_exit
      _
    // Predicated region
    $region89: #{sse_forward.6} parent=1 // pred_check
      _
    $region90: #{sse_forward.6} parent=1 // pred_check_branch
      %4007 = sbr.rel (0) target = $region92
    $region91: #{sse_forward.6} parent=1 // pred_region
      %s4009 = ssub.s32 1024, 1024
      %4010 = vsyncadd [#allocation9], %s4009
      %s4011 = sshll.u32 [#allocation24], 4
      %s4012 = int_to_ptr.vmem [resolvable:$true] %s4011
      %4017 = dma.vmem_to_hbm [thread:$0]  %s4012, 1024, %s10, [#allocation9], 128, 128, 8
    $region92: #{sse_forward.6} parent=1 // pred_fallthru
      _
    // Predicated region
    $region93: #{sse_forward.6} parent=1 // pred_check
      _
    $region94: #{sse_forward.6} parent=1 // pred_check_branch
      %4019 = sbr.rel (0) target = $region96
    $region95: #{sse_forward.6} parent=1 // pred_region
      %4020 = dma.done [#allocation9], 1024
    $region96: #{sse_forward.6} parent=1 // pred_fallthru
      _
    %4021 = vsyncpa [#allocation8], 1
    %4022 = vsyncpa [#allocation11], 1
    %4023 = vsyncpa [#allocation14], 1
    %4024 = vsyncpa [#allocation17], 1
    %4025 = vsyncpa [#allocation20], 1
    %4026 = vsyncpa [#allocation23], 1
    %4027 = vsyncpa [#allocation9], 1

</llo_original>
